<compile_context>
chip_gen: v5e
topology: v5e:2x2
jax: 0.10.0
libtpu: 0.0.40
codegen_flags: <defaults>
</compile_context>

<pallas_src>
from functools import partial

import numpy as np
import jax
import jax.numpy as jnp
from jax.experimental import pallas as pl
from jax.experimental.pallas import tpu as pltpu


# ----------------------------------------------------------------------------
# Static phase / tap bookkeeping for ConvTranspose2d(kernel=4, stride=2, pad=1).
# Per spatial axis:  out[2m + p] = sum_{d in S(p)} x[m + d] * W[k],  k = p + 1 - 2d,
#                    S(0) = (-1, 0),  S(1) = (0, 1)
# ----------------------------------------------------------------------------
PHASES = [(py, px) for py in (0, 1) for px in (0, 1)]              # phase id = py*2+px
TAP_OFFSETS = [(dy, dx) for dy in (-1, 0, 1) for dx in (-1, 0, 1)]  # union of all taps


def _parity_offsets(p):
    return (-1, 0) if p == 0 else (0, 1)


def _kernel_index(p, d):
    return p + 1 - 2 * d


def _phase_tap_list(py, px):
    return [(dy, dx) for dy in _parity_offsets(py) for dx in _parity_offsets(px)]


PHASE_TAP_IDS = [[TAP_OFFSETS.index(t) for t in _phase_tap_list(py, px)]
                 for (py, px) in PHASES]


# ----------------------------------------------------------------------------
# Host-side constant matrices (shift+mask, phase->raster interleave)
# ----------------------------------------------------------------------------
def _shift_matrix(h, w, dy, dx):
    """S[r_target, r_source] = 1  iff  source = (m+dy, n+dx) is a valid pixel."""
    r = h * w
    s = np.zeros((r, r), np.float32)
    for m in range(h):
        for n in range(w):
            ms, ns = m + dy, n + dx
            if 0 <= ms < h and 0 <= ns < w:
                s[m * w + n, ms * w + ns] = 1.0
    return s


def _interleave_matrix(hm, wm):
    """P[raster_row, stacked_row]: stacked (phase, m, n) -> raster (2m+py)*2wm + 2n+px."""
    r = 4 * hm * wm
    p = np.zeros((r, r), np.float32)
    for pid, (py, px) in enumerate(PHASES):
        for m in range(hm):
            for n in range(wm):
                tgt = (2 * m + py) * (2 * wm) + (2 * n + px)
                src = pid * (hm * wm) + m * wm + n
                p[tgt, src] = 1.0
    return p


# ----------------------------------------------------------------------------
# Weight preparation (done ONCE at init; kernel sees matmul-ready bf16 matrices)
# ----------------------------------------------------------------------------
def _prep_conv_weights(w_t, b_t, cout_pad):
    """w_t: (Cin, Cout, 4, 4) PyTorch ConvTranspose2d layout, b_t: (Cout,)."""
    cin, cout = w_t.shape[0], w_t.shape[1]
    blocks = []
    for (py, px) in PHASES:
        mats = []
        for (dy, dx) in _phase_tap_list(py, px):
            ky, kx = _kernel_index(py, dy), _kernel_index(px, dx)
            mats.append(w_t[:, :, ky, kx])                      # (Cin, Cout)
        blk = jnp.concatenate(mats, axis=0)                     # (4*Cin, Cout)
        blocks.append(jnp.pad(blk, ((0, 0), (0, cout_pad - cout))))
    w_k = jnp.stack(blocks, axis=0).astype(jnp.bfloat16)        # (4, 4*Cin, cout_pad)
    b_k = jnp.pad(b_t, (0, cout_pad - cout)).reshape(1, cout_pad).astype(jnp.float32)
    return w_k, b_k


def prepare_kernel_params(tp, latent_dim, c_out):
    c0, c1 = 128, 256
    npix = 16  # 4x4 spatial positions after the FC
    # FC weight (torch Linear: (c0*npix, latent), feature f = c*16 + p) -> columns (p, c)
    wfc = tp["fc_w"].reshape(c0, npix, latent_dim).transpose(2, 1, 0)   # (k, p, c)
    wfc = wfc.reshape(latent_dim, npix * c0)
    wfc = jnp.pad(wfc, ((0, 128 - latent_dim), (0, 0))).astype(jnp.bfloat16)
    bfc = tp["fc_b"].reshape(c0, npix).T.reshape(1, npix * c0).astype(jnp.float32)

    w1, b1 = _prep_conv_weights(tp["w1"], tp["b1"], cout_pad=c1)    # (4, 512, 256)
    w2, b2 = _prep_conv_weights(tp["w2"], tp["b2"], cout_pad=128)   # (4, 1024, 128)

    s1 = jnp.asarray(
        np.stack([_shift_matrix(4, 4, dy, dx) for dy, dx in TAP_OFFSETS]),
        jnp.bfloat16)                                               # (9, 16, 16)
    p1 = _interleave_matrix(4, 4)                                   # (64, 64)
    s2p = jnp.asarray(
        np.stack([_shift_matrix(8, 8, dy, dx) @ p1 for dy, dx in TAP_OFFSETS]),
        jnp.bfloat16)                                               # (9, 64, 64)
    return dict(wfc=wfc, bfc=bfc, s1=s1, w1=w1, b1=b1, s2p=s2p, w2=w2, b2=b2)


def init_params(key, latent_dim, target_shape, filters=(128, 256)):
    c_out, H, W = target_shape
    assert (H, W) == (16, 16) and filters == (128, 256)
    assert latent_dim <= 128 and c_out <= 128
    ks = jax.random.split(key, 6)
    scale = 0.05
    tp = {
        "fc_w": scale * jax.random.normal(ks[0], (filters[0] * 16, latent_dim), jnp.float32),
        "fc_b": scale * jax.random.normal(ks[1], (filters[0] * 16,), jnp.float32),
        "w1": scale * jax.random.normal(ks[2], (filters[0], filters[1], 4, 4), jnp.float32),
        "b1": scale * jax.random.normal(ks[3], (filters[1],), jnp.float32),
        "w2": scale * jax.random.normal(ks[4], (filters[1], c_out, 4, 4), jnp.float32),
        "b2": scale * jax.random.normal(ks[5], (c_out,), jnp.float32),
    }
    return {"torch": tp, "kernel": prepare_kernel_params(tp, latent_dim, c_out)}


# ----------------------------------------------------------------------------
# Fused generator kernel: FC + ConvT1 + ConvT2 for one batch element, all in VMEM.
# ----------------------------------------------------------------------------
def _generator_kernel(z_ref, wfc_ref, bfc_ref, s1_ref, w1_ref, b1_ref,
                      s2p_ref, w2_ref, b2_ref, o_ref, x1_scr):
    f32, bf16 = jnp.float32, jnp.bfloat16

    # ---- FC: (1,128) @ (128,2048) + bias + ReLU ----------------------------
    h = jnp.dot(z_ref[0], wfc_ref[...], preferred_element_type=f32)   # (1, 2048)
    h = jnp.maximum(h + bfc_ref[...], 0.0)

    # scatter the 16 spatial positions (p = y*4 + x) into rows -> X1 (16, 128)
    for p in range(16):
        x1_scr[p:p + 1, :] = h[:, p * 128:(p + 1) * 128]
    x1 = x1_scr[...].astype(bf16)                                     # (16, 128)

    # ---- layer 1: ConvT 128->256, 4x4 -> 8x8 (phase decomposition) ---------
    sh1 = [jnp.dot(s1_ref[i], x1, preferred_element_type=f32).astype(bf16)
           for i in range(9)]                                         # 9 x (16, 128)
    outs1 = []
    for ph in range(4):
        xc = jnp.concatenate([sh1[t] for t in PHASE_TAP_IDS[ph]], axis=-1)   # (16, 512)
        y = jnp.dot(xc, w1_ref[ph], preferred_element_type=f32)              # (16, 256)
        y = jnp.maximum(y + b1_ref[...], 0.0).astype(bf16)
        outs1.append(y)
    x2_stack = jnp.concatenate(outs1, axis=0)                         # (64, 256)

    # ---- layer 2: ConvT 256->C(pad 128), 8x8 -> 16x16 ----------------------
    # s2p = (shift + boundary mask) composed with the phase->raster interleave
    sh2 = [jnp.dot(s2p_ref[i], x2_stack, preferred_element_type=f32).astype(bf16)
           for i in range(9)]                                         # 9 x (64, 256)
    for ph in range(4):
        xc = jnp.concatenate([sh2[t] for t in PHASE_TAP_IDS[ph]], axis=-1)   # (64, 1024)
        y = jnp.dot(xc, w2_ref[ph], preferred_element_type=f32)              # (64, 128)
        o_ref[0, ph] = jnp.tanh(y + b2_ref[...])                      # lane-dense store


@partial(jax.jit, static_argnames=("c_out",))
def improved_gan_forward(z, kparams, *, c_out):
    """z: (B, latent) f32 -> generated images (B, c_out, 16, 16), NCHW like PyTorch."""
    B, latent = z.shape
    z_pad = jnp.zeros((B, 1, 128), jnp.bfloat16)
    z_pad = z_pad.at[:, 0, :latent].set(z.astype(jnp.bfloat16))

    out = pl.pallas_call(
        _generator_kernel,
        out_shape=jax.ShapeDtypeStruct((B, 4, 64, 128), jnp.float32),
        grid_spec=pltpu.PrefetchScalarGridSpec(
            num_scalar_prefetch=0,
            grid=(B,),
            in_specs=[
                pl.BlockSpec((1, 1, 128), lambda b: (b, 0, 0)),        # z (padded)
                pl.BlockSpec((128, 2048), lambda b: (0, 0)),           # wfc
                pl.BlockSpec((1, 2048), lambda b: (0, 0)),             # bfc
                pl.BlockSpec((9, 16, 16), lambda b: (0, 0, 0)),        # s1 shifts
                pl.BlockSpec((4, 512, 256), lambda b: (0, 0, 0)),      # w1 (per phase)
                pl.BlockSpec((1, 256), lambda b: (0, 0)),              # b1
                pl.BlockSpec((9, 64, 64), lambda b: (0, 0, 0)),        # s2p shifts
                pl.BlockSpec((4, 1024, 128), lambda b: (0, 0, 0)),     # w2 (per phase)
                pl.BlockSpec((1, 128), lambda b: (0, 0)),              # b2
            ],
            out_specs=pl.BlockSpec((1, 4, 64, 128), lambda b: (b, 0, 0, 0)),
            scratch_shapes=[pltpu.VMEM((16, 128), jnp.float32)],
        ),
        compiler_params=pltpu.CompilerParams(
            dimension_semantics=("parallel",)),
    )(z_pad, kparams["wfc"], kparams["bfc"], kparams["s1"], kparams["w1"],
      kparams["b1"], kparams["s2p"], kparams["w2"], kparams["b2"])

    # decode (boundary only): (B, phase=qy*2+qx, u*8+v, c_pad) -> NCHW (B, c_out, 16, 16)
    o = out[..., :c_out].reshape(B, 2, 2, 8, 8, c_out)      # (B, qy, qx, u, v, c)
    o = o.transpose(0, 5, 3, 1, 4, 2).reshape(B, c_out, 16, 16)
    return o


# ----------------------------------------------------------------------------
# Plain-JAX reference (PyTorch semantics) used for a numerical self-check.
# ----------------------------------------------------------------------------
def _conv_transpose_ref(x, w, b):
    """PyTorch ConvTranspose2d(k=4, s=2, p=1). x NCHW, w (Cin, Cout, 4, 4)."""
    w_oihw = jnp.transpose(w[:, :, ::-1, ::-1], (1, 0, 2, 3))
    y = jax.lax.conv_general_dilated(
        x, w_oihw, window_strides=(1, 1), padding=((2, 2), (2, 2)),
        lhs_dilation=(2, 2), dimension_numbers=("NCHW", "OIHW", "NCHW"))
    return y + b.reshape(1, -1, 1, 1)


def reference_forward(z, tp):
    bf = lambda a: a.astype(jnp.bfloat16).astype(jnp.float32)   # match kernel rounding
    B = z.shape[0]
    h = jnp.maximum(bf(z) @ bf(tp["fc_w"]).T + tp["fc_b"], 0.0)
    x = h.reshape(B, 128, 4, 4)
    x = jnp.maximum(_conv_transpose_ref(x, bf(tp["w1"]), tp["b1"]), 0.0)
    x = _conv_transpose_ref(x, bf(tp["w2"]), tp["b2"])
    return jnp.tanh(x)


if __name__ == "__main__":
    key = jax.random.PRNGKey(0)
    kz, kp = jax.random.split(key)

    latent_dim = 32
    target_shape = (1, 16, 16)   # (C, H, W)
    batch = 2

    params = init_params(kp, latent_dim, target_shape)
    z = jax.random.normal(kz, (batch, latent_dim), jnp.float32)

    imgs = improved_gan_forward(z, params["kernel"], c_out=target_shape[0])
    imgs = jax.block_until_ready(imgs)

    assert imgs.shape == (batch,) + target_shape, imgs.shape
    assert bool(jnp.all(jnp.isfinite(imgs)))

    ref = reference_forward(z, params["torch"])
    np.testing.assert_allclose(np.asarray(imgs), np.asarray(ref), rtol=3e-2, atol=3e-2)

    print("KERNEL_OK")
</pallas_src>

<mosaic_0001>
module attributes {stable_mosaic.version = 11 : i64} {
  func.func @_generator_kernel(%arg0: i32, %arg1: memref<1x1x128xbf16, #tpu.memory_space<vmem>>, %arg2: memref<128x2048xbf16, #tpu.memory_space<vmem>>, %arg3: memref<1x2048xf32, #tpu.memory_space<vmem>>, %arg4: memref<9x16x16xbf16, #tpu.memory_space<vmem>>, %arg5: memref<4x512x256xbf16, #tpu.memory_space<vmem>>, %arg6: memref<1x256xf32, #tpu.memory_space<vmem>>, %arg7: memref<9x64x64xbf16, #tpu.memory_space<vmem>>, %arg8: memref<4x1024x128xbf16, #tpu.memory_space<vmem>>, %arg9: memref<1x128xf32, #tpu.memory_space<vmem>>, %arg10: memref<1x4x64x128xf32, #tpu.memory_space<vmem>>, %arg11: memref<16x128xf32, #tpu.memory_space<vmem>>) attributes {dimension_semantics = [#tpu.dimension_semantics<parallel>], iteration_bounds = array<i64: 2>, scalar_prefetch = 0 : i64, scratch_operands = 1 : i64, tpu.core_type = #tpu.core_type<tc>, window_params = [{transform_indices = @transform_0, window_bounds = array<i64: 1, 1, 128>}, {pipeline_mode = #tpu.pipeline_mode<synchronous>, transform_indices = @transform_1, window_bounds = array<i64: 128, 2048>}, {pipeline_mode = #tpu.pipeline_mode<synchronous>, transform_indices = @transform_2, window_bounds = array<i64: 1, 2048>}, {pipeline_mode = #tpu.pipeline_mode<synchronous>, transform_indices = @transform_3, window_bounds = array<i64: 9, 16, 16>}, {pipeline_mode = #tpu.pipeline_mode<synchronous>, transform_indices = @transform_4, window_bounds = array<i64: 4, 512, 256>}, {pipeline_mode = #tpu.pipeline_mode<synchronous>, transform_indices = @transform_5, window_bounds = array<i64: 1, 256>}, {pipeline_mode = #tpu.pipeline_mode<synchronous>, transform_indices = @transform_6, window_bounds = array<i64: 9, 64, 64>}, {pipeline_mode = #tpu.pipeline_mode<synchronous>, transform_indices = @transform_7, window_bounds = array<i64: 4, 1024, 128>}, {pipeline_mode = #tpu.pipeline_mode<synchronous>, transform_indices = @transform_8, window_bounds = array<i64: 1, 128>}, {transform_indices = @transform_9, window_bounds = array<i64: 1, 4, 64, 128>}]} {
    %c0 = arith.constant 0 : index
    %c0_0 = arith.constant 0 : index
    %c0_1 = arith.constant 0 : index
    %0 = vector.load %arg1[%c0, %c0_0, %c0_1] : memref<1x1x128xbf16, #tpu.memory_space<vmem>>, vector<1x1x128xbf16>
    %1 = vector.shape_cast %0 : vector<1x1x128xbf16> to vector<1x128xbf16>
    %c0_2 = arith.constant 0 : index
    %c0_3 = arith.constant 0 : index
    %2 = vector.load %arg2[%c0_2, %c0_3] : memref<128x2048xbf16, #tpu.memory_space<vmem>>, vector<128x2048xbf16>
    %cst = arith.constant dense<0.000000e+00> : vector<1x2048xf32>
    %3 = tpu.matmul %1, %2, %cst {dimension_numbers = #tpu.dot_dimension_numbers<[1], [0], [0], [1], [0, 0, 1, 1], [], []>} : vector<1x128xbf16>, vector<128x2048xbf16>, vector<1x2048xf32> -> vector<1x2048xf32>
    %c0_4 = arith.constant 0 : index
    %c0_5 = arith.constant 0 : index
    %4 = vector.load %arg3[%c0_4, %c0_5] : memref<1x2048xf32, #tpu.memory_space<vmem>>, vector<1x2048xf32>
    %5 = arith.addf %3, %4 : vector<1x2048xf32>
    %cst_6 = arith.constant 0.000000e+00 : f32
    %6 = vector.broadcast %cst_6 : f32 to vector<1x2048xf32>
    %7 = arith.maximumf %5, %6 : vector<1x2048xf32>
    %8 = vector.extract_strided_slice %7 {offsets = [0, 0], sizes = [1, 128], strides = [1, 1]} : vector<1x2048xf32> to vector<1x128xf32>
    %c0_7 = arith.constant 0 : index
    %c0_8 = arith.constant 0 : index
    %9 = vector.load %arg11[%c0_7, %c0_8] : memref<16x128xf32, #tpu.memory_space<vmem>>, vector<1x128xf32>
    tpu.vector_store %arg11[%c0_7, %c0_8], %8 {strides = array<i32>} : memref<16x128xf32, #tpu.memory_space<vmem>>, vector<1x128xf32>,
    %10 = vector.extract_strided_slice %7 {offsets = [0, 128], sizes = [1, 128], strides = [1, 1]} : vector<1x2048xf32> to vector<1x128xf32>
    %c1 = arith.constant 1 : index
    %c0_9 = arith.constant 0 : index
    %11 = vector.load %arg11[%c1, %c0_9] : memref<16x128xf32, #tpu.memory_space<vmem>>, vector<1x128xf32>
    tpu.vector_store %arg11[%c1, %c0_9], %10 {strides = array<i32>} : memref<16x128xf32, #tpu.memory_space<vmem>>, vector<1x128xf32>,
    %12 = vector.extract_strided_slice %7 {offsets = [0, 256], sizes = [1, 128], strides = [1, 1]} : vector<1x2048xf32> to vector<1x128xf32>
    %c2 = arith.constant 2 : index
    %c0_10 = arith.constant 0 : index
    %13 = vector.load %arg11[%c2, %c0_10] : memref<16x128xf32, #tpu.memory_space<vmem>>, vector<1x128xf32>
    tpu.vector_store %arg11[%c2, %c0_10], %12 {strides = array<i32>} : memref<16x128xf32, #tpu.memory_space<vmem>>, vector<1x128xf32>,
    %14 = vector.extract_strided_slice %7 {offsets = [0, 384], sizes = [1, 128], strides = [1, 1]} : vector<1x2048xf32> to vector<1x128xf32>
    %c3 = arith.constant 3 : index
    %c0_11 = arith.constant 0 : index
    %15 = vector.load %arg11[%c3, %c0_11] : memref<16x128xf32, #tpu.memory_space<vmem>>, vector<1x128xf32>
    tpu.vector_store %arg11[%c3, %c0_11], %14 {strides = array<i32>} : memref<16x128xf32, #tpu.memory_space<vmem>>, vector<1x128xf32>,
    %16 = vector.extract_strided_slice %7 {offsets = [0, 512], sizes = [1, 128], strides = [1, 1]} : vector<1x2048xf32> to vector<1x128xf32>
    %c4 = arith.constant 4 : index
    %c0_12 = arith.constant 0 : index
    %17 = vector.load %arg11[%c4, %c0_12] : memref<16x128xf32, #tpu.memory_space<vmem>>, vector<1x128xf32>
    tpu.vector_store %arg11[%c4, %c0_12], %16 {strides = array<i32>} : memref<16x128xf32, #tpu.memory_space<vmem>>, vector<1x128xf32>,
    %18 = vector.extract_strided_slice %7 {offsets = [0, 640], sizes = [1, 128], strides = [1, 1]} : vector<1x2048xf32> to vector<1x128xf32>
    %c5 = arith.constant 5 : index
    %c0_13 = arith.constant 0 : index
    %19 = vector.load %arg11[%c5, %c0_13] : memref<16x128xf32, #tpu.memory_space<vmem>>, vector<1x128xf32>
    tpu.vector_store %arg11[%c5, %c0_13], %18 {strides = array<i32>} : memref<16x128xf32, #tpu.memory_space<vmem>>, vector<1x128xf32>,
    %20 = vector.extract_strided_slice %7 {offsets = [0, 768], sizes = [1, 128], strides = [1, 1]} : vector<1x2048xf32> to vector<1x128xf32>
    %c6 = arith.constant 6 : index
    %c0_14 = arith.constant 0 : index
    %21 = vector.load %arg11[%c6, %c0_14] : memref<16x128xf32, #tpu.memory_space<vmem>>, vector<1x128xf32>
    tpu.vector_store %arg11[%c6, %c0_14], %20 {strides = array<i32>} : memref<16x128xf32, #tpu.memory_space<vmem>>, vector<1x128xf32>,
    %22 = vector.extract_strided_slice %7 {offsets = [0, 896], sizes = [1, 128], strides = [1, 1]} : vector<1x2048xf32> to vector<1x128xf32>
    %c7 = arith.constant 7 : index
    %c0_15 = arith.constant 0 : index
    %23 = vector.load %arg11[%c7, %c0_15] : memref<16x128xf32, #tpu.memory_space<vmem>>, vector<1x128xf32>
    tpu.vector_store %arg11[%c7, %c0_15], %22 {strides = array<i32>} : memref<16x128xf32, #tpu.memory_space<vmem>>, vector<1x128xf32>,
    %24 = vector.extract_strided_slice %7 {offsets = [0, 1024], sizes = [1, 128], strides = [1, 1]} : vector<1x2048xf32> to vector<1x128xf32>
    %c8 = arith.constant 8 : index
    %c0_16 = arith.constant 0 : index
    %25 = vector.load %arg11[%c8, %c0_16] : memref<16x128xf32, #tpu.memory_space<vmem>>, vector<1x128xf32>
    tpu.vector_store %arg11[%c8, %c0_16], %24 {strides = array<i32>} : memref<16x128xf32, #tpu.memory_space<vmem>>, vector<1x128xf32>,
    %26 = vector.extract_strided_slice %7 {offsets = [0, 1152], sizes = [1, 128], strides = [1, 1]} : vector<1x2048xf32> to vector<1x128xf32>
    %c9 = arith.constant 9 : index
    %c0_17 = arith.constant 0 : index
    %27 = vector.load %arg11[%c9, %c0_17] : memref<16x128xf32, #tpu.memory_space<vmem>>, vector<1x128xf32>
    tpu.vector_store %arg11[%c9, %c0_17], %26 {strides = array<i32>} : memref<16x128xf32, #tpu.memory_space<vmem>>, vector<1x128xf32>,
    %28 = vector.extract_strided_slice %7 {offsets = [0, 1280], sizes = [1, 128], strides = [1, 1]} : vector<1x2048xf32> to vector<1x128xf32>
    %c10 = arith.constant 10 : index
    %c0_18 = arith.constant 0 : index
    %29 = vector.load %arg11[%c10, %c0_18] : memref<16x128xf32, #tpu.memory_space<vmem>>, vector<1x128xf32>
    tpu.vector_store %arg11[%c10, %c0_18], %28 {strides = array<i32>} : memref<16x128xf32, #tpu.memory_space<vmem>>, vector<1x128xf32>,
    %30 = vector.extract_strided_slice %7 {offsets = [0, 1408], sizes = [1, 128], strides = [1, 1]} : vector<1x2048xf32> to vector<1x128xf32>
    %c11 = arith.constant 11 : index
    %c0_19 = arith.constant 0 : index
    %31 = vector.load %arg11[%c11, %c0_19] : memref<16x128xf32, #tpu.memory_space<vmem>>, vector<1x128xf32>
    tpu.vector_store %arg11[%c11, %c0_19], %30 {strides = array<i32>} : memref<16x128xf32, #tpu.memory_space<vmem>>, vector<1x128xf32>,
    %32 = vector.extract_strided_slice %7 {offsets = [0, 1536], sizes = [1, 128], strides = [1, 1]} : vector<1x2048xf32> to vector<1x128xf32>
    %c12 = arith.constant 12 : index
    %c0_20 = arith.constant 0 : index
    %33 = vector.load %arg11[%c12, %c0_20] : memref<16x128xf32, #tpu.memory_space<vmem>>, vector<1x128xf32>
    tpu.vector_store %arg11[%c12, %c0_20], %32 {strides = array<i32>} : memref<16x128xf32, #tpu.memory_space<vmem>>, vector<1x128xf32>,
    %34 = vector.extract_strided_slice %7 {offsets = [0, 1664], sizes = [1, 128], strides = [1, 1]} : vector<1x2048xf32> to vector<1x128xf32>
    %c13 = arith.constant 13 : index
    %c0_21 = arith.constant 0 : index
    %35 = vector.load %arg11[%c13, %c0_21] : memref<16x128xf32, #tpu.memory_space<vmem>>, vector<1x128xf32>
    tpu.vector_store %arg11[%c13, %c0_21], %34 {strides = array<i32>} : memref<16x128xf32, #tpu.memory_space<vmem>>, vector<1x128xf32>,
    %36 = vector.extract_strided_slice %7 {offsets = [0, 1792], sizes = [1, 128], strides = [1, 1]} : vector<1x2048xf32> to vector<1x128xf32>
    %c14 = arith.constant 14 : index
    %c0_22 = arith.constant 0 : index
    %37 = vector.load %arg11[%c14, %c0_22] : memref<16x128xf32, #tpu.memory_space<vmem>>, vector<1x128xf32>
    tpu.vector_store %arg11[%c14, %c0_22], %36 {strides = array<i32>} : memref<16x128xf32, #tpu.memory_space<vmem>>, vector<1x128xf32>,
    %38 = vector.extract_strided_slice %7 {offsets = [0, 1920], sizes = [1, 128], strides = [1, 1]} : vector<1x2048xf32> to vector<1x128xf32>
    %c15 = arith.constant 15 : index
    %c0_23 = arith.constant 0 : index
    %39 = vector.load %arg11[%c15, %c0_23] : memref<16x128xf32, #tpu.memory_space<vmem>>, vector<1x128xf32>
    tpu.vector_store %arg11[%c15, %c0_23], %38 {strides = array<i32>} : memref<16x128xf32, #tpu.memory_space<vmem>>, vector<1x128xf32>,
    %c0_24 = arith.constant 0 : index
    %c0_25 = arith.constant 0 : index
    %40 = vector.load %arg11[%c0_24, %c0_25] : memref<16x128xf32, #tpu.memory_space<vmem>>, vector<16x128xf32>
    %41 = arith.truncf %40 : vector<16x128xf32> to vector<16x128xbf16>
    %c0_26 = arith.constant 0 : index
    %c0_27 = arith.constant 0 : index
    %c0_28 = arith.constant 0 : index
    %42 = vector.load %arg4[%c0_26, %c0_27, %c0_28] : memref<9x16x16xbf16, #tpu.memory_space<vmem>>, vector<1x16x16xbf16>
    %43 = vector.shape_cast %42 : vector<1x16x16xbf16> to vector<16x16xbf16>
    %cst_29 = arith.constant dense<0.000000e+00> : vector<16x128xf32>
    %44 = tpu.matmul %43, %41, %cst_29 {dimension_numbers = #tpu.dot_dimension_numbers<[1], [0], [0], [1], [0, 0, 1, 1], [], []>} : vector<16x16xbf16>, vector<16x128xbf16>, vector<16x128xf32> -> vector<16x128xf32>
    %45 = arith.truncf %44 : vector<16x128xf32> to vector<16x128xbf16>
    %c1_30 = arith.constant 1 : index
    %c0_31 = arith.constant 0 : index
    %c0_32 = arith.constant 0 : index
    %46 = vector.load %arg4[%c1_30, %c0_31, %c0_32] : memref<9x16x16xbf16, #tpu.memory_space<vmem>>, vector<1x16x16xbf16>
    %47 = vector.shape_cast %46 : vector<1x16x16xbf16> to vector<16x16xbf16>
    %cst_33 = arith.constant dense<0.000000e+00> : vector<16x128xf32>
    %48 = tpu.matmul %47, %41, %cst_33 {dimension_numbers = #tpu.dot_dimension_numbers<[1], [0], [0], [1], [0, 0, 1, 1], [], []>} : vector<16x16xbf16>, vector<16x128xbf16>, vector<16x128xf32> -> vector<16x128xf32>
    %49 = arith.truncf %48 : vector<16x128xf32> to vector<16x128xbf16>
    %c2_34 = arith.constant 2 : index
    %c0_35 = arith.constant 0 : index
    %c0_36 = arith.constant 0 : index
    %50 = vector.load %arg4[%c2_34, %c0_35, %c0_36] : memref<9x16x16xbf16, #tpu.memory_space<vmem>>, vector<1x16x16xbf16>
    %51 = vector.shape_cast %50 : vector<1x16x16xbf16> to vector<16x16xbf16>
    %cst_37 = arith.constant dense<0.000000e+00> : vector<16x128xf32>
    %52 = tpu.matmul %51, %41, %cst_37 {dimension_numbers = #tpu.dot_dimension_numbers<[1], [0], [0], [1], [0, 0, 1, 1], [], []>} : vector<16x16xbf16>, vector<16x128xbf16>, vector<16x128xf32> -> vector<16x128xf32>
    %53 = arith.truncf %52 : vector<16x128xf32> to vector<16x128xbf16>
    %c3_38 = arith.constant 3 : index
    %c0_39 = arith.constant 0 : index
    %c0_40 = arith.constant 0 : index
    %54 = vector.load %arg4[%c3_38, %c0_39, %c0_40] : memref<9x16x16xbf16, #tpu.memory_space<vmem>>, vector<1x16x16xbf16>
    %55 = vector.shape_cast %54 : vector<1x16x16xbf16> to vector<16x16xbf16>
    %cst_41 = arith.constant dense<0.000000e+00> : vector<16x128xf32>
    %56 = tpu.matmul %55, %41, %cst_41 {dimension_numbers = #tpu.dot_dimension_numbers<[1], [0], [0], [1], [0, 0, 1, 1], [], []>} : vector<16x16xbf16>, vector<16x128xbf16>, vector<16x128xf32> -> vector<16x128xf32>
    %57 = arith.truncf %56 : vector<16x128xf32> to vector<16x128xbf16>
    %c4_42 = arith.constant 4 : index
    %c0_43 = arith.constant 0 : index
    %c0_44 = arith.constant 0 : index
    %58 = vector.load %arg4[%c4_42, %c0_43, %c0_44] : memref<9x16x16xbf16, #tpu.memory_space<vmem>>, vector<1x16x16xbf16>
    %59 = vector.shape_cast %58 : vector<1x16x16xbf16> to vector<16x16xbf16>
    %cst_45 = arith.constant dense<0.000000e+00> : vector<16x128xf32>
    %60 = tpu.matmul %59, %41, %cst_45 {dimension_numbers = #tpu.dot_dimension_numbers<[1], [0], [0], [1], [0, 0, 1, 1], [], []>} : vector<16x16xbf16>, vector<16x128xbf16>, vector<16x128xf32> -> vector<16x128xf32>
    %61 = arith.truncf %60 : vector<16x128xf32> to vector<16x128xbf16>
    %c5_46 = arith.constant 5 : index
    %c0_47 = arith.constant 0 : index
    %c0_48 = arith.constant 0 : index
    %62 = vector.load %arg4[%c5_46, %c0_47, %c0_48] : memref<9x16x16xbf16, #tpu.memory_space<vmem>>, vector<1x16x16xbf16>
    %63 = vector.shape_cast %62 : vector<1x16x16xbf16> to vector<16x16xbf16>
    %cst_49 = arith.constant dense<0.000000e+00> : vector<16x128xf32>
    %64 = tpu.matmul %63, %41, %cst_49 {dimension_numbers = #tpu.dot_dimension_numbers<[1], [0], [0], [1], [0, 0, 1, 1], [], []>} : vector<16x16xbf16>, vector<16x128xbf16>, vector<16x128xf32> -> vector<16x128xf32>
    %65 = arith.truncf %64 : vector<16x128xf32> to vector<16x128xbf16>
    %c6_50 = arith.constant 6 : index
    %c0_51 = arith.constant 0 : index
    %c0_52 = arith.constant 0 : index
    %66 = vector.load %arg4[%c6_50, %c0_51, %c0_52] : memref<9x16x16xbf16, #tpu.memory_space<vmem>>, vector<1x16x16xbf16>
    %67 = vector.shape_cast %66 : vector<1x16x16xbf16> to vector<16x16xbf16>
    %cst_53 = arith.constant dense<0.000000e+00> : vector<16x128xf32>
    %68 = tpu.matmul %67, %41, %cst_53 {dimension_numbers = #tpu.dot_dimension_numbers<[1], [0], [0], [1], [0, 0, 1, 1], [], []>} : vector<16x16xbf16>, vector<16x128xbf16>, vector<16x128xf32> -> vector<16x128xf32>
    %69 = arith.truncf %68 : vector<16x128xf32> to vector<16x128xbf16>
    %c7_54 = arith.constant 7 : index
    %c0_55 = arith.constant 0 : index
    %c0_56 = arith.constant 0 : index
    %70 = vector.load %arg4[%c7_54, %c0_55, %c0_56] : memref<9x16x16xbf16, #tpu.memory_space<vmem>>, vector<1x16x16xbf16>
    %71 = vector.shape_cast %70 : vector<1x16x16xbf16> to vector<16x16xbf16>
    %cst_57 = arith.constant dense<0.000000e+00> : vector<16x128xf32>
    %72 = tpu.matmul %71, %41, %cst_57 {dimension_numbers = #tpu.dot_dimension_numbers<[1], [0], [0], [1], [0, 0, 1, 1], [], []>} : vector<16x16xbf16>, vector<16x128xbf16>, vector<16x128xf32> -> vector<16x128xf32>
    %73 = arith.truncf %72 : vector<16x128xf32> to vector<16x128xbf16>
    %c8_58 = arith.constant 8 : index
    %c0_59 = arith.constant 0 : index
    %c0_60 = arith.constant 0 : index
    %74 = vector.load %arg4[%c8_58, %c0_59, %c0_60] : memref<9x16x16xbf16, #tpu.memory_space<vmem>>, vector<1x16x16xbf16>
    %75 = vector.shape_cast %74 : vector<1x16x16xbf16> to vector<16x16xbf16>
    %cst_61 = arith.constant dense<0.000000e+00> : vector<16x128xf32>
    %76 = tpu.matmul %75, %41, %cst_61 {dimension_numbers = #tpu.dot_dimension_numbers<[1], [0], [0], [1], [0, 0, 1, 1], [], []>} : vector<16x16xbf16>, vector<16x128xbf16>, vector<16x128xf32> -> vector<16x128xf32>
    %77 = arith.truncf %76 : vector<16x128xf32> to vector<16x128xbf16>
    %78 = tpu.concatenate %45, %49, %57, %61 in 1 : vector<16x128xbf16>, vector<16x128xbf16>, vector<16x128xbf16>, vector<16x128xbf16> -> vector<16x512xbf16>
    %c0_62 = arith.constant 0 : index
    %c0_63 = arith.constant 0 : index
    %c0_64 = arith.constant 0 : index
    %79 = vector.load %arg5[%c0_62, %c0_63, %c0_64] : memref<4x512x256xbf16, #tpu.memory_space<vmem>>, vector<1x512x256xbf16>
    %80 = vector.shape_cast %79 : vector<1x512x256xbf16> to vector<512x256xbf16>
    %cst_65 = arith.constant dense<0.000000e+00> : vector<16x256xf32>
    %81 = tpu.matmul %78, %80, %cst_65 {dimension_numbers = #tpu.dot_dimension_numbers<[1], [0], [0], [1], [0, 0, 1, 1], [], []>} : vector<16x512xbf16>, vector<512x256xbf16>, vector<16x256xf32> -> vector<16x256xf32>
    %c0_66 = arith.constant 0 : index
    %c0_67 = arith.constant 0 : index
    %82 = vector.load %arg6[%c0_66, %c0_67] : memref<1x256xf32, #tpu.memory_space<vmem>>, vector<1x256xf32>
    %83 = vector.broadcast %82 : vector<1x256xf32> to vector<16x256xf32>
    %84 = arith.addf %81, %83 : vector<16x256xf32>
    %cst_68 = arith.constant 0.000000e+00 : f32
    %85 = vector.broadcast %cst_68 : f32 to vector<16x256xf32>
    %86 = arith.maximumf %84, %85 : vector<16x256xf32>
    %87 = arith.truncf %86 : vector<16x256xf32> to vector<16x256xbf16>
    %88 = tpu.concatenate %49, %53, %61, %65 in 1 : vector<16x128xbf16>, vector<16x128xbf16>, vector<16x128xbf16>, vector<16x128xbf16> -> vector<16x512xbf16>
    %c1_69 = arith.constant 1 : index
    %c0_70 = arith.constant 0 : index
    %c0_71 = arith.constant 0 : index
    %89 = vector.load %arg5[%c1_69, %c0_70, %c0_71] : memref<4x512x256xbf16, #tpu.memory_space<vmem>>, vector<1x512x256xbf16>
    %90 = vector.shape_cast %89 : vector<1x512x256xbf16> to vector<512x256xbf16>
    %cst_72 = arith.constant dense<0.000000e+00> : vector<16x256xf32>
    %91 = tpu.matmul %88, %90, %cst_72 {dimension_numbers = #tpu.dot_dimension_numbers<[1], [0], [0], [1], [0, 0, 1, 1], [], []>} : vector<16x512xbf16>, vector<512x256xbf16>, vector<16x256xf32> -> vector<16x256xf32>
    %c0_73 = arith.constant 0 : index
    %c0_74 = arith.constant 0 : index
    %92 = vector.load %arg6[%c0_73, %c0_74] : memref<1x256xf32, #tpu.memory_space<vmem>>, vector<1x256xf32>
    %93 = vector.broadcast %92 : vector<1x256xf32> to vector<16x256xf32>
    %94 = arith.addf %91, %93 : vector<16x256xf32>
    %cst_75 = arith.constant 0.000000e+00 : f32
    %95 = vector.broadcast %cst_75 : f32 to vector<16x256xf32>
    %96 = arith.maximumf %94, %95 : vector<16x256xf32>
    %97 = arith.truncf %96 : vector<16x256xf32> to vector<16x256xbf16>
    %98 = tpu.concatenate %57, %61, %69, %73 in 1 : vector<16x128xbf16>, vector<16x128xbf16>, vector<16x128xbf16>, vector<16x128xbf16> -> vector<16x512xbf16>
    %c2_76 = arith.constant 2 : index
    %c0_77 = arith.constant 0 : index
    %c0_78 = arith.constant 0 : index
    %99 = vector.load %arg5[%c2_76, %c0_77, %c0_78] : memref<4x512x256xbf16, #tpu.memory_space<vmem>>, vector<1x512x256xbf16>
    %100 = vector.shape_cast %99 : vector<1x512x256xbf16> to vector<512x256xbf16>
    %cst_79 = arith.constant dense<0.000000e+00> : vector<16x256xf32>
    %101 = tpu.matmul %98, %100, %cst_79 {dimension_numbers = #tpu.dot_dimension_numbers<[1], [0], [0], [1], [0, 0, 1, 1], [], []>} : vector<16x512xbf16>, vector<512x256xbf16>, vector<16x256xf32> -> vector<16x256xf32>
    %c0_80 = arith.constant 0 : index
    %c0_81 = arith.constant 0 : index
    %102 = vector.load %arg6[%c0_80, %c0_81] : memref<1x256xf32, #tpu.memory_space<vmem>>, vector<1x256xf32>
    %103 = vector.broadcast %102 : vector<1x256xf32> to vector<16x256xf32>
    %104 = arith.addf %101, %103 : vector<16x256xf32>
    %cst_82 = arith.constant 0.000000e+00 : f32
    %105 = vector.broadcast %cst_82 : f32 to vector<16x256xf32>
    %106 = arith.maximumf %104, %105 : vector<16x256xf32>
    %107 = arith.truncf %106 : vector<16x256xf32> to vector<16x256xbf16>
    %108 = tpu.concatenate %61, %65, %73, %77 in 1 : vector<16x128xbf16>, vector<16x128xbf16>, vector<16x128xbf16>, vector<16x128xbf16> -> vector<16x512xbf16>
    %c3_83 = arith.constant 3 : index
    %c0_84 = arith.constant 0 : index
    %c0_85 = arith.constant 0 : index
    %109 = vector.load %arg5[%c3_83, %c0_84, %c0_85] : memref<4x512x256xbf16, #tpu.memory_space<vmem>>, vector<1x512x256xbf16>
    %110 = vector.shape_cast %109 : vector<1x512x256xbf16> to vector<512x256xbf16>
    %cst_86 = arith.constant dense<0.000000e+00> : vector<16x256xf32>
    %111 = tpu.matmul %108, %110, %cst_86 {dimension_numbers = #tpu.dot_dimension_numbers<[1], [0], [0], [1], [0, 0, 1, 1], [], []>} : vector<16x512xbf16>, vector<512x256xbf16>, vector<16x256xf32> -> vector<16x256xf32>
    %c0_87 = arith.constant 0 : index
    %c0_88 = arith.constant 0 : index
    %112 = vector.load %arg6[%c0_87, %c0_88] : memref<1x256xf32, #tpu.memory_space<vmem>>, vector<1x256xf32>
    %113 = vector.broadcast %112 : vector<1x256xf32> to vector<16x256xf32>
    %114 = arith.addf %111, %113 : vector<16x256xf32>
    %cst_89 = arith.constant 0.000000e+00 : f32
    %115 = vector.broadcast %cst_89 : f32 to vector<16x256xf32>
    %116 = arith.maximumf %114, %115 : vector<16x256xf32>
    %117 = arith.truncf %116 : vector<16x256xf32> to vector<16x256xbf16>
    %118 = tpu.concatenate %87, %97, %107, %117 in 0 : vector<16x256xbf16>, vector<16x256xbf16>, vector<16x256xbf16>, vector<16x256xbf16> -> vector<64x256xbf16>
    %c0_90 = arith.constant 0 : index
    %c0_91 = arith.constant 0 : index
    %c0_92 = arith.constant 0 : index
    %119 = vector.load %arg7[%c0_90, %c0_91, %c0_92] : memref<9x64x64xbf16, #tpu.memory_space<vmem>>, vector<1x64x64xbf16>
    %120 = vector.shape_cast %119 : vector<1x64x64xbf16> to vector<64x64xbf16>
    %cst_93 = arith.constant dense<0.000000e+00> : vector<64x256xf32>
    %121 = tpu.matmul %120, %118, %cst_93 {dimension_numbers = #tpu.dot_dimension_numbers<[1], [0], [0], [1], [0, 0, 1, 1], [], []>} : vector<64x64xbf16>, vector<64x256xbf16>, vector<64x256xf32> -> vector<64x256xf32>
    %122 = arith.truncf %121 : vector<64x256xf32> to vector<64x256xbf16>
    %c1_94 = arith.constant 1 : index
    %c0_95 = arith.constant 0 : index
    %c0_96 = arith.constant 0 : index
    %123 = vector.load %arg7[%c1_94, %c0_95, %c0_96] : memref<9x64x64xbf16, #tpu.memory_space<vmem>>, vector<1x64x64xbf16>
    %124 = vector.shape_cast %123 : vector<1x64x64xbf16> to vector<64x64xbf16>
    %cst_97 = arith.constant dense<0.000000e+00> : vector<64x256xf32>
    %125 = tpu.matmul %124, %118, %cst_97 {dimension_numbers = #tpu.dot_dimension_numbers<[1], [0], [0], [1], [0, 0, 1, 1], [], []>} : vector<64x64xbf16>, vector<64x256xbf16>, vector<64x256xf32> -> vector<64x256xf32>
    %126 = arith.truncf %125 : vector<64x256xf32> to vector<64x256xbf16>
    %c2_98 = arith.constant 2 : index
    %c0_99 = arith.constant 0 : index
    %c0_100 = arith.constant 0 : index
    %127 = vector.load %arg7[%c2_98, %c0_99, %c0_100] : memref<9x64x64xbf16, #tpu.memory_space<vmem>>, vector<1x64x64xbf16>
    %128 = vector.shape_cast %127 : vector<1x64x64xbf16> to vector<64x64xbf16>
    %cst_101 = arith.constant dense<0.000000e+00> : vector<64x256xf32>
    %129 = tpu.matmul %128, %118, %cst_101 {dimension_numbers = #tpu.dot_dimension_numbers<[1], [0], [0], [1], [0, 0, 1, 1], [], []>} : vector<64x64xbf16>, vector<64x256xbf16>, vector<64x256xf32> -> vector<64x256xf32>
    %130 = arith.truncf %129 : vector<64x256xf32> to vector<64x256xbf16>
    %c3_102 = arith.constant 3 : index
    %c0_103 = arith.constant 0 : index
    %c0_104 = arith.constant 0 : index
    %131 = vector.load %arg7[%c3_102, %c0_103, %c0_104] : memref<9x64x64xbf16, #tpu.memory_space<vmem>>, vector<1x64x64xbf16>
    %132 = vector.shape_cast %131 : vector<1x64x64xbf16> to vector<64x64xbf16>
    %cst_105 = arith.constant dense<0.000000e+00> : vector<64x256xf32>
    %133 = tpu.matmul %132, %118, %cst_105 {dimension_numbers = #tpu.dot_dimension_numbers<[1], [0], [0], [1], [0, 0, 1, 1], [], []>} : vector<64x64xbf16>, vector<64x256xbf16>, vector<64x256xf32> -> vector<64x256xf32>
    %134 = arith.truncf %133 : vector<64x256xf32> to vector<64x256xbf16>
    %c4_106 = arith.constant 4 : index
    %c0_107 = arith.constant 0 : index
    %c0_108 = arith.constant 0 : index
    %135 = vector.load %arg7[%c4_106, %c0_107, %c0_108] : memref<9x64x64xbf16, #tpu.memory_space<vmem>>, vector<1x64x64xbf16>
    %136 = vector.shape_cast %135 : vector<1x64x64xbf16> to vector<64x64xbf16>
    %cst_109 = arith.constant dense<0.000000e+00> : vector<64x256xf32>
    %137 = tpu.matmul %136, %118, %cst_109 {dimension_numbers = #tpu.dot_dimension_numbers<[1], [0], [0], [1], [0, 0, 1, 1], [], []>} : vector<64x64xbf16>, vector<64x256xbf16>, vector<64x256xf32> -> vector<64x256xf32>
    %138 = arith.truncf %137 : vector<64x256xf32> to vector<64x256xbf16>
    %c5_110 = arith.constant 5 : index
    %c0_111 = arith.constant 0 : index
    %c0_112 = arith.constant 0 : index
    %139 = vector.load %arg7[%c5_110, %c0_111, %c0_112] : memref<9x64x64xbf16, #tpu.memory_space<vmem>>, vector<1x64x64xbf16>
    %140 = vector.shape_cast %139 : vector<1x64x64xbf16> to vector<64x64xbf16>
    %cst_113 = arith.constant dense<0.000000e+00> : vector<64x256xf32>
    %141 = tpu.matmul %140, %118, %cst_113 {dimension_numbers = #tpu.dot_dimension_numbers<[1], [0], [0], [1], [0, 0, 1, 1], [], []>} : vector<64x64xbf16>, vector<64x256xbf16>, vector<64x256xf32> -> vector<64x256xf32>
    %142 = arith.truncf %141 : vector<64x256xf32> to vector<64x256xbf16>
    %c6_114 = arith.constant 6 : index
    %c0_115 = arith.constant 0 : index
    %c0_116 = arith.constant 0 : index
    %143 = vector.load %arg7[%c6_114, %c0_115, %c0_116] : memref<9x64x64xbf16, #tpu.memory_space<vmem>>, vector<1x64x64xbf16>
    %144 = vector.shape_cast %143 : vector<1x64x64xbf16> to vector<64x64xbf16>
    %cst_117 = arith.constant dense<0.000000e+00> : vector<64x256xf32>
    %145 = tpu.matmul %144, %118, %cst_117 {dimension_numbers = #tpu.dot_dimension_numbers<[1], [0], [0], [1], [0, 0, 1, 1], [], []>} : vector<64x64xbf16>, vector<64x256xbf16>, vector<64x256xf32> -> vector<64x256xf32>
    %146 = arith.truncf %145 : vector<64x256xf32> to vector<64x256xbf16>
    %c7_118 = arith.constant 7 : index
    %c0_119 = arith.constant 0 : index
    %c0_120 = arith.constant 0 : index
    %147 = vector.load %arg7[%c7_118, %c0_119, %c0_120] : memref<9x64x64xbf16, #tpu.memory_space<vmem>>, vector<1x64x64xbf16>
    %148 = vector.shape_cast %147 : vector<1x64x64xbf16> to vector<64x64xbf16>
    %cst_121 = arith.constant dense<0.000000e+00> : vector<64x256xf32>
    %149 = tpu.matmul %148, %118, %cst_121 {dimension_numbers = #tpu.dot_dimension_numbers<[1], [0], [0], [1], [0, 0, 1, 1], [], []>} : vector<64x64xbf16>, vector<64x256xbf16>, vector<64x256xf32> -> vector<64x256xf32>
    %150 = arith.truncf %149 : vector<64x256xf32> to vector<64x256xbf16>
    %c8_122 = arith.constant 8 : index
    %c0_123 = arith.constant 0 : index
    %c0_124 = arith.constant 0 : index
    %151 = vector.load %arg7[%c8_122, %c0_123, %c0_124] : memref<9x64x64xbf16, #tpu.memory_space<vmem>>, vector<1x64x64xbf16>
    %152 = vector.shape_cast %151 : vector<1x64x64xbf16> to vector<64x64xbf16>
    %cst_125 = arith.constant dense<0.000000e+00> : vector<64x256xf32>
    %153 = tpu.matmul %152, %118, %cst_125 {dimension_numbers = #tpu.dot_dimension_numbers<[1], [0], [0], [1], [0, 0, 1, 1], [], []>} : vector<64x64xbf16>, vector<64x256xbf16>, vector<64x256xf32> -> vector<64x256xf32>
    %154 = arith.truncf %153 : vector<64x256xf32> to vector<64x256xbf16>
    %155 = tpu.concatenate %122, %126, %134, %138 in 1 : vector<64x256xbf16>, vector<64x256xbf16>, vector<64x256xbf16>, vector<64x256xbf16> -> vector<64x1024xbf16>
    %c0_126 = arith.constant 0 : index
    %c0_127 = arith.constant 0 : index
    %c0_128 = arith.constant 0 : index
    %156 = vector.load %arg8[%c0_126, %c0_127, %c0_128] : memref<4x1024x128xbf16, #tpu.memory_space<vmem>>, vector<1x1024x128xbf16>
    %157 = vector.shape_cast %156 : vector<1x1024x128xbf16> to vector<1024x128xbf16>
    %cst_129 = arith.constant dense<0.000000e+00> : vector<64x128xf32>
    %158 = tpu.matmul %155, %157, %cst_129 {dimension_numbers = #tpu.dot_dimension_numbers<[1], [0], [0], [1], [0, 0, 1, 1], [], []>} : vector<64x1024xbf16>, vector<1024x128xbf16>, vector<64x128xf32> -> vector<64x128xf32>
    %c0_130 = arith.constant 0 : index
    %c0_131 = arith.constant 0 : index
    %159 = vector.load %arg9[%c0_130, %c0_131] : memref<1x128xf32, #tpu.memory_space<vmem>>, vector<1x128xf32>
    %160 = vector.broadcast %159 : vector<1x128xf32> to vector<64x128xf32>
    %161 = arith.addf %158, %160 : vector<64x128xf32>
    %162 = math.tanh %161 : vector<64x128xf32>
    %c0_132 = arith.constant 0 : index
    %c0_133 = arith.constant 0 : index
    %c0_134 = arith.constant 0 : index
    %c0_135 = arith.constant 0 : index
    %163 = vector.load %arg10[%c0_132, %c0_133, %c0_134, %c0_135] : memref<1x4x64x128xf32, #tpu.memory_space<vmem>>, vector<1x1x64x128xf32>
    %164 = vector.shape_cast %163 : vector<1x1x64x128xf32> to vector<64x128xf32>
    %165 = vector.shape_cast %162 : vector<64x128xf32> to vector<1x1x64x128xf32>
    tpu.vector_store %arg10[%c0_132, %c0_133, %c0_134, %c0_135], %165 {strides = array<i32>} : memref<1x4x64x128xf32, #tpu.memory_space<vmem>>, vector<1x1x64x128xf32>,
    %166 = tpu.concatenate %126, %130, %138, %142 in 1 : vector<64x256xbf16>, vector<64x256xbf16>, vector<64x256xbf16>, vector<64x256xbf16> -> vector<64x1024xbf16>
    %c1_136 = arith.constant 1 : index
    %c0_137 = arith.constant 0 : index
    %c0_138 = arith.constant 0 : index
    %167 = vector.load %arg8[%c1_136, %c0_137, %c0_138] : memref<4x1024x128xbf16, #tpu.memory_space<vmem>>, vector<1x1024x128xbf16>
    %168 = vector.shape_cast %167 : vector<1x1024x128xbf16> to vector<1024x128xbf16>
    %cst_139 = arith.constant dense<0.000000e+00> : vector<64x128xf32>
    %169 = tpu.matmul %166, %168, %cst_139 {dimension_numbers = #tpu.dot_dimension_numbers<[1], [0], [0], [1], [0, 0, 1, 1], [], []>} : vector<64x1024xbf16>, vector<1024x128xbf16>, vector<64x128xf32> -> vector<64x128xf32>
    %c0_140 = arith.constant 0 : index
    %c0_141 = arith.constant 0 : index
    %170 = vector.load %arg9[%c0_140, %c0_141] : memref<1x128xf32, #tpu.memory_space<vmem>>, vector<1x128xf32>
    %171 = vector.broadcast %170 : vector<1x128xf32> to vector<64x128xf32>
    %172 = arith.addf %169, %171 : vector<64x128xf32>
    %173 = math.tanh %172 : vector<64x128xf32>
    %c0_142 = arith.constant 0 : index
    %c1_143 = arith.constant 1 : index
    %c0_144 = arith.constant 0 : index
    %c0_145 = arith.constant 0 : index
    %174 = vector.load %arg10[%c0_142, %c1_143, %c0_144, %c0_145] : memref<1x4x64x128xf32, #tpu.memory_space<vmem>>, vector<1x1x64x128xf32>
    %175 = vector.shape_cast %174 : vector<1x1x64x128xf32> to vector<64x128xf32>
    %176 = vector.shape_cast %173 : vector<64x128xf32> to vector<1x1x64x128xf32>
    tpu.vector_store %arg10[%c0_142, %c1_143, %c0_144, %c0_145], %176 {strides = array<i32>} : memref<1x4x64x128xf32, #tpu.memory_space<vmem>>, vector<1x1x64x128xf32>,
    %177 = tpu.concatenate %134, %138, %146, %150 in 1 : vector<64x256xbf16>, vector<64x256xbf16>, vector<64x256xbf16>, vector<64x256xbf16> -> vector<64x1024xbf16>
    %c2_146 = arith.constant 2 : index
    %c0_147 = arith.constant 0 : index
    %c0_148 = arith.constant 0 : index
    %178 = vector.load %arg8[%c2_146, %c0_147, %c0_148] : memref<4x1024x128xbf16, #tpu.memory_space<vmem>>, vector<1x1024x128xbf16>
    %179 = vector.shape_cast %178 : vector<1x1024x128xbf16> to vector<1024x128xbf16>
    %cst_149 = arith.constant dense<0.000000e+00> : vector<64x128xf32>
    %180 = tpu.matmul %177, %179, %cst_149 {dimension_numbers = #tpu.dot_dimension_numbers<[1], [0], [0], [1], [0, 0, 1, 1], [], []>} : vector<64x1024xbf16>, vector<1024x128xbf16>, vector<64x128xf32> -> vector<64x128xf32>
    %c0_150 = arith.constant 0 : index
    %c0_151 = arith.constant 0 : index
    %181 = vector.load %arg9[%c0_150, %c0_151] : memref<1x128xf32, #tpu.memory_space<vmem>>, vector<1x128xf32>
    %182 = vector.broadcast %181 : vector<1x128xf32> to vector<64x128xf32>
    %183 = arith.addf %180, %182 : vector<64x128xf32>
    %184 = math.tanh %183 : vector<64x128xf32>
    %c0_152 = arith.constant 0 : index
    %c2_153 = arith.constant 2 : index
    %c0_154 = arith.constant 0 : index
    %c0_155 = arith.constant 0 : index
    %185 = vector.load %arg10[%c0_152, %c2_153, %c0_154, %c0_155] : memref<1x4x64x128xf32, #tpu.memory_space<vmem>>, vector<1x1x64x128xf32>
    %186 = vector.shape_cast %185 : vector<1x1x64x128xf32> to vector<64x128xf32>
    %187 = vector.shape_cast %184 : vector<64x128xf32> to vector<1x1x64x128xf32>
    tpu.vector_store %arg10[%c0_152, %c2_153, %c0_154, %c0_155], %187 {strides = array<i32>} : memref<1x4x64x128xf32, #tpu.memory_space<vmem>>, vector<1x1x64x128xf32>,
    %188 = tpu.concatenate %138, %142, %150, %154 in 1 : vector<64x256xbf16>, vector<64x256xbf16>, vector<64x256xbf16>, vector<64x256xbf16> -> vector<64x1024xbf16>
    %c3_156 = arith.constant 3 : index
    %c0_157 = arith.constant 0 : index
    %c0_158 = arith.constant 0 : index
    %189 = vector.load %arg8[%c3_156, %c0_157, %c0_158] : memref<4x1024x128xbf16, #tpu.memory_space<vmem>>, vector<1x1024x128xbf16>
    %190 = vector.shape_cast %189 : vector<1x1024x128xbf16> to vector<1024x128xbf16>
    %cst_159 = arith.constant dense<0.000000e+00> : vector<64x128xf32>
    %191 = tpu.matmul %188, %190, %cst_159 {dimension_numbers = #tpu.dot_dimension_numbers<[1], [0], [0], [1], [0, 0, 1, 1], [], []>} : vector<64x1024xbf16>, vector<1024x128xbf16>, vector<64x128xf32> -> vector<64x128xf32>
    %c0_160 = arith.constant 0 : index
    %c0_161 = arith.constant 0 : index
    %192 = vector.load %arg9[%c0_160, %c0_161] : memref<1x128xf32, #tpu.memory_space<vmem>>, vector<1x128xf32>
    %193 = vector.broadcast %192 : vector<1x128xf32> to vector<64x128xf32>
    %194 = arith.addf %191, %193 : vector<64x128xf32>
    %195 = math.tanh %194 : vector<64x128xf32>
    %c0_162 = arith.constant 0 : index
    %c3_163 = arith.constant 3 : index
    %c0_164 = arith.constant 0 : index
    %c0_165 = arith.constant 0 : index
    %196 = vector.load %arg10[%c0_162, %c3_163, %c0_164, %c0_165] : memref<1x4x64x128xf32, #tpu.memory_space<vmem>>, vector<1x1x64x128xf32>
    %197 = vector.shape_cast %196 : vector<1x1x64x128xf32> to vector<64x128xf32>
    %198 = vector.shape_cast %195 : vector<64x128xf32> to vector<1x1x64x128xf32>
    tpu.vector_store %arg10[%c0_162, %c3_163, %c0_164, %c0_165], %198 {strides = array<i32>} : memref<1x4x64x128xf32, #tpu.memory_space<vmem>>, vector<1x1x64x128xf32>,
    return
  }
  func.func @transform_0(%arg0: i32) -> (i32, i32, i32) {
    %c0_i32 = arith.constant 0 : i32
    %c0_i32_0 = arith.constant 0 : i32
    %c0_i32_1 = arith.constant 0 : i32
    return %arg0, %c0_i32, %c0_i32_0 : i32, i32, i32
  }
  func.func @transform_1(%arg0: i32) -> (i32, i32) {
    %c0_i32 = arith.constant 0 : i32
    %c0_i32_0 = arith.constant 0 : i32
    %c0_i32_1 = arith.constant 0 : i32
    return %c0_i32, %c0_i32_0 : i32, i32
  }
  func.func @transform_2(%arg0: i32) -> (i32, i32) {
    %c0_i32 = arith.constant 0 : i32
    %c0_i32_0 = arith.constant 0 : i32
    %c0_i32_1 = arith.constant 0 : i32
    return %c0_i32, %c0_i32_0 : i32, i32
  }
  func.func @transform_3(%arg0: i32) -> (i32, i32, i32) {
    %c0_i32 = arith.constant 0 : i32
    %c0_i32_0 = arith.constant 0 : i32
    %c0_i32_1 = arith.constant 0 : i32
    %c0_i32_2 = arith.constant 0 : i32
    return %c0_i32, %c0_i32_0, %c0_i32_1 : i32, i32, i32
  }
  func.func @transform_4(%arg0: i32) -> (i32, i32, i32) {
    %c0_i32 = arith.constant 0 : i32
    %c0_i32_0 = arith.constant 0 : i32
    %c0_i32_1 = arith.constant 0 : i32
    %c0_i32_2 = arith.constant 0 : i32
    return %c0_i32, %c0_i32_0, %c0_i32_1 : i32, i32, i32
  }
  func.func @transform_5(%arg0: i32) -> (i32, i32) {
    %c0_i32 = arith.constant 0 : i32
    %c0_i32_0 = arith.constant 0 : i32
    %c0_i32_1 = arith.constant 0 : i32
    return %c0_i32, %c0_i32_0 : i32, i32
  }
  func.func @transform_6(%arg0: i32) -> (i32, i32, i32) {
    %c0_i32 = arith.constant 0 : i32
    %c0_i32_0 = arith.constant 0 : i32
    %c0_i32_1 = arith.constant 0 : i32
    %c0_i32_2 = arith.constant 0 : i32
    return %c0_i32, %c0_i32_0, %c0_i32_1 : i32, i32, i32
  }
  func.func @transform_7(%arg0: i32) -> (i32, i32, i32) {
    %c0_i32 = arith.constant 0 : i32
    %c0_i32_0 = arith.constant 0 : i32
    %c0_i32_1 = arith.constant 0 : i32
    %c0_i32_2 = arith.constant 0 : i32
    return %c0_i32, %c0_i32_0, %c0_i32_1 : i32, i32, i32
  }
  func.func @transform_8(%arg0: i32) -> (i32, i32) {
    %c0_i32 = arith.constant 0 : i32
    %c0_i32_0 = arith.constant 0 : i32
    %c0_i32_1 = arith.constant 0 : i32
    return %c0_i32, %c0_i32_0 : i32, i32
  }
  func.func @transform_9(%arg0: i32) -> (i32, i32, i32, i32) {
    %c0_i32 = arith.constant 0 : i32
    %c0_i32_0 = arith.constant 0 : i32
    %c0_i32_1 = arith.constant 0 : i32
    %c0_i32_2 = arith.constant 0 : i32
    return %arg0, %c0_i32, %c0_i32_0, %c0_i32_1 : i32, i32, i32, i32
  }
}

</mosaic_0001>

<llo_original>
// kernel: improved_gan_forward.1
$region0: #{improved_gan_forward.1}
  #allocation0 [shape = 'u32[]', space=smem, size = 0x4, offset = 0x4, fixed_abs, tag = 'smem constant byte address 0x4 - core index']
  #allocation1 [shape = 'u32[72,128]{1,0:T(1,128)}', space=vmem, size = 0x9000, scoped, tag = 'internal scratch']
  #allocation2 [shape = 'f32[16,128]{1,0:T(8,128)}', space=vmem, size = 0x2000, scoped, tag = 'scratch operand']
  %s0 = inlined_call_operand.vmem [shape: bf16[2,1,128], index: 0, kind: input, shape index: {}]
  %s1 = inlined_call_operand.hbm [shape: bf16[128,2048], index: 1, kind: input, shape index: {}]
  %s2 = inlined_call_operand.hbm [shape: f32[1,2048], index: 2, kind: input, shape index: {}]
  %s3 = inlined_call_operand.hbm [shape: bf16[9,16,16], index: 3, kind: input, shape index: {}]
  %s4 = inlined_call_operand.hbm [shape: bf16[4,512,256], index: 4, kind: input, shape index: {}]
  %s5 = inlined_call_operand.vmem [shape: f32[1,256], index: 5, kind: input, shape index: {}]
  %s6 = inlined_call_operand.hbm [shape: bf16[9,64,64], index: 6, kind: input, shape index: {}]
  %s7 = inlined_call_operand.hbm [shape: bf16[4,1024,128], index: 7, kind: input, shape index: {}]
  %s8 = inlined_call_operand.vmem [shape: f32[1,128], index: 8, kind: input, shape index: {}]
  %s9 = inlined_call_operand.vmem [shape: f32[2,4,64,128], index: 9, kind: output, shape index: {}]
  %s10 = sld [smem:[#allocation0]]
  $region93: #{improved_gan_forward.1} parent=0
    _
  %s12 = ssub.s32 1, %s10
  %s13 = scalar_select 0, %s12, %s10
  $region1: #{improved_gan_forward.1} parent=0
    #allocation3 [shape = 'u8[524288]{0}', space=vmem, size = 0x80000, scoped, tag = 'input window, operand 1, single buffered']
    #allocation4 [shape = 's32[2]{0}', space=sflag, size = 0x8, scoped, tag = 'scoped memory for improved_gan_forward.1']
    #allocation5 [shape = 'u8[8192]{0}', space=vmem, size = 0x2000, scoped, tag = 'input window, operand 2, single buffered']
    #allocation6 [shape = 's32[1]{0}', space=sflag, size = 0x4, scoped, tag = 'scoped memory for improved_gan_forward.1']
    #allocation7 [shape = 'u8[36864]{0}', space=vmem, size = 0x9000, scoped, tag = 'input window, operand 3, single buffered']
    #allocation8 [shape = 'u8[1048576]{0}', space=vmem, size = 0x100000, scoped, tag = 'input window, operand 4, single buffered']
    #allocation9 [shape = 's32[1]{0}', space=sflag, size = 0x4, scoped, tag = 'scoped memory for improved_gan_forward.1']
    #allocation10 [shape = 'u8[147456]{0}', space=vmem, size = 0x24000, scoped, tag = 'input window, operand 6, single buffered']
    #allocation11 [shape = 'u8[1048576]{0}', space=vmem, size = 0x100000, scoped, tag = 'input window, operand 7, single buffered']
    #allocation12 [shape = 's32[1]{0}', space=sflag, size = 0x4, scoped, tag = 'scoped memory for improved_gan_forward.1']
    %14 = vsyncpa [#allocation4], 0
    %15 = vsyncpa [#allocation6], 0
    %16 = vsyncpa [#allocation9], 0
    %17 = vsyncpa [#allocation12], 0
    loop: start=0, step=1, limit=4
    $region2: #{improved_gan_forward.1} parent=1 // loop_pre_header
      _
    $region3: #{improved_gan_forward.1} parent=1 // loop_header
      %s19 = sphi 0, %s23
      %p20 = scmp.ge.s32.totalorder %s19, 4
      %s29 = sphi 0, %s31
      %s32 = sphi 0, %s29
      %s33 = sphi 0, %s32
      %s49 = sphi 0, %s33
      %s53 = sphi 0, %s53
      %s55 = sphi 0, %s53
      %s56 = sphi 0, %s55
      %s70 = sphi 0, %s56
      %s74 = sphi 0, %s74
      %s76 = sphi 0, %s74
      %s77 = sphi 0, %s76
      %s91 = sphi 0, %s77
      %s95 = sphi 0, %s95
      %s97 = sphi 0, %s95
      %s98 = sphi 0, %s97
      %s112 = sphi 0, %s98
      %s116 = sphi 0, %s116
      %s118 = sphi 0, %s116
      %s119 = sphi 0, %s118
      %s133 = sphi 0, %s119
      %s137 = sphi 0, %s137
      %s139 = sphi 0, %s137
      %s140 = sphi 0, %s139
      %s154 = sphi 0, %s140
      %s158 = sphi 0, %s158
      %s160 = sphi 0, %s158
      %s161 = sphi 0, %s160
      %s175 = sphi 0, %s161
      %s179 = sphi 0, %s179
      %s181 = sphi 0, %s179
      %s182 = sphi 0, %s181
      %s196 = sphi 0, %s182
      %s200 = sphi 0, %s200
      %s202 = sphi 0, %s200
      %s203 = sphi 0, %s202
      %s217 = sphi 0, %s203
      %s223 = sphi 0, %s225
      %s226 = sphi 0, %s223
      %s227 = sphi 0, %s226
      %s243 = sphi 0, %s227
    $region4: #{improved_gan_forward.1} parent=1 // loop_header_branch
      %22 = sbr.rel (%p20) target = $region8
    $region5: #{improved_gan_forward.1} parent=1 // loop_body
      %s24 = ssub.s32 %s19, 1
      %s25 = ssub.s32 %s19, 2
      %s26 = sadd.s32 %s19, 1
      %s27 = ssub.s32 %s19, %s26
      %p28 = scmp.eq.s32.totalorder %s27, 0
      %s30 = sadd.s32 %s29, 1
      %s31 = scalar_select %p28, %s29, %s30
      %p34 = pneg %p28
      %p35 = scmp.eq.s32.totalorder %s19, 1
      %p36 = por %p34, %p35
      %p37 = scmp.ne.s32.totalorder %s29, %s32
      %p38 = scmp.eq.s32.totalorder %s19, 0
      %p39 = por %p37, %p38
      %p40 = scmp.ne.s32.totalorder %s29, %s32
      %p41 = scmp.eq.s32.totalorder %s24, 1
      %p42 = por %p40, %p41
      %p43 = scmp.ne.s32.totalorder %s32, %s33
      %p44 = scmp.eq.s32.totalorder %s24, 0
      %p45 = por %p43, %p44
      %p46 = scmp.ne.s32.totalorder %s32, %s33
      %p47 = scmp.eq.s32.totalorder %s25, 1
      %p48 = por %p46, %p47
      %p50 = scmp.ne.s32.totalorder %s33, %s49
      %p51 = scmp.eq.s32.totalorder %s25, 0
      %p52 = por %p50, %p51
      %s54 = sadd.s32 %s53, 1
      %p57 = scmp.eq.s32.totalorder %s19, 1
      %p58 = scmp.ne.s32.totalorder %s53, %s55
      %p59 = scmp.eq.s32.totalorder %s19, 0
      %p60 = por %p58, %p59
      %p61 = scmp.ne.s32.totalorder %s53, %s55
      %p62 = scmp.eq.s32.totalorder %s24, 1
      %p63 = por %p61, %p62
      %p64 = scmp.ne.s32.totalorder %s55, %s56
      %p65 = scmp.eq.s32.totalorder %s24, 0
      %p66 = por %p64, %p65
      %p67 = scmp.ne.s32.totalorder %s55, %s56
      %p68 = scmp.eq.s32.totalorder %s25, 1
      %p69 = por %p67, %p68
      %p71 = scmp.ne.s32.totalorder %s56, %s70
      %p72 = scmp.eq.s32.totalorder %s25, 0
      %p73 = por %p71, %p72
      %s75 = sadd.s32 %s74, 1
      %p78 = scmp.eq.s32.totalorder %s19, 1
      %p79 = scmp.ne.s32.totalorder %s74, %s76
      %p80 = scmp.eq.s32.totalorder %s19, 0
      %p81 = por %p79, %p80
      %p82 = scmp.ne.s32.totalorder %s74, %s76
      %p83 = scmp.eq.s32.totalorder %s24, 1
      %p84 = por %p82, %p83
      %p85 = scmp.ne.s32.totalorder %s76, %s77
      %p86 = scmp.eq.s32.totalorder %s24, 0
      %p87 = por %p85, %p86
      %p88 = scmp.ne.s32.totalorder %s76, %s77
      %p89 = scmp.eq.s32.totalorder %s25, 1
      %p90 = por %p88, %p89
      %p92 = scmp.ne.s32.totalorder %s77, %s91
      %p93 = scmp.eq.s32.totalorder %s25, 0
      %p94 = por %p92, %p93
      %s96 = sadd.s32 %s95, 1
      %p99 = scmp.eq.s32.totalorder %s19, 1
      %p100 = scmp.ne.s32.totalorder %s95, %s97
      %p101 = scmp.eq.s32.totalorder %s19, 0
      %p102 = por %p100, %p101
      %p103 = scmp.ne.s32.totalorder %s95, %s97
      %p104 = scmp.eq.s32.totalorder %s24, 1
      %p105 = por %p103, %p104
      %p106 = scmp.ne.s32.totalorder %s97, %s98
      %p107 = scmp.eq.s32.totalorder %s24, 0
      %p108 = por %p106, %p107
      %p109 = scmp.ne.s32.totalorder %s97, %s98
      %p110 = scmp.eq.s32.totalorder %s25, 1
      %p111 = por %p109, %p110
      %p113 = scmp.ne.s32.totalorder %s98, %s112
      %p114 = scmp.eq.s32.totalorder %s25, 0
      %p115 = por %p113, %p114
      %s117 = sadd.s32 %s116, 1
      %p120 = scmp.eq.s32.totalorder %s19, 1
      %p121 = scmp.ne.s32.totalorder %s116, %s118
      %p122 = scmp.eq.s32.totalorder %s19, 0
      %p123 = por %p121, %p122
      %p124 = scmp.ne.s32.totalorder %s116, %s118
      %p125 = scmp.eq.s32.totalorder %s24, 1
      %p126 = por %p124, %p125
      %p127 = scmp.ne.s32.totalorder %s118, %s119
      %p128 = scmp.eq.s32.totalorder %s24, 0
      %p129 = por %p127, %p128
      %p130 = scmp.ne.s32.totalorder %s118, %s119
      %p131 = scmp.eq.s32.totalorder %s25, 1
      %p132 = por %p130, %p131
      %p134 = scmp.ne.s32.totalorder %s119, %s133
      %p135 = scmp.eq.s32.totalorder %s25, 0
      %p136 = por %p134, %p135
      %s138 = sadd.s32 %s137, 1
      %p141 = scmp.eq.s32.totalorder %s19, 1
      %p142 = scmp.ne.s32.totalorder %s137, %s139
      %p143 = scmp.eq.s32.totalorder %s19, 0
      %p144 = por %p142, %p143
      %p145 = scmp.ne.s32.totalorder %s137, %s139
      %p146 = scmp.eq.s32.totalorder %s24, 1
      %p147 = por %p145, %p146
      %p148 = scmp.ne.s32.totalorder %s139, %s140
      %p149 = scmp.eq.s32.totalorder %s24, 0
      %p150 = por %p148, %p149
      %p151 = scmp.ne.s32.totalorder %s139, %s140
      %p152 = scmp.eq.s32.totalorder %s25, 1
      %p153 = por %p151, %p152
      %p155 = scmp.ne.s32.totalorder %s140, %s154
      %p156 = scmp.eq.s32.totalorder %s25, 0
      %p157 = por %p155, %p156
      %s159 = sadd.s32 %s158, 1
      %p162 = scmp.eq.s32.totalorder %s19, 1
      %p163 = scmp.ne.s32.totalorder %s158, %s160
      %p164 = scmp.eq.s32.totalorder %s19, 0
      %p165 = por %p163, %p164
      %p166 = scmp.ne.s32.totalorder %s158, %s160
      %p167 = scmp.eq.s32.totalorder %s24, 1
      %p168 = por %p166, %p167
      %p169 = scmp.ne.s32.totalorder %s160, %s161
      %p170 = scmp.eq.s32.totalorder %s24, 0
      %p171 = por %p169, %p170
      %p172 = scmp.ne.s32.totalorder %s160, %s161
      %p173 = scmp.eq.s32.totalorder %s25, 1
      %p174 = por %p172, %p173
      %p176 = scmp.ne.s32.totalorder %s161, %s175
      %p177 = scmp.eq.s32.totalorder %s25, 0
      %p178 = por %p176, %p177
      %s180 = sadd.s32 %s179, 1
      %p183 = scmp.eq.s32.totalorder %s19, 1
      %p184 = scmp.ne.s32.totalorder %s179, %s181
      %p185 = scmp.eq.s32.totalorder %s19, 0
      %p186 = por %p184, %p185
      %p187 = scmp.ne.s32.totalorder %s179, %s181
      %p188 = scmp.eq.s32.totalorder %s24, 1
      %p189 = por %p187, %p188
      %p190 = scmp.ne.s32.totalorder %s181, %s182
      %p191 = scmp.eq.s32.totalorder %s24, 0
      %p192 = por %p190, %p191
      %p193 = scmp.ne.s32.totalorder %s181, %s182
      %p194 = scmp.eq.s32.totalorder %s25, 1
      %p195 = por %p193, %p194
      %p197 = scmp.ne.s32.totalorder %s182, %s196
      %p198 = scmp.eq.s32.totalorder %s25, 0
      %p199 = por %p197, %p198
      %s201 = sadd.s32 %s200, 1
      %p204 = scmp.eq.s32.totalorder %s19, 1
      %p205 = scmp.ne.s32.totalorder %s200, %s202
      %p206 = scmp.eq.s32.totalorder %s19, 0
      %p207 = por %p205, %p206
      %p208 = scmp.ne.s32.totalorder %s200, %s202
      %p209 = scmp.eq.s32.totalorder %s24, 1
      %p210 = por %p208, %p209
      %p211 = scmp.ne.s32.totalorder %s202, %s203
      %p212 = scmp.eq.s32.totalorder %s24, 0
      %p213 = por %p211, %p212
      %p214 = scmp.ne.s32.totalorder %s202, %s203
      %p215 = scmp.eq.s32.totalorder %s25, 1
      %p216 = por %p214, %p215
      %p218 = scmp.ne.s32.totalorder %s203, %s217
      %p219 = scmp.eq.s32.totalorder %s25, 0
      %p220 = por %p218, %p219
      %s221 = ssub.s32 %s19, %s26
      %p222 = scmp.eq.s32.totalorder %s221, 0
      %s224 = sadd.s32 %s223, 1
      %s225 = scalar_select %p222, %s223, %s224
      %p228 = pneg %p222
      %p229 = scmp.eq.s32.totalorder %s19, 1
      %p230 = por %p228, %p229
      %p231 = scmp.ne.s32.totalorder %s223, %s226
      %p232 = scmp.eq.s32.totalorder %s19, 0
      %p233 = por %p231, %p232
      %p234 = scmp.ne.s32.totalorder %s223, %s226
      %p235 = scmp.eq.s32.totalorder %s24, 1
      %p236 = por %p234, %p235
      %p237 = scmp.ne.s32.totalorder %s226, %s227
      %p238 = scmp.eq.s32.totalorder %s24, 0
      %p239 = por %p237, %p238
      %p240 = scmp.ne.s32.totalorder %s226, %s227
      %p241 = scmp.eq.s32.totalorder %s25, 1
      %p242 = por %p240, %p241
      %p244 = scmp.ne.s32.totalorder %s227, %s243
      %p245 = scmp.eq.s32.totalorder %s25, 0
      %p246 = por %p244, %p245
      %p247 = scmp.le.s32.totalorder 1, %s19
      %p248 = scmp.lt.s32.totalorder %s19, 3
      %p249 = pnand %p247, %p248
      %p250 = pneg %p249
      // Predicated region
      $region9: #{improved_gan_forward.1} parent=5 // pred_check
        _
      $region10: #{improved_gan_forward.1} parent=5 // pred_check_branch
        %252 = sbr.rel (%p249) target = $region12
      $region11: #{improved_gan_forward.1} parent=5 // pred_region
        %s253 = ssub.s32 %s19, 1
        // Predicated region
        $region13: #{improved_gan_forward.1} parent=11 // pred_check
          %p254 = pneg %p66
        $region14: #{improved_gan_forward.1} parent=11 // pred_check_branch
          %256 = sbr.rel (%p254) target = $region16
        $region15: #{improved_gan_forward.1} parent=11 // pred_region
          %258 = vsyncadd [#allocation4], 0
          %s259 = sshll.u32 %s1, 4
          %s260 = int_to_ptr.hbm [resolvable:$true] %s259
          %s261 = sshll.u32 [#allocation3], 4
          %s262 = int_to_ptr.vmem [resolvable:$true] %s261
          %267 = dma.hbm_to_vmem [thread:$0]  %s260, 16384, %s262, [#allocation4], 1024, 1024, 64
        $region16: #{improved_gan_forward.1} parent=11 // pred_fallthru
          _
        // Predicated region
        $region17: #{improved_gan_forward.1} parent=11 // pred_check
          %p268 = pneg %p87
        $region18: #{improved_gan_forward.1} parent=11 // pred_check_branch
          %270 = sbr.rel (%p268) target = $region20
        $region19: #{improved_gan_forward.1} parent=11 // pred_region
          %272 = vsyncadd [#allocation6], 0
          %s274 = sshll.u32 %s2, 4
          %s275 = int_to_ptr.hbm [resolvable:$true] %s274
          %s276 = sshll.u32 [#allocation5], 4
          %s277 = int_to_ptr.vmem [resolvable:$true] %s276
          %279 = dma.hbm_to_vmem [thread:$0]  %s275, 256, %s277, [#allocation6]
        $region20: #{improved_gan_forward.1} parent=11 // pred_fallthru
          _
        // Predicated region
        $region21: #{improved_gan_forward.1} parent=11 // pred_check
          %p280 = pneg %p108
        $region22: #{improved_gan_forward.1} parent=11 // pred_check_branch
          %282 = sbr.rel (%p280) target = $region24
        $region23: #{improved_gan_forward.1} parent=11 // pred_region
          %284 = vsyncadd [#allocation6], 0
          %s285 = sshll.u32 %s3, 4
          %s286 = int_to_ptr.hbm [resolvable:$true] %s285
          %s287 = sshll.u32 [#allocation7], 4
          %s288 = int_to_ptr.vmem [resolvable:$true] %s287
          %293 = dma.hbm_to_vmem [thread:$0]  %s286, 1152, %s288, [#allocation6], 64, 64, 4
        $region24: #{improved_gan_forward.1} parent=11 // pred_fallthru
          _
        // Predicated region
        $region25: #{improved_gan_forward.1} parent=11 // pred_check
          %p294 = pneg %p129
        $region26: #{improved_gan_forward.1} parent=11 // pred_check_branch
          %296 = sbr.rel (%p294) target = $region28
        $region27: #{improved_gan_forward.1} parent=11 // pred_region
          %298 = vsyncadd [#allocation9], 0
          %s299 = sshll.u32 %s4, 4
          %s300 = int_to_ptr.hbm [resolvable:$true] %s299
          %s301 = sshll.u32 [#allocation8], 4
          %s302 = int_to_ptr.vmem [resolvable:$true] %s301
          %307 = dma.hbm_to_vmem [thread:$0]  %s300, 32768, %s302, [#allocation9], 128, 128, 8
        $region28: #{improved_gan_forward.1} parent=11 // pred_fallthru
          _
        // Predicated region
        $region29: #{improved_gan_forward.1} parent=11 // pred_check
          %p308 = pneg %p150
        $region30: #{improved_gan_forward.1} parent=11 // pred_check_branch
          %310 = sbr.rel (%p308) target = $region32
        $region31: #{improved_gan_forward.1} parent=11 // pred_region
          _
        $region32: #{improved_gan_forward.1} parent=11 // pred_fallthru
          _
        // Predicated region
        $region33: #{improved_gan_forward.1} parent=11 // pred_check
          %p311 = pneg %p171
        $region34: #{improved_gan_forward.1} parent=11 // pred_check_branch
          %313 = sbr.rel (%p311) target = $region36
        $region35: #{improved_gan_forward.1} parent=11 // pred_region
          %315 = vsyncadd [#allocation9], 0
          %s316 = sshll.u32 %s6, 4
          %s317 = int_to_ptr.hbm [resolvable:$true] %s316
          %s318 = sshll.u32 [#allocation10], 4
          %s319 = int_to_ptr.vmem [resolvable:$true] %s318
          %324 = dma.hbm_to_vmem [thread:$0]  %s317, 4608, %s319, [#allocation9], 64, 64, 4
        $region36: #{improved_gan_forward.1} parent=11 // pred_fallthru
          _
        // Predicated region
        $region37: #{improved_gan_forward.1} parent=11 // pred_check
          %p325 = pneg %p192
        $region38: #{improved_gan_forward.1} parent=11 // pred_check_branch
          %327 = sbr.rel (%p325) target = $region40
        $region39: #{improved_gan_forward.1} parent=11 // pred_region
          %329 = vsyncadd [#allocation12], 0
          %s330 = sshll.u32 %s7, 4
          %s331 = int_to_ptr.hbm [resolvable:$true] %s330
          %s332 = sshll.u32 [#allocation11], 4
          %s333 = int_to_ptr.vmem [resolvable:$true] %s332
          %338 = dma.hbm_to_vmem [thread:$0]  %s331, 32768, %s333, [#allocation12], 64, 64, 4
        $region40: #{improved_gan_forward.1} parent=11 // pred_fallthru
          _
        // Predicated region
        $region41: #{improved_gan_forward.1} parent=11 // pred_check
          %p339 = pneg %p213
        $region42: #{improved_gan_forward.1} parent=11 // pred_check_branch
          %341 = sbr.rel (%p339) target = $region44
        $region43: #{improved_gan_forward.1} parent=11 // pred_region
          _
        $region44: #{improved_gan_forward.1} parent=11 // pred_fallthru
          _
      $region12: #{improved_gan_forward.1} parent=5 // pred_fallthru
        _
      %p342 = scmp.lt.s32.totalorder %s19, 2
      // Predicated region
      $region45: #{improved_gan_forward.1} parent=5 // pred_check
        %p343 = pneg %p342
      $region46: #{improved_gan_forward.1} parent=5 // pred_check_branch
        %345 = sbr.rel (%p343) target = $region48
      $region47: #{improved_gan_forward.1} parent=5 // pred_region
        // Predicated region
        $region49: #{improved_gan_forward.1} parent=47 // pred_check
          %p346 = pneg %p39
        $region50: #{improved_gan_forward.1} parent=47 // pred_check_branch
          %348 = sbr.rel (%p346) target = $region52
        $region51: #{improved_gan_forward.1} parent=47 // pred_region
          %p349 = scmp.lt.s32.totalorder %s19, 1
          %s350 = scalar_select %p349, %s19, 1
          %s351 = scalar_lea.vmem %s0, %s350
        $region52: #{improved_gan_forward.1} parent=47 // pred_fallthru
          _
      $region48: #{improved_gan_forward.1} parent=5 // pred_fallthru
        _
      %p352 = scmp.le.s32.totalorder 1, %s19
      %p353 = scmp.lt.s32.totalorder %s19, 3
      %p354 = pnand %p352, %p353
      %p355 = pneg %p354
      // Predicated region
      $region53: #{improved_gan_forward.1} parent=5 // pred_check
        _
      $region54: #{improved_gan_forward.1} parent=5 // pred_check_branch
        %357 = sbr.rel (%p354) target = $region56
      $region55: #{improved_gan_forward.1} parent=5 // pred_region
        %s358 = ssub.s32 %s19, 1
        // Predicated region
        $region57: #{improved_gan_forward.1} parent=55 // pred_check
          %p359 = pneg %p66
        $region58: #{improved_gan_forward.1} parent=55 // pred_check_branch
          %361 = sbr.rel (%p359) target = $region60
        $region59: #{improved_gan_forward.1} parent=55 // pred_region
          %363 = dma.done [#allocation4], 16384
        $region60: #{improved_gan_forward.1} parent=55 // pred_fallthru
          _
        // Predicated region
        $region61: #{improved_gan_forward.1} parent=55 // pred_check
          %p364 = pneg %p87
        $region62: #{improved_gan_forward.1} parent=55 // pred_check_branch
          %366 = sbr.rel (%p364) target = $region64
        $region63: #{improved_gan_forward.1} parent=55 // pred_region
          %368 = dma.done [#allocation6], 256
        $region64: #{improved_gan_forward.1} parent=55 // pred_fallthru
          _
        // Predicated region
        $region65: #{improved_gan_forward.1} parent=55 // pred_check
          %p369 = pneg %p108
        $region66: #{improved_gan_forward.1} parent=55 // pred_check_branch
          %371 = sbr.rel (%p369) target = $region68
        $region67: #{improved_gan_forward.1} parent=55 // pred_region
          %373 = dma.done [#allocation6], 1152
        $region68: #{improved_gan_forward.1} parent=55 // pred_fallthru
          _
        // Predicated region
        $region69: #{improved_gan_forward.1} parent=55 // pred_check
          %p374 = pneg %p129
        $region70: #{improved_gan_forward.1} parent=55 // pred_check_branch
          %376 = sbr.rel (%p374) target = $region72
        $region71: #{improved_gan_forward.1} parent=55 // pred_region
          %378 = dma.done [#allocation9], 32768
        $region72: #{improved_gan_forward.1} parent=55 // pred_fallthru
          _
        // Predicated region
        $region73: #{improved_gan_forward.1} parent=55 // pred_check
          %p379 = pneg %p171
        $region74: #{improved_gan_forward.1} parent=55 // pred_check_branch
          %381 = sbr.rel (%p379) target = $region76
        $region75: #{improved_gan_forward.1} parent=55 // pred_region
          %383 = dma.done [#allocation9], 4608
        $region76: #{improved_gan_forward.1} parent=55 // pred_fallthru
          _
        // Predicated region
        $region77: #{improved_gan_forward.1} parent=55 // pred_check
          %p384 = pneg %p192
        $region78: #{improved_gan_forward.1} parent=55 // pred_check_branch
          %386 = sbr.rel (%p384) target = $region80
        $region79: #{improved_gan_forward.1} parent=55 // pred_region
          %388 = dma.done [#allocation12], 32768
        $region80: #{improved_gan_forward.1} parent=55 // pred_fallthru
          _
        %p389 = scmp.lt.s32.totalorder %s24, 1
        %s390 = scalar_select %p389, %s24, 1
        %s391 = scalar_lea.vmem %s0, %s390
        %p392 = pneg %p45
        %p393 = pneg %p42
        %p394 = pneg %p66
        %p395 = pneg %p63
        %p396 = pneg %p87
        %p397 = pneg %p84
        %p398 = pneg %p108
        %p399 = pneg %p105
        %p400 = pneg %p129
        %p401 = pneg %p126
        %p402 = pneg %p150
        %p403 = pneg %p147
        %p404 = pneg %p171
        %p405 = pneg %p168
        %p406 = pneg %p192
        %p407 = pneg %p189
        %p408 = pneg %p213
        %p409 = pneg %p210
        %p410 = pneg %p239
        %p411 = pneg %p236
        %p412 = scmp.lt.s32.totalorder %s24, 1
        %s413 = scalar_select %p412, %s24, 1
        %s414 = smul.addr %s413, 32
        %s415 = smul.addr %s414, 8
        %s416 = scalar_lea.vmem %s9, %s415
        %p417 = scmp.lt.s32.totalorder %s24, 1
        %s418 = scalar_select %p417, %s24, 1
        %s419 = scalar_lea.vmem %s0, %s418
        %p420 = scmp.lt.s32.totalorder %s24, 1
        %s421 = scalar_select %p420, %s24, 1
        %s422 = smul.addr %s421, 32
        %s423 = smul.addr %s422, 8
        %s424 = scalar_lea.vmem %s9, %s423
        %v426 = vld [vmem:[%s419] sm:$0x1]
        %v427 = vld [vmem:[#allocation3] sm:$0xff]
        %v428 = vld [vmem:[#allocation3 + $0x8] sm:$0xff]
        %v429 = vld [vmem:[#allocation3 + $0x10] sm:$0xff]
        %v430 = vld [vmem:[#allocation3 + $0x18] sm:$0xff]
        %v431 = vld [vmem:[#allocation3 + $0x20] sm:$0xff]
        %v432 = vld [vmem:[#allocation3 + $0x28] sm:$0xff]
        %v433 = vld [vmem:[#allocation3 + $0x30] sm:$0xff]
        %v434 = vld [vmem:[#allocation3 + $0x38] sm:$0xff]
        %v435 = vld [vmem:[#allocation3 + $0x40] sm:$0xff]
        %v436 = vld [vmem:[#allocation3 + $0x48] sm:$0xff]
        %v437 = vld [vmem:[#allocation3 + $0x50] sm:$0xff]
        %v438 = vld [vmem:[#allocation3 + $0x58] sm:$0xff]
        %v439 = vld [vmem:[#allocation3 + $0x60] sm:$0xff]
        %v440 = vld [vmem:[#allocation3 + $0x68] sm:$0xff]
        %v441 = vld [vmem:[#allocation3 + $0x70] sm:$0xff]
        %v442 = vld [vmem:[#allocation3 + $0x78] sm:$0xff]
        %v443 = vld [vmem:[#allocation3 + $0x80] sm:$0xff]
        %v444 = vld [vmem:[#allocation3 + $0x88] sm:$0xff]
        %v445 = vld [vmem:[#allocation3 + $0x90] sm:$0xff]
        %v446 = vld [vmem:[#allocation3 + $0x98] sm:$0xff]
        %v447 = vld [vmem:[#allocation3 + $0xa0] sm:$0xff]
        %v448 = vld [vmem:[#allocation3 + $0xa8] sm:$0xff]
        %v449 = vld [vmem:[#allocation3 + $0xb0] sm:$0xff]
        %v450 = vld [vmem:[#allocation3 + $0xb8] sm:$0xff]
        %v451 = vld [vmem:[#allocation3 + $0xc0] sm:$0xff]
        %v452 = vld [vmem:[#allocation3 + $0xc8] sm:$0xff]
        %v453 = vld [vmem:[#allocation3 + $0xd0] sm:$0xff]
        %v454 = vld [vmem:[#allocation3 + $0xd8] sm:$0xff]
        %v455 = vld [vmem:[#allocation3 + $0xe0] sm:$0xff]
        %v456 = vld [vmem:[#allocation3 + $0xe8] sm:$0xff]
        %v457 = vld [vmem:[#allocation3 + $0xf0] sm:$0xff]
        %v458 = vld [vmem:[#allocation3 + $0xf8] sm:$0xff]
        %v459 = vld [vmem:[#allocation3 + $0x100] sm:$0xff]
        %v460 = vld [vmem:[#allocation3 + $0x108] sm:$0xff]
        %v461 = vld [vmem:[#allocation3 + $0x110] sm:$0xff]
        %v462 = vld [vmem:[#allocation3 + $0x118] sm:$0xff]
        %v463 = vld [vmem:[#allocation3 + $0x120] sm:$0xff]
        %v464 = vld [vmem:[#allocation3 + $0x128] sm:$0xff]
        %v465 = vld [vmem:[#allocation3 + $0x130] sm:$0xff]
        %v466 = vld [vmem:[#allocation3 + $0x138] sm:$0xff]
        %v467 = vld [vmem:[#allocation3 + $0x140] sm:$0xff]
        %v468 = vld [vmem:[#allocation3 + $0x148] sm:$0xff]
        %v469 = vld [vmem:[#allocation3 + $0x150] sm:$0xff]
        %v470 = vld [vmem:[#allocation3 + $0x158] sm:$0xff]
        %v471 = vld [vmem:[#allocation3 + $0x160] sm:$0xff]
        %v472 = vld [vmem:[#allocation3 + $0x168] sm:$0xff]
        %v473 = vld [vmem:[#allocation3 + $0x170] sm:$0xff]
        %v474 = vld [vmem:[#allocation3 + $0x178] sm:$0xff]
        %v475 = vld [vmem:[#allocation3 + $0x180] sm:$0xff]
        %v476 = vld [vmem:[#allocation3 + $0x188] sm:$0xff]
        %v477 = vld [vmem:[#allocation3 + $0x190] sm:$0xff]
        %v478 = vld [vmem:[#allocation3 + $0x198] sm:$0xff]
        %v479 = vld [vmem:[#allocation3 + $0x1a0] sm:$0xff]
        %v480 = vld [vmem:[#allocation3 + $0x1a8] sm:$0xff]
        %v481 = vld [vmem:[#allocation3 + $0x1b0] sm:$0xff]
        %v482 = vld [vmem:[#allocation3 + $0x1b8] sm:$0xff]
        %v483 = vld [vmem:[#allocation3 + $0x1c0] sm:$0xff]
        %v484 = vld [vmem:[#allocation3 + $0x1c8] sm:$0xff]
        %v485 = vld [vmem:[#allocation3 + $0x1d0] sm:$0xff]
        %v486 = vld [vmem:[#allocation3 + $0x1d8] sm:$0xff]
        %v487 = vld [vmem:[#allocation3 + $0x1e0] sm:$0xff]
        %v488 = vld [vmem:[#allocation3 + $0x1e8] sm:$0xff]
        %v489 = vld [vmem:[#allocation3 + $0x1f0] sm:$0xff]
        %v490 = vld [vmem:[#allocation3 + $0x1f8] sm:$0xff]
        %v491 = vld [vmem:[#allocation3 + $0x200] sm:$0xff]
        %v492 = vld [vmem:[#allocation3 + $0x208] sm:$0xff]
        %v493 = vld [vmem:[#allocation3 + $0x210] sm:$0xff]
        %v494 = vld [vmem:[#allocation3 + $0x218] sm:$0xff]
        %v495 = vld [vmem:[#allocation3 + $0x220] sm:$0xff]
        %v496 = vld [vmem:[#allocation3 + $0x228] sm:$0xff]
        %v497 = vld [vmem:[#allocation3 + $0x230] sm:$0xff]
        %v498 = vld [vmem:[#allocation3 + $0x238] sm:$0xff]
        %v499 = vld [vmem:[#allocation3 + $0x240] sm:$0xff]
        %v500 = vld [vmem:[#allocation3 + $0x248] sm:$0xff]
        %v501 = vld [vmem:[#allocation3 + $0x250] sm:$0xff]
        %v502 = vld [vmem:[#allocation3 + $0x258] sm:$0xff]
        %v503 = vld [vmem:[#allocation3 + $0x260] sm:$0xff]
        %v504 = vld [vmem:[#allocation3 + $0x268] sm:$0xff]
        %v505 = vld [vmem:[#allocation3 + $0x270] sm:$0xff]
        %v506 = vld [vmem:[#allocation3 + $0x278] sm:$0xff]
        %v507 = vld [vmem:[#allocation3 + $0x280] sm:$0xff]
        %v508 = vld [vmem:[#allocation3 + $0x288] sm:$0xff]
        %v509 = vld [vmem:[#allocation3 + $0x290] sm:$0xff]
        %v510 = vld [vmem:[#allocation3 + $0x298] sm:$0xff]
        %v511 = vld [vmem:[#allocation3 + $0x2a0] sm:$0xff]
        %v512 = vld [vmem:[#allocation3 + $0x2a8] sm:$0xff]
        %v513 = vld [vmem:[#allocation3 + $0x2b0] sm:$0xff]
        %v514 = vld [vmem:[#allocation3 + $0x2b8] sm:$0xff]
        %v515 = vld [vmem:[#allocation3 + $0x2c0] sm:$0xff]
        %v516 = vld [vmem:[#allocation3 + $0x2c8] sm:$0xff]
        %v517 = vld [vmem:[#allocation3 + $0x2d0] sm:$0xff]
        %v518 = vld [vmem:[#allocation3 + $0x2d8] sm:$0xff]
        %v519 = vld [vmem:[#allocation3 + $0x2e0] sm:$0xff]
        %v520 = vld [vmem:[#allocation3 + $0x2e8] sm:$0xff]
        %v521 = vld [vmem:[#allocation3 + $0x2f0] sm:$0xff]
        %v522 = vld [vmem:[#allocation3 + $0x2f8] sm:$0xff]
        %v523 = vld [vmem:[#allocation3 + $0x300] sm:$0xff]
        %v524 = vld [vmem:[#allocation3 + $0x308] sm:$0xff]
        %v525 = vld [vmem:[#allocation3 + $0x310] sm:$0xff]
        %v526 = vld [vmem:[#allocation3 + $0x318] sm:$0xff]
        %v527 = vld [vmem:[#allocation3 + $0x320] sm:$0xff]
        %v528 = vld [vmem:[#allocation3 + $0x328] sm:$0xff]
        %v529 = vld [vmem:[#allocation3 + $0x330] sm:$0xff]
        %v530 = vld [vmem:[#allocation3 + $0x338] sm:$0xff]
        %v531 = vld [vmem:[#allocation3 + $0x340] sm:$0xff]
        %v532 = vld [vmem:[#allocation3 + $0x348] sm:$0xff]
        %v533 = vld [vmem:[#allocation3 + $0x350] sm:$0xff]
        %v534 = vld [vmem:[#allocation3 + $0x358] sm:$0xff]
        %v535 = vld [vmem:[#allocation3 + $0x360] sm:$0xff]
        %v536 = vld [vmem:[#allocation3 + $0x368] sm:$0xff]
        %v537 = vld [vmem:[#allocation3 + $0x370] sm:$0xff]
        %v538 = vld [vmem:[#allocation3 + $0x378] sm:$0xff]
        %v539 = vld [vmem:[#allocation3 + $0x380] sm:$0xff]
        %v540 = vld [vmem:[#allocation3 + $0x388] sm:$0xff]
        %v541 = vld [vmem:[#allocation3 + $0x390] sm:$0xff]
        %v542 = vld [vmem:[#allocation3 + $0x398] sm:$0xff]
        %v543 = vld [vmem:[#allocation3 + $0x3a0] sm:$0xff]
        %v544 = vld [vmem:[#allocation3 + $0x3a8] sm:$0xff]
        %v545 = vld [vmem:[#allocation3 + $0x3b0] sm:$0xff]
        %v546 = vld [vmem:[#allocation3 + $0x3b8] sm:$0xff]
        %v547 = vld [vmem:[#allocation3 + $0x3c0] sm:$0xff]
        %v548 = vld [vmem:[#allocation3 + $0x3c8] sm:$0xff]
        %v549 = vld [vmem:[#allocation3 + $0x3d0] sm:$0xff]
        %v550 = vld [vmem:[#allocation3 + $0x3d8] sm:$0xff]
        %v551 = vld [vmem:[#allocation3 + $0x3e0] sm:$0xff]
        %v552 = vld [vmem:[#allocation3 + $0x3e8] sm:$0xff]
        %v553 = vld [vmem:[#allocation3 + $0x3f0] sm:$0xff]
        %v554 = vld [vmem:[#allocation3 + $0x3f8] sm:$0xff]
        %v555 = vld [vmem:[#allocation5] sm:$0xff]
        %v556 = vld [vmem:[#allocation5 + $0x8] sm:$0xff]
        %v685 = vunpack.c.l.b16 %v427
        %v686 = vunpack.c.h.b16 %v427
        %v687 = vunpack.c.l.b16 %v428
        %v688 = vunpack.c.h.b16 %v428
        %v689 = vunpack.c.l.b16 %v429
        %v690 = vunpack.c.h.b16 %v429
        %v691 = vunpack.c.l.b16 %v430
        %v692 = vunpack.c.h.b16 %v430
        %v693 = vunpack.c.l.b16 %v431
        %v694 = vunpack.c.h.b16 %v431
        %v695 = vunpack.c.l.b16 %v432
        %v696 = vunpack.c.h.b16 %v432
        %v697 = vunpack.c.l.b16 %v433
        %v698 = vunpack.c.h.b16 %v433
        %v699 = vunpack.c.l.b16 %v434
        %v700 = vunpack.c.h.b16 %v434
        %v701 = vunpack.c.l.b16 %v435
        %v702 = vunpack.c.h.b16 %v435
        %v703 = vunpack.c.l.b16 %v436
        %v704 = vunpack.c.h.b16 %v436
        %v705 = vunpack.c.l.b16 %v437
        %v706 = vunpack.c.h.b16 %v437
        %v707 = vunpack.c.l.b16 %v438
        %v708 = vunpack.c.h.b16 %v438
        %v709 = vunpack.c.l.b16 %v439
        %v710 = vunpack.c.h.b16 %v439
        %v711 = vunpack.c.l.b16 %v440
        %v712 = vunpack.c.h.b16 %v440
        %v713 = vunpack.c.l.b16 %v441
        %v714 = vunpack.c.h.b16 %v441
        %v715 = vunpack.c.l.b16 %v442
        %v716 = vunpack.c.h.b16 %v442
        %v717 = vunpack.c.l.b16 %v443
        %v718 = vunpack.c.h.b16 %v443
        %v719 = vunpack.c.l.b16 %v444
        %v720 = vunpack.c.h.b16 %v444
        %v721 = vunpack.c.l.b16 %v445
        %v722 = vunpack.c.h.b16 %v445
        %v723 = vunpack.c.l.b16 %v446
        %v724 = vunpack.c.h.b16 %v446
        %v725 = vunpack.c.l.b16 %v447
        %v726 = vunpack.c.h.b16 %v447
        %v727 = vunpack.c.l.b16 %v448
        %v728 = vunpack.c.h.b16 %v448
        %v729 = vunpack.c.l.b16 %v449
        %v730 = vunpack.c.h.b16 %v449
        %v731 = vunpack.c.l.b16 %v450
        %v732 = vunpack.c.h.b16 %v450
        %v733 = vunpack.c.l.b16 %v451
        %v734 = vunpack.c.h.b16 %v451
        %v735 = vunpack.c.l.b16 %v452
        %v736 = vunpack.c.h.b16 %v452
        %v737 = vunpack.c.l.b16 %v453
        %v738 = vunpack.c.h.b16 %v453
        %v739 = vunpack.c.l.b16 %v454
        %v740 = vunpack.c.h.b16 %v454
        %v741 = vunpack.c.l.b16 %v455
        %v742 = vunpack.c.h.b16 %v455
        %v743 = vunpack.c.l.b16 %v456
        %v744 = vunpack.c.h.b16 %v456
        %v745 = vunpack.c.l.b16 %v457
        %v746 = vunpack.c.h.b16 %v457
        %v747 = vunpack.c.l.b16 %v458
        %v748 = vunpack.c.h.b16 %v458
        %v749 = vunpack.c.l.b16 %v459
        %v750 = vunpack.c.h.b16 %v459
        %v751 = vunpack.c.l.b16 %v460
        %v752 = vunpack.c.h.b16 %v460
        %v753 = vunpack.c.l.b16 %v461
        %v754 = vunpack.c.h.b16 %v461
        %v755 = vunpack.c.l.b16 %v462
        %v756 = vunpack.c.h.b16 %v462
        %v757 = vunpack.c.l.b16 %v463
        %v758 = vunpack.c.h.b16 %v463
        %v759 = vunpack.c.l.b16 %v464
        %v760 = vunpack.c.h.b16 %v464
        %v761 = vunpack.c.l.b16 %v465
        %v762 = vunpack.c.h.b16 %v465
        %v763 = vunpack.c.l.b16 %v466
        %v764 = vunpack.c.h.b16 %v466
        %v765 = vunpack.c.l.b16 %v467
        %v766 = vunpack.c.h.b16 %v467
        %v767 = vunpack.c.l.b16 %v468
        %v768 = vunpack.c.h.b16 %v468
        %v769 = vunpack.c.l.b16 %v469
        %v770 = vunpack.c.h.b16 %v469
        %v771 = vunpack.c.l.b16 %v470
        %v772 = vunpack.c.h.b16 %v470
        %v773 = vunpack.c.l.b16 %v471
        %v774 = vunpack.c.h.b16 %v471
        %v775 = vunpack.c.l.b16 %v472
        %v776 = vunpack.c.h.b16 %v472
        %v777 = vunpack.c.l.b16 %v473
        %v778 = vunpack.c.h.b16 %v473
        %v779 = vunpack.c.l.b16 %v474
        %v780 = vunpack.c.h.b16 %v474
        %v781 = vunpack.c.l.b16 %v475
        %v782 = vunpack.c.h.b16 %v475
        %v783 = vunpack.c.l.b16 %v476
        %v784 = vunpack.c.h.b16 %v476
        %v785 = vunpack.c.l.b16 %v477
        %v786 = vunpack.c.h.b16 %v477
        %v787 = vunpack.c.l.b16 %v478
        %v788 = vunpack.c.h.b16 %v478
        %v789 = vunpack.c.l.b16 %v479
        %v790 = vunpack.c.h.b16 %v479
        %v791 = vunpack.c.l.b16 %v480
        %v792 = vunpack.c.h.b16 %v480
        %v793 = vunpack.c.l.b16 %v481
        %v794 = vunpack.c.h.b16 %v481
        %v795 = vunpack.c.l.b16 %v482
        %v796 = vunpack.c.h.b16 %v482
        %v797 = vunpack.c.l.b16 %v483
        %v798 = vunpack.c.h.b16 %v483
        %v799 = vunpack.c.l.b16 %v484
        %v800 = vunpack.c.h.b16 %v484
        %v801 = vunpack.c.l.b16 %v485
        %v802 = vunpack.c.h.b16 %v485
        %v803 = vunpack.c.l.b16 %v486
        %v804 = vunpack.c.h.b16 %v486
        %v805 = vunpack.c.l.b16 %v487
        %v806 = vunpack.c.h.b16 %v487
        %v807 = vunpack.c.l.b16 %v488
        %v808 = vunpack.c.h.b16 %v488
        %v809 = vunpack.c.l.b16 %v489
        %v810 = vunpack.c.h.b16 %v489
        %v811 = vunpack.c.l.b16 %v490
        %v812 = vunpack.c.h.b16 %v490
        %v813 = vunpack.c.l.b16 %v491
        %v814 = vunpack.c.h.b16 %v491
        %v815 = vunpack.c.l.b16 %v492
        %v816 = vunpack.c.h.b16 %v492
        %v817 = vunpack.c.l.b16 %v493
        %v818 = vunpack.c.h.b16 %v493
        %v819 = vunpack.c.l.b16 %v494
        %v820 = vunpack.c.h.b16 %v494
        %v821 = vunpack.c.l.b16 %v495
        %v822 = vunpack.c.h.b16 %v495
        %v823 = vunpack.c.l.b16 %v496
        %v824 = vunpack.c.h.b16 %v496
        %v825 = vunpack.c.l.b16 %v497
        %v826 = vunpack.c.h.b16 %v497
        %v827 = vunpack.c.l.b16 %v498
        %v828 = vunpack.c.h.b16 %v498
        %v829 = vunpack.c.l.b16 %v499
        %v830 = vunpack.c.h.b16 %v499
        %v831 = vunpack.c.l.b16 %v500
        %v832 = vunpack.c.h.b16 %v500
        %v833 = vunpack.c.l.b16 %v501
        %v834 = vunpack.c.h.b16 %v501
        %v835 = vunpack.c.l.b16 %v502
        %v836 = vunpack.c.h.b16 %v502
        %v837 = vunpack.c.l.b16 %v503
        %v838 = vunpack.c.h.b16 %v503
        %v839 = vunpack.c.l.b16 %v504
        %v840 = vunpack.c.h.b16 %v504
        %v841 = vunpack.c.l.b16 %v505
        %v842 = vunpack.c.h.b16 %v505
        %v843 = vunpack.c.l.b16 %v506
        %v844 = vunpack.c.h.b16 %v506
        %v845 = vunpack.c.l.b16 %v507
        %v846 = vunpack.c.h.b16 %v507
        %v847 = vunpack.c.l.b16 %v508
        %v848 = vunpack.c.h.b16 %v508
        %v849 = vunpack.c.l.b16 %v509
        %v850 = vunpack.c.h.b16 %v509
        %v851 = vunpack.c.l.b16 %v510
        %v852 = vunpack.c.h.b16 %v510
        %v853 = vunpack.c.l.b16 %v511
        %v854 = vunpack.c.h.b16 %v511
        %v855 = vunpack.c.l.b16 %v512
        %v856 = vunpack.c.h.b16 %v512
        %v857 = vunpack.c.l.b16 %v513
        %v858 = vunpack.c.h.b16 %v513
        %v859 = vunpack.c.l.b16 %v514
        %v860 = vunpack.c.h.b16 %v514
        %v861 = vunpack.c.l.b16 %v515
        %v862 = vunpack.c.h.b16 %v515
        %v863 = vunpack.c.l.b16 %v516
        %v864 = vunpack.c.h.b16 %v516
        %v865 = vunpack.c.l.b16 %v517
        %v866 = vunpack.c.h.b16 %v517
        %v867 = vunpack.c.l.b16 %v518
        %v868 = vunpack.c.h.b16 %v518
        %v869 = vunpack.c.l.b16 %v519
        %v870 = vunpack.c.h.b16 %v519
        %v871 = vunpack.c.l.b16 %v520
        %v872 = vunpack.c.h.b16 %v520
        %v873 = vunpack.c.l.b16 %v521
        %v874 = vunpack.c.h.b16 %v521
        %v875 = vunpack.c.l.b16 %v522
        %v876 = vunpack.c.h.b16 %v522
        %v877 = vunpack.c.l.b16 %v523
        %v878 = vunpack.c.h.b16 %v523
        %v879 = vunpack.c.l.b16 %v524
        %v880 = vunpack.c.h.b16 %v524
        %v881 = vunpack.c.l.b16 %v525
        %v882 = vunpack.c.h.b16 %v525
        %v883 = vunpack.c.l.b16 %v526
        %v884 = vunpack.c.h.b16 %v526
        %v885 = vunpack.c.l.b16 %v527
        %v886 = vunpack.c.h.b16 %v527
        %v887 = vunpack.c.l.b16 %v528
        %v888 = vunpack.c.h.b16 %v528
        %v889 = vunpack.c.l.b16 %v529
        %v890 = vunpack.c.h.b16 %v529
        %v891 = vunpack.c.l.b16 %v530
        %v892 = vunpack.c.h.b16 %v530
        %v893 = vunpack.c.l.b16 %v531
        %v894 = vunpack.c.h.b16 %v531
        %v895 = vunpack.c.l.b16 %v532
        %v896 = vunpack.c.h.b16 %v532
        %v897 = vunpack.c.l.b16 %v533
        %v898 = vunpack.c.h.b16 %v533
        %v899 = vunpack.c.l.b16 %v534
        %v900 = vunpack.c.h.b16 %v534
        %v901 = vunpack.c.l.b16 %v535
        %v902 = vunpack.c.h.b16 %v535
        %v903 = vunpack.c.l.b16 %v536
        %v904 = vunpack.c.h.b16 %v536
        %v905 = vunpack.c.l.b16 %v537
        %v906 = vunpack.c.h.b16 %v537
        %v907 = vunpack.c.l.b16 %v538
        %v908 = vunpack.c.h.b16 %v538
        %v909 = vunpack.c.l.b16 %v539
        %v910 = vunpack.c.h.b16 %v539
        %v911 = vunpack.c.l.b16 %v540
        %v912 = vunpack.c.h.b16 %v540
        %v913 = vunpack.c.l.b16 %v541
        %v914 = vunpack.c.h.b16 %v541
        %v915 = vunpack.c.l.b16 %v542
        %v916 = vunpack.c.h.b16 %v542
        %v917 = vunpack.c.l.b16 %v543
        %v918 = vunpack.c.h.b16 %v543
        %v919 = vunpack.c.l.b16 %v544
        %v920 = vunpack.c.h.b16 %v544
        %v921 = vunpack.c.l.b16 %v545
        %v922 = vunpack.c.h.b16 %v545
        %v923 = vunpack.c.l.b16 %v546
        %v924 = vunpack.c.h.b16 %v546
        %v925 = vunpack.c.l.b16 %v547
        %v926 = vunpack.c.h.b16 %v547
        %v927 = vunpack.c.l.b16 %v548
        %v928 = vunpack.c.h.b16 %v548
        %v929 = vunpack.c.l.b16 %v549
        %v930 = vunpack.c.h.b16 %v549
        %v931 = vunpack.c.l.b16 %v550
        %v932 = vunpack.c.h.b16 %v550
        %v933 = vunpack.c.l.b16 %v551
        %v934 = vunpack.c.h.b16 %v551
        %v935 = vunpack.c.l.b16 %v552
        %v936 = vunpack.c.h.b16 %v552
        %v937 = vunpack.c.l.b16 %v553
        %v938 = vunpack.c.h.b16 %v553
        %v939 = vunpack.c.l.b16 %v554
        %v940 = vunpack.c.h.b16 %v554
        %v941 = vpack.c.b16 %v701, %v685
        %v942 = vpack.c.b16 %v702, %v686
        %v943 = vpack.c.b16 %v703, %v687
        %v944 = vpack.c.b16 %v704, %v688
        %v945 = vpack.c.b16 %v705, %v689
        %v946 = vpack.c.b16 %v706, %v690
        %v947 = vpack.c.b16 %v707, %v691
        %v948 = vpack.c.b16 %v708, %v692
        %v949 = vpack.c.b16 %v709, %v693
        %v950 = vpack.c.b16 %v710, %v694
        %v951 = vpack.c.b16 %v711, %v695
        %v952 = vpack.c.b16 %v712, %v696
        %v953 = vpack.c.b16 %v713, %v697
        %v954 = vpack.c.b16 %v714, %v698
        %v955 = vpack.c.b16 %v715, %v699
        %v956 = vpack.c.b16 %v716, %v700
        %v957 = vpack.c.b16 %v733, %v717
        %v958 = vpack.c.b16 %v734, %v718
        %v959 = vpack.c.b16 %v735, %v719
        %v960 = vpack.c.b16 %v736, %v720
        %v961 = vpack.c.b16 %v737, %v721
        %v962 = vpack.c.b16 %v738, %v722
        %v963 = vpack.c.b16 %v739, %v723
        %v964 = vpack.c.b16 %v740, %v724
        %v965 = vpack.c.b16 %v741, %v725
        %v966 = vpack.c.b16 %v742, %v726
        %v967 = vpack.c.b16 %v743, %v727
        %v968 = vpack.c.b16 %v744, %v728
        %v969 = vpack.c.b16 %v745, %v729
        %v970 = vpack.c.b16 %v746, %v730
        %v971 = vpack.c.b16 %v747, %v731
        %v972 = vpack.c.b16 %v748, %v732
        %v973 = vpack.c.b16 %v765, %v749
        %v974 = vpack.c.b16 %v766, %v750
        %v975 = vpack.c.b16 %v767, %v751
        %v976 = vpack.c.b16 %v768, %v752
        %v977 = vpack.c.b16 %v769, %v753
        %v978 = vpack.c.b16 %v770, %v754
        %v979 = vpack.c.b16 %v771, %v755
        %v980 = vpack.c.b16 %v772, %v756
        %v981 = vpack.c.b16 %v773, %v757
        %v982 = vpack.c.b16 %v774, %v758
        %v983 = vpack.c.b16 %v775, %v759
        %v984 = vpack.c.b16 %v776, %v760
        %v985 = vpack.c.b16 %v777, %v761
        %v986 = vpack.c.b16 %v778, %v762
        %v987 = vpack.c.b16 %v779, %v763
        %v988 = vpack.c.b16 %v780, %v764
        %v989 = vpack.c.b16 %v797, %v781
        %v990 = vpack.c.b16 %v798, %v782
        %v991 = vpack.c.b16 %v799, %v783
        %v992 = vpack.c.b16 %v800, %v784
        %v993 = vpack.c.b16 %v801, %v785
        %v994 = vpack.c.b16 %v802, %v786
        %v995 = vpack.c.b16 %v803, %v787
        %v996 = vpack.c.b16 %v804, %v788
        %v997 = vpack.c.b16 %v805, %v789
        %v998 = vpack.c.b16 %v806, %v790
        %v999 = vpack.c.b16 %v807, %v791
        %v1000 = vpack.c.b16 %v808, %v792
        %v1001 = vpack.c.b16 %v809, %v793
        %v1002 = vpack.c.b16 %v810, %v794
        %v1003 = vpack.c.b16 %v811, %v795
        %v1004 = vpack.c.b16 %v812, %v796
        %v1005 = vpack.c.b16 %v829, %v813
        %v1006 = vpack.c.b16 %v830, %v814
        %v1007 = vpack.c.b16 %v831, %v815
        %v1008 = vpack.c.b16 %v832, %v816
        %v1009 = vpack.c.b16 %v833, %v817
        %v1010 = vpack.c.b16 %v834, %v818
        %v1011 = vpack.c.b16 %v835, %v819
        %v1012 = vpack.c.b16 %v836, %v820
        %v1013 = vpack.c.b16 %v837, %v821
        %v1014 = vpack.c.b16 %v838, %v822
        %v1015 = vpack.c.b16 %v839, %v823
        %v1016 = vpack.c.b16 %v840, %v824
        %v1017 = vpack.c.b16 %v841, %v825
        %v1018 = vpack.c.b16 %v842, %v826
        %v1019 = vpack.c.b16 %v843, %v827
        %v1020 = vpack.c.b16 %v844, %v828
        %v1021 = vpack.c.b16 %v861, %v845
        %v1022 = vpack.c.b16 %v862, %v846
        %v1023 = vpack.c.b16 %v863, %v847
        %v1024 = vpack.c.b16 %v864, %v848
        %v1025 = vpack.c.b16 %v865, %v849
        %v1026 = vpack.c.b16 %v866, %v850
        %v1027 = vpack.c.b16 %v867, %v851
        %v1028 = vpack.c.b16 %v868, %v852
        %v1029 = vpack.c.b16 %v869, %v853
        %v1030 = vpack.c.b16 %v870, %v854
        %v1031 = vpack.c.b16 %v871, %v855
        %v1032 = vpack.c.b16 %v872, %v856
        %v1033 = vpack.c.b16 %v873, %v857
        %v1034 = vpack.c.b16 %v874, %v858
        %v1035 = vpack.c.b16 %v875, %v859
        %v1036 = vpack.c.b16 %v876, %v860
        %v1037 = vpack.c.b16 %v893, %v877
        %v1038 = vpack.c.b16 %v894, %v878
        %v1039 = vpack.c.b16 %v895, %v879
        %v1040 = vpack.c.b16 %v896, %v880
        %v1041 = vpack.c.b16 %v897, %v881
        %v1042 = vpack.c.b16 %v898, %v882
        %v1043 = vpack.c.b16 %v899, %v883
        %v1044 = vpack.c.b16 %v900, %v884
        %v1045 = vpack.c.b16 %v901, %v885
        %v1046 = vpack.c.b16 %v902, %v886
        %v1047 = vpack.c.b16 %v903, %v887
        %v1048 = vpack.c.b16 %v904, %v888
        %v1049 = vpack.c.b16 %v905, %v889
        %v1050 = vpack.c.b16 %v906, %v890
        %v1051 = vpack.c.b16 %v907, %v891
        %v1052 = vpack.c.b16 %v908, %v892
        %v1053 = vpack.c.b16 %v925, %v909
        %v1054 = vpack.c.b16 %v926, %v910
        %v1055 = vpack.c.b16 %v927, %v911
        %v1056 = vpack.c.b16 %v928, %v912
        %v1057 = vpack.c.b16 %v929, %v913
        %v1058 = vpack.c.b16 %v930, %v914
        %v1059 = vpack.c.b16 %v931, %v915
        %v1060 = vpack.c.b16 %v932, %v916
        %v1061 = vpack.c.b16 %v933, %v917
        %v1062 = vpack.c.b16 %v934, %v918
        %v1063 = vpack.c.b16 %v935, %v919
        %v1064 = vpack.c.b16 %v936, %v920
        %v1065 = vpack.c.b16 %v937, %v921
        %v1066 = vpack.c.b16 %v938, %v922
        %v1067 = vpack.c.b16 %v939, %v923
        %v1068 = vpack.c.b16 %v940, %v924
        %v1199 = vperm.slane %v555, 0
        %v1200 = vperm.slane %v555, 1
        %v1201 = vperm.slane %v555, 2
        %v1202 = vperm.slane %v555, 3
        %v1203 = vperm.slane %v555, 4
        %v1204 = vperm.slane %v555, 5
        %v1205 = vperm.slane %v555, 6
        %v1206 = vperm.slane %v555, 7
        %v1207 = vperm.slane %v556, 0
        %v1208 = vperm.slane %v556, 1
        %v1209 = vperm.slane %v556, 2
        %v1210 = vperm.slane %v556, 3
        %v1211 = vperm.slane %v556, 4
        %v1212 = vperm.slane %v556, 5
        %v1213 = vperm.slane %v556, 6
        %v1214 = vperm.slane %v556, 7
        %1231 = vmatpush.bf16.msra.mxu0 %v1053
        %1232 = vmatpush.bf16.msra.mxu0 %v1037
        %1233 = vmatpush.bf16.msra.mxu0 %v1021
        %1234 = vmatpush.bf16.msra.mxu0 %v1005
        %1235 = vmatpush.bf16.msra.mxu0 %v989
        %1236 = vmatpush.bf16.msra.mxu0 %v973
        %1237 = vmatpush.bf16.msra.mxu0 %v957
        %1238 = vmatpush.bf16.msra.mxu0 %v941
        %1239 = vmatmul.bf16.gmra.mxu0 %v426
        %v1240 = vpop.f32.mrf.mxu0
        %v1241 = vadd.f32 %v1199, %v1240
        %v1242 = vpop.f32.mrf.mxu0
        %1243 = vdwg.mxu0
        %1244 = vmatpush.bf16.msra.mxu0 %v1054
        %1245 = vmatpush.bf16.msra.mxu0 %v1038
        %1246 = vmatpush.bf16.msra.mxu0 %v1022
        %1247 = vmatpush.bf16.msra.mxu0 %v1006
        %1248 = vmatpush.bf16.msra.mxu0 %v990
        %1249 = vmatpush.bf16.msra.mxu0 %v974
        %1250 = vmatpush.bf16.msra.mxu0 %v958
        %1251 = vmatpush.bf16.msra.mxu0 %v942
        %1252 = vmatmul.bf16.gmra.mxu0 %v426
        %v1253 = vpop.f32.mrf.mxu0
        %v1254 = vadd.f32 %v1200, %v1253
        %v1255 = vpop.f32.mrf.mxu0
        %1256 = vdwg.mxu0
        %1257 = vmatpush.bf16.msra.mxu0 %v1055
        %1258 = vmatpush.bf16.msra.mxu0 %v1039
        %1259 = vmatpush.bf16.msra.mxu0 %v1023
        %1260 = vmatpush.bf16.msra.mxu0 %v1007
        %1261 = vmatpush.bf16.msra.mxu0 %v991
        %1262 = vmatpush.bf16.msra.mxu0 %v975
        %1263 = vmatpush.bf16.msra.mxu0 %v959
        %1264 = vmatpush.bf16.msra.mxu0 %v943
        %1265 = vmatmul.bf16.gmra.mxu0 %v426
        %v1266 = vpop.f32.mrf.mxu0
        %v1267 = vadd.f32 %v1201, %v1266
        %v1268 = vpop.f32.mrf.mxu0
        %1269 = vdwg.mxu0
        %1270 = vmatpush.bf16.msra.mxu0 %v1056
        %1271 = vmatpush.bf16.msra.mxu0 %v1040
        %1272 = vmatpush.bf16.msra.mxu0 %v1024
        %1273 = vmatpush.bf16.msra.mxu0 %v1008
        %1274 = vmatpush.bf16.msra.mxu0 %v992
        %1275 = vmatpush.bf16.msra.mxu0 %v976
        %1276 = vmatpush.bf16.msra.mxu0 %v960
        %1277 = vmatpush.bf16.msra.mxu0 %v944
        %1278 = vmatmul.bf16.gmra.mxu0 %v426
        %v1279 = vpop.f32.mrf.mxu0
        %v1280 = vadd.f32 %v1202, %v1279
        %v1281 = vpop.f32.mrf.mxu0
        %1282 = vdwg.mxu0
        %1283 = vmatpush.bf16.msra.mxu0 %v1057
        %1284 = vmatpush.bf16.msra.mxu0 %v1041
        %1285 = vmatpush.bf16.msra.mxu0 %v1025
        %1286 = vmatpush.bf16.msra.mxu0 %v1009
        %1287 = vmatpush.bf16.msra.mxu0 %v993
        %1288 = vmatpush.bf16.msra.mxu0 %v977
        %1289 = vmatpush.bf16.msra.mxu0 %v961
        %1290 = vmatpush.bf16.msra.mxu0 %v945
        %1291 = vmatmul.bf16.gmra.mxu0 %v426
        %v1292 = vpop.f32.mrf.mxu0
        %v1293 = vadd.f32 %v1203, %v1292
        %v1294 = vpop.f32.mrf.mxu0
        %1295 = vdwg.mxu0
        %1296 = vmatpush.bf16.msra.mxu0 %v1058
        %1297 = vmatpush.bf16.msra.mxu0 %v1042
        %1298 = vmatpush.bf16.msra.mxu0 %v1026
        %1299 = vmatpush.bf16.msra.mxu0 %v1010
        %1300 = vmatpush.bf16.msra.mxu0 %v994
        %1301 = vmatpush.bf16.msra.mxu0 %v978
        %1302 = vmatpush.bf16.msra.mxu0 %v962
        %1303 = vmatpush.bf16.msra.mxu0 %v946
        %1304 = vmatmul.bf16.gmra.mxu0 %v426
        %v1305 = vpop.f32.mrf.mxu0
        %v1306 = vadd.f32 %v1204, %v1305
        %v1307 = vpop.f32.mrf.mxu0
        %1308 = vdwg.mxu0
        %1309 = vmatpush.bf16.msra.mxu0 %v1059
        %1310 = vmatpush.bf16.msra.mxu0 %v1043
        %1311 = vmatpush.bf16.msra.mxu0 %v1027
        %1312 = vmatpush.bf16.msra.mxu0 %v1011
        %1313 = vmatpush.bf16.msra.mxu0 %v995
        %1314 = vmatpush.bf16.msra.mxu0 %v979
        %1315 = vmatpush.bf16.msra.mxu0 %v963
        %1316 = vmatpush.bf16.msra.mxu0 %v947
        %1317 = vmatmul.bf16.gmra.mxu0 %v426
        %v1318 = vpop.f32.mrf.mxu0
        %v1319 = vadd.f32 %v1205, %v1318
        %v1320 = vpop.f32.mrf.mxu0
        %1321 = vdwg.mxu0
        %1322 = vmatpush.bf16.msra.mxu0 %v1060
        %1323 = vmatpush.bf16.msra.mxu0 %v1044
        %1324 = vmatpush.bf16.msra.mxu0 %v1028
        %1325 = vmatpush.bf16.msra.mxu0 %v1012
        %1326 = vmatpush.bf16.msra.mxu0 %v996
        %1327 = vmatpush.bf16.msra.mxu0 %v980
        %1328 = vmatpush.bf16.msra.mxu0 %v964
        %1329 = vmatpush.bf16.msra.mxu0 %v948
        %1330 = vmatmul.bf16.gmra.mxu0 %v426
        %v1331 = vpop.f32.mrf.mxu0
        %v1332 = vadd.f32 %v1206, %v1331
        %v1333 = vpop.f32.mrf.mxu0
        %1334 = vdwg.mxu0
        %1335 = vmatpush.bf16.msra.mxu0 %v1061
        %1336 = vmatpush.bf16.msra.mxu0 %v1045
        %1337 = vmatpush.bf16.msra.mxu0 %v1029
        %1338 = vmatpush.bf16.msra.mxu0 %v1013
        %1339 = vmatpush.bf16.msra.mxu0 %v997
        %1340 = vmatpush.bf16.msra.mxu0 %v981
        %1341 = vmatpush.bf16.msra.mxu0 %v965
        %1342 = vmatpush.bf16.msra.mxu0 %v949
        %1343 = vmatmul.bf16.gmra.mxu0 %v426
        %v1344 = vpop.f32.mrf.mxu0
        %v1345 = vadd.f32 %v1207, %v1344
        %v1346 = vpop.f32.mrf.mxu0
        %1347 = vdwg.mxu0
        %1348 = vmatpush.bf16.msra.mxu0 %v1062
        %1349 = vmatpush.bf16.msra.mxu0 %v1046
        %1350 = vmatpush.bf16.msra.mxu0 %v1030
        %1351 = vmatpush.bf16.msra.mxu0 %v1014
        %1352 = vmatpush.bf16.msra.mxu0 %v998
        %1353 = vmatpush.bf16.msra.mxu0 %v982
        %1354 = vmatpush.bf16.msra.mxu0 %v966
        %1355 = vmatpush.bf16.msra.mxu0 %v950
        %1356 = vmatmul.bf16.gmra.mxu0 %v426
        %v1357 = vpop.f32.mrf.mxu0
        %v1358 = vadd.f32 %v1208, %v1357
        %v1359 = vpop.f32.mrf.mxu0
        %1360 = vdwg.mxu0
        %1361 = vmatpush.bf16.msra.mxu0 %v1063
        %1362 = vmatpush.bf16.msra.mxu0 %v1047
        %1363 = vmatpush.bf16.msra.mxu0 %v1031
        %1364 = vmatpush.bf16.msra.mxu0 %v1015
        %1365 = vmatpush.bf16.msra.mxu0 %v999
        %1366 = vmatpush.bf16.msra.mxu0 %v983
        %1367 = vmatpush.bf16.msra.mxu0 %v967
        %1368 = vmatpush.bf16.msra.mxu0 %v951
        %1369 = vmatmul.bf16.gmra.mxu0 %v426
        %v1370 = vpop.f32.mrf.mxu0
        %v1371 = vadd.f32 %v1209, %v1370
        %v1372 = vpop.f32.mrf.mxu0
        %1373 = vdwg.mxu0
        %1374 = vmatpush.bf16.msra.mxu0 %v1064
        %1375 = vmatpush.bf16.msra.mxu0 %v1048
        %1376 = vmatpush.bf16.msra.mxu0 %v1032
        %1377 = vmatpush.bf16.msra.mxu0 %v1016
        %1378 = vmatpush.bf16.msra.mxu0 %v1000
        %1379 = vmatpush.bf16.msra.mxu0 %v984
        %1380 = vmatpush.bf16.msra.mxu0 %v968
        %1381 = vmatpush.bf16.msra.mxu0 %v952
        %1382 = vmatmul.bf16.gmra.mxu0 %v426
        %v1383 = vpop.f32.mrf.mxu0
        %v1384 = vadd.f32 %v1210, %v1383
        %v1385 = vpop.f32.mrf.mxu0
        %1386 = vdwg.mxu0
        %1387 = vmatpush.bf16.msra.mxu0 %v1065
        %1388 = vmatpush.bf16.msra.mxu0 %v1049
        %1389 = vmatpush.bf16.msra.mxu0 %v1033
        %1390 = vmatpush.bf16.msra.mxu0 %v1017
        %1391 = vmatpush.bf16.msra.mxu0 %v1001
        %1392 = vmatpush.bf16.msra.mxu0 %v985
        %1393 = vmatpush.bf16.msra.mxu0 %v969
        %1394 = vmatpush.bf16.msra.mxu0 %v953
        %1395 = vmatmul.bf16.gmra.mxu0 %v426
        %v1396 = vpop.f32.mrf.mxu0
        %v1397 = vadd.f32 %v1211, %v1396
        %v1398 = vpop.f32.mrf.mxu0
        %1399 = vdwg.mxu0
        %1400 = vmatpush.bf16.msra.mxu0 %v1066
        %1401 = vmatpush.bf16.msra.mxu0 %v1050
        %1402 = vmatpush.bf16.msra.mxu0 %v1034
        %1403 = vmatpush.bf16.msra.mxu0 %v1018
        %1404 = vmatpush.bf16.msra.mxu0 %v1002
        %1405 = vmatpush.bf16.msra.mxu0 %v986
        %1406 = vmatpush.bf16.msra.mxu0 %v970
        %1407 = vmatpush.bf16.msra.mxu0 %v954
        %1408 = vmatmul.bf16.gmra.mxu0 %v426
        %v1409 = vpop.f32.mrf.mxu0
        %v1410 = vadd.f32 %v1212, %v1409
        %v1411 = vpop.f32.mrf.mxu0
        %1412 = vdwg.mxu0
        %1413 = vmatpush.bf16.msra.mxu0 %v1067
        %1414 = vmatpush.bf16.msra.mxu0 %v1051
        %1415 = vmatpush.bf16.msra.mxu0 %v1035
        %1416 = vmatpush.bf16.msra.mxu0 %v1019
        %1417 = vmatpush.bf16.msra.mxu0 %v1003
        %1418 = vmatpush.bf16.msra.mxu0 %v987
        %1419 = vmatpush.bf16.msra.mxu0 %v971
        %1420 = vmatpush.bf16.msra.mxu0 %v955
        %1421 = vmatmul.bf16.gmra.mxu0 %v426
        %v1422 = vpop.f32.mrf.mxu0
        %v1423 = vadd.f32 %v1213, %v1422
        %v1424 = vpop.f32.mrf.mxu0
        %1425 = vdwg.mxu0
        %1426 = vmatpush.bf16.msra.mxu0 %v1068
        %1427 = vmatpush.bf16.msra.mxu0 %v1052
        %1428 = vmatpush.bf16.msra.mxu0 %v1036
        %1429 = vmatpush.bf16.msra.mxu0 %v1020
        %1430 = vmatpush.bf16.msra.mxu0 %v1004
        %1431 = vmatpush.bf16.msra.mxu0 %v988
        %1432 = vmatpush.bf16.msra.mxu0 %v972
        %1433 = vmatpush.bf16.msra.mxu0 %v956
        %1434 = vmatmul.bf16.gmra.mxu0 %v426
        %v1435 = vpop.f32.mrf.mxu0
        %v1436 = vadd.f32 %v1214, %v1435
        %v1437 = vpop.f32.mrf.mxu0
        %1438 = vdwg.mxu0
        %v1439 = vmax.f32 %v1241, 0.0
        %v1440 = vmax.f32 %v1254, 0.0
        %v1441 = vmax.f32 %v1267, 0.0
        %v1442 = vmax.f32 %v1280, 0.0
        %v1443 = vmax.f32 %v1293, 0.0
        %v1444 = vmax.f32 %v1306, 0.0
        %v1445 = vmax.f32 %v1319, 0.0
        %v1446 = vmax.f32 %v1332, 0.0
        %v1447 = vmax.f32 %v1345, 0.0
        %v1448 = vmax.f32 %v1358, 0.0
        %v1449 = vmax.f32 %v1371, 0.0
        %v1450 = vmax.f32 %v1384, 0.0
        %v1451 = vmax.f32 %v1397, 0.0
        %v1452 = vmax.f32 %v1410, 0.0
        %v1453 = vmax.f32 %v1423, 0.0
        %v1454 = vmax.f32 %v1436, 0.0
        %1455 = vst [vmem:[#allocation2] sm:$0x1] %v1439
        %1456 = vst [vmem:[#allocation2 + $0x1] sm:$0x1] %v1440
        %1457 = vst [vmem:[#allocation2 + $0x2] sm:$0x1] %v1441
        %1458 = vst [vmem:[#allocation2 + $0x3] sm:$0x1] %v1442
        %1459 = vst [vmem:[#allocation2 + $0x4] sm:$0x1] %v1443
        %1460 = vst [vmem:[#allocation2 + $0x5] sm:$0x1] %v1444
        %1461 = vst [vmem:[#allocation2 + $0x6] sm:$0x1] %v1445
        %1462 = vst [vmem:[#allocation2 + $0x7] sm:$0x1] %v1446
        %1463 = vst [vmem:[#allocation2 + $0x8] sm:$0x1] %v1447
        %1464 = vst [vmem:[#allocation2 + $0x9] sm:$0x1] %v1448
        %1465 = vst [vmem:[#allocation2 + $0xa] sm:$0x1] %v1449
        %1466 = vst [vmem:[#allocation2 + $0xb] sm:$0x1] %v1450
        %1467 = vst [vmem:[#allocation2 + $0xc] sm:$0x1] %v1451
        %1468 = vst [vmem:[#allocation2 + $0xd] sm:$0x1] %v1452
        %1469 = vst [vmem:[#allocation2 + $0xe] sm:$0x1] %v1453
        %1470 = vst [vmem:[#allocation2 + $0xf] sm:$0x1] %v1454
        %v1471 = vld [vmem:[#allocation2] sm:$0xff]
        %v1472 = vld [vmem:[#allocation2 + $0x8] sm:$0xff]
        %v1473 = vpack.c.bf16 %v1472, %v1471
        %v1474 = vld [vmem:[#allocation7] sm:$0xf]
        %v1475 = vld [vmem:[#allocation7 + $0x4] sm:$0xf]
        %v1478 = vunpack.c.l.b16 %v1474
        %v1479 = vunpack.c.l.b16 %v1475
        %v1480 = vpack.c.b16 %v1479, %v1478
        %vm1481 = vcmask 130048
        %v1483 = vsel %vm1481, %v1480, 0
        %1485 = vmatpush.bf16.msra.mxu0 0
        %1486 = vmatpush.bf16.msra.mxu0 0
        %1487 = vmatpush.bf16.msra.mxu0 0
        %1488 = vmatpush.bf16.msra.mxu0 0
        %1489 = vmatpush.bf16.msra.mxu0 0
        %1490 = vmatpush.bf16.msra.mxu0 0
        %1491 = vmatpush.bf16.msra.mxu0 0
        %1492 = vmatpush.bf16.msra.mxu0 %v1473
        %1493 = vmatmul.bf16.gmra.mxu0 %v1483
        %v1494 = vpop.f32.mrf.mxu0
        %v1495 = vadd.f32 0.0, %v1494
        %v1496 = vpop.f32.mrf.mxu0
        %v1497 = vadd.f32 0.0, %v1496
        %1498 = vdwg.mxu0
        %v1499 = vpack.c.bf16 %v1495, %v1495
        %v1500 = vpack.c.bf16 %v1497, %v1497
        %s1501 = scalar_lea.vmem [#allocation7], 8
        %v1502 = vld [vmem:[%s1501] sm:$0xf]
        %v1503 = vld [vmem:[%s1501 + $0x4] sm:$0xf]
        %v1506 = vunpack.c.l.b16 %v1502
        %v1507 = vunpack.c.l.b16 %v1503
        %v1508 = vpack.c.b16 %v1507, %v1506
        %v1510 = vsel %vm1481, %v1508, 0
        %1512 = vmatpush.bf16.msra.mxu0 0
        %1513 = vmatpush.bf16.msra.mxu0 0
        %1514 = vmatpush.bf16.msra.mxu0 0
        %1515 = vmatpush.bf16.msra.mxu0 0
        %1516 = vmatpush.bf16.msra.mxu0 0
        %1517 = vmatpush.bf16.msra.mxu0 0
        %1518 = vmatpush.bf16.msra.mxu0 0
        %1519 = vmatpush.bf16.msra.mxu0 %v1473
        %1520 = vmatmul.bf16.gmra.mxu0 %v1510
        %v1521 = vpop.f32.mrf.mxu0
        %v1522 = vadd.f32 0.0, %v1521
        %v1523 = vpop.f32.mrf.mxu0
        %v1524 = vadd.f32 0.0, %v1523
        %1525 = vdwg.mxu0
        %v1526 = vpack.c.bf16 %v1522, %v1522
        %v1527 = vpack.c.bf16 %v1524, %v1524
        %s1528 = scalar_lea.vmem [#allocation7], 16
        %v1529 = vld [vmem:[%s1528] sm:$0xf]
        %v1530 = vld [vmem:[%s1528 + $0x4] sm:$0xf]
        %v1533 = vunpack.c.l.b16 %v1529
        %v1534 = vunpack.c.l.b16 %v1530
        %v1535 = vpack.c.b16 %v1534, %v1533
        %v1537 = vsel %vm1481, %v1535, 0
        %1539 = vmatpush.bf16.msra.mxu0 0
        %1540 = vmatpush.bf16.msra.mxu0 0
        %1541 = vmatpush.bf16.msra.mxu0 0
        %1542 = vmatpush.bf16.msra.mxu0 0
        %1543 = vmatpush.bf16.msra.mxu0 0
        %1544 = vmatpush.bf16.msra.mxu0 0
        %1545 = vmatpush.bf16.msra.mxu0 0
        %1546 = vmatpush.bf16.msra.mxu0 %v1473
        %1547 = vmatmul.bf16.gmra.mxu0 %v1537
        %v1548 = vpop.f32.mrf.mxu0
        %v1549 = vadd.f32 0.0, %v1548
        %v1550 = vpop.f32.mrf.mxu0
        %v1551 = vadd.f32 0.0, %v1550
        %1552 = vdwg.mxu0
        %v1553 = vpack.c.bf16 %v1549, %v1549
        %v1554 = vpack.c.bf16 %v1551, %v1551
        %s1555 = scalar_lea.vmem [#allocation7], 24
        %v1556 = vld [vmem:[%s1555] sm:$0xf]
        %v1557 = vld [vmem:[%s1555 + $0x4] sm:$0xf]
        %v1560 = vunpack.c.l.b16 %v1556
        %v1561 = vunpack.c.l.b16 %v1557
        %v1562 = vpack.c.b16 %v1561, %v1560
        %v1564 = vsel %vm1481, %v1562, 0
        %1566 = vmatpush.bf16.msra.mxu0 0
        %1567 = vmatpush.bf16.msra.mxu0 0
        %1568 = vmatpush.bf16.msra.mxu0 0
        %1569 = vmatpush.bf16.msra.mxu0 0
        %1570 = vmatpush.bf16.msra.mxu0 0
        %1571 = vmatpush.bf16.msra.mxu0 0
        %1572 = vmatpush.bf16.msra.mxu0 0
        %1573 = vmatpush.bf16.msra.mxu0 %v1473
        %1574 = vmatmul.bf16.gmra.mxu0 %v1564
        %v1575 = vpop.f32.mrf.mxu0
        %v1576 = vadd.f32 0.0, %v1575
        %v1577 = vpop.f32.mrf.mxu0
        %v1578 = vadd.f32 0.0, %v1577
        %1579 = vdwg.mxu0
        %v1580 = vpack.c.bf16 %v1576, %v1576
        %v1581 = vpack.c.bf16 %v1578, %v1578
        %s1582 = scalar_lea.vmem [#allocation7], 32
        %v1583 = vld [vmem:[%s1582] sm:$0xf]
        %v1584 = vld [vmem:[%s1582 + $0x4] sm:$0xf]
        %v1587 = vunpack.c.l.b16 %v1583
        %v1588 = vunpack.c.l.b16 %v1584
        %v1589 = vpack.c.b16 %v1588, %v1587
        %v1591 = vsel %vm1481, %v1589, 0
        %1593 = vmatpush.bf16.msra.mxu0 0
        %1594 = vmatpush.bf16.msra.mxu0 0
        %1595 = vmatpush.bf16.msra.mxu0 0
        %1596 = vmatpush.bf16.msra.mxu0 0
        %1597 = vmatpush.bf16.msra.mxu0 0
        %1598 = vmatpush.bf16.msra.mxu0 0
        %1599 = vmatpush.bf16.msra.mxu0 0
        %1600 = vmatpush.bf16.msra.mxu0 %v1473
        %1601 = vmatmul.bf16.gmra.mxu0 %v1591
        %v1602 = vpop.f32.mrf.mxu0
        %v1603 = vadd.f32 0.0, %v1602
        %v1604 = vpop.f32.mrf.mxu0
        %v1605 = vadd.f32 0.0, %v1604
        %1606 = vdwg.mxu0
        %v1607 = vpack.c.bf16 %v1603, %v1603
        %v1608 = vpack.c.bf16 %v1605, %v1605
        %s1609 = scalar_lea.vmem [#allocation7], 40
        %v1610 = vld [vmem:[%s1609] sm:$0xf]
        %v1611 = vld [vmem:[%s1609 + $0x4] sm:$0xf]
        %v1614 = vunpack.c.l.b16 %v1610
        %v1615 = vunpack.c.l.b16 %v1611
        %v1616 = vpack.c.b16 %v1615, %v1614
        %v1618 = vsel %vm1481, %v1616, 0
        %1620 = vmatpush.bf16.msra.mxu0 0
        %1621 = vmatpush.bf16.msra.mxu0 0
        %1622 = vmatpush.bf16.msra.mxu0 0
        %1623 = vmatpush.bf16.msra.mxu0 0
        %1624 = vmatpush.bf16.msra.mxu0 0
        %1625 = vmatpush.bf16.msra.mxu0 0
        %1626 = vmatpush.bf16.msra.mxu0 0
        %1627 = vmatpush.bf16.msra.mxu0 %v1473
        %1628 = vmatmul.bf16.gmra.mxu0 %v1618
        %v1629 = vpop.f32.mrf.mxu0
        %v1630 = vadd.f32 0.0, %v1629
        %v1631 = vpop.f32.mrf.mxu0
        %v1632 = vadd.f32 0.0, %v1631
        %1633 = vdwg.mxu0
        %v1634 = vpack.c.bf16 %v1630, %v1630
        %v1635 = vpack.c.bf16 %v1632, %v1632
        %s1636 = scalar_lea.vmem [#allocation7], 48
        %v1637 = vld [vmem:[%s1636] sm:$0xf]
        %v1638 = vld [vmem:[%s1636 + $0x4] sm:$0xf]
        %v1641 = vunpack.c.l.b16 %v1637
        %v1642 = vunpack.c.l.b16 %v1638
        %v1643 = vpack.c.b16 %v1642, %v1641
        %v1645 = vsel %vm1481, %v1643, 0
        %1647 = vmatpush.bf16.msra.mxu0 0
        %1648 = vmatpush.bf16.msra.mxu0 0
        %1649 = vmatpush.bf16.msra.mxu0 0
        %1650 = vmatpush.bf16.msra.mxu0 0
        %1651 = vmatpush.bf16.msra.mxu0 0
        %1652 = vmatpush.bf16.msra.mxu0 0
        %1653 = vmatpush.bf16.msra.mxu0 0
        %1654 = vmatpush.bf16.msra.mxu0 %v1473
        %1655 = vmatmul.bf16.gmra.mxu0 %v1645
        %v1656 = vpop.f32.mrf.mxu0
        %v1657 = vadd.f32 0.0, %v1656
        %v1658 = vpop.f32.mrf.mxu0
        %v1659 = vadd.f32 0.0, %v1658
        %1660 = vdwg.mxu0
        %v1661 = vpack.c.bf16 %v1657, %v1657
        %v1662 = vpack.c.bf16 %v1659, %v1659
        %s1663 = scalar_lea.vmem [#allocation7], 56
        %v1664 = vld [vmem:[%s1663] sm:$0xf]
        %v1665 = vld [vmem:[%s1663 + $0x4] sm:$0xf]
        %v1668 = vunpack.c.l.b16 %v1664
        %v1669 = vunpack.c.l.b16 %v1665
        %v1670 = vpack.c.b16 %v1669, %v1668
        %v1672 = vsel %vm1481, %v1670, 0
        %1674 = vmatpush.bf16.msra.mxu0 0
        %1675 = vmatpush.bf16.msra.mxu0 0
        %1676 = vmatpush.bf16.msra.mxu0 0
        %1677 = vmatpush.bf16.msra.mxu0 0
        %1678 = vmatpush.bf16.msra.mxu0 0
        %1679 = vmatpush.bf16.msra.mxu0 0
        %1680 = vmatpush.bf16.msra.mxu0 0
        %1681 = vmatpush.bf16.msra.mxu0 %v1473
        %1682 = vmatmul.bf16.gmra.mxu0 %v1672
        %v1683 = vpop.f32.mrf.mxu0
        %v1684 = vadd.f32 0.0, %v1683
        %v1685 = vpop.f32.mrf.mxu0
        %v1686 = vadd.f32 0.0, %v1685
        %1687 = vdwg.mxu0
        %v1688 = vpack.c.bf16 %v1684, %v1684
        %v1689 = vpack.c.bf16 %v1686, %v1686
        %s1690 = scalar_lea.vmem [#allocation7], 64
        %v1691 = vld [vmem:[%s1690] sm:$0xf]
        %v1692 = vld [vmem:[%s1690 + $0x4] sm:$0xf]
        %v1695 = vunpack.c.l.b16 %v1691
        %v1696 = vunpack.c.l.b16 %v1692
        %v1697 = vpack.c.b16 %v1696, %v1695
        %v1699 = vsel %vm1481, %v1697, 0
        %1701 = vmatpush.bf16.msra.mxu0 0
        %1702 = vmatpush.bf16.msra.mxu0 0
        %1703 = vmatpush.bf16.msra.mxu0 0
        %1704 = vmatpush.bf16.msra.mxu0 0
        %1705 = vmatpush.bf16.msra.mxu0 0
        %1706 = vmatpush.bf16.msra.mxu0 0
        %1707 = vmatpush.bf16.msra.mxu0 0
        %1708 = vmatpush.bf16.msra.mxu0 %v1473
        %1709 = vmatmul.bf16.gmra.mxu0 %v1699
        %v1710 = vpop.f32.mrf.mxu0
        %v1711 = vadd.f32 0.0, %v1710
        %v1712 = vpop.f32.mrf.mxu0
        %v1713 = vadd.f32 0.0, %v1712
        %1714 = vdwg.mxu0
        %v1715 = vpack.c.bf16 %v1711, %v1711
        %v1716 = vpack.c.bf16 %v1713, %v1713
        %v1719 = vunpack.c.l.b16 %v1499
        %v1720 = vunpack.c.l.b16 %v1500
        %v1721 = vpack.c.b16 %v1720, %v1719
        %v1725 = vunpack.c.l.b16 %v1526
        %v1726 = vunpack.c.l.b16 %v1527
        %v1727 = vpack.c.b16 %v1726, %v1725
        %v1731 = vunpack.c.l.b16 %v1580
        %v1732 = vunpack.c.l.b16 %v1581
        %v1733 = vpack.c.b16 %v1732, %v1731
        %v1737 = vunpack.c.l.b16 %v1607
        %v1738 = vunpack.c.l.b16 %v1608
        %v1739 = vpack.c.b16 %v1738, %v1737
        %v1741 = vld [vmem:[#allocation8] sm:$0xff]
        %v1742 = vld [vmem:[#allocation8 + $0x8] sm:$0xff]
        %v1743 = vld [vmem:[#allocation8 + $0x10] sm:$0xff]
        %v1744 = vld [vmem:[#allocation8 + $0x18] sm:$0xff]
        %v1745 = vld [vmem:[#allocation8 + $0x20] sm:$0xff]
        %v1746 = vld [vmem:[#allocation8 + $0x28] sm:$0xff]
        %v1747 = vld [vmem:[#allocation8 + $0x30] sm:$0xff]
        %v1748 = vld [vmem:[#allocation8 + $0x38] sm:$0xff]
        %v1749 = vld [vmem:[#allocation8 + $0x40] sm:$0xff]
        %v1750 = vld [vmem:[#allocation8 + $0x48] sm:$0xff]
        %v1751 = vld [vmem:[#allocation8 + $0x50] sm:$0xff]
        %v1752 = vld [vmem:[#allocation8 + $0x58] sm:$0xff]
        %v1753 = vld [vmem:[#allocation8 + $0x60] sm:$0xff]
        %v1754 = vld [vmem:[#allocation8 + $0x68] sm:$0xff]
        %v1755 = vld [vmem:[#allocation8 + $0x70] sm:$0xff]
        %v1756 = vld [vmem:[#allocation8 + $0x78] sm:$0xff]
        %v1757 = vld [vmem:[#allocation8 + $0x80] sm:$0xff]
        %v1758 = vld [vmem:[#allocation8 + $0x88] sm:$0xff]
        %v1759 = vld [vmem:[#allocation8 + $0x90] sm:$0xff]
        %v1760 = vld [vmem:[#allocation8 + $0x98] sm:$0xff]
        %v1761 = vld [vmem:[#allocation8 + $0xa0] sm:$0xff]
        %v1762 = vld [vmem:[#allocation8 + $0xa8] sm:$0xff]
        %v1763 = vld [vmem:[#allocation8 + $0xb0] sm:$0xff]
        %v1764 = vld [vmem:[#allocation8 + $0xb8] sm:$0xff]
        %v1765 = vld [vmem:[#allocation8 + $0xc0] sm:$0xff]
        %v1766 = vld [vmem:[#allocation8 + $0xc8] sm:$0xff]
        %v1767 = vld [vmem:[#allocation8 + $0xd0] sm:$0xff]
        %v1768 = vld [vmem:[#allocation8 + $0xd8] sm:$0xff]
        %v1769 = vld [vmem:[#allocation8 + $0xe0] sm:$0xff]
        %v1770 = vld [vmem:[#allocation8 + $0xe8] sm:$0xff]
        %v1771 = vld [vmem:[#allocation8 + $0xf0] sm:$0xff]
        %v1772 = vld [vmem:[#allocation8 + $0xf8] sm:$0xff]
        %v1773 = vld [vmem:[#allocation8 + $0x100] sm:$0xff]
        %v1774 = vld [vmem:[#allocation8 + $0x108] sm:$0xff]
        %v1775 = vld [vmem:[#allocation8 + $0x110] sm:$0xff]
        %v1776 = vld [vmem:[#allocation8 + $0x118] sm:$0xff]
        %v1777 = vld [vmem:[#allocation8 + $0x120] sm:$0xff]
        %v1778 = vld [vmem:[#allocation8 + $0x128] sm:$0xff]
        %v1779 = vld [vmem:[#allocation8 + $0x130] sm:$0xff]
        %v1780 = vld [vmem:[#allocation8 + $0x138] sm:$0xff]
        %v1781 = vld [vmem:[#allocation8 + $0x140] sm:$0xff]
        %v1782 = vld [vmem:[#allocation8 + $0x148] sm:$0xff]
        %v1783 = vld [vmem:[#allocation8 + $0x150] sm:$0xff]
        %v1784 = vld [vmem:[#allocation8 + $0x158] sm:$0xff]
        %v1785 = vld [vmem:[#allocation8 + $0x160] sm:$0xff]
        %v1786 = vld [vmem:[#allocation8 + $0x168] sm:$0xff]
        %v1787 = vld [vmem:[#allocation8 + $0x170] sm:$0xff]
        %v1788 = vld [vmem:[#allocation8 + $0x178] sm:$0xff]
        %v1789 = vld [vmem:[#allocation8 + $0x180] sm:$0xff]
        %v1790 = vld [vmem:[#allocation8 + $0x188] sm:$0xff]
        %v1791 = vld [vmem:[#allocation8 + $0x190] sm:$0xff]
        %v1792 = vld [vmem:[#allocation8 + $0x198] sm:$0xff]
        %v1793 = vld [vmem:[#allocation8 + $0x1a0] sm:$0xff]
        %v1794 = vld [vmem:[#allocation8 + $0x1a8] sm:$0xff]
        %v1795 = vld [vmem:[#allocation8 + $0x1b0] sm:$0xff]
        %v1796 = vld [vmem:[#allocation8 + $0x1b8] sm:$0xff]
        %v1797 = vld [vmem:[#allocation8 + $0x1c0] sm:$0xff]
        %v1798 = vld [vmem:[#allocation8 + $0x1c8] sm:$0xff]
        %v1799 = vld [vmem:[#allocation8 + $0x1d0] sm:$0xff]
        %v1800 = vld [vmem:[#allocation8 + $0x1d8] sm:$0xff]
        %v1801 = vld [vmem:[#allocation8 + $0x1e0] sm:$0xff]
        %v1802 = vld [vmem:[#allocation8 + $0x1e8] sm:$0xff]
        %v1803 = vld [vmem:[#allocation8 + $0x1f0] sm:$0xff]
        %v1804 = vld [vmem:[#allocation8 + $0x1f8] sm:$0xff]
        %v1805 = vld [vmem:[%s5] sm:$0x3]
        %v1807 = vperm.slane %v1805, 0
        %v1808 = vperm.slane %v1805, 1
        %v1875 = vunpack.c.l.b16 %v1741
        %v1876 = vunpack.c.h.b16 %v1741
        %v1877 = vunpack.c.l.b16 %v1742
        %v1878 = vunpack.c.h.b16 %v1742
        %v1879 = vunpack.c.l.b16 %v1743
        %v1880 = vunpack.c.h.b16 %v1743
        %v1881 = vunpack.c.l.b16 %v1744
        %v1882 = vunpack.c.h.b16 %v1744
        %v1883 = vunpack.c.l.b16 %v1745
        %v1884 = vunpack.c.h.b16 %v1745
        %v1885 = vunpack.c.l.b16 %v1746
        %v1886 = vunpack.c.h.b16 %v1746
        %v1887 = vunpack.c.l.b16 %v1747
        %v1888 = vunpack.c.h.b16 %v1747
        %v1889 = vunpack.c.l.b16 %v1748
        %v1890 = vunpack.c.h.b16 %v1748
        %v1891 = vunpack.c.l.b16 %v1749
        %v1892 = vunpack.c.h.b16 %v1749
        %v1893 = vunpack.c.l.b16 %v1750
        %v1894 = vunpack.c.h.b16 %v1750
        %v1895 = vunpack.c.l.b16 %v1751
        %v1896 = vunpack.c.h.b16 %v1751
        %v1897 = vunpack.c.l.b16 %v1752
        %v1898 = vunpack.c.h.b16 %v1752
        %v1899 = vunpack.c.l.b16 %v1753
        %v1900 = vunpack.c.h.b16 %v1753
        %v1901 = vunpack.c.l.b16 %v1754
        %v1902 = vunpack.c.h.b16 %v1754
        %v1903 = vunpack.c.l.b16 %v1755
        %v1904 = vunpack.c.h.b16 %v1755
        %v1905 = vunpack.c.l.b16 %v1756
        %v1906 = vunpack.c.h.b16 %v1756
        %v1907 = vunpack.c.l.b16 %v1757
        %v1908 = vunpack.c.h.b16 %v1757
        %v1909 = vunpack.c.l.b16 %v1758
        %v1910 = vunpack.c.h.b16 %v1758
        %v1911 = vunpack.c.l.b16 %v1759
        %v1912 = vunpack.c.h.b16 %v1759
        %v1913 = vunpack.c.l.b16 %v1760
        %v1914 = vunpack.c.h.b16 %v1760
        %v1915 = vunpack.c.l.b16 %v1761
        %v1916 = vunpack.c.h.b16 %v1761
        %v1917 = vunpack.c.l.b16 %v1762
        %v1918 = vunpack.c.h.b16 %v1762
        %v1919 = vunpack.c.l.b16 %v1763
        %v1920 = vunpack.c.h.b16 %v1763
        %v1921 = vunpack.c.l.b16 %v1764
        %v1922 = vunpack.c.h.b16 %v1764
        %v1923 = vunpack.c.l.b16 %v1765
        %v1924 = vunpack.c.h.b16 %v1765
        %v1925 = vunpack.c.l.b16 %v1766
        %v1926 = vunpack.c.h.b16 %v1766
        %v1927 = vunpack.c.l.b16 %v1767
        %v1928 = vunpack.c.h.b16 %v1767
        %v1929 = vunpack.c.l.b16 %v1768
        %v1930 = vunpack.c.h.b16 %v1768
        %v1931 = vunpack.c.l.b16 %v1769
        %v1932 = vunpack.c.h.b16 %v1769
        %v1933 = vunpack.c.l.b16 %v1770
        %v1934 = vunpack.c.h.b16 %v1770
        %v1935 = vunpack.c.l.b16 %v1771
        %v1936 = vunpack.c.h.b16 %v1771
        %v1937 = vunpack.c.l.b16 %v1772
        %v1938 = vunpack.c.h.b16 %v1772
        %v1939 = vunpack.c.l.b16 %v1773
        %v1940 = vunpack.c.h.b16 %v1773
        %v1941 = vunpack.c.l.b16 %v1774
        %v1942 = vunpack.c.h.b16 %v1774
        %v1943 = vunpack.c.l.b16 %v1775
        %v1944 = vunpack.c.h.b16 %v1775
        %v1945 = vunpack.c.l.b16 %v1776
        %v1946 = vunpack.c.h.b16 %v1776
        %v1947 = vunpack.c.l.b16 %v1777
        %v1948 = vunpack.c.h.b16 %v1777
        %v1949 = vunpack.c.l.b16 %v1778
        %v1950 = vunpack.c.h.b16 %v1778
        %v1951 = vunpack.c.l.b16 %v1779
        %v1952 = vunpack.c.h.b16 %v1779
        %v1953 = vunpack.c.l.b16 %v1780
        %v1954 = vunpack.c.h.b16 %v1780
        %v1955 = vunpack.c.l.b16 %v1781
        %v1956 = vunpack.c.h.b16 %v1781
        %v1957 = vunpack.c.l.b16 %v1782
        %v1958 = vunpack.c.h.b16 %v1782
        %v1959 = vunpack.c.l.b16 %v1783
        %v1960 = vunpack.c.h.b16 %v1783
        %v1961 = vunpack.c.l.b16 %v1784
        %v1962 = vunpack.c.h.b16 %v1784
        %v1963 = vunpack.c.l.b16 %v1785
        %v1964 = vunpack.c.h.b16 %v1785
        %v1965 = vunpack.c.l.b16 %v1786
        %v1966 = vunpack.c.h.b16 %v1786
        %v1967 = vunpack.c.l.b16 %v1787
        %v1968 = vunpack.c.h.b16 %v1787
        %v1969 = vunpack.c.l.b16 %v1788
        %v1970 = vunpack.c.h.b16 %v1788
        %v1971 = vunpack.c.l.b16 %v1789
        %v1972 = vunpack.c.h.b16 %v1789
        %v1973 = vunpack.c.l.b16 %v1790
        %v1974 = vunpack.c.h.b16 %v1790
        %v1975 = vunpack.c.l.b16 %v1791
        %v1976 = vunpack.c.h.b16 %v1791
        %v1977 = vunpack.c.l.b16 %v1792
        %v1978 = vunpack.c.h.b16 %v1792
        %v1979 = vunpack.c.l.b16 %v1793
        %v1980 = vunpack.c.h.b16 %v1793
        %v1981 = vunpack.c.l.b16 %v1794
        %v1982 = vunpack.c.h.b16 %v1794
        %v1983 = vunpack.c.l.b16 %v1795
        %v1984 = vunpack.c.h.b16 %v1795
        %v1985 = vunpack.c.l.b16 %v1796
        %v1986 = vunpack.c.h.b16 %v1796
        %v1987 = vunpack.c.l.b16 %v1797
        %v1988 = vunpack.c.h.b16 %v1797
        %v1989 = vunpack.c.l.b16 %v1798
        %v1990 = vunpack.c.h.b16 %v1798
        %v1991 = vunpack.c.l.b16 %v1799
        %v1992 = vunpack.c.h.b16 %v1799
        %v1993 = vunpack.c.l.b16 %v1800
        %v1994 = vunpack.c.h.b16 %v1800
        %v1995 = vunpack.c.l.b16 %v1801
        %v1996 = vunpack.c.h.b16 %v1801
        %v1997 = vunpack.c.l.b16 %v1802
        %v1998 = vunpack.c.h.b16 %v1802
        %v1999 = vunpack.c.l.b16 %v1803
        %v2000 = vunpack.c.h.b16 %v1803
        %v2001 = vunpack.c.l.b16 %v1804
        %v2002 = vunpack.c.h.b16 %v1804
        %v2003 = vpack.c.b16 %v1877, %v1875
        %v2004 = vpack.c.b16 %v1878, %v1876
        %v2005 = vpack.c.b16 %v1881, %v1879
        %v2006 = vpack.c.b16 %v1882, %v1880
        %v2007 = vpack.c.b16 %v1885, %v1883
        %v2008 = vpack.c.b16 %v1886, %v1884
        %v2009 = vpack.c.b16 %v1889, %v1887
        %v2010 = vpack.c.b16 %v1890, %v1888
        %v2011 = vpack.c.b16 %v1893, %v1891
        %v2012 = vpack.c.b16 %v1894, %v1892
        %v2013 = vpack.c.b16 %v1897, %v1895
        %v2014 = vpack.c.b16 %v1898, %v1896
        %v2015 = vpack.c.b16 %v1901, %v1899
        %v2016 = vpack.c.b16 %v1902, %v1900
        %v2017 = vpack.c.b16 %v1905, %v1903
        %v2018 = vpack.c.b16 %v1906, %v1904
        %v2019 = vpack.c.b16 %v1909, %v1907
        %v2020 = vpack.c.b16 %v1910, %v1908
        %v2021 = vpack.c.b16 %v1913, %v1911
        %v2022 = vpack.c.b16 %v1914, %v1912
        %v2023 = vpack.c.b16 %v1917, %v1915
        %v2024 = vpack.c.b16 %v1918, %v1916
        %v2025 = vpack.c.b16 %v1921, %v1919
        %v2026 = vpack.c.b16 %v1922, %v1920
        %v2027 = vpack.c.b16 %v1925, %v1923
        %v2028 = vpack.c.b16 %v1926, %v1924
        %v2029 = vpack.c.b16 %v1929, %v1927
        %v2030 = vpack.c.b16 %v1930, %v1928
        %v2031 = vpack.c.b16 %v1933, %v1931
        %v2032 = vpack.c.b16 %v1934, %v1932
        %v2033 = vpack.c.b16 %v1937, %v1935
        %v2034 = vpack.c.b16 %v1938, %v1936
        %v2035 = vpack.c.b16 %v1941, %v1939
        %v2036 = vpack.c.b16 %v1942, %v1940
        %v2037 = vpack.c.b16 %v1945, %v1943
        %v2038 = vpack.c.b16 %v1946, %v1944
        %v2039 = vpack.c.b16 %v1949, %v1947
        %v2040 = vpack.c.b16 %v1950, %v1948
        %v2041 = vpack.c.b16 %v1953, %v1951
        %v2042 = vpack.c.b16 %v1954, %v1952
        %v2043 = vpack.c.b16 %v1957, %v1955
        %v2044 = vpack.c.b16 %v1958, %v1956
        %v2045 = vpack.c.b16 %v1961, %v1959
        %v2046 = vpack.c.b16 %v1962, %v1960
        %v2047 = vpack.c.b16 %v1965, %v1963
        %v2048 = vpack.c.b16 %v1966, %v1964
        %v2049 = vpack.c.b16 %v1969, %v1967
        %v2050 = vpack.c.b16 %v1970, %v1968
        %v2051 = vpack.c.b16 %v1973, %v1971
        %v2052 = vpack.c.b16 %v1974, %v1972
        %v2053 = vpack.c.b16 %v1977, %v1975
        %v2054 = vpack.c.b16 %v1978, %v1976
        %v2055 = vpack.c.b16 %v1981, %v1979
        %v2056 = vpack.c.b16 %v1982, %v1980
        %v2057 = vpack.c.b16 %v1985, %v1983
        %v2058 = vpack.c.b16 %v1986, %v1984
        %v2059 = vpack.c.b16 %v1989, %v1987
        %v2060 = vpack.c.b16 %v1990, %v1988
        %v2061 = vpack.c.b16 %v1993, %v1991
        %v2062 = vpack.c.b16 %v1994, %v1992
        %v2063 = vpack.c.b16 %v1997, %v1995
        %v2064 = vpack.c.b16 %v1998, %v1996
        %v2065 = vpack.c.b16 %v2001, %v1999
        %v2066 = vpack.c.b16 %v2002, %v2000
        %2131 = vmatpush.bf16.msra.mxu0 %v2017
        %2132 = vmatpush.bf16.msra.mxu0 %v2015
        %2133 = vmatpush.bf16.msra.mxu0 %v2013
        %2134 = vmatpush.bf16.msra.mxu0 %v2011
        %2135 = vmatpush.bf16.msra.mxu0 %v2009
        %2136 = vmatpush.bf16.msra.mxu0 %v2007
        %2137 = vmatpush.bf16.msra.mxu0 %v2005
        %2138 = vmatpush.bf16.msra.mxu0 %v2003
        %2139 = vmatmul.bf16.gmra.mxu0 %v1721
        %v2140 = vpop.f32.mrf.mxu0
        %v2141 = vadd.f32 %v1807, %v2140
        %v2142 = vpop.f32.mrf.mxu0
        %v2143 = vadd.f32 %v1807, %v2142
        %2144 = vdwg.mxu0
        %2145 = vmatpush.bf16.msra.mxu0 %v2033
        %2146 = vmatpush.bf16.msra.mxu0 %v2031
        %2147 = vmatpush.bf16.msra.mxu0 %v2029
        %2148 = vmatpush.bf16.msra.mxu0 %v2027
        %2149 = vmatpush.bf16.msra.mxu0 %v2025
        %2150 = vmatpush.bf16.msra.mxu0 %v2023
        %2151 = vmatpush.bf16.msra.mxu0 %v2021
        %2152 = vmatpush.bf16.msra.mxu0 %v2019
        %2153 = vmatmul.bf16.gmra.mxu0 %v1727
        %v2154 = vpop.f32.mrf.mxu0
        %v2155 = vadd.f32 %v2141, %v2154
        %v2156 = vpop.f32.mrf.mxu0
        %v2157 = vadd.f32 %v2143, %v2156
        %2158 = vdwg.mxu0
        %2159 = vmatpush.bf16.msra.mxu0 %v2049
        %2160 = vmatpush.bf16.msra.mxu0 %v2047
        %2161 = vmatpush.bf16.msra.mxu0 %v2045
        %2162 = vmatpush.bf16.msra.mxu0 %v2043
        %2163 = vmatpush.bf16.msra.mxu0 %v2041
        %2164 = vmatpush.bf16.msra.mxu0 %v2039
        %2165 = vmatpush.bf16.msra.mxu0 %v2037
        %2166 = vmatpush.bf16.msra.mxu0 %v2035
        %2167 = vmatmul.bf16.gmra.mxu0 %v1733
        %v2168 = vpop.f32.mrf.mxu0
        %v2169 = vadd.f32 %v2155, %v2168
        %v2170 = vpop.f32.mrf.mxu0
        %v2171 = vadd.f32 %v2157, %v2170
        %2172 = vdwg.mxu0
        %2173 = vmatpush.bf16.msra.mxu0 %v2065
        %2174 = vmatpush.bf16.msra.mxu0 %v2063
        %2175 = vmatpush.bf16.msra.mxu0 %v2061
        %2176 = vmatpush.bf16.msra.mxu0 %v2059
        %2177 = vmatpush.bf16.msra.mxu0 %v2057
        %2178 = vmatpush.bf16.msra.mxu0 %v2055
        %2179 = vmatpush.bf16.msra.mxu0 %v2053
        %2180 = vmatpush.bf16.msra.mxu0 %v2051
        %2181 = vmatmul.bf16.gmra.mxu0 %v1739
        %v2182 = vpop.f32.mrf.mxu0
        %v2183 = vadd.f32 %v2169, %v2182
        %v2184 = vpop.f32.mrf.mxu0
        %v2185 = vadd.f32 %v2171, %v2184
        %2186 = vdwg.mxu0
        %2187 = vmatpush.bf16.msra.mxu0 %v2018
        %2188 = vmatpush.bf16.msra.mxu0 %v2016
        %2189 = vmatpush.bf16.msra.mxu0 %v2014
        %2190 = vmatpush.bf16.msra.mxu0 %v2012
        %2191 = vmatpush.bf16.msra.mxu0 %v2010
        %2192 = vmatpush.bf16.msra.mxu0 %v2008
        %2193 = vmatpush.bf16.msra.mxu0 %v2006
        %2194 = vmatpush.bf16.msra.mxu0 %v2004
        %2195 = vmatmul.bf16.gmra.mxu0 %v1721
        %v2196 = vpop.f32.mrf.mxu0
        %v2197 = vadd.f32 %v1808, %v2196
        %v2198 = vpop.f32.mrf.mxu0
        %v2199 = vadd.f32 %v1808, %v2198
        %2200 = vdwg.mxu0
        %2201 = vmatpush.bf16.msra.mxu0 %v2034
        %2202 = vmatpush.bf16.msra.mxu0 %v2032
        %2203 = vmatpush.bf16.msra.mxu0 %v2030
        %2204 = vmatpush.bf16.msra.mxu0 %v2028
        %2205 = vmatpush.bf16.msra.mxu0 %v2026
        %2206 = vmatpush.bf16.msra.mxu0 %v2024
        %2207 = vmatpush.bf16.msra.mxu0 %v2022
        %2208 = vmatpush.bf16.msra.mxu0 %v2020
        %2209 = vmatmul.bf16.gmra.mxu0 %v1727
        %v2210 = vpop.f32.mrf.mxu0
        %v2211 = vadd.f32 %v2197, %v2210
        %v2212 = vpop.f32.mrf.mxu0
        %v2213 = vadd.f32 %v2199, %v2212
        %2214 = vdwg.mxu0
        %2215 = vmatpush.bf16.msra.mxu0 %v2050
        %2216 = vmatpush.bf16.msra.mxu0 %v2048
        %2217 = vmatpush.bf16.msra.mxu0 %v2046
        %2218 = vmatpush.bf16.msra.mxu0 %v2044
        %2219 = vmatpush.bf16.msra.mxu0 %v2042
        %2220 = vmatpush.bf16.msra.mxu0 %v2040
        %2221 = vmatpush.bf16.msra.mxu0 %v2038
        %2222 = vmatpush.bf16.msra.mxu0 %v2036
        %2223 = vmatmul.bf16.gmra.mxu0 %v1733
        %v2224 = vpop.f32.mrf.mxu0
        %v2225 = vadd.f32 %v2211, %v2224
        %v2226 = vpop.f32.mrf.mxu0
        %v2227 = vadd.f32 %v2213, %v2226
        %2228 = vdwg.mxu0
        %2229 = vmatpush.bf16.msra.mxu0 %v2066
        %2230 = vmatpush.bf16.msra.mxu0 %v2064
        %2231 = vmatpush.bf16.msra.mxu0 %v2062
        %2232 = vmatpush.bf16.msra.mxu0 %v2060
        %2233 = vmatpush.bf16.msra.mxu0 %v2058
        %2234 = vmatpush.bf16.msra.mxu0 %v2056
        %2235 = vmatpush.bf16.msra.mxu0 %v2054
        %2236 = vmatpush.bf16.msra.mxu0 %v2052
        %2237 = vmatmul.bf16.gmra.mxu0 %v1739
        %v2238 = vpop.f32.mrf.mxu0
        %v2239 = vadd.f32 %v2225, %v2238
        %v2240 = vpop.f32.mrf.mxu0
        %v2241 = vadd.f32 %v2227, %v2240
        %2242 = vdwg.mxu0
        %v2243 = vmax.f32 %v2183, 0.0
        %v2244 = vmax.f32 %v2239, 0.0
        %v2245 = vmax.f32 %v2185, 0.0
        %v2246 = vmax.f32 %v2241, 0.0
        %v2247 = vpack.c.bf16 %v2244, %v2243
        %v2248 = vpack.c.bf16 %v2246, %v2245
        %v2251 = vunpack.c.l.b16 %v1553
        %v2252 = vunpack.c.l.b16 %v1554
        %v2253 = vpack.c.b16 %v2252, %v2251
        %v2257 = vunpack.c.l.b16 %v1634
        %v2258 = vunpack.c.l.b16 %v1635
        %v2259 = vpack.c.b16 %v2258, %v2257
        %s2261 = scalar_lea.vmem [#allocation8], 512
        %v2262 = vld [vmem:[%s2261] sm:$0xff]
        %v2263 = vld [vmem:[%s2261 + $0x8] sm:$0xff]
        %v2264 = vld [vmem:[%s2261 + $0x10] sm:$0xff]
        %v2265 = vld [vmem:[%s2261 + $0x18] sm:$0xff]
        %v2266 = vld [vmem:[%s2261 + $0x20] sm:$0xff]
        %v2267 = vld [vmem:[%s2261 + $0x28] sm:$0xff]
        %v2268 = vld [vmem:[%s2261 + $0x30] sm:$0xff]
        %v2269 = vld [vmem:[%s2261 + $0x38] sm:$0xff]
        %v2270 = vld [vmem:[%s2261 + $0x40] sm:$0xff]
        %v2271 = vld [vmem:[%s2261 + $0x48] sm:$0xff]
        %v2272 = vld [vmem:[%s2261 + $0x50] sm:$0xff]
        %v2273 = vld [vmem:[%s2261 + $0x58] sm:$0xff]
        %v2274 = vld [vmem:[%s2261 + $0x60] sm:$0xff]
        %v2275 = vld [vmem:[%s2261 + $0x68] sm:$0xff]
        %v2276 = vld [vmem:[%s2261 + $0x70] sm:$0xff]
        %v2277 = vld [vmem:[%s2261 + $0x78] sm:$0xff]
        %v2278 = vld [vmem:[%s2261 + $0x80] sm:$0xff]
        %v2279 = vld [vmem:[%s2261 + $0x88] sm:$0xff]
        %v2280 = vld [vmem:[%s2261 + $0x90] sm:$0xff]
        %v2281 = vld [vmem:[%s2261 + $0x98] sm:$0xff]
        %v2282 = vld [vmem:[%s2261 + $0xa0] sm:$0xff]
        %v2283 = vld [vmem:[%s2261 + $0xa8] sm:$0xff]
        %v2284 = vld [vmem:[%s2261 + $0xb0] sm:$0xff]
        %v2285 = vld [vmem:[%s2261 + $0xb8] sm:$0xff]
        %v2286 = vld [vmem:[%s2261 + $0xc0] sm:$0xff]
        %v2287 = vld [vmem:[%s2261 + $0xc8] sm:$0xff]
        %v2288 = vld [vmem:[%s2261 + $0xd0] sm:$0xff]
        %v2289 = vld [vmem:[%s2261 + $0xd8] sm:$0xff]
        %v2290 = vld [vmem:[%s2261 + $0xe0] sm:$0xff]
        %v2291 = vld [vmem:[%s2261 + $0xe8] sm:$0xff]
        %v2292 = vld [vmem:[%s2261 + $0xf0] sm:$0xff]
        %v2293 = vld [vmem:[%s2261 + $0xf8] sm:$0xff]
        %v2294 = vld [vmem:[%s2261 + $0x100] sm:$0xff]
        %v2295 = vld [vmem:[%s2261 + $0x108] sm:$0xff]
        %v2296 = vld [vmem:[%s2261 + $0x110] sm:$0xff]
        %v2297 = vld [vmem:[%s2261 + $0x118] sm:$0xff]
        %v2298 = vld [vmem:[%s2261 + $0x120] sm:$0xff]
        %v2299 = vld [vmem:[%s2261 + $0x128] sm:$0xff]
        %v2300 = vld [vmem:[%s2261 + $0x130] sm:$0xff]
        %v2301 = vld [vmem:[%s2261 + $0x138] sm:$0xff]
        %v2302 = vld [vmem:[%s2261 + $0x140] sm:$0xff]
        %v2303 = vld [vmem:[%s2261 + $0x148] sm:$0xff]
        %v2304 = vld [vmem:[%s2261 + $0x150] sm:$0xff]
        %v2305 = vld [vmem:[%s2261 + $0x158] sm:$0xff]
        %v2306 = vld [vmem:[%s2261 + $0x160] sm:$0xff]
        %v2307 = vld [vmem:[%s2261 + $0x168] sm:$0xff]
        %v2308 = vld [vmem:[%s2261 + $0x170] sm:$0xff]
        %v2309 = vld [vmem:[%s2261 + $0x178] sm:$0xff]
        %v2310 = vld [vmem:[%s2261 + $0x180] sm:$0xff]
        %v2311 = vld [vmem:[%s2261 + $0x188] sm:$0xff]
        %v2312 = vld [vmem:[%s2261 + $0x190] sm:$0xff]
        %v2313 = vld [vmem:[%s2261 + $0x198] sm:$0xff]
        %v2314 = vld [vmem:[%s2261 + $0x1a0] sm:$0xff]
        %v2315 = vld [vmem:[%s2261 + $0x1a8] sm:$0xff]
        %v2316 = vld [vmem:[%s2261 + $0x1b0] sm:$0xff]
        %v2317 = vld [vmem:[%s2261 + $0x1b8] sm:$0xff]
        %v2318 = vld [vmem:[%s2261 + $0x1c0] sm:$0xff]
        %v2319 = vld [vmem:[%s2261 + $0x1c8] sm:$0xff]
        %v2320 = vld [vmem:[%s2261 + $0x1d0] sm:$0xff]
        %v2321 = vld [vmem:[%s2261 + $0x1d8] sm:$0xff]
        %v2322 = vld [vmem:[%s2261 + $0x1e0] sm:$0xff]
        %v2323 = vld [vmem:[%s2261 + $0x1e8] sm:$0xff]
        %v2324 = vld [vmem:[%s2261 + $0x1f0] sm:$0xff]
        %v2325 = vld [vmem:[%s2261 + $0x1f8] sm:$0xff]
        %v2390 = vunpack.c.l.b16 %v2262
        %v2391 = vunpack.c.h.b16 %v2262
        %v2392 = vunpack.c.l.b16 %v2263
        %v2393 = vunpack.c.h.b16 %v2263
        %v2394 = vunpack.c.l.b16 %v2264
        %v2395 = vunpack.c.h.b16 %v2264
        %v2396 = vunpack.c.l.b16 %v2265
        %v2397 = vunpack.c.h.b16 %v2265
        %v2398 = vunpack.c.l.b16 %v2266
        %v2399 = vunpack.c.h.b16 %v2266
        %v2400 = vunpack.c.l.b16 %v2267
        %v2401 = vunpack.c.h.b16 %v2267
        %v2402 = vunpack.c.l.b16 %v2268
        %v2403 = vunpack.c.h.b16 %v2268
        %v2404 = vunpack.c.l.b16 %v2269
        %v2405 = vunpack.c.h.b16 %v2269
        %v2406 = vunpack.c.l.b16 %v2270
        %v2407 = vunpack.c.h.b16 %v2270
        %v2408 = vunpack.c.l.b16 %v2271
        %v2409 = vunpack.c.h.b16 %v2271
        %v2410 = vunpack.c.l.b16 %v2272
        %v2411 = vunpack.c.h.b16 %v2272
        %v2412 = vunpack.c.l.b16 %v2273
        %v2413 = vunpack.c.h.b16 %v2273
        %v2414 = vunpack.c.l.b16 %v2274
        %v2415 = vunpack.c.h.b16 %v2274
        %v2416 = vunpack.c.l.b16 %v2275
        %v2417 = vunpack.c.h.b16 %v2275
        %v2418 = vunpack.c.l.b16 %v2276
        %v2419 = vunpack.c.h.b16 %v2276
        %v2420 = vunpack.c.l.b16 %v2277
        %v2421 = vunpack.c.h.b16 %v2277
        %v2422 = vunpack.c.l.b16 %v2278
        %v2423 = vunpack.c.h.b16 %v2278
        %v2424 = vunpack.c.l.b16 %v2279
        %v2425 = vunpack.c.h.b16 %v2279
        %v2426 = vunpack.c.l.b16 %v2280
        %v2427 = vunpack.c.h.b16 %v2280
        %v2428 = vunpack.c.l.b16 %v2281
        %v2429 = vunpack.c.h.b16 %v2281
        %v2430 = vunpack.c.l.b16 %v2282
        %v2431 = vunpack.c.h.b16 %v2282
        %v2432 = vunpack.c.l.b16 %v2283
        %v2433 = vunpack.c.h.b16 %v2283
        %v2434 = vunpack.c.l.b16 %v2284
        %v2435 = vunpack.c.h.b16 %v2284
        %v2436 = vunpack.c.l.b16 %v2285
        %v2437 = vunpack.c.h.b16 %v2285
        %v2438 = vunpack.c.l.b16 %v2286
        %v2439 = vunpack.c.h.b16 %v2286
        %v2440 = vunpack.c.l.b16 %v2287
        %v2441 = vunpack.c.h.b16 %v2287
        %v2442 = vunpack.c.l.b16 %v2288
        %v2443 = vunpack.c.h.b16 %v2288
        %v2444 = vunpack.c.l.b16 %v2289
        %v2445 = vunpack.c.h.b16 %v2289
        %v2446 = vunpack.c.l.b16 %v2290
        %v2447 = vunpack.c.h.b16 %v2290
        %v2448 = vunpack.c.l.b16 %v2291
        %v2449 = vunpack.c.h.b16 %v2291
        %v2450 = vunpack.c.l.b16 %v2292
        %v2451 = vunpack.c.h.b16 %v2292
        %v2452 = vunpack.c.l.b16 %v2293
        %v2453 = vunpack.c.h.b16 %v2293
        %v2454 = vunpack.c.l.b16 %v2294
        %v2455 = vunpack.c.h.b16 %v2294
        %v2456 = vunpack.c.l.b16 %v2295
        %v2457 = vunpack.c.h.b16 %v2295
        %v2458 = vunpack.c.l.b16 %v2296
        %v2459 = vunpack.c.h.b16 %v2296
        %v2460 = vunpack.c.l.b16 %v2297
        %v2461 = vunpack.c.h.b16 %v2297
        %v2462 = vunpack.c.l.b16 %v2298
        %v2463 = vunpack.c.h.b16 %v2298
        %v2464 = vunpack.c.l.b16 %v2299
        %v2465 = vunpack.c.h.b16 %v2299
        %v2466 = vunpack.c.l.b16 %v2300
        %v2467 = vunpack.c.h.b16 %v2300
        %v2468 = vunpack.c.l.b16 %v2301
        %v2469 = vunpack.c.h.b16 %v2301
        %v2470 = vunpack.c.l.b16 %v2302
        %v2471 = vunpack.c.h.b16 %v2302
        %v2472 = vunpack.c.l.b16 %v2303
        %v2473 = vunpack.c.h.b16 %v2303
        %v2474 = vunpack.c.l.b16 %v2304
        %v2475 = vunpack.c.h.b16 %v2304
        %v2476 = vunpack.c.l.b16 %v2305
        %v2477 = vunpack.c.h.b16 %v2305
        %v2478 = vunpack.c.l.b16 %v2306
        %v2479 = vunpack.c.h.b16 %v2306
        %v2480 = vunpack.c.l.b16 %v2307
        %v2481 = vunpack.c.h.b16 %v2307
        %v2482 = vunpack.c.l.b16 %v2308
        %v2483 = vunpack.c.h.b16 %v2308
        %v2484 = vunpack.c.l.b16 %v2309
        %v2485 = vunpack.c.h.b16 %v2309
        %v2486 = vunpack.c.l.b16 %v2310
        %v2487 = vunpack.c.h.b16 %v2310
        %v2488 = vunpack.c.l.b16 %v2311
        %v2489 = vunpack.c.h.b16 %v2311
        %v2490 = vunpack.c.l.b16 %v2312
        %v2491 = vunpack.c.h.b16 %v2312
        %v2492 = vunpack.c.l.b16 %v2313
        %v2493 = vunpack.c.h.b16 %v2313
        %v2494 = vunpack.c.l.b16 %v2314
        %v2495 = vunpack.c.h.b16 %v2314
        %v2496 = vunpack.c.l.b16 %v2315
        %v2497 = vunpack.c.h.b16 %v2315
        %v2498 = vunpack.c.l.b16 %v2316
        %v2499 = vunpack.c.h.b16 %v2316
        %v2500 = vunpack.c.l.b16 %v2317
        %v2501 = vunpack.c.h.b16 %v2317
        %v2502 = vunpack.c.l.b16 %v2318
        %v2503 = vunpack.c.h.b16 %v2318
        %v2504 = vunpack.c.l.b16 %v2319
        %v2505 = vunpack.c.h.b16 %v2319
        %v2506 = vunpack.c.l.b16 %v2320
        %v2507 = vunpack.c.h.b16 %v2320
        %v2508 = vunpack.c.l.b16 %v2321
        %v2509 = vunpack.c.h.b16 %v2321
        %v2510 = vunpack.c.l.b16 %v2322
        %v2511 = vunpack.c.h.b16 %v2322
        %v2512 = vunpack.c.l.b16 %v2323
        %v2513 = vunpack.c.h.b16 %v2323
        %v2514 = vunpack.c.l.b16 %v2324
        %v2515 = vunpack.c.h.b16 %v2324
        %v2516 = vunpack.c.l.b16 %v2325
        %v2517 = vunpack.c.h.b16 %v2325
        %v2518 = vpack.c.b16 %v2392, %v2390
        %v2519 = vpack.c.b16 %v2393, %v2391
        %v2520 = vpack.c.b16 %v2396, %v2394
        %v2521 = vpack.c.b16 %v2397, %v2395
        %v2522 = vpack.c.b16 %v2400, %v2398
        %v2523 = vpack.c.b16 %v2401, %v2399
        %v2524 = vpack.c.b16 %v2404, %v2402
        %v2525 = vpack.c.b16 %v2405, %v2403
        %v2526 = vpack.c.b16 %v2408, %v2406
        %v2527 = vpack.c.b16 %v2409, %v2407
        %v2528 = vpack.c.b16 %v2412, %v2410
        %v2529 = vpack.c.b16 %v2413, %v2411
        %v2530 = vpack.c.b16 %v2416, %v2414
        %v2531 = vpack.c.b16 %v2417, %v2415
        %v2532 = vpack.c.b16 %v2420, %v2418
        %v2533 = vpack.c.b16 %v2421, %v2419
        %v2534 = vpack.c.b16 %v2424, %v2422
        %v2535 = vpack.c.b16 %v2425, %v2423
        %v2536 = vpack.c.b16 %v2428, %v2426
        %v2537 = vpack.c.b16 %v2429, %v2427
        %v2538 = vpack.c.b16 %v2432, %v2430
        %v2539 = vpack.c.b16 %v2433, %v2431
        %v2540 = vpack.c.b16 %v2436, %v2434
        %v2541 = vpack.c.b16 %v2437, %v2435
        %v2542 = vpack.c.b16 %v2440, %v2438
        %v2543 = vpack.c.b16 %v2441, %v2439
        %v2544 = vpack.c.b16 %v2444, %v2442
        %v2545 = vpack.c.b16 %v2445, %v2443
        %v2546 = vpack.c.b16 %v2448, %v2446
        %v2547 = vpack.c.b16 %v2449, %v2447
        %v2548 = vpack.c.b16 %v2452, %v2450
        %v2549 = vpack.c.b16 %v2453, %v2451
        %v2550 = vpack.c.b16 %v2456, %v2454
        %v2551 = vpack.c.b16 %v2457, %v2455
        %v2552 = vpack.c.b16 %v2460, %v2458
        %v2553 = vpack.c.b16 %v2461, %v2459
        %v2554 = vpack.c.b16 %v2464, %v2462
        %v2555 = vpack.c.b16 %v2465, %v2463
        %v2556 = vpack.c.b16 %v2468, %v2466
        %v2557 = vpack.c.b16 %v2469, %v2467
        %v2558 = vpack.c.b16 %v2472, %v2470
        %v2559 = vpack.c.b16 %v2473, %v2471
        %v2560 = vpack.c.b16 %v2476, %v2474
        %v2561 = vpack.c.b16 %v2477, %v2475
        %v2562 = vpack.c.b16 %v2480, %v2478
        %v2563 = vpack.c.b16 %v2481, %v2479
        %v2564 = vpack.c.b16 %v2484, %v2482
        %v2565 = vpack.c.b16 %v2485, %v2483
        %v2566 = vpack.c.b16 %v2488, %v2486
        %v2567 = vpack.c.b16 %v2489, %v2487
        %v2568 = vpack.c.b16 %v2492, %v2490
        %v2569 = vpack.c.b16 %v2493, %v2491
        %v2570 = vpack.c.b16 %v2496, %v2494
        %v2571 = vpack.c.b16 %v2497, %v2495
        %v2572 = vpack.c.b16 %v2500, %v2498
        %v2573 = vpack.c.b16 %v2501, %v2499
        %v2574 = vpack.c.b16 %v2504, %v2502
        %v2575 = vpack.c.b16 %v2505, %v2503
        %v2576 = vpack.c.b16 %v2508, %v2506
        %v2577 = vpack.c.b16 %v2509, %v2507
        %v2578 = vpack.c.b16 %v2512, %v2510
        %v2579 = vpack.c.b16 %v2513, %v2511
        %v2580 = vpack.c.b16 %v2516, %v2514
        %v2581 = vpack.c.b16 %v2517, %v2515
        %2646 = vmatpush.bf16.msra.mxu0 %v2532
        %2647 = vmatpush.bf16.msra.mxu0 %v2530
        %2648 = vmatpush.bf16.msra.mxu0 %v2528
        %2649 = vmatpush.bf16.msra.mxu0 %v2526
        %2650 = vmatpush.bf16.msra.mxu0 %v2524
        %2651 = vmatpush.bf16.msra.mxu0 %v2522
        %2652 = vmatpush.bf16.msra.mxu0 %v2520
        %2653 = vmatpush.bf16.msra.mxu0 %v2518
        %2654 = vmatmul.bf16.gmra.mxu0 %v1727
        %v2655 = vpop.f32.mrf.mxu0
        %v2656 = vadd.f32 %v1807, %v2655
        %v2657 = vpop.f32.mrf.mxu0
        %v2658 = vadd.f32 %v1807, %v2657
        %2659 = vdwg.mxu0
        %2660 = vmatpush.bf16.msra.mxu0 %v2548
        %2661 = vmatpush.bf16.msra.mxu0 %v2546
        %2662 = vmatpush.bf16.msra.mxu0 %v2544
        %2663 = vmatpush.bf16.msra.mxu0 %v2542
        %2664 = vmatpush.bf16.msra.mxu0 %v2540
        %2665 = vmatpush.bf16.msra.mxu0 %v2538
        %2666 = vmatpush.bf16.msra.mxu0 %v2536
        %2667 = vmatpush.bf16.msra.mxu0 %v2534
        %2668 = vmatmul.bf16.gmra.mxu0 %v2253
        %v2669 = vpop.f32.mrf.mxu0
        %v2670 = vadd.f32 %v2656, %v2669
        %v2671 = vpop.f32.mrf.mxu0
        %v2672 = vadd.f32 %v2658, %v2671
        %2673 = vdwg.mxu0
        %2674 = vmatpush.bf16.msra.mxu0 %v2564
        %2675 = vmatpush.bf16.msra.mxu0 %v2562
        %2676 = vmatpush.bf16.msra.mxu0 %v2560
        %2677 = vmatpush.bf16.msra.mxu0 %v2558
        %2678 = vmatpush.bf16.msra.mxu0 %v2556
        %2679 = vmatpush.bf16.msra.mxu0 %v2554
        %2680 = vmatpush.bf16.msra.mxu0 %v2552
        %2681 = vmatpush.bf16.msra.mxu0 %v2550
        %2682 = vmatmul.bf16.gmra.mxu0 %v1739
        %v2683 = vpop.f32.mrf.mxu0
        %v2684 = vadd.f32 %v2670, %v2683
        %v2685 = vpop.f32.mrf.mxu0
        %v2686 = vadd.f32 %v2672, %v2685
        %2687 = vdwg.mxu0
        %2688 = vmatpush.bf16.msra.mxu0 %v2580
        %2689 = vmatpush.bf16.msra.mxu0 %v2578
        %2690 = vmatpush.bf16.msra.mxu0 %v2576
        %2691 = vmatpush.bf16.msra.mxu0 %v2574
        %2692 = vmatpush.bf16.msra.mxu0 %v2572
        %2693 = vmatpush.bf16.msra.mxu0 %v2570
        %2694 = vmatpush.bf16.msra.mxu0 %v2568
        %2695 = vmatpush.bf16.msra.mxu0 %v2566
        %2696 = vmatmul.bf16.gmra.mxu0 %v2259
        %v2697 = vpop.f32.mrf.mxu0
        %v2698 = vadd.f32 %v2684, %v2697
        %v2699 = vpop.f32.mrf.mxu0
        %v2700 = vadd.f32 %v2686, %v2699
        %2701 = vdwg.mxu0
        %2702 = vmatpush.bf16.msra.mxu0 %v2533
        %2703 = vmatpush.bf16.msra.mxu0 %v2531
        %2704 = vmatpush.bf16.msra.mxu0 %v2529
        %2705 = vmatpush.bf16.msra.mxu0 %v2527
        %2706 = vmatpush.bf16.msra.mxu0 %v2525
        %2707 = vmatpush.bf16.msra.mxu0 %v2523
        %2708 = vmatpush.bf16.msra.mxu0 %v2521
        %2709 = vmatpush.bf16.msra.mxu0 %v2519
        %2710 = vmatmul.bf16.gmra.mxu0 %v1727
        %v2711 = vpop.f32.mrf.mxu0
        %v2712 = vadd.f32 %v1808, %v2711
        %v2713 = vpop.f32.mrf.mxu0
        %v2714 = vadd.f32 %v1808, %v2713
        %2715 = vdwg.mxu0
        %2716 = vmatpush.bf16.msra.mxu0 %v2549
        %2717 = vmatpush.bf16.msra.mxu0 %v2547
        %2718 = vmatpush.bf16.msra.mxu0 %v2545
        %2719 = vmatpush.bf16.msra.mxu0 %v2543
        %2720 = vmatpush.bf16.msra.mxu0 %v2541
        %2721 = vmatpush.bf16.msra.mxu0 %v2539
        %2722 = vmatpush.bf16.msra.mxu0 %v2537
        %2723 = vmatpush.bf16.msra.mxu0 %v2535
        %2724 = vmatmul.bf16.gmra.mxu0 %v2253
        %v2725 = vpop.f32.mrf.mxu0
        %v2726 = vadd.f32 %v2712, %v2725
        %v2727 = vpop.f32.mrf.mxu0
        %v2728 = vadd.f32 %v2714, %v2727
        %2729 = vdwg.mxu0
        %2730 = vmatpush.bf16.msra.mxu0 %v2565
        %2731 = vmatpush.bf16.msra.mxu0 %v2563
        %2732 = vmatpush.bf16.msra.mxu0 %v2561
        %2733 = vmatpush.bf16.msra.mxu0 %v2559
        %2734 = vmatpush.bf16.msra.mxu0 %v2557
        %2735 = vmatpush.bf16.msra.mxu0 %v2555
        %2736 = vmatpush.bf16.msra.mxu0 %v2553
        %2737 = vmatpush.bf16.msra.mxu0 %v2551
        %2738 = vmatmul.bf16.gmra.mxu0 %v1739
        %v2739 = vpop.f32.mrf.mxu0
        %v2740 = vadd.f32 %v2726, %v2739
        %v2741 = vpop.f32.mrf.mxu0
        %v2742 = vadd.f32 %v2728, %v2741
        %2743 = vdwg.mxu0
        %2744 = vmatpush.bf16.msra.mxu0 %v2581
        %2745 = vmatpush.bf16.msra.mxu0 %v2579
        %2746 = vmatpush.bf16.msra.mxu0 %v2577
        %2747 = vmatpush.bf16.msra.mxu0 %v2575
        %2748 = vmatpush.bf16.msra.mxu0 %v2573
        %2749 = vmatpush.bf16.msra.mxu0 %v2571
        %2750 = vmatpush.bf16.msra.mxu0 %v2569
        %2751 = vmatpush.bf16.msra.mxu0 %v2567
        %2752 = vmatmul.bf16.gmra.mxu0 %v2259
        %v2753 = vpop.f32.mrf.mxu0
        %v2754 = vadd.f32 %v2740, %v2753
        %v2755 = vpop.f32.mrf.mxu0
        %v2756 = vadd.f32 %v2742, %v2755
        %2757 = vdwg.mxu0
        %v2758 = vmax.f32 %v2698, 0.0
        %v2759 = vmax.f32 %v2754, 0.0
        %v2760 = vmax.f32 %v2700, 0.0
        %v2761 = vmax.f32 %v2756, 0.0
        %v2762 = vpack.c.bf16 %v2759, %v2758
        %v2763 = vpack.c.bf16 %v2761, %v2760
        %v2766 = vunpack.c.l.b16 %v1661
        %v2767 = vunpack.c.l.b16 %v1662
        %v2768 = vpack.c.b16 %v2767, %v2766
        %v2772 = vunpack.c.l.b16 %v1688
        %v2773 = vunpack.c.l.b16 %v1689
        %v2774 = vpack.c.b16 %v2773, %v2772
        %s2776 = scalar_lea.vmem [#allocation8], 1024
        %v2777 = vld [vmem:[%s2776] sm:$0xff]
        %v2778 = vld [vmem:[%s2776 + $0x8] sm:$0xff]
        %v2779 = vld [vmem:[%s2776 + $0x10] sm:$0xff]
        %v2780 = vld [vmem:[%s2776 + $0x18] sm:$0xff]
        %v2781 = vld [vmem:[%s2776 + $0x20] sm:$0xff]
        %v2782 = vld [vmem:[%s2776 + $0x28] sm:$0xff]
        %v2783 = vld [vmem:[%s2776 + $0x30] sm:$0xff]
        %v2784 = vld [vmem:[%s2776 + $0x38] sm:$0xff]
        %v2785 = vld [vmem:[%s2776 + $0x40] sm:$0xff]
        %v2786 = vld [vmem:[%s2776 + $0x48] sm:$0xff]
        %v2787 = vld [vmem:[%s2776 + $0x50] sm:$0xff]
        %v2788 = vld [vmem:[%s2776 + $0x58] sm:$0xff]
        %v2789 = vld [vmem:[%s2776 + $0x60] sm:$0xff]
        %v2790 = vld [vmem:[%s2776 + $0x68] sm:$0xff]
        %v2791 = vld [vmem:[%s2776 + $0x70] sm:$0xff]
        %v2792 = vld [vmem:[%s2776 + $0x78] sm:$0xff]
        %v2793 = vld [vmem:[%s2776 + $0x80] sm:$0xff]
        %v2794 = vld [vmem:[%s2776 + $0x88] sm:$0xff]
        %v2795 = vld [vmem:[%s2776 + $0x90] sm:$0xff]
        %v2796 = vld [vmem:[%s2776 + $0x98] sm:$0xff]
        %v2797 = vld [vmem:[%s2776 + $0xa0] sm:$0xff]
        %v2798 = vld [vmem:[%s2776 + $0xa8] sm:$0xff]
        %v2799 = vld [vmem:[%s2776 + $0xb0] sm:$0xff]
        %v2800 = vld [vmem:[%s2776 + $0xb8] sm:$0xff]
        %v2801 = vld [vmem:[%s2776 + $0xc0] sm:$0xff]
        %v2802 = vld [vmem:[%s2776 + $0xc8] sm:$0xff]
        %v2803 = vld [vmem:[%s2776 + $0xd0] sm:$0xff]
        %v2804 = vld [vmem:[%s2776 + $0xd8] sm:$0xff]
        %v2805 = vld [vmem:[%s2776 + $0xe0] sm:$0xff]
        %v2806 = vld [vmem:[%s2776 + $0xe8] sm:$0xff]
        %v2807 = vld [vmem:[%s2776 + $0xf0] sm:$0xff]
        %v2808 = vld [vmem:[%s2776 + $0xf8] sm:$0xff]
        %v2809 = vld [vmem:[%s2776 + $0x100] sm:$0xff]
        %v2810 = vld [vmem:[%s2776 + $0x108] sm:$0xff]
        %v2811 = vld [vmem:[%s2776 + $0x110] sm:$0xff]
        %v2812 = vld [vmem:[%s2776 + $0x118] sm:$0xff]
        %v2813 = vld [vmem:[%s2776 + $0x120] sm:$0xff]
        %v2814 = vld [vmem:[%s2776 + $0x128] sm:$0xff]
        %v2815 = vld [vmem:[%s2776 + $0x130] sm:$0xff]
        %v2816 = vld [vmem:[%s2776 + $0x138] sm:$0xff]
        %v2817 = vld [vmem:[%s2776 + $0x140] sm:$0xff]
        %v2818 = vld [vmem:[%s2776 + $0x148] sm:$0xff]
        %v2819 = vld [vmem:[%s2776 + $0x150] sm:$0xff]
        %v2820 = vld [vmem:[%s2776 + $0x158] sm:$0xff]
        %v2821 = vld [vmem:[%s2776 + $0x160] sm:$0xff]
        %v2822 = vld [vmem:[%s2776 + $0x168] sm:$0xff]
        %v2823 = vld [vmem:[%s2776 + $0x170] sm:$0xff]
        %v2824 = vld [vmem:[%s2776 + $0x178] sm:$0xff]
        %v2825 = vld [vmem:[%s2776 + $0x180] sm:$0xff]
        %v2826 = vld [vmem:[%s2776 + $0x188] sm:$0xff]
        %v2827 = vld [vmem:[%s2776 + $0x190] sm:$0xff]
        %v2828 = vld [vmem:[%s2776 + $0x198] sm:$0xff]
        %v2829 = vld [vmem:[%s2776 + $0x1a0] sm:$0xff]
        %v2830 = vld [vmem:[%s2776 + $0x1a8] sm:$0xff]
        %v2831 = vld [vmem:[%s2776 + $0x1b0] sm:$0xff]
        %v2832 = vld [vmem:[%s2776 + $0x1b8] sm:$0xff]
        %v2833 = vld [vmem:[%s2776 + $0x1c0] sm:$0xff]
        %v2834 = vld [vmem:[%s2776 + $0x1c8] sm:$0xff]
        %v2835 = vld [vmem:[%s2776 + $0x1d0] sm:$0xff]
        %v2836 = vld [vmem:[%s2776 + $0x1d8] sm:$0xff]
        %v2837 = vld [vmem:[%s2776 + $0x1e0] sm:$0xff]
        %v2838 = vld [vmem:[%s2776 + $0x1e8] sm:$0xff]
        %v2839 = vld [vmem:[%s2776 + $0x1f0] sm:$0xff]
        %v2840 = vld [vmem:[%s2776 + $0x1f8] sm:$0xff]
        %v2905 = vunpack.c.l.b16 %v2777
        %v2906 = vunpack.c.h.b16 %v2777
        %v2907 = vunpack.c.l.b16 %v2778
        %v2908 = vunpack.c.h.b16 %v2778
        %v2909 = vunpack.c.l.b16 %v2779
        %v2910 = vunpack.c.h.b16 %v2779
        %v2911 = vunpack.c.l.b16 %v2780
        %v2912 = vunpack.c.h.b16 %v2780
        %v2913 = vunpack.c.l.b16 %v2781
        %v2914 = vunpack.c.h.b16 %v2781
        %v2915 = vunpack.c.l.b16 %v2782
        %v2916 = vunpack.c.h.b16 %v2782
        %v2917 = vunpack.c.l.b16 %v2783
        %v2918 = vunpack.c.h.b16 %v2783
        %v2919 = vunpack.c.l.b16 %v2784
        %v2920 = vunpack.c.h.b16 %v2784
        %v2921 = vunpack.c.l.b16 %v2785
        %v2922 = vunpack.c.h.b16 %v2785
        %v2923 = vunpack.c.l.b16 %v2786
        %v2924 = vunpack.c.h.b16 %v2786
        %v2925 = vunpack.c.l.b16 %v2787
        %v2926 = vunpack.c.h.b16 %v2787
        %v2927 = vunpack.c.l.b16 %v2788
        %v2928 = vunpack.c.h.b16 %v2788
        %v2929 = vunpack.c.l.b16 %v2789
        %v2930 = vunpack.c.h.b16 %v2789
        %v2931 = vunpack.c.l.b16 %v2790
        %v2932 = vunpack.c.h.b16 %v2790
        %v2933 = vunpack.c.l.b16 %v2791
        %v2934 = vunpack.c.h.b16 %v2791
        %v2935 = vunpack.c.l.b16 %v2792
        %v2936 = vunpack.c.h.b16 %v2792
        %v2937 = vunpack.c.l.b16 %v2793
        %v2938 = vunpack.c.h.b16 %v2793
        %v2939 = vunpack.c.l.b16 %v2794
        %v2940 = vunpack.c.h.b16 %v2794
        %v2941 = vunpack.c.l.b16 %v2795
        %v2942 = vunpack.c.h.b16 %v2795
        %v2943 = vunpack.c.l.b16 %v2796
        %v2944 = vunpack.c.h.b16 %v2796
        %v2945 = vunpack.c.l.b16 %v2797
        %v2946 = vunpack.c.h.b16 %v2797
        %v2947 = vunpack.c.l.b16 %v2798
        %v2948 = vunpack.c.h.b16 %v2798
        %v2949 = vunpack.c.l.b16 %v2799
        %v2950 = vunpack.c.h.b16 %v2799
        %v2951 = vunpack.c.l.b16 %v2800
        %v2952 = vunpack.c.h.b16 %v2800
        %v2953 = vunpack.c.l.b16 %v2801
        %v2954 = vunpack.c.h.b16 %v2801
        %v2955 = vunpack.c.l.b16 %v2802
        %v2956 = vunpack.c.h.b16 %v2802
        %v2957 = vunpack.c.l.b16 %v2803
        %v2958 = vunpack.c.h.b16 %v2803
        %v2959 = vunpack.c.l.b16 %v2804
        %v2960 = vunpack.c.h.b16 %v2804
        %v2961 = vunpack.c.l.b16 %v2805
        %v2962 = vunpack.c.h.b16 %v2805
        %v2963 = vunpack.c.l.b16 %v2806
        %v2964 = vunpack.c.h.b16 %v2806
        %v2965 = vunpack.c.l.b16 %v2807
        %v2966 = vunpack.c.h.b16 %v2807
        %v2967 = vunpack.c.l.b16 %v2808
        %v2968 = vunpack.c.h.b16 %v2808
        %v2969 = vunpack.c.l.b16 %v2809
        %v2970 = vunpack.c.h.b16 %v2809
        %v2971 = vunpack.c.l.b16 %v2810
        %v2972 = vunpack.c.h.b16 %v2810
        %v2973 = vunpack.c.l.b16 %v2811
        %v2974 = vunpack.c.h.b16 %v2811
        %v2975 = vunpack.c.l.b16 %v2812
        %v2976 = vunpack.c.h.b16 %v2812
        %v2977 = vunpack.c.l.b16 %v2813
        %v2978 = vunpack.c.h.b16 %v2813
        %v2979 = vunpack.c.l.b16 %v2814
        %v2980 = vunpack.c.h.b16 %v2814
        %v2981 = vunpack.c.l.b16 %v2815
        %v2982 = vunpack.c.h.b16 %v2815
        %v2983 = vunpack.c.l.b16 %v2816
        %v2984 = vunpack.c.h.b16 %v2816
        %v2985 = vunpack.c.l.b16 %v2817
        %v2986 = vunpack.c.h.b16 %v2817
        %v2987 = vunpack.c.l.b16 %v2818
        %v2988 = vunpack.c.h.b16 %v2818
        %v2989 = vunpack.c.l.b16 %v2819
        %v2990 = vunpack.c.h.b16 %v2819
        %v2991 = vunpack.c.l.b16 %v2820
        %v2992 = vunpack.c.h.b16 %v2820
        %v2993 = vunpack.c.l.b16 %v2821
        %v2994 = vunpack.c.h.b16 %v2821
        %v2995 = vunpack.c.l.b16 %v2822
        %v2996 = vunpack.c.h.b16 %v2822
        %v2997 = vunpack.c.l.b16 %v2823
        %v2998 = vunpack.c.h.b16 %v2823
        %v2999 = vunpack.c.l.b16 %v2824
        %v3000 = vunpack.c.h.b16 %v2824
        %v3001 = vunpack.c.l.b16 %v2825
        %v3002 = vunpack.c.h.b16 %v2825
        %v3003 = vunpack.c.l.b16 %v2826
        %v3004 = vunpack.c.h.b16 %v2826
        %v3005 = vunpack.c.l.b16 %v2827
        %v3006 = vunpack.c.h.b16 %v2827
        %v3007 = vunpack.c.l.b16 %v2828
        %v3008 = vunpack.c.h.b16 %v2828
        %v3009 = vunpack.c.l.b16 %v2829
        %v3010 = vunpack.c.h.b16 %v2829
        %v3011 = vunpack.c.l.b16 %v2830
        %v3012 = vunpack.c.h.b16 %v2830
        %v3013 = vunpack.c.l.b16 %v2831
        %v3014 = vunpack.c.h.b16 %v2831
        %v3015 = vunpack.c.l.b16 %v2832
        %v3016 = vunpack.c.h.b16 %v2832
        %v3017 = vunpack.c.l.b16 %v2833
        %v3018 = vunpack.c.h.b16 %v2833
        %v3019 = vunpack.c.l.b16 %v2834
        %v3020 = vunpack.c.h.b16 %v2834
        %v3021 = vunpack.c.l.b16 %v2835
        %v3022 = vunpack.c.h.b16 %v2835
        %v3023 = vunpack.c.l.b16 %v2836
        %v3024 = vunpack.c.h.b16 %v2836
        %v3025 = vunpack.c.l.b16 %v2837
        %v3026 = vunpack.c.h.b16 %v2837
        %v3027 = vunpack.c.l.b16 %v2838
        %v3028 = vunpack.c.h.b16 %v2838
        %v3029 = vunpack.c.l.b16 %v2839
        %v3030 = vunpack.c.h.b16 %v2839
        %v3031 = vunpack.c.l.b16 %v2840
        %v3032 = vunpack.c.h.b16 %v2840
        %v3033 = vpack.c.b16 %v2907, %v2905
        %v3034 = vpack.c.b16 %v2908, %v2906
        %v3035 = vpack.c.b16 %v2911, %v2909
        %v3036 = vpack.c.b16 %v2912, %v2910
        %v3037 = vpack.c.b16 %v2915, %v2913
        %v3038 = vpack.c.b16 %v2916, %v2914
        %v3039 = vpack.c.b16 %v2919, %v2917
        %v3040 = vpack.c.b16 %v2920, %v2918
        %v3041 = vpack.c.b16 %v2923, %v2921
        %v3042 = vpack.c.b16 %v2924, %v2922
        %v3043 = vpack.c.b16 %v2927, %v2925
        %v3044 = vpack.c.b16 %v2928, %v2926
        %v3045 = vpack.c.b16 %v2931, %v2929
        %v3046 = vpack.c.b16 %v2932, %v2930
        %v3047 = vpack.c.b16 %v2935, %v2933
        %v3048 = vpack.c.b16 %v2936, %v2934
        %v3049 = vpack.c.b16 %v2939, %v2937
        %v3050 = vpack.c.b16 %v2940, %v2938
        %v3051 = vpack.c.b16 %v2943, %v2941
        %v3052 = vpack.c.b16 %v2944, %v2942
        %v3053 = vpack.c.b16 %v2947, %v2945
        %v3054 = vpack.c.b16 %v2948, %v2946
        %v3055 = vpack.c.b16 %v2951, %v2949
        %v3056 = vpack.c.b16 %v2952, %v2950
        %v3057 = vpack.c.b16 %v2955, %v2953
        %v3058 = vpack.c.b16 %v2956, %v2954
        %v3059 = vpack.c.b16 %v2959, %v2957
        %v3060 = vpack.c.b16 %v2960, %v2958
        %v3061 = vpack.c.b16 %v2963, %v2961
        %v3062 = vpack.c.b16 %v2964, %v2962
        %v3063 = vpack.c.b16 %v2967, %v2965
        %v3064 = vpack.c.b16 %v2968, %v2966
        %v3065 = vpack.c.b16 %v2971, %v2969
        %v3066 = vpack.c.b16 %v2972, %v2970
        %v3067 = vpack.c.b16 %v2975, %v2973
        %v3068 = vpack.c.b16 %v2976, %v2974
        %v3069 = vpack.c.b16 %v2979, %v2977
        %v3070 = vpack.c.b16 %v2980, %v2978
        %v3071 = vpack.c.b16 %v2983, %v2981
        %v3072 = vpack.c.b16 %v2984, %v2982
        %v3073 = vpack.c.b16 %v2987, %v2985
        %v3074 = vpack.c.b16 %v2988, %v2986
        %v3075 = vpack.c.b16 %v2991, %v2989
        %v3076 = vpack.c.b16 %v2992, %v2990
        %v3077 = vpack.c.b16 %v2995, %v2993
        %v3078 = vpack.c.b16 %v2996, %v2994
        %v3079 = vpack.c.b16 %v2999, %v2997
        %v3080 = vpack.c.b16 %v3000, %v2998
        %v3081 = vpack.c.b16 %v3003, %v3001
        %v3082 = vpack.c.b16 %v3004, %v3002
        %v3083 = vpack.c.b16 %v3007, %v3005
        %v3084 = vpack.c.b16 %v3008, %v3006
        %v3085 = vpack.c.b16 %v3011, %v3009
        %v3086 = vpack.c.b16 %v3012, %v3010
        %v3087 = vpack.c.b16 %v3015, %v3013
        %v3088 = vpack.c.b16 %v3016, %v3014
        %v3089 = vpack.c.b16 %v3019, %v3017
        %v3090 = vpack.c.b16 %v3020, %v3018
        %v3091 = vpack.c.b16 %v3023, %v3021
        %v3092 = vpack.c.b16 %v3024, %v3022
        %v3093 = vpack.c.b16 %v3027, %v3025
        %v3094 = vpack.c.b16 %v3028, %v3026
        %v3095 = vpack.c.b16 %v3031, %v3029
        %v3096 = vpack.c.b16 %v3032, %v3030
        %3161 = vmatpush.bf16.msra.mxu0 %v3047
        %3162 = vmatpush.bf16.msra.mxu0 %v3045
        %3163 = vmatpush.bf16.msra.mxu0 %v3043
        %3164 = vmatpush.bf16.msra.mxu0 %v3041
        %3165 = vmatpush.bf16.msra.mxu0 %v3039
        %3166 = vmatpush.bf16.msra.mxu0 %v3037
        %3167 = vmatpush.bf16.msra.mxu0 %v3035
        %3168 = vmatpush.bf16.msra.mxu0 %v3033
        %3169 = vmatmul.bf16.gmra.mxu0 %v1733
        %v3170 = vpop.f32.mrf.mxu0
        %v3171 = vadd.f32 %v1807, %v3170
        %v3172 = vpop.f32.mrf.mxu0
        %v3173 = vadd.f32 %v1807, %v3172
        %3174 = vdwg.mxu0
        %3175 = vmatpush.bf16.msra.mxu0 %v3063
        %3176 = vmatpush.bf16.msra.mxu0 %v3061
        %3177 = vmatpush.bf16.msra.mxu0 %v3059
        %3178 = vmatpush.bf16.msra.mxu0 %v3057
        %3179 = vmatpush.bf16.msra.mxu0 %v3055
        %3180 = vmatpush.bf16.msra.mxu0 %v3053
        %3181 = vmatpush.bf16.msra.mxu0 %v3051
        %3182 = vmatpush.bf16.msra.mxu0 %v3049
        %3183 = vmatmul.bf16.gmra.mxu0 %v1739
        %v3184 = vpop.f32.mrf.mxu0
        %v3185 = vadd.f32 %v3171, %v3184
        %v3186 = vpop.f32.mrf.mxu0
        %v3187 = vadd.f32 %v3173, %v3186
        %3188 = vdwg.mxu0
        %3189 = vmatpush.bf16.msra.mxu0 %v3079
        %3190 = vmatpush.bf16.msra.mxu0 %v3077
        %3191 = vmatpush.bf16.msra.mxu0 %v3075
        %3192 = vmatpush.bf16.msra.mxu0 %v3073
        %3193 = vmatpush.bf16.msra.mxu0 %v3071
        %3194 = vmatpush.bf16.msra.mxu0 %v3069
        %3195 = vmatpush.bf16.msra.mxu0 %v3067
        %3196 = vmatpush.bf16.msra.mxu0 %v3065
        %3197 = vmatmul.bf16.gmra.mxu0 %v2768
        %v3198 = vpop.f32.mrf.mxu0
        %v3199 = vadd.f32 %v3185, %v3198
        %v3200 = vpop.f32.mrf.mxu0
        %v3201 = vadd.f32 %v3187, %v3200
        %3202 = vdwg.mxu0
        %3203 = vmatpush.bf16.msra.mxu0 %v3095
        %3204 = vmatpush.bf16.msra.mxu0 %v3093
        %3205 = vmatpush.bf16.msra.mxu0 %v3091
        %3206 = vmatpush.bf16.msra.mxu0 %v3089
        %3207 = vmatpush.bf16.msra.mxu0 %v3087
        %3208 = vmatpush.bf16.msra.mxu0 %v3085
        %3209 = vmatpush.bf16.msra.mxu0 %v3083
        %3210 = vmatpush.bf16.msra.mxu0 %v3081
        %3211 = vmatmul.bf16.gmra.mxu0 %v2774
        %v3212 = vpop.f32.mrf.mxu0
        %v3213 = vadd.f32 %v3199, %v3212
        %v3214 = vpop.f32.mrf.mxu0
        %v3215 = vadd.f32 %v3201, %v3214
        %3216 = vdwg.mxu0
        %3217 = vmatpush.bf16.msra.mxu0 %v3048
        %3218 = vmatpush.bf16.msra.mxu0 %v3046
        %3219 = vmatpush.bf16.msra.mxu0 %v3044
        %3220 = vmatpush.bf16.msra.mxu0 %v3042
        %3221 = vmatpush.bf16.msra.mxu0 %v3040
        %3222 = vmatpush.bf16.msra.mxu0 %v3038
        %3223 = vmatpush.bf16.msra.mxu0 %v3036
        %3224 = vmatpush.bf16.msra.mxu0 %v3034
        %3225 = vmatmul.bf16.gmra.mxu0 %v1733
        %v3226 = vpop.f32.mrf.mxu0
        %v3227 = vadd.f32 %v1808, %v3226
        %v3228 = vpop.f32.mrf.mxu0
        %v3229 = vadd.f32 %v1808, %v3228
        %3230 = vdwg.mxu0
        %3231 = vmatpush.bf16.msra.mxu0 %v3064
        %3232 = vmatpush.bf16.msra.mxu0 %v3062
        %3233 = vmatpush.bf16.msra.mxu0 %v3060
        %3234 = vmatpush.bf16.msra.mxu0 %v3058
        %3235 = vmatpush.bf16.msra.mxu0 %v3056
        %3236 = vmatpush.bf16.msra.mxu0 %v3054
        %3237 = vmatpush.bf16.msra.mxu0 %v3052
        %3238 = vmatpush.bf16.msra.mxu0 %v3050
        %3239 = vmatmul.bf16.gmra.mxu0 %v1739
        %v3240 = vpop.f32.mrf.mxu0
        %v3241 = vadd.f32 %v3227, %v3240
        %v3242 = vpop.f32.mrf.mxu0
        %v3243 = vadd.f32 %v3229, %v3242
        %3244 = vdwg.mxu0
        %3245 = vmatpush.bf16.msra.mxu0 %v3080
        %3246 = vmatpush.bf16.msra.mxu0 %v3078
        %3247 = vmatpush.bf16.msra.mxu0 %v3076
        %3248 = vmatpush.bf16.msra.mxu0 %v3074
        %3249 = vmatpush.bf16.msra.mxu0 %v3072
        %3250 = vmatpush.bf16.msra.mxu0 %v3070
        %3251 = vmatpush.bf16.msra.mxu0 %v3068
        %3252 = vmatpush.bf16.msra.mxu0 %v3066
        %3253 = vmatmul.bf16.gmra.mxu0 %v2768
        %v3254 = vpop.f32.mrf.mxu0
        %v3255 = vadd.f32 %v3241, %v3254
        %v3256 = vpop.f32.mrf.mxu0
        %v3257 = vadd.f32 %v3243, %v3256
        %3258 = vdwg.mxu0
        %3259 = vmatpush.bf16.msra.mxu0 %v3096
        %3260 = vmatpush.bf16.msra.mxu0 %v3094
        %3261 = vmatpush.bf16.msra.mxu0 %v3092
        %3262 = vmatpush.bf16.msra.mxu0 %v3090
        %3263 = vmatpush.bf16.msra.mxu0 %v3088
        %3264 = vmatpush.bf16.msra.mxu0 %v3086
        %3265 = vmatpush.bf16.msra.mxu0 %v3084
        %3266 = vmatpush.bf16.msra.mxu0 %v3082
        %3267 = vmatmul.bf16.gmra.mxu0 %v2774
        %v3268 = vpop.f32.mrf.mxu0
        %v3269 = vadd.f32 %v3255, %v3268
        %v3270 = vpop.f32.mrf.mxu0
        %v3271 = vadd.f32 %v3257, %v3270
        %3272 = vdwg.mxu0
        %v3273 = vmax.f32 %v3213, 0.0
        %v3274 = vmax.f32 %v3269, 0.0
        %v3275 = vmax.f32 %v3215, 0.0
        %v3276 = vmax.f32 %v3271, 0.0
        %v3277 = vpack.c.bf16 %v3274, %v3273
        %v3278 = vpack.c.bf16 %v3276, %v3275
        %v3281 = vunpack.c.l.b16 %v1715
        %v3282 = vunpack.c.l.b16 %v1716
        %v3283 = vpack.c.b16 %v3282, %v3281
        %s3285 = scalar_lea.vmem [#allocation8], 1536
        %v3286 = vld [vmem:[%s3285] sm:$0xff]
        %v3287 = vld [vmem:[%s3285 + $0x8] sm:$0xff]
        %v3288 = vld [vmem:[%s3285 + $0x10] sm:$0xff]
        %v3289 = vld [vmem:[%s3285 + $0x18] sm:$0xff]
        %v3290 = vld [vmem:[%s3285 + $0x20] sm:$0xff]
        %v3291 = vld [vmem:[%s3285 + $0x28] sm:$0xff]
        %v3292 = vld [vmem:[%s3285 + $0x30] sm:$0xff]
        %v3293 = vld [vmem:[%s3285 + $0x38] sm:$0xff]
        %v3294 = vld [vmem:[%s3285 + $0x40] sm:$0xff]
        %v3295 = vld [vmem:[%s3285 + $0x48] sm:$0xff]
        %v3296 = vld [vmem:[%s3285 + $0x50] sm:$0xff]
        %v3297 = vld [vmem:[%s3285 + $0x58] sm:$0xff]
        %v3298 = vld [vmem:[%s3285 + $0x60] sm:$0xff]
        %v3299 = vld [vmem:[%s3285 + $0x68] sm:$0xff]
        %v3300 = vld [vmem:[%s3285 + $0x70] sm:$0xff]
        %v3301 = vld [vmem:[%s3285 + $0x78] sm:$0xff]
        %v3302 = vld [vmem:[%s3285 + $0x80] sm:$0xff]
        %v3303 = vld [vmem:[%s3285 + $0x88] sm:$0xff]
        %v3304 = vld [vmem:[%s3285 + $0x90] sm:$0xff]
        %v3305 = vld [vmem:[%s3285 + $0x98] sm:$0xff]
        %v3306 = vld [vmem:[%s3285 + $0xa0] sm:$0xff]
        %v3307 = vld [vmem:[%s3285 + $0xa8] sm:$0xff]
        %v3308 = vld [vmem:[%s3285 + $0xb0] sm:$0xff]
        %v3309 = vld [vmem:[%s3285 + $0xb8] sm:$0xff]
        %v3310 = vld [vmem:[%s3285 + $0xc0] sm:$0xff]
        %v3311 = vld [vmem:[%s3285 + $0xc8] sm:$0xff]
        %v3312 = vld [vmem:[%s3285 + $0xd0] sm:$0xff]
        %v3313 = vld [vmem:[%s3285 + $0xd8] sm:$0xff]
        %v3314 = vld [vmem:[%s3285 + $0xe0] sm:$0xff]
        %v3315 = vld [vmem:[%s3285 + $0xe8] sm:$0xff]
        %v3316 = vld [vmem:[%s3285 + $0xf0] sm:$0xff]
        %v3317 = vld [vmem:[%s3285 + $0xf8] sm:$0xff]
        %v3318 = vld [vmem:[%s3285 + $0x100] sm:$0xff]
        %v3319 = vld [vmem:[%s3285 + $0x108] sm:$0xff]
        %v3320 = vld [vmem:[%s3285 + $0x110] sm:$0xff]
        %v3321 = vld [vmem:[%s3285 + $0x118] sm:$0xff]
        %v3322 = vld [vmem:[%s3285 + $0x120] sm:$0xff]
        %v3323 = vld [vmem:[%s3285 + $0x128] sm:$0xff]
        %v3324 = vld [vmem:[%s3285 + $0x130] sm:$0xff]
        %v3325 = vld [vmem:[%s3285 + $0x138] sm:$0xff]
        %v3326 = vld [vmem:[%s3285 + $0x140] sm:$0xff]
        %v3327 = vld [vmem:[%s3285 + $0x148] sm:$0xff]
        %v3328 = vld [vmem:[%s3285 + $0x150] sm:$0xff]
        %v3329 = vld [vmem:[%s3285 + $0x158] sm:$0xff]
        %v3330 = vld [vmem:[%s3285 + $0x160] sm:$0xff]
        %v3331 = vld [vmem:[%s3285 + $0x168] sm:$0xff]
        %v3332 = vld [vmem:[%s3285 + $0x170] sm:$0xff]
        %v3333 = vld [vmem:[%s3285 + $0x178] sm:$0xff]
        %v3334 = vld [vmem:[%s3285 + $0x180] sm:$0xff]
        %v3335 = vld [vmem:[%s3285 + $0x188] sm:$0xff]
        %v3336 = vld [vmem:[%s3285 + $0x190] sm:$0xff]
        %v3337 = vld [vmem:[%s3285 + $0x198] sm:$0xff]
        %v3338 = vld [vmem:[%s3285 + $0x1a0] sm:$0xff]
        %v3339 = vld [vmem:[%s3285 + $0x1a8] sm:$0xff]
        %v3340 = vld [vmem:[%s3285 + $0x1b0] sm:$0xff]
        %v3341 = vld [vmem:[%s3285 + $0x1b8] sm:$0xff]
        %v3342 = vld [vmem:[%s3285 + $0x1c0] sm:$0xff]
        %v3343 = vld [vmem:[%s3285 + $0x1c8] sm:$0xff]
        %v3344 = vld [vmem:[%s3285 + $0x1d0] sm:$0xff]
        %v3345 = vld [vmem:[%s3285 + $0x1d8] sm:$0xff]
        %v3346 = vld [vmem:[%s3285 + $0x1e0] sm:$0xff]
        %v3347 = vld [vmem:[%s3285 + $0x1e8] sm:$0xff]
        %v3348 = vld [vmem:[%s3285 + $0x1f0] sm:$0xff]
        %v3349 = vld [vmem:[%s3285 + $0x1f8] sm:$0xff]
        %v3414 = vunpack.c.l.b16 %v3286
        %v3415 = vunpack.c.h.b16 %v3286
        %v3416 = vunpack.c.l.b16 %v3287
        %v3417 = vunpack.c.h.b16 %v3287
        %v3418 = vunpack.c.l.b16 %v3288
        %v3419 = vunpack.c.h.b16 %v3288
        %v3420 = vunpack.c.l.b16 %v3289
        %v3421 = vunpack.c.h.b16 %v3289
        %v3422 = vunpack.c.l.b16 %v3290
        %v3423 = vunpack.c.h.b16 %v3290
        %v3424 = vunpack.c.l.b16 %v3291
        %v3425 = vunpack.c.h.b16 %v3291
        %v3426 = vunpack.c.l.b16 %v3292
        %v3427 = vunpack.c.h.b16 %v3292
        %v3428 = vunpack.c.l.b16 %v3293
        %v3429 = vunpack.c.h.b16 %v3293
        %v3430 = vunpack.c.l.b16 %v3294
        %v3431 = vunpack.c.h.b16 %v3294
        %v3432 = vunpack.c.l.b16 %v3295
        %v3433 = vunpack.c.h.b16 %v3295
        %v3434 = vunpack.c.l.b16 %v3296
        %v3435 = vunpack.c.h.b16 %v3296
        %v3436 = vunpack.c.l.b16 %v3297
        %v3437 = vunpack.c.h.b16 %v3297
        %v3438 = vunpack.c.l.b16 %v3298
        %v3439 = vunpack.c.h.b16 %v3298
        %v3440 = vunpack.c.l.b16 %v3299
        %v3441 = vunpack.c.h.b16 %v3299
        %v3442 = vunpack.c.l.b16 %v3300
        %v3443 = vunpack.c.h.b16 %v3300
        %v3444 = vunpack.c.l.b16 %v3301
        %v3445 = vunpack.c.h.b16 %v3301
        %v3446 = vunpack.c.l.b16 %v3302
        %v3447 = vunpack.c.h.b16 %v3302
        %v3448 = vunpack.c.l.b16 %v3303
        %v3449 = vunpack.c.h.b16 %v3303
        %v3450 = vunpack.c.l.b16 %v3304
        %v3451 = vunpack.c.h.b16 %v3304
        %v3452 = vunpack.c.l.b16 %v3305
        %v3453 = vunpack.c.h.b16 %v3305
        %v3454 = vunpack.c.l.b16 %v3306
        %v3455 = vunpack.c.h.b16 %v3306
        %v3456 = vunpack.c.l.b16 %v3307
        %v3457 = vunpack.c.h.b16 %v3307
        %v3458 = vunpack.c.l.b16 %v3308
        %v3459 = vunpack.c.h.b16 %v3308
        %v3460 = vunpack.c.l.b16 %v3309
        %v3461 = vunpack.c.h.b16 %v3309
        %v3462 = vunpack.c.l.b16 %v3310
        %v3463 = vunpack.c.h.b16 %v3310
        %v3464 = vunpack.c.l.b16 %v3311
        %v3465 = vunpack.c.h.b16 %v3311
        %v3466 = vunpack.c.l.b16 %v3312
        %v3467 = vunpack.c.h.b16 %v3312
        %v3468 = vunpack.c.l.b16 %v3313
        %v3469 = vunpack.c.h.b16 %v3313
        %v3470 = vunpack.c.l.b16 %v3314
        %v3471 = vunpack.c.h.b16 %v3314
        %v3472 = vunpack.c.l.b16 %v3315
        %v3473 = vunpack.c.h.b16 %v3315
        %v3474 = vunpack.c.l.b16 %v3316
        %v3475 = vunpack.c.h.b16 %v3316
        %v3476 = vunpack.c.l.b16 %v3317
        %v3477 = vunpack.c.h.b16 %v3317
        %v3478 = vunpack.c.l.b16 %v3318
        %v3479 = vunpack.c.h.b16 %v3318
        %v3480 = vunpack.c.l.b16 %v3319
        %v3481 = vunpack.c.h.b16 %v3319
        %v3482 = vunpack.c.l.b16 %v3320
        %v3483 = vunpack.c.h.b16 %v3320
        %v3484 = vunpack.c.l.b16 %v3321
        %v3485 = vunpack.c.h.b16 %v3321
        %v3486 = vunpack.c.l.b16 %v3322
        %v3487 = vunpack.c.h.b16 %v3322
        %v3488 = vunpack.c.l.b16 %v3323
        %v3489 = vunpack.c.h.b16 %v3323
        %v3490 = vunpack.c.l.b16 %v3324
        %v3491 = vunpack.c.h.b16 %v3324
        %v3492 = vunpack.c.l.b16 %v3325
        %v3493 = vunpack.c.h.b16 %v3325
        %v3494 = vunpack.c.l.b16 %v3326
        %v3495 = vunpack.c.h.b16 %v3326
        %v3496 = vunpack.c.l.b16 %v3327
        %v3497 = vunpack.c.h.b16 %v3327
        %v3498 = vunpack.c.l.b16 %v3328
        %v3499 = vunpack.c.h.b16 %v3328
        %v3500 = vunpack.c.l.b16 %v3329
        %v3501 = vunpack.c.h.b16 %v3329
        %v3502 = vunpack.c.l.b16 %v3330
        %v3503 = vunpack.c.h.b16 %v3330
        %v3504 = vunpack.c.l.b16 %v3331
        %v3505 = vunpack.c.h.b16 %v3331
        %v3506 = vunpack.c.l.b16 %v3332
        %v3507 = vunpack.c.h.b16 %v3332
        %v3508 = vunpack.c.l.b16 %v3333
        %v3509 = vunpack.c.h.b16 %v3333
        %v3510 = vunpack.c.l.b16 %v3334
        %v3511 = vunpack.c.h.b16 %v3334
        %v3512 = vunpack.c.l.b16 %v3335
        %v3513 = vunpack.c.h.b16 %v3335
        %v3514 = vunpack.c.l.b16 %v3336
        %v3515 = vunpack.c.h.b16 %v3336
        %v3516 = vunpack.c.l.b16 %v3337
        %v3517 = vunpack.c.h.b16 %v3337
        %v3518 = vunpack.c.l.b16 %v3338
        %v3519 = vunpack.c.h.b16 %v3338
        %v3520 = vunpack.c.l.b16 %v3339
        %v3521 = vunpack.c.h.b16 %v3339
        %v3522 = vunpack.c.l.b16 %v3340
        %v3523 = vunpack.c.h.b16 %v3340
        %v3524 = vunpack.c.l.b16 %v3341
        %v3525 = vunpack.c.h.b16 %v3341
        %v3526 = vunpack.c.l.b16 %v3342
        %v3527 = vunpack.c.h.b16 %v3342
        %v3528 = vunpack.c.l.b16 %v3343
        %v3529 = vunpack.c.h.b16 %v3343
        %v3530 = vunpack.c.l.b16 %v3344
        %v3531 = vunpack.c.h.b16 %v3344
        %v3532 = vunpack.c.l.b16 %v3345
        %v3533 = vunpack.c.h.b16 %v3345
        %v3534 = vunpack.c.l.b16 %v3346
        %v3535 = vunpack.c.h.b16 %v3346
        %v3536 = vunpack.c.l.b16 %v3347
        %v3537 = vunpack.c.h.b16 %v3347
        %v3538 = vunpack.c.l.b16 %v3348
        %v3539 = vunpack.c.h.b16 %v3348
        %v3540 = vunpack.c.l.b16 %v3349
        %v3541 = vunpack.c.h.b16 %v3349
        %v3542 = vpack.c.b16 %v3416, %v3414
        %v3543 = vpack.c.b16 %v3417, %v3415
        %v3544 = vpack.c.b16 %v3420, %v3418
        %v3545 = vpack.c.b16 %v3421, %v3419
        %v3546 = vpack.c.b16 %v3424, %v3422
        %v3547 = vpack.c.b16 %v3425, %v3423
        %v3548 = vpack.c.b16 %v3428, %v3426
        %v3549 = vpack.c.b16 %v3429, %v3427
        %v3550 = vpack.c.b16 %v3432, %v3430
        %v3551 = vpack.c.b16 %v3433, %v3431
        %v3552 = vpack.c.b16 %v3436, %v3434
        %v3553 = vpack.c.b16 %v3437, %v3435
        %v3554 = vpack.c.b16 %v3440, %v3438
        %v3555 = vpack.c.b16 %v3441, %v3439
        %v3556 = vpack.c.b16 %v3444, %v3442
        %v3557 = vpack.c.b16 %v3445, %v3443
        %v3558 = vpack.c.b16 %v3448, %v3446
        %v3559 = vpack.c.b16 %v3449, %v3447
        %v3560 = vpack.c.b16 %v3452, %v3450
        %v3561 = vpack.c.b16 %v3453, %v3451
        %v3562 = vpack.c.b16 %v3456, %v3454
        %v3563 = vpack.c.b16 %v3457, %v3455
        %v3564 = vpack.c.b16 %v3460, %v3458
        %v3565 = vpack.c.b16 %v3461, %v3459
        %v3566 = vpack.c.b16 %v3464, %v3462
        %v3567 = vpack.c.b16 %v3465, %v3463
        %v3568 = vpack.c.b16 %v3468, %v3466
        %v3569 = vpack.c.b16 %v3469, %v3467
        %v3570 = vpack.c.b16 %v3472, %v3470
        %v3571 = vpack.c.b16 %v3473, %v3471
        %v3572 = vpack.c.b16 %v3476, %v3474
        %v3573 = vpack.c.b16 %v3477, %v3475
        %v3574 = vpack.c.b16 %v3480, %v3478
        %v3575 = vpack.c.b16 %v3481, %v3479
        %v3576 = vpack.c.b16 %v3484, %v3482
        %v3577 = vpack.c.b16 %v3485, %v3483
        %v3578 = vpack.c.b16 %v3488, %v3486
        %v3579 = vpack.c.b16 %v3489, %v3487
        %v3580 = vpack.c.b16 %v3492, %v3490
        %v3581 = vpack.c.b16 %v3493, %v3491
        %v3582 = vpack.c.b16 %v3496, %v3494
        %v3583 = vpack.c.b16 %v3497, %v3495
        %v3584 = vpack.c.b16 %v3500, %v3498
        %v3585 = vpack.c.b16 %v3501, %v3499
        %v3586 = vpack.c.b16 %v3504, %v3502
        %v3587 = vpack.c.b16 %v3505, %v3503
        %v3588 = vpack.c.b16 %v3508, %v3506
        %v3589 = vpack.c.b16 %v3509, %v3507
        %v3590 = vpack.c.b16 %v3512, %v3510
        %v3591 = vpack.c.b16 %v3513, %v3511
        %v3592 = vpack.c.b16 %v3516, %v3514
        %v3593 = vpack.c.b16 %v3517, %v3515
        %v3594 = vpack.c.b16 %v3520, %v3518
        %v3595 = vpack.c.b16 %v3521, %v3519
        %v3596 = vpack.c.b16 %v3524, %v3522
        %v3597 = vpack.c.b16 %v3525, %v3523
        %v3598 = vpack.c.b16 %v3528, %v3526
        %v3599 = vpack.c.b16 %v3529, %v3527
        %v3600 = vpack.c.b16 %v3532, %v3530
        %v3601 = vpack.c.b16 %v3533, %v3531
        %v3602 = vpack.c.b16 %v3536, %v3534
        %v3603 = vpack.c.b16 %v3537, %v3535
        %v3604 = vpack.c.b16 %v3540, %v3538
        %v3605 = vpack.c.b16 %v3541, %v3539
        %3670 = vmatpush.bf16.msra.mxu0 %v3556
        %3671 = vmatpush.bf16.msra.mxu0 %v3554
        %3672 = vmatpush.bf16.msra.mxu0 %v3552
        %3673 = vmatpush.bf16.msra.mxu0 %v3550
        %3674 = vmatpush.bf16.msra.mxu0 %v3548
        %3675 = vmatpush.bf16.msra.mxu0 %v3546
        %3676 = vmatpush.bf16.msra.mxu0 %v3544
        %3677 = vmatpush.bf16.msra.mxu0 %v3542
        %3678 = vmatmul.bf16.gmra.mxu0 %v1739
        %v3679 = vpop.f32.mrf.mxu0
        %v3680 = vadd.f32 %v1807, %v3679
        %v3681 = vpop.f32.mrf.mxu0
        %v3682 = vadd.f32 %v1807, %v3681
        %3683 = vdwg.mxu0
        %3684 = vmatpush.bf16.msra.mxu0 %v3572
        %3685 = vmatpush.bf16.msra.mxu0 %v3570
        %3686 = vmatpush.bf16.msra.mxu0 %v3568
        %3687 = vmatpush.bf16.msra.mxu0 %v3566
        %3688 = vmatpush.bf16.msra.mxu0 %v3564
        %3689 = vmatpush.bf16.msra.mxu0 %v3562
        %3690 = vmatpush.bf16.msra.mxu0 %v3560
        %3691 = vmatpush.bf16.msra.mxu0 %v3558
        %3692 = vmatmul.bf16.gmra.mxu0 %v2259
        %v3693 = vpop.f32.mrf.mxu0
        %v3694 = vadd.f32 %v3680, %v3693
        %v3695 = vpop.f32.mrf.mxu0
        %v3696 = vadd.f32 %v3682, %v3695
        %3697 = vdwg.mxu0
        %3698 = vmatpush.bf16.msra.mxu0 %v3588
        %3699 = vmatpush.bf16.msra.mxu0 %v3586
        %3700 = vmatpush.bf16.msra.mxu0 %v3584
        %3701 = vmatpush.bf16.msra.mxu0 %v3582
        %3702 = vmatpush.bf16.msra.mxu0 %v3580
        %3703 = vmatpush.bf16.msra.mxu0 %v3578
        %3704 = vmatpush.bf16.msra.mxu0 %v3576
        %3705 = vmatpush.bf16.msra.mxu0 %v3574
        %3706 = vmatmul.bf16.gmra.mxu0 %v2774
        %v3707 = vpop.f32.mrf.mxu0
        %v3708 = vadd.f32 %v3694, %v3707
        %v3709 = vpop.f32.mrf.mxu0
        %v3710 = vadd.f32 %v3696, %v3709
        %3711 = vdwg.mxu0
        %3712 = vmatpush.bf16.msra.mxu0 %v3604
        %3713 = vmatpush.bf16.msra.mxu0 %v3602
        %3714 = vmatpush.bf16.msra.mxu0 %v3600
        %3715 = vmatpush.bf16.msra.mxu0 %v3598
        %3716 = vmatpush.bf16.msra.mxu0 %v3596
        %3717 = vmatpush.bf16.msra.mxu0 %v3594
        %3718 = vmatpush.bf16.msra.mxu0 %v3592
        %3719 = vmatpush.bf16.msra.mxu0 %v3590
        %3720 = vmatmul.bf16.gmra.mxu0 %v3283
        %v3721 = vpop.f32.mrf.mxu0
        %v3722 = vadd.f32 %v3708, %v3721
        %v3723 = vpop.f32.mrf.mxu0
        %v3724 = vadd.f32 %v3710, %v3723
        %3725 = vdwg.mxu0
        %3726 = vmatpush.bf16.msra.mxu0 %v3557
        %3727 = vmatpush.bf16.msra.mxu0 %v3555
        %3728 = vmatpush.bf16.msra.mxu0 %v3553
        %3729 = vmatpush.bf16.msra.mxu0 %v3551
        %3730 = vmatpush.bf16.msra.mxu0 %v3549
        %3731 = vmatpush.bf16.msra.mxu0 %v3547
        %3732 = vmatpush.bf16.msra.mxu0 %v3545
        %3733 = vmatpush.bf16.msra.mxu0 %v3543
        %3734 = vmatmul.bf16.gmra.mxu0 %v1739
        %v3735 = vpop.f32.mrf.mxu0
        %v3736 = vadd.f32 %v1808, %v3735
        %v3737 = vpop.f32.mrf.mxu0
        %v3738 = vadd.f32 %v1808, %v3737
        %3739 = vdwg.mxu0
        %3740 = vmatpush.bf16.msra.mxu0 %v3573
        %3741 = vmatpush.bf16.msra.mxu0 %v3571
        %3742 = vmatpush.bf16.msra.mxu0 %v3569
        %3743 = vmatpush.bf16.msra.mxu0 %v3567
        %3744 = vmatpush.bf16.msra.mxu0 %v3565
        %3745 = vmatpush.bf16.msra.mxu0 %v3563
        %3746 = vmatpush.bf16.msra.mxu0 %v3561
        %3747 = vmatpush.bf16.msra.mxu0 %v3559
        %3748 = vmatmul.bf16.gmra.mxu0 %v2259
        %v3749 = vpop.f32.mrf.mxu0
        %v3750 = vadd.f32 %v3736, %v3749
        %v3751 = vpop.f32.mrf.mxu0
        %v3752 = vadd.f32 %v3738, %v3751
        %3753 = vdwg.mxu0
        %3754 = vmatpush.bf16.msra.mxu0 %v3589
        %3755 = vmatpush.bf16.msra.mxu0 %v3587
        %3756 = vmatpush.bf16.msra.mxu0 %v3585
        %3757 = vmatpush.bf16.msra.mxu0 %v3583
        %3758 = vmatpush.bf16.msra.mxu0 %v3581
        %3759 = vmatpush.bf16.msra.mxu0 %v3579
        %3760 = vmatpush.bf16.msra.mxu0 %v3577
        %3761 = vmatpush.bf16.msra.mxu0 %v3575
        %3762 = vmatmul.bf16.gmra.mxu0 %v2774
        %v3763 = vpop.f32.mrf.mxu0
        %v3764 = vadd.f32 %v3750, %v3763
        %v3765 = vpop.f32.mrf.mxu0
        %v3766 = vadd.f32 %v3752, %v3765
        %3767 = vdwg.mxu0
        %3768 = vmatpush.bf16.msra.mxu0 %v3605
        %3769 = vmatpush.bf16.msra.mxu0 %v3603
        %3770 = vmatpush.bf16.msra.mxu0 %v3601
        %3771 = vmatpush.bf16.msra.mxu0 %v3599
        %3772 = vmatpush.bf16.msra.mxu0 %v3597
        %3773 = vmatpush.bf16.msra.mxu0 %v3595
        %3774 = vmatpush.bf16.msra.mxu0 %v3593
        %3775 = vmatpush.bf16.msra.mxu0 %v3591
        %3776 = vmatmul.bf16.gmra.mxu0 %v3283
        %v3777 = vpop.f32.mrf.mxu0
        %v3778 = vadd.f32 %v3764, %v3777
        %v3779 = vpop.f32.mrf.mxu0
        %v3780 = vadd.f32 %v3766, %v3779
        %3781 = vdwg.mxu0
        %v3782 = vmax.f32 %v3722, 0.0
        %v3783 = vmax.f32 %v3778, 0.0
        %v3784 = vmax.f32 %v3724, 0.0
        %v3785 = vmax.f32 %v3780, 0.0
        %v3786 = vpack.c.bf16 %v3783, %v3782
        %v3787 = vpack.c.bf16 %v3785, %v3784
        %v3790 = vunpack.c.l.b16 %v2247
        %v3791 = vunpack.c.h.b16 %v2247
        %v3792 = vunpack.c.l.b16 %v2248
        %v3793 = vunpack.c.h.b16 %v2248
        %v3794 = vpack.c.b16 %v3792, %v3790
        %v3795 = vpack.c.b16 %v3793, %v3791
        %v3800 = vunpack.c.l.b16 %v2762
        %v3801 = vunpack.c.h.b16 %v2762
        %v3802 = vunpack.c.l.b16 %v2763
        %v3803 = vunpack.c.h.b16 %v2763
        %v3804 = vpack.c.b16 %v3802, %v3800
        %v3805 = vpack.c.b16 %v3803, %v3801
        %v3810 = vunpack.c.l.b16 %v3277
        %v3811 = vunpack.c.h.b16 %v3277
        %v3812 = vunpack.c.l.b16 %v3278
        %v3813 = vunpack.c.h.b16 %v3278
        %v3814 = vpack.c.b16 %v3812, %v3810
        %v3815 = vpack.c.b16 %v3813, %v3811
        %v3820 = vunpack.c.l.b16 %v3786
        %v3821 = vunpack.c.h.b16 %v3786
        %v3822 = vunpack.c.l.b16 %v3787
        %v3823 = vunpack.c.h.b16 %v3787
        %v3824 = vpack.c.b16 %v3822, %v3820
        %v3825 = vpack.c.b16 %v3823, %v3821
        %v3828 = vld [vmem:[#allocation10] sm:$0xf]
        %v3829 = vld [vmem:[#allocation10 + $0x4] sm:$0xf]
        %v3830 = vld [vmem:[#allocation10 + $0x8] sm:$0xf]
        %v3831 = vld [vmem:[#allocation10 + $0xc] sm:$0xf]
        %v3832 = vld [vmem:[#allocation10 + $0x10] sm:$0xf]
        %v3833 = vld [vmem:[#allocation10 + $0x14] sm:$0xf]
        %v3834 = vld [vmem:[#allocation10 + $0x18] sm:$0xf]
        %v3835 = vld [vmem:[#allocation10 + $0x1c] sm:$0xf]
        %v3844 = vunpack.c.l.b16 %v3828
        %v3845 = vunpack.c.l.b16 %v3829
        %v3846 = vunpack.c.l.b16 %v3830
        %v3847 = vunpack.c.l.b16 %v3831
        %v3848 = vunpack.c.l.b16 %v3832
        %v3849 = vunpack.c.l.b16 %v3833
        %v3850 = vunpack.c.l.b16 %v3834
        %v3851 = vunpack.c.l.b16 %v3835
        %v3852 = vpack.c.b16 %v3845, %v3844
        %v3853 = vpack.c.b16 %v3847, %v3846
        %v3854 = vpack.c.b16 %v3849, %v3848
        %v3855 = vpack.c.b16 %v3851, %v3850
        %vm3856 = vcmask 523264
        %v3858 = vsel %vm3856, %v3852, 0
        %v3861 = vsel %vm3856, %v3853, 0
        %v3864 = vsel %vm3856, %v3854, 0
        %v3867 = vsel %vm3856, %v3855, 0
        %3869 = vmatpush.bf16.msra.mxu0 0
        %3870 = vmatpush.bf16.msra.mxu0 0
        %3871 = vmatpush.bf16.msra.mxu0 0
        %3872 = vmatpush.bf16.msra.mxu0 0
        %3873 = vmatpush.bf16.msra.mxu0 %v3824
        %3874 = vmatpush.bf16.msra.mxu0 %v3814
        %3875 = vmatpush.bf16.msra.mxu0 %v3804
        %3876 = vmatpush.bf16.msra.mxu0 %v3794
        %3877 = vmatmul.bf16.gmra.mxu0 %v3858
        %v3878 = vpop.f32.mrf.mxu0
        %v3879 = vadd.f32 0.0, %v3878
        %v3880 = vpop.f32.mrf.mxu0
        %v3881 = vadd.f32 0.0, %v3880
        %3882 = vmatmul.bf16.gmra.mxu0 %v3861
        %v3883 = vpop.f32.mrf.mxu0
        %v3884 = vadd.f32 0.0, %v3883
        %v3885 = vpop.f32.mrf.mxu0
        %v3886 = vadd.f32 0.0, %v3885
        %3887 = vmatmul.bf16.gmra.mxu0 %v3864
        %v3888 = vpop.f32.mrf.mxu0
        %v3889 = vadd.f32 0.0, %v3888
        %v3890 = vpop.f32.mrf.mxu0
        %v3891 = vadd.f32 0.0, %v3890
        %3892 = vmatmul.bf16.gmra.mxu0 %v3867
        %v3893 = vpop.f32.mrf.mxu0
        %v3894 = vadd.f32 0.0, %v3893
        %v3895 = vpop.f32.mrf.mxu0
        %v3896 = vadd.f32 0.0, %v3895
        %3897 = vdwg.mxu0
        %3898 = vmatpush.bf16.msra.mxu0 0
        %3899 = vmatpush.bf16.msra.mxu0 0
        %3900 = vmatpush.bf16.msra.mxu0 0
        %3901 = vmatpush.bf16.msra.mxu0 0
        %3902 = vmatpush.bf16.msra.mxu0 %v3825
        %3903 = vmatpush.bf16.msra.mxu0 %v3815
        %3904 = vmatpush.bf16.msra.mxu0 %v3805
        %3905 = vmatpush.bf16.msra.mxu0 %v3795
        %3906 = vmatmul.bf16.gmra.mxu0 %v3858
        %v3907 = vpop.f32.mrf.mxu0
        %v3908 = vadd.f32 0.0, %v3907
        %v3909 = vpop.f32.mrf.mxu0
        %v3910 = vadd.f32 0.0, %v3909
        %3911 = vmatmul.bf16.gmra.mxu0 %v3861
        %v3912 = vpop.f32.mrf.mxu0
        %v3913 = vadd.f32 0.0, %v3912
        %v3914 = vpop.f32.mrf.mxu0
        %v3915 = vadd.f32 0.0, %v3914
        %3916 = vmatmul.bf16.gmra.mxu0 %v3864
        %v3917 = vpop.f32.mrf.mxu0
        %v3918 = vadd.f32 0.0, %v3917
        %v3919 = vpop.f32.mrf.mxu0
        %v3920 = vadd.f32 0.0, %v3919
        %3921 = vmatmul.bf16.gmra.mxu0 %v3867
        %v3922 = vpop.f32.mrf.mxu0
        %v3923 = vadd.f32 0.0, %v3922
        %v3924 = vpop.f32.mrf.mxu0
        %v3925 = vadd.f32 0.0, %v3924
        %3926 = vdwg.mxu0
        %v3927 = vpack.c.bf16 %v3908, %v3879
        %v3928 = vpack.c.bf16 %v3910, %v3881
        %v3929 = vpack.c.bf16 %v3913, %v3884
        %v3930 = vpack.c.bf16 %v3915, %v3886
        %v3931 = vpack.c.bf16 %v3918, %v3889
        %v3932 = vpack.c.bf16 %v3920, %v3891
        %v3933 = vpack.c.bf16 %v3923, %v3894
        %v3934 = vpack.c.bf16 %v3925, %v3896
        %s3935 = scalar_lea.vmem [#allocation10], 32
        %v3936 = vld [vmem:[%s3935] sm:$0xf]
        %v3937 = vld [vmem:[%s3935 + $0x4] sm:$0xf]
        %v3938 = vld [vmem:[%s3935 + $0x8] sm:$0xf]
        %v3939 = vld [vmem:[%s3935 + $0xc] sm:$0xf]
        %v3940 = vld [vmem:[%s3935 + $0x10] sm:$0xf]
        %v3941 = vld [vmem:[%s3935 + $0x14] sm:$0xf]
        %v3942 = vld [vmem:[%s3935 + $0x18] sm:$0xf]
        %v3943 = vld [vmem:[%s3935 + $0x1c] sm:$0xf]
        %v3952 = vunpack.c.l.b16 %v3936
        %v3953 = vunpack.c.l.b16 %v3937
        %v3954 = vunpack.c.l.b16 %v3938
        %v3955 = vunpack.c.l.b16 %v3939
        %v3956 = vunpack.c.l.b16 %v3940
        %v3957 = vunpack.c.l.b16 %v3941
        %v3958 = vunpack.c.l.b16 %v3942
        %v3959 = vunpack.c.l.b16 %v3943
        %v3960 = vpack.c.b16 %v3953, %v3952
        %v3961 = vpack.c.b16 %v3955, %v3954
        %v3962 = vpack.c.b16 %v3957, %v3956
        %v3963 = vpack.c.b16 %v3959, %v3958
        %v3965 = vsel %vm3856, %v3960, 0
        %v3968 = vsel %vm3856, %v3961, 0
        %v3971 = vsel %vm3856, %v3962, 0
        %v3974 = vsel %vm3856, %v3963, 0
        %3976 = vmatpush.bf16.msra.mxu0 0
        %3977 = vmatpush.bf16.msra.mxu0 0
        %3978 = vmatpush.bf16.msra.mxu0 0
        %3979 = vmatpush.bf16.msra.mxu0 0
        %3980 = vmatpush.bf16.msra.mxu0 %v3824
        %3981 = vmatpush.bf16.msra.mxu0 %v3814
        %3982 = vmatpush.bf16.msra.mxu0 %v3804
        %3983 = vmatpush.bf16.msra.mxu0 %v3794
        %3984 = vmatmul.bf16.gmra.mxu0 %v3965
        %v3985 = vpop.f32.mrf.mxu0
        %v3986 = vadd.f32 0.0, %v3985
        %v3987 = vpop.f32.mrf.mxu0
        %v3988 = vadd.f32 0.0, %v3987
        %3989 = vmatmul.bf16.gmra.mxu0 %v3968
        %v3990 = vpop.f32.mrf.mxu0
        %v3991 = vadd.f32 0.0, %v3990
        %v3992 = vpop.f32.mrf.mxu0
        %v3993 = vadd.f32 0.0, %v3992
        %3994 = vmatmul.bf16.gmra.mxu0 %v3971
        %v3995 = vpop.f32.mrf.mxu0
        %v3996 = vadd.f32 0.0, %v3995
        %v3997 = vpop.f32.mrf.mxu0
        %v3998 = vadd.f32 0.0, %v3997
        %3999 = vmatmul.bf16.gmra.mxu0 %v3974
        %v4000 = vpop.f32.mrf.mxu0
        %v4001 = vadd.f32 0.0, %v4000
        %v4002 = vpop.f32.mrf.mxu0
        %v4003 = vadd.f32 0.0, %v4002
        %4004 = vdwg.mxu0
        %4005 = vmatpush.bf16.msra.mxu0 0
        %4006 = vmatpush.bf16.msra.mxu0 0
        %4007 = vmatpush.bf16.msra.mxu0 0
        %4008 = vmatpush.bf16.msra.mxu0 0
        %4009 = vmatpush.bf16.msra.mxu0 %v3825
        %4010 = vmatpush.bf16.msra.mxu0 %v3815
        %4011 = vmatpush.bf16.msra.mxu0 %v3805
        %4012 = vmatpush.bf16.msra.mxu0 %v3795
        %4013 = vmatmul.bf16.gmra.mxu0 %v3965
        %v4014 = vpop.f32.mrf.mxu0
        %v4015 = vadd.f32 0.0, %v4014
        %v4016 = vpop.f32.mrf.mxu0
        %v4017 = vadd.f32 0.0, %v4016
        %4018 = vmatmul.bf16.gmra.mxu0 %v3968
        %v4019 = vpop.f32.mrf.mxu0
        %v4020 = vadd.f32 0.0, %v4019
        %v4021 = vpop.f32.mrf.mxu0
        %v4022 = vadd.f32 0.0, %v4021
        %4023 = vmatmul.bf16.gmra.mxu0 %v3971
        %v4024 = vpop.f32.mrf.mxu0
        %v4025 = vadd.f32 0.0, %v4024
        %v4026 = vpop.f32.mrf.mxu0
        %v4027 = vadd.f32 0.0, %v4026
        %4028 = vmatmul.bf16.gmra.mxu0 %v3974
        %v4029 = vpop.f32.mrf.mxu0
        %v4030 = vadd.f32 0.0, %v4029
        %v4031 = vpop.f32.mrf.mxu0
        %v4032 = vadd.f32 0.0, %v4031
        %4033 = vdwg.mxu0
        %v4034 = vpack.c.bf16 %v4015, %v3986
        %v4035 = vpack.c.bf16 %v4017, %v3988
        %v4036 = vpack.c.bf16 %v4020, %v3991
        %v4037 = vpack.c.bf16 %v4022, %v3993
        %v4038 = vpack.c.bf16 %v4025, %v3996
        %v4039 = vpack.c.bf16 %v4027, %v3998
        %v4040 = vpack.c.bf16 %v4030, %v4001
        %v4041 = vpack.c.bf16 %v4032, %v4003
        %s4042 = scalar_lea.vmem [#allocation10], 64
        %v4043 = vld [vmem:[%s4042] sm:$0xf]
        %v4044 = vld [vmem:[%s4042 + $0x4] sm:$0xf]
        %v4045 = vld [vmem:[%s4042 + $0x8] sm:$0xf]
        %v4046 = vld [vmem:[%s4042 + $0xc] sm:$0xf]
        %v4047 = vld [vmem:[%s4042 + $0x10] sm:$0xf]
        %v4048 = vld [vmem:[%s4042 + $0x14] sm:$0xf]
        %v4049 = vld [vmem:[%s4042 + $0x18] sm:$0xf]
        %v4050 = vld [vmem:[%s4042 + $0x1c] sm:$0xf]
        %v4059 = vunpack.c.l.b16 %v4043
        %v4060 = vunpack.c.l.b16 %v4044
        %v4061 = vunpack.c.l.b16 %v4045
        %v4062 = vunpack.c.l.b16 %v4046
        %v4063 = vunpack.c.l.b16 %v4047
        %v4064 = vunpack.c.l.b16 %v4048
        %v4065 = vunpack.c.l.b16 %v4049
        %v4066 = vunpack.c.l.b16 %v4050
        %v4067 = vpack.c.b16 %v4060, %v4059
        %v4068 = vpack.c.b16 %v4062, %v4061
        %v4069 = vpack.c.b16 %v4064, %v4063
        %v4070 = vpack.c.b16 %v4066, %v4065
        %v4072 = vsel %vm3856, %v4067, 0
        %v4075 = vsel %vm3856, %v4068, 0
        %v4078 = vsel %vm3856, %v4069, 0
        %v4081 = vsel %vm3856, %v4070, 0
        %4083 = vmatpush.bf16.msra.mxu0 0
        %4084 = vmatpush.bf16.msra.mxu0 0
        %4085 = vmatpush.bf16.msra.mxu0 0
        %4086 = vmatpush.bf16.msra.mxu0 0
        %4087 = vmatpush.bf16.msra.mxu0 %v3824
        %4088 = vmatpush.bf16.msra.mxu0 %v3814
        %4089 = vmatpush.bf16.msra.mxu0 %v3804
        %4090 = vmatpush.bf16.msra.mxu0 %v3794
        %4091 = vmatmul.bf16.gmra.mxu0 %v4072
        %v4092 = vpop.f32.mrf.mxu0
        %v4093 = vadd.f32 0.0, %v4092
        %v4094 = vpop.f32.mrf.mxu0
        %v4095 = vadd.f32 0.0, %v4094
        %4096 = vmatmul.bf16.gmra.mxu0 %v4075
        %v4097 = vpop.f32.mrf.mxu0
        %v4098 = vadd.f32 0.0, %v4097
        %v4099 = vpop.f32.mrf.mxu0
        %v4100 = vadd.f32 0.0, %v4099
        %4101 = vmatmul.bf16.gmra.mxu0 %v4078
        %v4102 = vpop.f32.mrf.mxu0
        %v4103 = vadd.f32 0.0, %v4102
        %v4104 = vpop.f32.mrf.mxu0
        %v4105 = vadd.f32 0.0, %v4104
        %4106 = vmatmul.bf16.gmra.mxu0 %v4081
        %v4107 = vpop.f32.mrf.mxu0
        %v4108 = vadd.f32 0.0, %v4107
        %v4109 = vpop.f32.mrf.mxu0
        %v4110 = vadd.f32 0.0, %v4109
        %4111 = vdwg.mxu0
        %4112 = vmatpush.bf16.msra.mxu0 0
        %4113 = vmatpush.bf16.msra.mxu0 0
        %4114 = vmatpush.bf16.msra.mxu0 0
        %4115 = vmatpush.bf16.msra.mxu0 0
        %4116 = vmatpush.bf16.msra.mxu0 %v3825
        %4117 = vmatpush.bf16.msra.mxu0 %v3815
        %4118 = vmatpush.bf16.msra.mxu0 %v3805
        %4119 = vmatpush.bf16.msra.mxu0 %v3795
        %4120 = vmatmul.bf16.gmra.mxu0 %v4072
        %v4121 = vpop.f32.mrf.mxu0
        %v4122 = vadd.f32 0.0, %v4121
        %v4123 = vpop.f32.mrf.mxu0
        %v4124 = vadd.f32 0.0, %v4123
        %4125 = vmatmul.bf16.gmra.mxu0 %v4075
        %v4126 = vpop.f32.mrf.mxu0
        %v4127 = vadd.f32 0.0, %v4126
        %v4128 = vpop.f32.mrf.mxu0
        %v4129 = vadd.f32 0.0, %v4128
        %4130 = vmatmul.bf16.gmra.mxu0 %v4078
        %v4131 = vpop.f32.mrf.mxu0
        %v4132 = vadd.f32 0.0, %v4131
        %v4133 = vpop.f32.mrf.mxu0
        %v4134 = vadd.f32 0.0, %v4133
        %4135 = vmatmul.bf16.gmra.mxu0 %v4081
        %v4136 = vpop.f32.mrf.mxu0
        %v4137 = vadd.f32 0.0, %v4136
        %v4138 = vpop.f32.mrf.mxu0
        %v4139 = vadd.f32 0.0, %v4138
        %4140 = vdwg.mxu0
        %v4141 = vpack.c.bf16 %v4122, %v4093
        %v4142 = vpack.c.bf16 %v4124, %v4095
        %v4143 = vpack.c.bf16 %v4127, %v4098
        %v4144 = vpack.c.bf16 %v4129, %v4100
        %v4145 = vpack.c.bf16 %v4132, %v4103
        %v4146 = vpack.c.bf16 %v4134, %v4105
        %v4147 = vpack.c.bf16 %v4137, %v4108
        %v4148 = vpack.c.bf16 %v4139, %v4110
        %s4149 = scalar_lea.vmem [#allocation10], 96
        %v4150 = vld [vmem:[%s4149] sm:$0xf]
        %v4151 = vld [vmem:[%s4149 + $0x4] sm:$0xf]
        %v4152 = vld [vmem:[%s4149 + $0x8] sm:$0xf]
        %v4153 = vld [vmem:[%s4149 + $0xc] sm:$0xf]
        %v4154 = vld [vmem:[%s4149 + $0x10] sm:$0xf]
        %v4155 = vld [vmem:[%s4149 + $0x14] sm:$0xf]
        %v4156 = vld [vmem:[%s4149 + $0x18] sm:$0xf]
        %v4157 = vld [vmem:[%s4149 + $0x1c] sm:$0xf]
        %v4166 = vunpack.c.l.b16 %v4150
        %v4167 = vunpack.c.l.b16 %v4151
        %v4168 = vunpack.c.l.b16 %v4152
        %v4169 = vunpack.c.l.b16 %v4153
        %v4170 = vunpack.c.l.b16 %v4154
        %v4171 = vunpack.c.l.b16 %v4155
        %v4172 = vunpack.c.l.b16 %v4156
        %v4173 = vunpack.c.l.b16 %v4157
        %v4174 = vpack.c.b16 %v4167, %v4166
        %v4175 = vpack.c.b16 %v4169, %v4168
        %v4176 = vpack.c.b16 %v4171, %v4170
        %v4177 = vpack.c.b16 %v4173, %v4172
        %v4179 = vsel %vm3856, %v4174, 0
        %v4182 = vsel %vm3856, %v4175, 0
        %v4185 = vsel %vm3856, %v4176, 0
        %v4188 = vsel %vm3856, %v4177, 0
        %4190 = vmatpush.bf16.msra.mxu0 0
        %4191 = vmatpush.bf16.msra.mxu0 0
        %4192 = vmatpush.bf16.msra.mxu0 0
        %4193 = vmatpush.bf16.msra.mxu0 0
        %4194 = vmatpush.bf16.msra.mxu0 %v3824
        %4195 = vmatpush.bf16.msra.mxu0 %v3814
        %4196 = vmatpush.bf16.msra.mxu0 %v3804
        %4197 = vmatpush.bf16.msra.mxu0 %v3794
        %4198 = vmatmul.bf16.gmra.mxu0 %v4179
        %v4199 = vpop.f32.mrf.mxu0
        %v4200 = vadd.f32 0.0, %v4199
        %v4201 = vpop.f32.mrf.mxu0
        %v4202 = vadd.f32 0.0, %v4201
        %4203 = vmatmul.bf16.gmra.mxu0 %v4182
        %v4204 = vpop.f32.mrf.mxu0
        %v4205 = vadd.f32 0.0, %v4204
        %v4206 = vpop.f32.mrf.mxu0
        %v4207 = vadd.f32 0.0, %v4206
        %4208 = vmatmul.bf16.gmra.mxu0 %v4185
        %v4209 = vpop.f32.mrf.mxu0
        %v4210 = vadd.f32 0.0, %v4209
        %v4211 = vpop.f32.mrf.mxu0
        %v4212 = vadd.f32 0.0, %v4211
        %4213 = vmatmul.bf16.gmra.mxu0 %v4188
        %v4214 = vpop.f32.mrf.mxu0
        %v4215 = vadd.f32 0.0, %v4214
        %v4216 = vpop.f32.mrf.mxu0
        %v4217 = vadd.f32 0.0, %v4216
        %4218 = vdwg.mxu0
        %4219 = vmatpush.bf16.msra.mxu0 0
        %4220 = vmatpush.bf16.msra.mxu0 0
        %4221 = vmatpush.bf16.msra.mxu0 0
        %4222 = vmatpush.bf16.msra.mxu0 0
        %4223 = vmatpush.bf16.msra.mxu0 %v3825
        %4224 = vmatpush.bf16.msra.mxu0 %v3815
        %4225 = vmatpush.bf16.msra.mxu0 %v3805
        %4226 = vmatpush.bf16.msra.mxu0 %v3795
        %4227 = vmatmul.bf16.gmra.mxu0 %v4179
        %v4228 = vpop.f32.mrf.mxu0
        %v4229 = vadd.f32 0.0, %v4228
        %v4230 = vpop.f32.mrf.mxu0
        %v4231 = vadd.f32 0.0, %v4230
        %4232 = vmatmul.bf16.gmra.mxu0 %v4182
        %v4233 = vpop.f32.mrf.mxu0
        %v4234 = vadd.f32 0.0, %v4233
        %v4235 = vpop.f32.mrf.mxu0
        %v4236 = vadd.f32 0.0, %v4235
        %4237 = vmatmul.bf16.gmra.mxu0 %v4185
        %v4238 = vpop.f32.mrf.mxu0
        %v4239 = vadd.f32 0.0, %v4238
        %v4240 = vpop.f32.mrf.mxu0
        %v4241 = vadd.f32 0.0, %v4240
        %4242 = vmatmul.bf16.gmra.mxu0 %v4188
        %v4243 = vpop.f32.mrf.mxu0
        %v4244 = vadd.f32 0.0, %v4243
        %v4245 = vpop.f32.mrf.mxu0
        %v4246 = vadd.f32 0.0, %v4245
        %4247 = vdwg.mxu0
        %v4248 = vpack.c.bf16 %v4229, %v4200
        %v4249 = vpack.c.bf16 %v4231, %v4202
        %v4250 = vpack.c.bf16 %v4234, %v4205
        %v4251 = vpack.c.bf16 %v4236, %v4207
        %v4252 = vpack.c.bf16 %v4239, %v4210
        %v4253 = vpack.c.bf16 %v4241, %v4212
        %v4254 = vpack.c.bf16 %v4244, %v4215
        %v4255 = vpack.c.bf16 %v4246, %v4217
        %s4256 = scalar_lea.vmem [#allocation10], 128
        %v4257 = vld [vmem:[%s4256] sm:$0xf]
        %v4258 = vld [vmem:[%s4256 + $0x4] sm:$0xf]
        %v4259 = vld [vmem:[%s4256 + $0x8] sm:$0xf]
        %v4260 = vld [vmem:[%s4256 + $0xc] sm:$0xf]
        %v4261 = vld [vmem:[%s4256 + $0x10] sm:$0xf]
        %v4262 = vld [vmem:[%s4256 + $0x14] sm:$0xf]
        %v4263 = vld [vmem:[%s4256 + $0x18] sm:$0xf]
        %v4264 = vld [vmem:[%s4256 + $0x1c] sm:$0xf]
        %v4273 = vunpack.c.l.b16 %v4257
        %v4274 = vunpack.c.l.b16 %v4258
        %v4275 = vunpack.c.l.b16 %v4259
        %v4276 = vunpack.c.l.b16 %v4260
        %v4277 = vunpack.c.l.b16 %v4261
        %v4278 = vunpack.c.l.b16 %v4262
        %v4279 = vunpack.c.l.b16 %v4263
        %v4280 = vunpack.c.l.b16 %v4264
        %v4281 = vpack.c.b16 %v4274, %v4273
        %v4282 = vpack.c.b16 %v4276, %v4275
        %v4283 = vpack.c.b16 %v4278, %v4277
        %v4284 = vpack.c.b16 %v4280, %v4279
        %v4286 = vsel %vm3856, %v4281, 0
        %v4289 = vsel %vm3856, %v4282, 0
        %v4292 = vsel %vm3856, %v4283, 0
        %v4295 = vsel %vm3856, %v4284, 0
        %4297 = vmatpush.bf16.msra.mxu0 0
        %4298 = vmatpush.bf16.msra.mxu0 0
        %4299 = vmatpush.bf16.msra.mxu0 0
        %4300 = vmatpush.bf16.msra.mxu0 0
        %4301 = vmatpush.bf16.msra.mxu0 %v3824
        %4302 = vmatpush.bf16.msra.mxu0 %v3814
        %4303 = vmatpush.bf16.msra.mxu0 %v3804
        %4304 = vmatpush.bf16.msra.mxu0 %v3794
        %4305 = vmatmul.bf16.gmra.mxu0 %v4286
        %v4306 = vpop.f32.mrf.mxu0
        %v4307 = vadd.f32 0.0, %v4306
        %v4308 = vpop.f32.mrf.mxu0
        %v4309 = vadd.f32 0.0, %v4308
        %4310 = vmatmul.bf16.gmra.mxu0 %v4289
        %v4311 = vpop.f32.mrf.mxu0
        %v4312 = vadd.f32 0.0, %v4311
        %v4313 = vpop.f32.mrf.mxu0
        %v4314 = vadd.f32 0.0, %v4313
        %4315 = vmatmul.bf16.gmra.mxu0 %v4292
        %v4316 = vpop.f32.mrf.mxu0
        %v4317 = vadd.f32 0.0, %v4316
        %v4318 = vpop.f32.mrf.mxu0
        %v4319 = vadd.f32 0.0, %v4318
        %4320 = vmatmul.bf16.gmra.mxu0 %v4295
        %v4321 = vpop.f32.mrf.mxu0
        %v4322 = vadd.f32 0.0, %v4321
        %v4323 = vpop.f32.mrf.mxu0
        %v4324 = vadd.f32 0.0, %v4323
        %4325 = vdwg.mxu0
        %4326 = vmatpush.bf16.msra.mxu0 0
        %4327 = vmatpush.bf16.msra.mxu0 0
        %4328 = vmatpush.bf16.msra.mxu0 0
        %4329 = vmatpush.bf16.msra.mxu0 0
        %4330 = vmatpush.bf16.msra.mxu0 %v3825
        %4331 = vmatpush.bf16.msra.mxu0 %v3815
        %4332 = vmatpush.bf16.msra.mxu0 %v3805
        %4333 = vmatpush.bf16.msra.mxu0 %v3795
        %4334 = vmatmul.bf16.gmra.mxu0 %v4286
        %v4335 = vpop.f32.mrf.mxu0
        %v4336 = vadd.f32 0.0, %v4335
        %v4337 = vpop.f32.mrf.mxu0
        %v4338 = vadd.f32 0.0, %v4337
        %4339 = vmatmul.bf16.gmra.mxu0 %v4289
        %v4340 = vpop.f32.mrf.mxu0
        %v4341 = vadd.f32 0.0, %v4340
        %v4342 = vpop.f32.mrf.mxu0
        %v4343 = vadd.f32 0.0, %v4342
        %4344 = vmatmul.bf16.gmra.mxu0 %v4292
        %v4345 = vpop.f32.mrf.mxu0
        %v4346 = vadd.f32 0.0, %v4345
        %v4347 = vpop.f32.mrf.mxu0
        %v4348 = vadd.f32 0.0, %v4347
        %4349 = vmatmul.bf16.gmra.mxu0 %v4295
        %v4350 = vpop.f32.mrf.mxu0
        %v4351 = vadd.f32 0.0, %v4350
        %v4352 = vpop.f32.mrf.mxu0
        %v4353 = vadd.f32 0.0, %v4352
        %4354 = vdwg.mxu0
        %v4355 = vpack.c.bf16 %v4336, %v4307
        %v4356 = vpack.c.bf16 %v4338, %v4309
        %v4357 = vpack.c.bf16 %v4341, %v4312
        %v4358 = vpack.c.bf16 %v4343, %v4314
        %v4359 = vpack.c.bf16 %v4346, %v4317
        %v4360 = vpack.c.bf16 %v4348, %v4319
        %v4361 = vpack.c.bf16 %v4351, %v4322
        %v4362 = vpack.c.bf16 %v4353, %v4324
        %s4363 = scalar_lea.vmem [#allocation10], 160
        %v4364 = vld [vmem:[%s4363] sm:$0xf]
        %v4365 = vld [vmem:[%s4363 + $0x4] sm:$0xf]
        %v4366 = vld [vmem:[%s4363 + $0x8] sm:$0xf]
        %v4367 = vld [vmem:[%s4363 + $0xc] sm:$0xf]
        %v4368 = vld [vmem:[%s4363 + $0x10] sm:$0xf]
        %v4369 = vld [vmem:[%s4363 + $0x14] sm:$0xf]
        %v4370 = vld [vmem:[%s4363 + $0x18] sm:$0xf]
        %v4371 = vld [vmem:[%s4363 + $0x1c] sm:$0xf]
        %v4380 = vunpack.c.l.b16 %v4364
        %v4381 = vunpack.c.l.b16 %v4365
        %v4382 = vunpack.c.l.b16 %v4366
        %v4383 = vunpack.c.l.b16 %v4367
        %v4384 = vunpack.c.l.b16 %v4368
        %v4385 = vunpack.c.l.b16 %v4369
        %v4386 = vunpack.c.l.b16 %v4370
        %v4387 = vunpack.c.l.b16 %v4371
        %v4388 = vpack.c.b16 %v4381, %v4380
        %v4389 = vpack.c.b16 %v4383, %v4382
        %v4390 = vpack.c.b16 %v4385, %v4384
        %v4391 = vpack.c.b16 %v4387, %v4386
        %v4393 = vsel %vm3856, %v4388, 0
        %v4396 = vsel %vm3856, %v4389, 0
        %v4399 = vsel %vm3856, %v4390, 0
        %v4402 = vsel %vm3856, %v4391, 0
        %4404 = vmatpush.bf16.msra.mxu0 0
        %4405 = vmatpush.bf16.msra.mxu0 0
        %4406 = vmatpush.bf16.msra.mxu0 0
        %4407 = vmatpush.bf16.msra.mxu0 0
        %4408 = vmatpush.bf16.msra.mxu0 %v3824
        %4409 = vmatpush.bf16.msra.mxu0 %v3814
        %4410 = vmatpush.bf16.msra.mxu0 %v3804
        %4411 = vmatpush.bf16.msra.mxu0 %v3794
        %4412 = vmatmul.bf16.gmra.mxu0 %v4393
        %v4413 = vpop.f32.mrf.mxu0
        %v4414 = vadd.f32 0.0, %v4413
        %v4415 = vpop.f32.mrf.mxu0
        %v4416 = vadd.f32 0.0, %v4415
        %4417 = vmatmul.bf16.gmra.mxu0 %v4396
        %v4418 = vpop.f32.mrf.mxu0
        %v4419 = vadd.f32 0.0, %v4418
        %v4420 = vpop.f32.mrf.mxu0
        %v4421 = vadd.f32 0.0, %v4420
        %4422 = vmatmul.bf16.gmra.mxu0 %v4399
        %v4423 = vpop.f32.mrf.mxu0
        %v4424 = vadd.f32 0.0, %v4423
        %v4425 = vpop.f32.mrf.mxu0
        %v4426 = vadd.f32 0.0, %v4425
        %4427 = vmatmul.bf16.gmra.mxu0 %v4402
        %v4428 = vpop.f32.mrf.mxu0
        %v4429 = vadd.f32 0.0, %v4428
        %v4430 = vpop.f32.mrf.mxu0
        %v4431 = vadd.f32 0.0, %v4430
        %4432 = vdwg.mxu0
        %4433 = vmatpush.bf16.msra.mxu0 0
        %4434 = vmatpush.bf16.msra.mxu0 0
        %4435 = vmatpush.bf16.msra.mxu0 0
        %4436 = vmatpush.bf16.msra.mxu0 0
        %4437 = vmatpush.bf16.msra.mxu0 %v3825
        %4438 = vmatpush.bf16.msra.mxu0 %v3815
        %4439 = vmatpush.bf16.msra.mxu0 %v3805
        %4440 = vmatpush.bf16.msra.mxu0 %v3795
        %4441 = vmatmul.bf16.gmra.mxu0 %v4393
        %v4442 = vpop.f32.mrf.mxu0
        %v4443 = vadd.f32 0.0, %v4442
        %v4444 = vpop.f32.mrf.mxu0
        %v4445 = vadd.f32 0.0, %v4444
        %4446 = vmatmul.bf16.gmra.mxu0 %v4396
        %v4447 = vpop.f32.mrf.mxu0
        %v4448 = vadd.f32 0.0, %v4447
        %v4449 = vpop.f32.mrf.mxu0
        %v4450 = vadd.f32 0.0, %v4449
        %4451 = vmatmul.bf16.gmra.mxu0 %v4399
        %v4452 = vpop.f32.mrf.mxu0
        %v4453 = vadd.f32 0.0, %v4452
        %v4454 = vpop.f32.mrf.mxu0
        %v4455 = vadd.f32 0.0, %v4454
        %4456 = vmatmul.bf16.gmra.mxu0 %v4402
        %v4457 = vpop.f32.mrf.mxu0
        %v4458 = vadd.f32 0.0, %v4457
        %v4459 = vpop.f32.mrf.mxu0
        %v4460 = vadd.f32 0.0, %v4459
        %4461 = vdwg.mxu0
        %v4462 = vpack.c.bf16 %v4443, %v4414
        %v4463 = vpack.c.bf16 %v4445, %v4416
        %v4464 = vpack.c.bf16 %v4448, %v4419
        %v4465 = vpack.c.bf16 %v4450, %v4421
        %v4466 = vpack.c.bf16 %v4453, %v4424
        %v4467 = vpack.c.bf16 %v4455, %v4426
        %v4468 = vpack.c.bf16 %v4458, %v4429
        %v4469 = vpack.c.bf16 %v4460, %v4431
        %s4470 = scalar_lea.vmem [#allocation10], 192
        %v4471 = vld [vmem:[%s4470] sm:$0xf]
        %v4472 = vld [vmem:[%s4470 + $0x4] sm:$0xf]
        %v4473 = vld [vmem:[%s4470 + $0x8] sm:$0xf]
        %v4474 = vld [vmem:[%s4470 + $0xc] sm:$0xf]
        %v4475 = vld [vmem:[%s4470 + $0x10] sm:$0xf]
        %v4476 = vld [vmem:[%s4470 + $0x14] sm:$0xf]
        %v4477 = vld [vmem:[%s4470 + $0x18] sm:$0xf]
        %v4478 = vld [vmem:[%s4470 + $0x1c] sm:$0xf]
        %v4487 = vunpack.c.l.b16 %v4471
        %v4488 = vunpack.c.l.b16 %v4472
        %v4489 = vunpack.c.l.b16 %v4473
        %v4490 = vunpack.c.l.b16 %v4474
        %v4491 = vunpack.c.l.b16 %v4475
        %v4492 = vunpack.c.l.b16 %v4476
        %v4493 = vunpack.c.l.b16 %v4477
        %v4494 = vunpack.c.l.b16 %v4478
        %v4495 = vpack.c.b16 %v4488, %v4487
        %v4496 = vpack.c.b16 %v4490, %v4489
        %v4497 = vpack.c.b16 %v4492, %v4491
        %v4498 = vpack.c.b16 %v4494, %v4493
        %v4500 = vsel %vm3856, %v4495, 0
        %v4503 = vsel %vm3856, %v4496, 0
        %v4506 = vsel %vm3856, %v4497, 0
        %v4509 = vsel %vm3856, %v4498, 0
        %4511 = vmatpush.bf16.msra.mxu0 0
        %4512 = vmatpush.bf16.msra.mxu0 0
        %4513 = vmatpush.bf16.msra.mxu0 0
        %4514 = vmatpush.bf16.msra.mxu0 0
        %4515 = vmatpush.bf16.msra.mxu0 %v3824
        %4516 = vmatpush.bf16.msra.mxu0 %v3814
        %4517 = vmatpush.bf16.msra.mxu0 %v3804
        %4518 = vmatpush.bf16.msra.mxu0 %v3794
        %4519 = vmatmul.bf16.gmra.mxu0 %v4500
        %v4520 = vpop.f32.mrf.mxu0
        %v4521 = vadd.f32 0.0, %v4520
        %v4522 = vpop.f32.mrf.mxu0
        %v4523 = vadd.f32 0.0, %v4522
        %4524 = vmatmul.bf16.gmra.mxu0 %v4503
        %v4525 = vpop.f32.mrf.mxu0
        %v4526 = vadd.f32 0.0, %v4525
        %v4527 = vpop.f32.mrf.mxu0
        %v4528 = vadd.f32 0.0, %v4527
        %4529 = vmatmul.bf16.gmra.mxu0 %v4506
        %v4530 = vpop.f32.mrf.mxu0
        %v4531 = vadd.f32 0.0, %v4530
        %v4532 = vpop.f32.mrf.mxu0
        %v4533 = vadd.f32 0.0, %v4532
        %4534 = vmatmul.bf16.gmra.mxu0 %v4509
        %v4535 = vpop.f32.mrf.mxu0
        %v4536 = vadd.f32 0.0, %v4535
        %v4537 = vpop.f32.mrf.mxu0
        %v4538 = vadd.f32 0.0, %v4537
        %4539 = vdwg.mxu0
        %4540 = vmatpush.bf16.msra.mxu0 0
        %4541 = vmatpush.bf16.msra.mxu0 0
        %4542 = vmatpush.bf16.msra.mxu0 0
        %4543 = vmatpush.bf16.msra.mxu0 0
        %4544 = vmatpush.bf16.msra.mxu0 %v3825
        %4545 = vmatpush.bf16.msra.mxu0 %v3815
        %4546 = vmatpush.bf16.msra.mxu0 %v3805
        %4547 = vmatpush.bf16.msra.mxu0 %v3795
        %4548 = vmatmul.bf16.gmra.mxu0 %v4500
        %v4549 = vpop.f32.mrf.mxu0
        %v4550 = vadd.f32 0.0, %v4549
        %v4551 = vpop.f32.mrf.mxu0
        %v4552 = vadd.f32 0.0, %v4551
        %4553 = vmatmul.bf16.gmra.mxu0 %v4503
        %v4554 = vpop.f32.mrf.mxu0
        %v4555 = vadd.f32 0.0, %v4554
        %v4556 = vpop.f32.mrf.mxu0
        %v4557 = vadd.f32 0.0, %v4556
        %4558 = vmatmul.bf16.gmra.mxu0 %v4506
        %v4559 = vpop.f32.mrf.mxu0
        %v4560 = vadd.f32 0.0, %v4559
        %v4561 = vpop.f32.mrf.mxu0
        %v4562 = vadd.f32 0.0, %v4561
        %4563 = vmatmul.bf16.gmra.mxu0 %v4509
        %v4564 = vpop.f32.mrf.mxu0
        %v4565 = vadd.f32 0.0, %v4564
        %v4566 = vpop.f32.mrf.mxu0
        %v4567 = vadd.f32 0.0, %v4566
        %4568 = vdwg.mxu0
        %v4569 = vpack.c.bf16 %v4550, %v4521
        %v4570 = vpack.c.bf16 %v4552, %v4523
        %v4571 = vpack.c.bf16 %v4555, %v4526
        %v4572 = vpack.c.bf16 %v4557, %v4528
        %v4573 = vpack.c.bf16 %v4560, %v4531
        %v4574 = vpack.c.bf16 %v4562, %v4533
        %v4575 = vpack.c.bf16 %v4565, %v4536
        %v4576 = vpack.c.bf16 %v4567, %v4538
        %s4577 = scalar_lea.vmem [#allocation10], 224
        %v4578 = vld [vmem:[%s4577] sm:$0xf]
        %v4579 = vld [vmem:[%s4577 + $0x4] sm:$0xf]
        %v4580 = vld [vmem:[%s4577 + $0x8] sm:$0xf]
        %v4581 = vld [vmem:[%s4577 + $0xc] sm:$0xf]
        %v4582 = vld [vmem:[%s4577 + $0x10] sm:$0xf]
        %v4583 = vld [vmem:[%s4577 + $0x14] sm:$0xf]
        %v4584 = vld [vmem:[%s4577 + $0x18] sm:$0xf]
        %v4585 = vld [vmem:[%s4577 + $0x1c] sm:$0xf]
        %v4594 = vunpack.c.l.b16 %v4578
        %v4595 = vunpack.c.l.b16 %v4579
        %v4596 = vunpack.c.l.b16 %v4580
        %v4597 = vunpack.c.l.b16 %v4581
        %v4598 = vunpack.c.l.b16 %v4582
        %v4599 = vunpack.c.l.b16 %v4583
        %v4600 = vunpack.c.l.b16 %v4584
        %v4601 = vunpack.c.l.b16 %v4585
        %v4602 = vpack.c.b16 %v4595, %v4594
        %v4603 = vpack.c.b16 %v4597, %v4596
        %v4604 = vpack.c.b16 %v4599, %v4598
        %v4605 = vpack.c.b16 %v4601, %v4600
        %v4607 = vsel %vm3856, %v4602, 0
        %v4610 = vsel %vm3856, %v4603, 0
        %v4613 = vsel %vm3856, %v4604, 0
        %v4616 = vsel %vm3856, %v4605, 0
        %4618 = vmatpush.bf16.msra.mxu0 0
        %4619 = vmatpush.bf16.msra.mxu0 0
        %4620 = vmatpush.bf16.msra.mxu0 0
        %4621 = vmatpush.bf16.msra.mxu0 0
        %4622 = vmatpush.bf16.msra.mxu0 %v3824
        %4623 = vmatpush.bf16.msra.mxu0 %v3814
        %4624 = vmatpush.bf16.msra.mxu0 %v3804
        %4625 = vmatpush.bf16.msra.mxu0 %v3794
        %4626 = vmatmul.bf16.gmra.mxu0 %v4607
        %v4627 = vpop.f32.mrf.mxu0
        %v4628 = vadd.f32 0.0, %v4627
        %v4629 = vpop.f32.mrf.mxu0
        %v4630 = vadd.f32 0.0, %v4629
        %4631 = vmatmul.bf16.gmra.mxu0 %v4610
        %v4632 = vpop.f32.mrf.mxu0
        %v4633 = vadd.f32 0.0, %v4632
        %v4634 = vpop.f32.mrf.mxu0
        %v4635 = vadd.f32 0.0, %v4634
        %4636 = vmatmul.bf16.gmra.mxu0 %v4613
        %v4637 = vpop.f32.mrf.mxu0
        %v4638 = vadd.f32 0.0, %v4637
        %v4639 = vpop.f32.mrf.mxu0
        %v4640 = vadd.f32 0.0, %v4639
        %4641 = vmatmul.bf16.gmra.mxu0 %v4616
        %v4642 = vpop.f32.mrf.mxu0
        %v4643 = vadd.f32 0.0, %v4642
        %v4644 = vpop.f32.mrf.mxu0
        %v4645 = vadd.f32 0.0, %v4644
        %4646 = vdwg.mxu0
        %4647 = vmatpush.bf16.msra.mxu0 0
        %4648 = vmatpush.bf16.msra.mxu0 0
        %4649 = vmatpush.bf16.msra.mxu0 0
        %4650 = vmatpush.bf16.msra.mxu0 0
        %4651 = vmatpush.bf16.msra.mxu0 %v3825
        %4652 = vmatpush.bf16.msra.mxu0 %v3815
        %4653 = vmatpush.bf16.msra.mxu0 %v3805
        %4654 = vmatpush.bf16.msra.mxu0 %v3795
        %4655 = vmatmul.bf16.gmra.mxu0 %v4607
        %v4656 = vpop.f32.mrf.mxu0
        %v4657 = vadd.f32 0.0, %v4656
        %v4658 = vpop.f32.mrf.mxu0
        %v4659 = vadd.f32 0.0, %v4658
        %4660 = vmatmul.bf16.gmra.mxu0 %v4610
        %v4661 = vpop.f32.mrf.mxu0
        %v4662 = vadd.f32 0.0, %v4661
        %v4663 = vpop.f32.mrf.mxu0
        %v4664 = vadd.f32 0.0, %v4663
        %4665 = vmatmul.bf16.gmra.mxu0 %v4613
        %v4666 = vpop.f32.mrf.mxu0
        %v4667 = vadd.f32 0.0, %v4666
        %v4668 = vpop.f32.mrf.mxu0
        %v4669 = vadd.f32 0.0, %v4668
        %4670 = vmatmul.bf16.gmra.mxu0 %v4616
        %v4671 = vpop.f32.mrf.mxu0
        %v4672 = vadd.f32 0.0, %v4671
        %v4673 = vpop.f32.mrf.mxu0
        %v4674 = vadd.f32 0.0, %v4673
        %4675 = vdwg.mxu0
        %v4676 = vpack.c.bf16 %v4657, %v4628
        %v4677 = vpack.c.bf16 %v4659, %v4630
        %v4678 = vpack.c.bf16 %v4662, %v4633
        %v4679 = vpack.c.bf16 %v4664, %v4635
        %v4680 = vpack.c.bf16 %v4667, %v4638
        %v4681 = vpack.c.bf16 %v4669, %v4640
        %v4682 = vpack.c.bf16 %v4672, %v4643
        %v4683 = vpack.c.bf16 %v4674, %v4645
        %s4684 = scalar_lea.vmem [#allocation10], 256
        %v4685 = vld [vmem:[%s4684] sm:$0xf]
        %v4686 = vld [vmem:[%s4684 + $0x4] sm:$0xf]
        %v4687 = vld [vmem:[%s4684 + $0x8] sm:$0xf]
        %v4688 = vld [vmem:[%s4684 + $0xc] sm:$0xf]
        %v4689 = vld [vmem:[%s4684 + $0x10] sm:$0xf]
        %v4690 = vld [vmem:[%s4684 + $0x14] sm:$0xf]
        %v4691 = vld [vmem:[%s4684 + $0x18] sm:$0xf]
        %v4692 = vld [vmem:[%s4684 + $0x1c] sm:$0xf]
        %v4701 = vunpack.c.l.b16 %v4685
        %v4702 = vunpack.c.l.b16 %v4686
        %v4703 = vunpack.c.l.b16 %v4687
        %v4704 = vunpack.c.l.b16 %v4688
        %v4705 = vunpack.c.l.b16 %v4689
        %v4706 = vunpack.c.l.b16 %v4690
        %v4707 = vunpack.c.l.b16 %v4691
        %v4708 = vunpack.c.l.b16 %v4692
        %v4709 = vpack.c.b16 %v4702, %v4701
        %v4710 = vpack.c.b16 %v4704, %v4703
        %v4711 = vpack.c.b16 %v4706, %v4705
        %v4712 = vpack.c.b16 %v4708, %v4707
        %v4714 = vsel %vm3856, %v4709, 0
        %v4717 = vsel %vm3856, %v4710, 0
        %v4720 = vsel %vm3856, %v4711, 0
        %v4723 = vsel %vm3856, %v4712, 0
        %4725 = vmatpush.bf16.msra.mxu0 0
        %4726 = vmatpush.bf16.msra.mxu0 0
        %4727 = vmatpush.bf16.msra.mxu0 0
        %4728 = vmatpush.bf16.msra.mxu0 0
        %4729 = vmatpush.bf16.msra.mxu0 %v3824
        %4730 = vmatpush.bf16.msra.mxu0 %v3814
        %4731 = vmatpush.bf16.msra.mxu0 %v3804
        %4732 = vmatpush.bf16.msra.mxu0 %v3794
        %4733 = vmatmul.bf16.gmra.mxu0 %v4714
        %v4734 = vpop.f32.mrf.mxu0
        %v4735 = vadd.f32 0.0, %v4734
        %v4736 = vpop.f32.mrf.mxu0
        %v4737 = vadd.f32 0.0, %v4736
        %4738 = vmatmul.bf16.gmra.mxu0 %v4717
        %v4739 = vpop.f32.mrf.mxu0
        %v4740 = vadd.f32 0.0, %v4739
        %v4741 = vpop.f32.mrf.mxu0
        %v4742 = vadd.f32 0.0, %v4741
        %4743 = vmatmul.bf16.gmra.mxu0 %v4720
        %v4744 = vpop.f32.mrf.mxu0
        %v4745 = vadd.f32 0.0, %v4744
        %v4746 = vpop.f32.mrf.mxu0
        %v4747 = vadd.f32 0.0, %v4746
        %4748 = vmatmul.bf16.gmra.mxu0 %v4723
        %v4749 = vpop.f32.mrf.mxu0
        %v4750 = vadd.f32 0.0, %v4749
        %v4751 = vpop.f32.mrf.mxu0
        %v4752 = vadd.f32 0.0, %v4751
        %4753 = vdwg.mxu0
        %4754 = vmatpush.bf16.msra.mxu0 0
        %4755 = vmatpush.bf16.msra.mxu0 0
        %4756 = vmatpush.bf16.msra.mxu0 0
        %4757 = vmatpush.bf16.msra.mxu0 0
        %4758 = vmatpush.bf16.msra.mxu0 %v3825
        %4759 = vmatpush.bf16.msra.mxu0 %v3815
        %4760 = vmatpush.bf16.msra.mxu0 %v3805
        %4761 = vmatpush.bf16.msra.mxu0 %v3795
        %4762 = vmatmul.bf16.gmra.mxu0 %v4714
        %v4763 = vpop.f32.mrf.mxu0
        %v4764 = vadd.f32 0.0, %v4763
        %v4765 = vpop.f32.mrf.mxu0
        %v4766 = vadd.f32 0.0, %v4765
        %4767 = vmatmul.bf16.gmra.mxu0 %v4717
        %v4768 = vpop.f32.mrf.mxu0
        %v4769 = vadd.f32 0.0, %v4768
        %v4770 = vpop.f32.mrf.mxu0
        %v4771 = vadd.f32 0.0, %v4770
        %4772 = vmatmul.bf16.gmra.mxu0 %v4720
        %v4773 = vpop.f32.mrf.mxu0
        %v4774 = vadd.f32 0.0, %v4773
        %v4775 = vpop.f32.mrf.mxu0
        %v4776 = vadd.f32 0.0, %v4775
        %4777 = vmatmul.bf16.gmra.mxu0 %v4723
        %v4778 = vpop.f32.mrf.mxu0
        %v4779 = vadd.f32 0.0, %v4778
        %v4780 = vpop.f32.mrf.mxu0
        %v4781 = vadd.f32 0.0, %v4780
        %4782 = vdwg.mxu0
        %v4783 = vpack.c.bf16 %v4764, %v4735
        %v4784 = vpack.c.bf16 %v4766, %v4737
        %v4785 = vpack.c.bf16 %v4769, %v4740
        %v4786 = vpack.c.bf16 %v4771, %v4742
        %v4787 = vpack.c.bf16 %v4774, %v4745
        %v4788 = vpack.c.bf16 %v4776, %v4747
        %v4789 = vpack.c.bf16 %v4779, %v4750
        %v4790 = vpack.c.bf16 %v4781, %v4752
        %v4799 = vunpack.c.l.b16 %v3927
        %v4800 = vunpack.c.h.b16 %v3927
        %v4801 = vunpack.c.l.b16 %v3928
        %v4802 = vunpack.c.h.b16 %v3928
        %v4803 = vunpack.c.l.b16 %v3929
        %v4804 = vunpack.c.h.b16 %v3929
        %v4805 = vunpack.c.l.b16 %v3930
        %v4806 = vunpack.c.h.b16 %v3930
        %v4807 = vunpack.c.l.b16 %v3931
        %v4808 = vunpack.c.h.b16 %v3931
        %v4809 = vunpack.c.l.b16 %v3932
        %v4810 = vunpack.c.h.b16 %v3932
        %v4811 = vunpack.c.l.b16 %v3933
        %v4812 = vunpack.c.h.b16 %v3933
        %v4813 = vunpack.c.l.b16 %v3934
        %v4814 = vunpack.c.h.b16 %v3934
        %v4815 = vpack.c.b16 %v4801, %v4799
        %v4816 = vpack.c.b16 %v4802, %v4800
        %v4817 = vpack.c.b16 %v4805, %v4803
        %v4818 = vpack.c.b16 %v4806, %v4804
        %v4819 = vpack.c.b16 %v4809, %v4807
        %v4820 = vpack.c.b16 %v4810, %v4808
        %v4821 = vpack.c.b16 %v4813, %v4811
        %v4822 = vpack.c.b16 %v4814, %v4812
        %v4839 = vunpack.c.l.b16 %v4034
        %v4840 = vunpack.c.h.b16 %v4034
        %v4841 = vunpack.c.l.b16 %v4035
        %v4842 = vunpack.c.h.b16 %v4035
        %v4843 = vunpack.c.l.b16 %v4036
        %v4844 = vunpack.c.h.b16 %v4036
        %v4845 = vunpack.c.l.b16 %v4037
        %v4846 = vunpack.c.h.b16 %v4037
        %v4847 = vunpack.c.l.b16 %v4038
        %v4848 = vunpack.c.h.b16 %v4038
        %v4849 = vunpack.c.l.b16 %v4039
        %v4850 = vunpack.c.h.b16 %v4039
        %v4851 = vunpack.c.l.b16 %v4040
        %v4852 = vunpack.c.h.b16 %v4040
        %v4853 = vunpack.c.l.b16 %v4041
        %v4854 = vunpack.c.h.b16 %v4041
        %v4855 = vpack.c.b16 %v4841, %v4839
        %v4856 = vpack.c.b16 %v4842, %v4840
        %v4857 = vpack.c.b16 %v4845, %v4843
        %v4858 = vpack.c.b16 %v4846, %v4844
        %v4859 = vpack.c.b16 %v4849, %v4847
        %v4860 = vpack.c.b16 %v4850, %v4848
        %v4861 = vpack.c.b16 %v4853, %v4851
        %v4862 = vpack.c.b16 %v4854, %v4852
        %v4879 = vunpack.c.l.b16 %v4248
        %v4880 = vunpack.c.h.b16 %v4248
        %v4881 = vunpack.c.l.b16 %v4249
        %v4882 = vunpack.c.h.b16 %v4249
        %v4883 = vunpack.c.l.b16 %v4250
        %v4884 = vunpack.c.h.b16 %v4250
        %v4885 = vunpack.c.l.b16 %v4251
        %v4886 = vunpack.c.h.b16 %v4251
        %v4887 = vunpack.c.l.b16 %v4252
        %v4888 = vunpack.c.h.b16 %v4252
        %v4889 = vunpack.c.l.b16 %v4253
        %v4890 = vunpack.c.h.b16 %v4253
        %v4891 = vunpack.c.l.b16 %v4254
        %v4892 = vunpack.c.h.b16 %v4254
        %v4893 = vunpack.c.l.b16 %v4255
        %v4894 = vunpack.c.h.b16 %v4255
        %v4895 = vpack.c.b16 %v4881, %v4879
        %v4896 = vpack.c.b16 %v4882, %v4880
        %v4897 = vpack.c.b16 %v4885, %v4883
        %v4898 = vpack.c.b16 %v4886, %v4884
        %v4899 = vpack.c.b16 %v4889, %v4887
        %v4900 = vpack.c.b16 %v4890, %v4888
        %v4901 = vpack.c.b16 %v4893, %v4891
        %v4902 = vpack.c.b16 %v4894, %v4892
        %v4919 = vunpack.c.l.b16 %v4355
        %v4920 = vunpack.c.h.b16 %v4355
        %v4921 = vunpack.c.l.b16 %v4356
        %v4922 = vunpack.c.h.b16 %v4356
        %v4923 = vunpack.c.l.b16 %v4357
        %v4924 = vunpack.c.h.b16 %v4357
        %v4925 = vunpack.c.l.b16 %v4358
        %v4926 = vunpack.c.h.b16 %v4358
        %v4927 = vunpack.c.l.b16 %v4359
        %v4928 = vunpack.c.h.b16 %v4359
        %v4929 = vunpack.c.l.b16 %v4360
        %v4930 = vunpack.c.h.b16 %v4360
        %v4931 = vunpack.c.l.b16 %v4361
        %v4932 = vunpack.c.h.b16 %v4361
        %v4933 = vunpack.c.l.b16 %v4362
        %v4934 = vunpack.c.h.b16 %v4362
        %v4935 = vpack.c.b16 %v4921, %v4919
        %v4936 = vpack.c.b16 %v4922, %v4920
        %v4937 = vpack.c.b16 %v4925, %v4923
        %v4938 = vpack.c.b16 %v4926, %v4924
        %v4939 = vpack.c.b16 %v4929, %v4927
        %v4940 = vpack.c.b16 %v4930, %v4928
        %v4941 = vpack.c.b16 %v4933, %v4931
        %v4942 = vpack.c.b16 %v4934, %v4932
        %v4951 = vld [vmem:[#allocation11] sm:$0xf]
        %v4952 = vld [vmem:[#allocation11 + $0x4] sm:$0xf]
        %v4953 = vld [vmem:[#allocation11 + $0x8] sm:$0xf]
        %v4954 = vld [vmem:[#allocation11 + $0xc] sm:$0xf]
        %v4955 = vld [vmem:[#allocation11 + $0x10] sm:$0xf]
        %v4956 = vld [vmem:[#allocation11 + $0x14] sm:$0xf]
        %v4957 = vld [vmem:[#allocation11 + $0x18] sm:$0xf]
        %v4958 = vld [vmem:[#allocation11 + $0x1c] sm:$0xf]
        %v4959 = vld [vmem:[#allocation11 + $0x20] sm:$0xf]
        %v4960 = vld [vmem:[#allocation11 + $0x24] sm:$0xf]
        %v4961 = vld [vmem:[#allocation11 + $0x28] sm:$0xf]
        %v4962 = vld [vmem:[#allocation11 + $0x2c] sm:$0xf]
        %v4963 = vld [vmem:[#allocation11 + $0x30] sm:$0xf]
        %v4964 = vld [vmem:[#allocation11 + $0x34] sm:$0xf]
        %v4965 = vld [vmem:[#allocation11 + $0x38] sm:$0xf]
        %v4966 = vld [vmem:[#allocation11 + $0x3c] sm:$0xf]
        %v4967 = vld [vmem:[#allocation11 + $0x40] sm:$0xf]
        %v4968 = vld [vmem:[#allocation11 + $0x44] sm:$0xf]
        %v4969 = vld [vmem:[#allocation11 + $0x48] sm:$0xf]
        %v4970 = vld [vmem:[#allocation11 + $0x4c] sm:$0xf]
        %v4971 = vld [vmem:[#allocation11 + $0x50] sm:$0xf]
        %v4972 = vld [vmem:[#allocation11 + $0x54] sm:$0xf]
        %v4973 = vld [vmem:[#allocation11 + $0x58] sm:$0xf]
        %v4974 = vld [vmem:[#allocation11 + $0x5c] sm:$0xf]
        %v4975 = vld [vmem:[#allocation11 + $0x60] sm:$0xf]
        %v4976 = vld [vmem:[#allocation11 + $0x64] sm:$0xf]
        %v4977 = vld [vmem:[#allocation11 + $0x68] sm:$0xf]
        %v4978 = vld [vmem:[#allocation11 + $0x6c] sm:$0xf]
        %v4979 = vld [vmem:[#allocation11 + $0x70] sm:$0xf]
        %v4980 = vld [vmem:[#allocation11 + $0x74] sm:$0xf]
        %v4981 = vld [vmem:[#allocation11 + $0x78] sm:$0xf]
        %v4982 = vld [vmem:[#allocation11 + $0x7c] sm:$0xf]
        %v4983 = vld [vmem:[#allocation11 + $0x80] sm:$0xf]
        %v4984 = vld [vmem:[#allocation11 + $0x84] sm:$0xf]
        %v4985 = vld [vmem:[#allocation11 + $0x88] sm:$0xf]
        %v4986 = vld [vmem:[#allocation11 + $0x8c] sm:$0xf]
        %v4987 = vld [vmem:[#allocation11 + $0x90] sm:$0xf]
        %v4988 = vld [vmem:[#allocation11 + $0x94] sm:$0xf]
        %v4989 = vld [vmem:[#allocation11 + $0x98] sm:$0xf]
        %v4990 = vld [vmem:[#allocation11 + $0x9c] sm:$0xf]
        %v4991 = vld [vmem:[#allocation11 + $0xa0] sm:$0xf]
        %v4992 = vld [vmem:[#allocation11 + $0xa4] sm:$0xf]
        %v4993 = vld [vmem:[#allocation11 + $0xa8] sm:$0xf]
        %v4994 = vld [vmem:[#allocation11 + $0xac] sm:$0xf]
        %v4995 = vld [vmem:[#allocation11 + $0xb0] sm:$0xf]
        %v4996 = vld [vmem:[#allocation11 + $0xb4] sm:$0xf]
        %v4997 = vld [vmem:[#allocation11 + $0xb8] sm:$0xf]
        %v4998 = vld [vmem:[#allocation11 + $0xbc] sm:$0xf]
        %v4999 = vld [vmem:[#allocation11 + $0xc0] sm:$0xf]
        %v5000 = vld [vmem:[#allocation11 + $0xc4] sm:$0xf]
        %v5001 = vld [vmem:[#allocation11 + $0xc8] sm:$0xf]
        %v5002 = vld [vmem:[#allocation11 + $0xcc] sm:$0xf]
        %v5003 = vld [vmem:[#allocation11 + $0xd0] sm:$0xf]
        %v5004 = vld [vmem:[#allocation11 + $0xd4] sm:$0xf]
        %v5005 = vld [vmem:[#allocation11 + $0xd8] sm:$0xf]
        %v5006 = vld [vmem:[#allocation11 + $0xdc] sm:$0xf]
        %v5007 = vld [vmem:[#allocation11 + $0xe0] sm:$0xf]
        %v5008 = vld [vmem:[#allocation11 + $0xe4] sm:$0xf]
        %v5009 = vld [vmem:[#allocation11 + $0xe8] sm:$0xf]
        %v5010 = vld [vmem:[#allocation11 + $0xec] sm:$0xf]
        %v5011 = vld [vmem:[#allocation11 + $0xf0] sm:$0xf]
        %v5012 = vld [vmem:[#allocation11 + $0xf4] sm:$0xf]
        %v5013 = vld [vmem:[#allocation11 + $0xf8] sm:$0xf]
        %v5014 = vld [vmem:[#allocation11 + $0xfc] sm:$0xf]
        %v5015 = vld [vmem:[#allocation11 + $0x100] sm:$0xf]
        %v5016 = vld [vmem:[#allocation11 + $0x104] sm:$0xf]
        %v5017 = vld [vmem:[#allocation11 + $0x108] sm:$0xf]
        %v5018 = vld [vmem:[#allocation11 + $0x10c] sm:$0xf]
        %v5019 = vld [vmem:[#allocation11 + $0x110] sm:$0xf]
        %v5020 = vld [vmem:[#allocation11 + $0x114] sm:$0xf]
        %v5021 = vld [vmem:[#allocation11 + $0x118] sm:$0xf]
        %v5022 = vld [vmem:[#allocation11 + $0x11c] sm:$0xf]
        %v5023 = vld [vmem:[#allocation11 + $0x120] sm:$0xf]
        %v5024 = vld [vmem:[#allocation11 + $0x124] sm:$0xf]
        %v5025 = vld [vmem:[#allocation11 + $0x128] sm:$0xf]
        %v5026 = vld [vmem:[#allocation11 + $0x12c] sm:$0xf]
        %v5027 = vld [vmem:[#allocation11 + $0x130] sm:$0xf]
        %v5028 = vld [vmem:[#allocation11 + $0x134] sm:$0xf]
        %v5029 = vld [vmem:[#allocation11 + $0x138] sm:$0xf]
        %v5030 = vld [vmem:[#allocation11 + $0x13c] sm:$0xf]
        %v5031 = vld [vmem:[#allocation11 + $0x140] sm:$0xf]
        %v5032 = vld [vmem:[#allocation11 + $0x144] sm:$0xf]
        %v5033 = vld [vmem:[#allocation11 + $0x148] sm:$0xf]
        %v5034 = vld [vmem:[#allocation11 + $0x14c] sm:$0xf]
        %v5035 = vld [vmem:[#allocation11 + $0x150] sm:$0xf]
        %v5036 = vld [vmem:[#allocation11 + $0x154] sm:$0xf]
        %v5037 = vld [vmem:[#allocation11 + $0x158] sm:$0xf]
        %v5038 = vld [vmem:[#allocation11 + $0x15c] sm:$0xf]
        %v5039 = vld [vmem:[#allocation11 + $0x160] sm:$0xf]
        %v5040 = vld [vmem:[#allocation11 + $0x164] sm:$0xf]
        %v5041 = vld [vmem:[#allocation11 + $0x168] sm:$0xf]
        %v5042 = vld [vmem:[#allocation11 + $0x16c] sm:$0xf]
        %v5043 = vld [vmem:[#allocation11 + $0x170] sm:$0xf]
        %v5044 = vld [vmem:[#allocation11 + $0x174] sm:$0xf]
        %v5045 = vld [vmem:[#allocation11 + $0x178] sm:$0xf]
        %v5046 = vld [vmem:[#allocation11 + $0x17c] sm:$0xf]
        %v5047 = vld [vmem:[#allocation11 + $0x180] sm:$0xf]
        %v5048 = vld [vmem:[#allocation11 + $0x184] sm:$0xf]
        %v5049 = vld [vmem:[#allocation11 + $0x188] sm:$0xf]
        %v5050 = vld [vmem:[#allocation11 + $0x18c] sm:$0xf]
        %v5051 = vld [vmem:[#allocation11 + $0x190] sm:$0xf]
        %v5052 = vld [vmem:[#allocation11 + $0x194] sm:$0xf]
        %v5053 = vld [vmem:[#allocation11 + $0x198] sm:$0xf]
        %v5054 = vld [vmem:[#allocation11 + $0x19c] sm:$0xf]
        %v5055 = vld [vmem:[#allocation11 + $0x1a0] sm:$0xf]
        %v5056 = vld [vmem:[#allocation11 + $0x1a4] sm:$0xf]
        %v5057 = vld [vmem:[#allocation11 + $0x1a8] sm:$0xf]
        %v5058 = vld [vmem:[#allocation11 + $0x1ac] sm:$0xf]
        %v5059 = vld [vmem:[#allocation11 + $0x1b0] sm:$0xf]
        %v5060 = vld [vmem:[#allocation11 + $0x1b4] sm:$0xf]
        %v5061 = vld [vmem:[#allocation11 + $0x1b8] sm:$0xf]
        %v5062 = vld [vmem:[#allocation11 + $0x1bc] sm:$0xf]
        %v5063 = vld [vmem:[#allocation11 + $0x1c0] sm:$0xf]
        %v5064 = vld [vmem:[#allocation11 + $0x1c4] sm:$0xf]
        %v5065 = vld [vmem:[#allocation11 + $0x1c8] sm:$0xf]
        %v5066 = vld [vmem:[#allocation11 + $0x1cc] sm:$0xf]
        %v5067 = vld [vmem:[#allocation11 + $0x1d0] sm:$0xf]
        %v5068 = vld [vmem:[#allocation11 + $0x1d4] sm:$0xf]
        %v5069 = vld [vmem:[#allocation11 + $0x1d8] sm:$0xf]
        %v5070 = vld [vmem:[#allocation11 + $0x1dc] sm:$0xf]
        %v5071 = vld [vmem:[#allocation11 + $0x1e0] sm:$0xf]
        %v5072 = vld [vmem:[#allocation11 + $0x1e4] sm:$0xf]
        %v5073 = vld [vmem:[#allocation11 + $0x1e8] sm:$0xf]
        %v5074 = vld [vmem:[#allocation11 + $0x1ec] sm:$0xf]
        %v5075 = vld [vmem:[#allocation11 + $0x1f0] sm:$0xf]
        %v5076 = vld [vmem:[#allocation11 + $0x1f4] sm:$0xf]
        %v5077 = vld [vmem:[#allocation11 + $0x1f8] sm:$0xf]
        %v5078 = vld [vmem:[#allocation11 + $0x1fc] sm:$0xf]
        %v5079 = vld [vmem:[%s8] sm:$0x1]
        %v5081 = vperm.slane %v5079, 0
        %v5211 = vunpack.c.l.b16 %v4951
        %v5212 = vunpack.c.l.b16 %v4952
        %v5213 = vunpack.c.l.b16 %v4953
        %v5214 = vunpack.c.l.b16 %v4954
        %v5215 = vunpack.c.l.b16 %v4955
        %v5216 = vunpack.c.l.b16 %v4956
        %v5217 = vunpack.c.l.b16 %v4957
        %v5218 = vunpack.c.l.b16 %v4958
        %v5219 = vunpack.c.l.b16 %v4959
        %v5220 = vunpack.c.l.b16 %v4960
        %v5221 = vunpack.c.l.b16 %v4961
        %v5222 = vunpack.c.l.b16 %v4962
        %v5223 = vunpack.c.l.b16 %v4963
        %v5224 = vunpack.c.l.b16 %v4964
        %v5225 = vunpack.c.l.b16 %v4965
        %v5226 = vunpack.c.l.b16 %v4966
        %v5227 = vunpack.c.l.b16 %v4967
        %v5228 = vunpack.c.l.b16 %v4968
        %v5229 = vunpack.c.l.b16 %v4969
        %v5230 = vunpack.c.l.b16 %v4970
        %v5231 = vunpack.c.l.b16 %v4971
        %v5232 = vunpack.c.l.b16 %v4972
        %v5233 = vunpack.c.l.b16 %v4973
        %v5234 = vunpack.c.l.b16 %v4974
        %v5235 = vunpack.c.l.b16 %v4975
        %v5236 = vunpack.c.l.b16 %v4976
        %v5237 = vunpack.c.l.b16 %v4977
        %v5238 = vunpack.c.l.b16 %v4978
        %v5239 = vunpack.c.l.b16 %v4979
        %v5240 = vunpack.c.l.b16 %v4980
        %v5241 = vunpack.c.l.b16 %v4981
        %v5242 = vunpack.c.l.b16 %v4982
        %v5243 = vunpack.c.l.b16 %v4983
        %v5244 = vunpack.c.l.b16 %v4984
        %v5245 = vunpack.c.l.b16 %v4985
        %v5246 = vunpack.c.l.b16 %v4986
        %v5247 = vunpack.c.l.b16 %v4987
        %v5248 = vunpack.c.l.b16 %v4988
        %v5249 = vunpack.c.l.b16 %v4989
        %v5250 = vunpack.c.l.b16 %v4990
        %v5251 = vunpack.c.l.b16 %v4991
        %v5252 = vunpack.c.l.b16 %v4992
        %v5253 = vunpack.c.l.b16 %v4993
        %v5254 = vunpack.c.l.b16 %v4994
        %v5255 = vunpack.c.l.b16 %v4995
        %v5256 = vunpack.c.l.b16 %v4996
        %v5257 = vunpack.c.l.b16 %v4997
        %v5258 = vunpack.c.l.b16 %v4998
        %v5259 = vunpack.c.l.b16 %v4999
        %v5260 = vunpack.c.l.b16 %v5000
        %v5261 = vunpack.c.l.b16 %v5001
        %v5262 = vunpack.c.l.b16 %v5002
        %v5263 = vunpack.c.l.b16 %v5003
        %v5264 = vunpack.c.l.b16 %v5004
        %v5265 = vunpack.c.l.b16 %v5005
        %v5266 = vunpack.c.l.b16 %v5006
        %v5267 = vunpack.c.l.b16 %v5007
        %v5268 = vunpack.c.l.b16 %v5008
        %v5269 = vunpack.c.l.b16 %v5009
        %v5270 = vunpack.c.l.b16 %v5010
        %v5271 = vunpack.c.l.b16 %v5011
        %v5272 = vunpack.c.l.b16 %v5012
        %v5273 = vunpack.c.l.b16 %v5013
        %v5274 = vunpack.c.l.b16 %v5014
        %v5275 = vunpack.c.l.b16 %v5015
        %v5276 = vunpack.c.l.b16 %v5016
        %v5277 = vunpack.c.l.b16 %v5017
        %v5278 = vunpack.c.l.b16 %v5018
        %v5279 = vunpack.c.l.b16 %v5019
        %v5280 = vunpack.c.l.b16 %v5020
        %v5281 = vunpack.c.l.b16 %v5021
        %v5282 = vunpack.c.l.b16 %v5022
        %v5283 = vunpack.c.l.b16 %v5023
        %v5284 = vunpack.c.l.b16 %v5024
        %v5285 = vunpack.c.l.b16 %v5025
        %v5286 = vunpack.c.l.b16 %v5026
        %v5287 = vunpack.c.l.b16 %v5027
        %v5288 = vunpack.c.l.b16 %v5028
        %v5289 = vunpack.c.l.b16 %v5029
        %v5290 = vunpack.c.l.b16 %v5030
        %v5291 = vunpack.c.l.b16 %v5031
        %v5292 = vunpack.c.l.b16 %v5032
        %v5293 = vunpack.c.l.b16 %v5033
        %v5294 = vunpack.c.l.b16 %v5034
        %v5295 = vunpack.c.l.b16 %v5035
        %v5296 = vunpack.c.l.b16 %v5036
        %v5297 = vunpack.c.l.b16 %v5037
        %v5298 = vunpack.c.l.b16 %v5038
        %v5299 = vunpack.c.l.b16 %v5039
        %v5300 = vunpack.c.l.b16 %v5040
        %v5301 = vunpack.c.l.b16 %v5041
        %v5302 = vunpack.c.l.b16 %v5042
        %v5303 = vunpack.c.l.b16 %v5043
        %v5304 = vunpack.c.l.b16 %v5044
        %v5305 = vunpack.c.l.b16 %v5045
        %v5306 = vunpack.c.l.b16 %v5046
        %v5307 = vunpack.c.l.b16 %v5047
        %v5308 = vunpack.c.l.b16 %v5048
        %v5309 = vunpack.c.l.b16 %v5049
        %v5310 = vunpack.c.l.b16 %v5050
        %v5311 = vunpack.c.l.b16 %v5051
        %v5312 = vunpack.c.l.b16 %v5052
        %v5313 = vunpack.c.l.b16 %v5053
        %v5314 = vunpack.c.l.b16 %v5054
        %v5315 = vunpack.c.l.b16 %v5055
        %v5316 = vunpack.c.l.b16 %v5056
        %v5317 = vunpack.c.l.b16 %v5057
        %v5318 = vunpack.c.l.b16 %v5058
        %v5319 = vunpack.c.l.b16 %v5059
        %v5320 = vunpack.c.l.b16 %v5060
        %v5321 = vunpack.c.l.b16 %v5061
        %v5322 = vunpack.c.l.b16 %v5062
        %v5323 = vunpack.c.l.b16 %v5063
        %v5324 = vunpack.c.l.b16 %v5064
        %v5325 = vunpack.c.l.b16 %v5065
        %v5326 = vunpack.c.l.b16 %v5066
        %v5327 = vunpack.c.l.b16 %v5067
        %v5328 = vunpack.c.l.b16 %v5068
        %v5329 = vunpack.c.l.b16 %v5069
        %v5330 = vunpack.c.l.b16 %v5070
        %v5331 = vunpack.c.l.b16 %v5071
        %v5332 = vunpack.c.l.b16 %v5072
        %v5333 = vunpack.c.l.b16 %v5073
        %v5334 = vunpack.c.l.b16 %v5074
        %v5335 = vunpack.c.l.b16 %v5075
        %v5336 = vunpack.c.l.b16 %v5076
        %v5337 = vunpack.c.l.b16 %v5077
        %v5338 = vunpack.c.l.b16 %v5078
        %v5339 = vpack.c.b16 %v5212, %v5211
        %v5340 = vpack.c.b16 %v5214, %v5213
        %v5341 = vpack.c.b16 %v5216, %v5215
        %v5342 = vpack.c.b16 %v5218, %v5217
        %v5343 = vpack.c.b16 %v5220, %v5219
        %v5344 = vpack.c.b16 %v5222, %v5221
        %v5345 = vpack.c.b16 %v5224, %v5223
        %v5346 = vpack.c.b16 %v5226, %v5225
        %v5347 = vpack.c.b16 %v5228, %v5227
        %v5348 = vpack.c.b16 %v5230, %v5229
        %v5349 = vpack.c.b16 %v5232, %v5231
        %v5350 = vpack.c.b16 %v5234, %v5233
        %v5351 = vpack.c.b16 %v5236, %v5235
        %v5352 = vpack.c.b16 %v5238, %v5237
        %v5353 = vpack.c.b16 %v5240, %v5239
        %v5354 = vpack.c.b16 %v5242, %v5241
        %v5355 = vpack.c.b16 %v5244, %v5243
        %v5356 = vpack.c.b16 %v5246, %v5245
        %v5357 = vpack.c.b16 %v5248, %v5247
        %v5358 = vpack.c.b16 %v5250, %v5249
        %v5359 = vpack.c.b16 %v5252, %v5251
        %v5360 = vpack.c.b16 %v5254, %v5253
        %v5361 = vpack.c.b16 %v5256, %v5255
        %v5362 = vpack.c.b16 %v5258, %v5257
        %v5363 = vpack.c.b16 %v5260, %v5259
        %v5364 = vpack.c.b16 %v5262, %v5261
        %v5365 = vpack.c.b16 %v5264, %v5263
        %v5366 = vpack.c.b16 %v5266, %v5265
        %v5367 = vpack.c.b16 %v5268, %v5267
        %v5368 = vpack.c.b16 %v5270, %v5269
        %v5369 = vpack.c.b16 %v5272, %v5271
        %v5370 = vpack.c.b16 %v5274, %v5273
        %v5371 = vpack.c.b16 %v5276, %v5275
        %v5372 = vpack.c.b16 %v5278, %v5277
        %v5373 = vpack.c.b16 %v5280, %v5279
        %v5374 = vpack.c.b16 %v5282, %v5281
        %v5375 = vpack.c.b16 %v5284, %v5283
        %v5376 = vpack.c.b16 %v5286, %v5285
        %v5377 = vpack.c.b16 %v5288, %v5287
        %v5378 = vpack.c.b16 %v5290, %v5289
        %v5379 = vpack.c.b16 %v5292, %v5291
        %v5380 = vpack.c.b16 %v5294, %v5293
        %v5381 = vpack.c.b16 %v5296, %v5295
        %v5382 = vpack.c.b16 %v5298, %v5297
        %v5383 = vpack.c.b16 %v5300, %v5299
        %v5384 = vpack.c.b16 %v5302, %v5301
        %v5385 = vpack.c.b16 %v5304, %v5303
        %v5386 = vpack.c.b16 %v5306, %v5305
        %v5387 = vpack.c.b16 %v5308, %v5307
        %v5388 = vpack.c.b16 %v5310, %v5309
        %v5389 = vpack.c.b16 %v5312, %v5311
        %v5390 = vpack.c.b16 %v5314, %v5313
        %v5391 = vpack.c.b16 %v5316, %v5315
        %v5392 = vpack.c.b16 %v5318, %v5317
        %v5393 = vpack.c.b16 %v5320, %v5319
        %v5394 = vpack.c.b16 %v5322, %v5321
        %v5395 = vpack.c.b16 %v5324, %v5323
        %v5396 = vpack.c.b16 %v5326, %v5325
        %v5397 = vpack.c.b16 %v5328, %v5327
        %v5398 = vpack.c.b16 %v5330, %v5329
        %v5399 = vpack.c.b16 %v5332, %v5331
        %v5400 = vpack.c.b16 %v5334, %v5333
        %v5401 = vpack.c.b16 %v5336, %v5335
        %v5402 = vpack.c.b16 %v5338, %v5337
        %5467 = vmatpush.bf16.msra.mxu0 %v5346
        %5468 = vmatpush.bf16.msra.mxu0 %v5345
        %5469 = vmatpush.bf16.msra.mxu0 %v5344
        %5470 = vmatpush.bf16.msra.mxu0 %v5343
        %5471 = vmatpush.bf16.msra.mxu0 %v5342
        %5472 = vmatpush.bf16.msra.mxu0 %v5341
        %5473 = vmatpush.bf16.msra.mxu0 %v5340
        %5474 = vmatpush.bf16.msra.mxu0 %v5339
        %5475 = vmatmul.bf16.gmra.mxu0 %v4815
        %v5476 = vpop.f32.mrf.mxu0
        %v5477 = vadd.f32 %v5081, %v5476
        %v5478 = vpop.f32.mrf.mxu0
        %v5479 = vadd.f32 %v5081, %v5478
        %5480 = vmatmul.bf16.gmra.mxu0 %v4817
        %v5481 = vpop.f32.mrf.mxu0
        %v5482 = vadd.f32 %v5081, %v5481
        %v5483 = vpop.f32.mrf.mxu0
        %v5484 = vadd.f32 %v5081, %v5483
        %5485 = vmatmul.bf16.gmra.mxu0 %v4819
        %v5486 = vpop.f32.mrf.mxu0
        %v5487 = vadd.f32 %v5081, %v5486
        %v5488 = vpop.f32.mrf.mxu0
        %v5489 = vadd.f32 %v5081, %v5488
        %5490 = vmatmul.bf16.gmra.mxu0 %v4821
        %v5491 = vpop.f32.mrf.mxu0
        %v5492 = vadd.f32 %v5081, %v5491
        %v5493 = vpop.f32.mrf.mxu0
        %v5494 = vadd.f32 %v5081, %v5493
        %5495 = vdwg.mxu0
        %5496 = vmatpush.bf16.msra.mxu0 %v5354
        %5497 = vmatpush.bf16.msra.mxu0 %v5353
        %5498 = vmatpush.bf16.msra.mxu0 %v5352
        %5499 = vmatpush.bf16.msra.mxu0 %v5351
        %5500 = vmatpush.bf16.msra.mxu0 %v5350
        %5501 = vmatpush.bf16.msra.mxu0 %v5349
        %5502 = vmatpush.bf16.msra.mxu0 %v5348
        %5503 = vmatpush.bf16.msra.mxu0 %v5347
        %5504 = vmatmul.bf16.gmra.mxu0 %v4816
        %v5505 = vpop.f32.mrf.mxu0
        %v5506 = vadd.f32 %v5477, %v5505
        %v5507 = vpop.f32.mrf.mxu0
        %v5508 = vadd.f32 %v5479, %v5507
        %5509 = vmatmul.bf16.gmra.mxu0 %v4818
        %v5510 = vpop.f32.mrf.mxu0
        %v5511 = vadd.f32 %v5482, %v5510
        %v5512 = vpop.f32.mrf.mxu0
        %v5513 = vadd.f32 %v5484, %v5512
        %5514 = vmatmul.bf16.gmra.mxu0 %v4820
        %v5515 = vpop.f32.mrf.mxu0
        %v5516 = vadd.f32 %v5487, %v5515
        %v5517 = vpop.f32.mrf.mxu0
        %v5518 = vadd.f32 %v5489, %v5517
        %5519 = vmatmul.bf16.gmra.mxu0 %v4822
        %v5520 = vpop.f32.mrf.mxu0
        %v5521 = vadd.f32 %v5492, %v5520
        %v5522 = vpop.f32.mrf.mxu0
        %v5523 = vadd.f32 %v5494, %v5522
        %5524 = vdwg.mxu0
        %5525 = vmatpush.bf16.msra.mxu0 %v5362
        %5526 = vmatpush.bf16.msra.mxu0 %v5361
        %5527 = vmatpush.bf16.msra.mxu0 %v5360
        %5528 = vmatpush.bf16.msra.mxu0 %v5359
        %5529 = vmatpush.bf16.msra.mxu0 %v5358
        %5530 = vmatpush.bf16.msra.mxu0 %v5357
        %5531 = vmatpush.bf16.msra.mxu0 %v5356
        %5532 = vmatpush.bf16.msra.mxu0 %v5355
        %5533 = vmatmul.bf16.gmra.mxu0 %v4855
        %v5534 = vpop.f32.mrf.mxu0
        %v5535 = vadd.f32 %v5506, %v5534
        %v5536 = vpop.f32.mrf.mxu0
        %v5537 = vadd.f32 %v5508, %v5536
        %5538 = vmatmul.bf16.gmra.mxu0 %v4857
        %v5539 = vpop.f32.mrf.mxu0
        %v5540 = vadd.f32 %v5511, %v5539
        %v5541 = vpop.f32.mrf.mxu0
        %v5542 = vadd.f32 %v5513, %v5541
        %5543 = vmatmul.bf16.gmra.mxu0 %v4859
        %v5544 = vpop.f32.mrf.mxu0
        %v5545 = vadd.f32 %v5516, %v5544
        %v5546 = vpop.f32.mrf.mxu0
        %v5547 = vadd.f32 %v5518, %v5546
        %5548 = vmatmul.bf16.gmra.mxu0 %v4861
        %v5549 = vpop.f32.mrf.mxu0
        %v5550 = vadd.f32 %v5521, %v5549
        %v5551 = vpop.f32.mrf.mxu0
        %v5552 = vadd.f32 %v5523, %v5551
        %5553 = vdwg.mxu0
        %5554 = vmatpush.bf16.msra.mxu0 %v5370
        %5555 = vmatpush.bf16.msra.mxu0 %v5369
        %5556 = vmatpush.bf16.msra.mxu0 %v5368
        %5557 = vmatpush.bf16.msra.mxu0 %v5367
        %5558 = vmatpush.bf16.msra.mxu0 %v5366
        %5559 = vmatpush.bf16.msra.mxu0 %v5365
        %5560 = vmatpush.bf16.msra.mxu0 %v5364
        %5561 = vmatpush.bf16.msra.mxu0 %v5363
        %5562 = vmatmul.bf16.gmra.mxu0 %v4856
        %v5563 = vpop.f32.mrf.mxu0
        %v5564 = vadd.f32 %v5535, %v5563
        %v5565 = vpop.f32.mrf.mxu0
        %v5566 = vadd.f32 %v5537, %v5565
        %5567 = vmatmul.bf16.gmra.mxu0 %v4858
        %v5568 = vpop.f32.mrf.mxu0
        %v5569 = vadd.f32 %v5540, %v5568
        %v5570 = vpop.f32.mrf.mxu0
        %v5571 = vadd.f32 %v5542, %v5570
        %5572 = vmatmul.bf16.gmra.mxu0 %v4860
        %v5573 = vpop.f32.mrf.mxu0
        %v5574 = vadd.f32 %v5545, %v5573
        %v5575 = vpop.f32.mrf.mxu0
        %v5576 = vadd.f32 %v5547, %v5575
        %5577 = vmatmul.bf16.gmra.mxu0 %v4862
        %v5578 = vpop.f32.mrf.mxu0
        %v5579 = vadd.f32 %v5550, %v5578
        %v5580 = vpop.f32.mrf.mxu0
        %v5581 = vadd.f32 %v5552, %v5580
        %5582 = vdwg.mxu0
        %5583 = vmatpush.bf16.msra.mxu0 %v5378
        %5584 = vmatpush.bf16.msra.mxu0 %v5377
        %5585 = vmatpush.bf16.msra.mxu0 %v5376
        %5586 = vmatpush.bf16.msra.mxu0 %v5375
        %5587 = vmatpush.bf16.msra.mxu0 %v5374
        %5588 = vmatpush.bf16.msra.mxu0 %v5373
        %5589 = vmatpush.bf16.msra.mxu0 %v5372
        %5590 = vmatpush.bf16.msra.mxu0 %v5371
        %5591 = vmatmul.bf16.gmra.mxu0 %v4895
        %v5592 = vpop.f32.mrf.mxu0
        %v5593 = vadd.f32 %v5564, %v5592
        %v5594 = vpop.f32.mrf.mxu0
        %v5595 = vadd.f32 %v5566, %v5594
        %5596 = vmatmul.bf16.gmra.mxu0 %v4897
        %v5597 = vpop.f32.mrf.mxu0
        %v5598 = vadd.f32 %v5569, %v5597
        %v5599 = vpop.f32.mrf.mxu0
        %v5600 = vadd.f32 %v5571, %v5599
        %5601 = vmatmul.bf16.gmra.mxu0 %v4899
        %v5602 = vpop.f32.mrf.mxu0
        %v5603 = vadd.f32 %v5574, %v5602
        %v5604 = vpop.f32.mrf.mxu0
        %v5605 = vadd.f32 %v5576, %v5604
        %5606 = vmatmul.bf16.gmra.mxu0 %v4901
        %v5607 = vpop.f32.mrf.mxu0
        %v5608 = vadd.f32 %v5579, %v5607
        %v5609 = vpop.f32.mrf.mxu0
        %v5610 = vadd.f32 %v5581, %v5609
        %5611 = vdwg.mxu0
        %5612 = vmatpush.bf16.msra.mxu0 %v5386
        %5613 = vmatpush.bf16.msra.mxu0 %v5385
        %5614 = vmatpush.bf16.msra.mxu0 %v5384
        %5615 = vmatpush.bf16.msra.mxu0 %v5383
        %5616 = vmatpush.bf16.msra.mxu0 %v5382
        %5617 = vmatpush.bf16.msra.mxu0 %v5381
        %5618 = vmatpush.bf16.msra.mxu0 %v5380
        %5619 = vmatpush.bf16.msra.mxu0 %v5379
        %5620 = vmatmul.bf16.gmra.mxu0 %v4896
        %v5621 = vpop.f32.mrf.mxu0
        %v5622 = vadd.f32 %v5593, %v5621
        %v5623 = vpop.f32.mrf.mxu0
        %v5624 = vadd.f32 %v5595, %v5623
        %5625 = vmatmul.bf16.gmra.mxu0 %v4898
        %v5626 = vpop.f32.mrf.mxu0
        %v5627 = vadd.f32 %v5598, %v5626
        %v5628 = vpop.f32.mrf.mxu0
        %v5629 = vadd.f32 %v5600, %v5628
        %5630 = vmatmul.bf16.gmra.mxu0 %v4900
        %v5631 = vpop.f32.mrf.mxu0
        %v5632 = vadd.f32 %v5603, %v5631
        %v5633 = vpop.f32.mrf.mxu0
        %v5634 = vadd.f32 %v5605, %v5633
        %5635 = vmatmul.bf16.gmra.mxu0 %v4902
        %v5636 = vpop.f32.mrf.mxu0
        %v5637 = vadd.f32 %v5608, %v5636
        %v5638 = vpop.f32.mrf.mxu0
        %v5639 = vadd.f32 %v5610, %v5638
        %5640 = vdwg.mxu0
        %5641 = vmatpush.bf16.msra.mxu0 %v5394
        %5642 = vmatpush.bf16.msra.mxu0 %v5393
        %5643 = vmatpush.bf16.msra.mxu0 %v5392
        %5644 = vmatpush.bf16.msra.mxu0 %v5391
        %5645 = vmatpush.bf16.msra.mxu0 %v5390
        %5646 = vmatpush.bf16.msra.mxu0 %v5389
        %5647 = vmatpush.bf16.msra.mxu0 %v5388
        %5648 = vmatpush.bf16.msra.mxu0 %v5387
        %5649 = vmatmul.bf16.gmra.mxu0 %v4935
        %v5650 = vpop.f32.mrf.mxu0
        %v5651 = vadd.f32 %v5622, %v5650
        %v5652 = vpop.f32.mrf.mxu0
        %v5653 = vadd.f32 %v5624, %v5652
        %5654 = vmatmul.bf16.gmra.mxu0 %v4937
        %v5655 = vpop.f32.mrf.mxu0
        %v5656 = vadd.f32 %v5627, %v5655
        %v5657 = vpop.f32.mrf.mxu0
        %v5658 = vadd.f32 %v5629, %v5657
        %5659 = vmatmul.bf16.gmra.mxu0 %v4939
        %v5660 = vpop.f32.mrf.mxu0
        %v5661 = vadd.f32 %v5632, %v5660
        %v5662 = vpop.f32.mrf.mxu0
        %v5663 = vadd.f32 %v5634, %v5662
        %5664 = vmatmul.bf16.gmra.mxu0 %v4941
        %v5665 = vpop.f32.mrf.mxu0
        %v5666 = vadd.f32 %v5637, %v5665
        %v5667 = vpop.f32.mrf.mxu0
        %v5668 = vadd.f32 %v5639, %v5667
        %5669 = vdwg.mxu0
        %5670 = vmatpush.bf16.msra.mxu0 %v5402
        %5671 = vmatpush.bf16.msra.mxu0 %v5401
        %5672 = vmatpush.bf16.msra.mxu0 %v5400
        %5673 = vmatpush.bf16.msra.mxu0 %v5399
        %5674 = vmatpush.bf16.msra.mxu0 %v5398
        %5675 = vmatpush.bf16.msra.mxu0 %v5397
        %5676 = vmatpush.bf16.msra.mxu0 %v5396
        %5677 = vmatpush.bf16.msra.mxu0 %v5395
        %5678 = vmatmul.bf16.gmra.mxu0 %v4936
        %v5679 = vpop.f32.mrf.mxu0
        %v5680 = vadd.f32 %v5651, %v5679
        %v5681 = vpop.f32.mrf.mxu0
        %v5682 = vadd.f32 %v5653, %v5681
        %5683 = vmatmul.bf16.gmra.mxu0 %v4938
        %v5684 = vpop.f32.mrf.mxu0
        %v5685 = vadd.f32 %v5656, %v5684
        %v5686 = vpop.f32.mrf.mxu0
        %v5687 = vadd.f32 %v5658, %v5686
        %5688 = vmatmul.bf16.gmra.mxu0 %v4940
        %v5689 = vpop.f32.mrf.mxu0
        %v5690 = vadd.f32 %v5661, %v5689
        %v5691 = vpop.f32.mrf.mxu0
        %v5692 = vadd.f32 %v5663, %v5691
        %5693 = vmatmul.bf16.gmra.mxu0 %v4942
        %v5694 = vpop.f32.mrf.mxu0
        %v5695 = vadd.f32 %v5666, %v5694
        %v5696 = vpop.f32.mrf.mxu0
        %v5697 = vadd.f32 %v5668, %v5696
        %5698 = vdwg.mxu0
        %v5699 = vtanh.pop %v5680
        %v5700 = vtanh.pop %v5682
        %v5701 = vtanh.pop %v5685
        %v5702 = vtanh.pop %v5687
        %v5703 = vtanh.pop %v5690
        %v5704 = vtanh.pop %v5692
        %v5705 = vtanh.pop %v5695
        %v5706 = vtanh.pop %v5697
        %5707 = vst [vmem:[%s424] sm:$0xff] %v5699
        %5708 = vst [vmem:[%s424 + $0x8] sm:$0xff] %v5700
        %5709 = vst [vmem:[%s424 + $0x10] sm:$0xff] %v5701
        %5710 = vst [vmem:[%s424 + $0x18] sm:$0xff] %v5702
        %5711 = vst [vmem:[%s424 + $0x20] sm:$0xff] %v5703
        %5712 = vst [vmem:[%s424 + $0x28] sm:$0xff] %v5704
        %5713 = vst [vmem:[%s424 + $0x30] sm:$0xff] %v5705
        %5714 = vst [vmem:[%s424 + $0x38] sm:$0xff] %v5706
        %v5723 = vunpack.c.l.b16 %v4141
        %v5724 = vunpack.c.h.b16 %v4141
        %v5725 = vunpack.c.l.b16 %v4142
        %v5726 = vunpack.c.h.b16 %v4142
        %v5727 = vunpack.c.l.b16 %v4143
        %v5728 = vunpack.c.h.b16 %v4143
        %v5729 = vunpack.c.l.b16 %v4144
        %v5730 = vunpack.c.h.b16 %v4144
        %v5731 = vunpack.c.l.b16 %v4145
        %v5732 = vunpack.c.h.b16 %v4145
        %v5733 = vunpack.c.l.b16 %v4146
        %v5734 = vunpack.c.h.b16 %v4146
        %v5735 = vunpack.c.l.b16 %v4147
        %v5736 = vunpack.c.h.b16 %v4147
        %v5737 = vunpack.c.l.b16 %v4148
        %v5738 = vunpack.c.h.b16 %v4148
        %v5739 = vpack.c.b16 %v5725, %v5723
        %v5740 = vpack.c.b16 %v5726, %v5724
        %v5741 = vpack.c.b16 %v5729, %v5727
        %v5742 = vpack.c.b16 %v5730, %v5728
        %v5743 = vpack.c.b16 %v5733, %v5731
        %v5744 = vpack.c.b16 %v5734, %v5732
        %v5745 = vpack.c.b16 %v5737, %v5735
        %v5746 = vpack.c.b16 %v5738, %v5736
        %v5763 = vunpack.c.l.b16 %v4462
        %v5764 = vunpack.c.h.b16 %v4462
        %v5765 = vunpack.c.l.b16 %v4463
        %v5766 = vunpack.c.h.b16 %v4463
        %v5767 = vunpack.c.l.b16 %v4464
        %v5768 = vunpack.c.h.b16 %v4464
        %v5769 = vunpack.c.l.b16 %v4465
        %v5770 = vunpack.c.h.b16 %v4465
        %v5771 = vunpack.c.l.b16 %v4466
        %v5772 = vunpack.c.h.b16 %v4466
        %v5773 = vunpack.c.l.b16 %v4467
        %v5774 = vunpack.c.h.b16 %v4467
        %v5775 = vunpack.c.l.b16 %v4468
        %v5776 = vunpack.c.h.b16 %v4468
        %v5777 = vunpack.c.l.b16 %v4469
        %v5778 = vunpack.c.h.b16 %v4469
        %v5779 = vpack.c.b16 %v5765, %v5763
        %v5780 = vpack.c.b16 %v5766, %v5764
        %v5781 = vpack.c.b16 %v5769, %v5767
        %v5782 = vpack.c.b16 %v5770, %v5768
        %v5783 = vpack.c.b16 %v5773, %v5771
        %v5784 = vpack.c.b16 %v5774, %v5772
        %v5785 = vpack.c.b16 %v5777, %v5775
        %v5786 = vpack.c.b16 %v5778, %v5776
        %s5795 = scalar_lea.vmem [#allocation11], 512
        %v5796 = vld [vmem:[%s5795] sm:$0xf]
        %v5797 = vld [vmem:[%s5795 + $0x4] sm:$0xf]
        %v5798 = vld [vmem:[%s5795 + $0x8] sm:$0xf]
        %v5799 = vld [vmem:[%s5795 + $0xc] sm:$0xf]
        %v5800 = vld [vmem:[%s5795 + $0x10] sm:$0xf]
        %v5801 = vld [vmem:[%s5795 + $0x14] sm:$0xf]
        %v5802 = vld [vmem:[%s5795 + $0x18] sm:$0xf]
        %v5803 = vld [vmem:[%s5795 + $0x1c] sm:$0xf]
        %v5804 = vld [vmem:[%s5795 + $0x20] sm:$0xf]
        %v5805 = vld [vmem:[%s5795 + $0x24] sm:$0xf]
        %v5806 = vld [vmem:[%s5795 + $0x28] sm:$0xf]
        %v5807 = vld [vmem:[%s5795 + $0x2c] sm:$0xf]
        %v5808 = vld [vmem:[%s5795 + $0x30] sm:$0xf]
        %v5809 = vld [vmem:[%s5795 + $0x34] sm:$0xf]
        %v5810 = vld [vmem:[%s5795 + $0x38] sm:$0xf]
        %v5811 = vld [vmem:[%s5795 + $0x3c] sm:$0xf]
        %v5812 = vld [vmem:[%s5795 + $0x40] sm:$0xf]
        %v5813 = vld [vmem:[%s5795 + $0x44] sm:$0xf]
        %v5814 = vld [vmem:[%s5795 + $0x48] sm:$0xf]
        %v5815 = vld [vmem:[%s5795 + $0x4c] sm:$0xf]
        %v5816 = vld [vmem:[%s5795 + $0x50] sm:$0xf]
        %v5817 = vld [vmem:[%s5795 + $0x54] sm:$0xf]
        %v5818 = vld [vmem:[%s5795 + $0x58] sm:$0xf]
        %v5819 = vld [vmem:[%s5795 + $0x5c] sm:$0xf]
        %v5820 = vld [vmem:[%s5795 + $0x60] sm:$0xf]
        %v5821 = vld [vmem:[%s5795 + $0x64] sm:$0xf]
        %v5822 = vld [vmem:[%s5795 + $0x68] sm:$0xf]
        %v5823 = vld [vmem:[%s5795 + $0x6c] sm:$0xf]
        %v5824 = vld [vmem:[%s5795 + $0x70] sm:$0xf]
        %v5825 = vld [vmem:[%s5795 + $0x74] sm:$0xf]
        %v5826 = vld [vmem:[%s5795 + $0x78] sm:$0xf]
        %v5827 = vld [vmem:[%s5795 + $0x7c] sm:$0xf]
        %v5828 = vld [vmem:[%s5795 + $0x80] sm:$0xf]
        %v5829 = vld [vmem:[%s5795 + $0x84] sm:$0xf]
        %v5830 = vld [vmem:[%s5795 + $0x88] sm:$0xf]
        %v5831 = vld [vmem:[%s5795 + $0x8c] sm:$0xf]
        %v5832 = vld [vmem:[%s5795 + $0x90] sm:$0xf]
        %v5833 = vld [vmem:[%s5795 + $0x94] sm:$0xf]
        %v5834 = vld [vmem:[%s5795 + $0x98] sm:$0xf]
        %v5835 = vld [vmem:[%s5795 + $0x9c] sm:$0xf]
        %v5836 = vld [vmem:[%s5795 + $0xa0] sm:$0xf]
        %v5837 = vld [vmem:[%s5795 + $0xa4] sm:$0xf]
        %v5838 = vld [vmem:[%s5795 + $0xa8] sm:$0xf]
        %v5839 = vld [vmem:[%s5795 + $0xac] sm:$0xf]
        %v5840 = vld [vmem:[%s5795 + $0xb0] sm:$0xf]
        %v5841 = vld [vmem:[%s5795 + $0xb4] sm:$0xf]
        %v5842 = vld [vmem:[%s5795 + $0xb8] sm:$0xf]
        %v5843 = vld [vmem:[%s5795 + $0xbc] sm:$0xf]
        %v5844 = vld [vmem:[%s5795 + $0xc0] sm:$0xf]
        %v5845 = vld [vmem:[%s5795 + $0xc4] sm:$0xf]
        %v5846 = vld [vmem:[%s5795 + $0xc8] sm:$0xf]
        %v5847 = vld [vmem:[%s5795 + $0xcc] sm:$0xf]
        %v5848 = vld [vmem:[%s5795 + $0xd0] sm:$0xf]
        %v5849 = vld [vmem:[%s5795 + $0xd4] sm:$0xf]
        %v5850 = vld [vmem:[%s5795 + $0xd8] sm:$0xf]
        %v5851 = vld [vmem:[%s5795 + $0xdc] sm:$0xf]
        %v5852 = vld [vmem:[%s5795 + $0xe0] sm:$0xf]
        %v5853 = vld [vmem:[%s5795 + $0xe4] sm:$0xf]
        %v5854 = vld [vmem:[%s5795 + $0xe8] sm:$0xf]
        %v5855 = vld [vmem:[%s5795 + $0xec] sm:$0xf]
        %v5856 = vld [vmem:[%s5795 + $0xf0] sm:$0xf]
        %v5857 = vld [vmem:[%s5795 + $0xf4] sm:$0xf]
        %v5858 = vld [vmem:[%s5795 + $0xf8] sm:$0xf]
        %v5859 = vld [vmem:[%s5795 + $0xfc] sm:$0xf]
        %v5860 = vld [vmem:[%s5795 + $0x100] sm:$0xf]
        %v5861 = vld [vmem:[%s5795 + $0x104] sm:$0xf]
        %v5862 = vld [vmem:[%s5795 + $0x108] sm:$0xf]
        %v5863 = vld [vmem:[%s5795 + $0x10c] sm:$0xf]
        %v5864 = vld [vmem:[%s5795 + $0x110] sm:$0xf]
        %v5865 = vld [vmem:[%s5795 + $0x114] sm:$0xf]
        %v5866 = vld [vmem:[%s5795 + $0x118] sm:$0xf]
        %v5867 = vld [vmem:[%s5795 + $0x11c] sm:$0xf]
        %v5868 = vld [vmem:[%s5795 + $0x120] sm:$0xf]
        %v5869 = vld [vmem:[%s5795 + $0x124] sm:$0xf]
        %v5870 = vld [vmem:[%s5795 + $0x128] sm:$0xf]
        %v5871 = vld [vmem:[%s5795 + $0x12c] sm:$0xf]
        %v5872 = vld [vmem:[%s5795 + $0x130] sm:$0xf]
        %v5873 = vld [vmem:[%s5795 + $0x134] sm:$0xf]
        %v5874 = vld [vmem:[%s5795 + $0x138] sm:$0xf]
        %v5875 = vld [vmem:[%s5795 + $0x13c] sm:$0xf]
        %v5876 = vld [vmem:[%s5795 + $0x140] sm:$0xf]
        %v5877 = vld [vmem:[%s5795 + $0x144] sm:$0xf]
        %v5878 = vld [vmem:[%s5795 + $0x148] sm:$0xf]
        %v5879 = vld [vmem:[%s5795 + $0x14c] sm:$0xf]
        %v5880 = vld [vmem:[%s5795 + $0x150] sm:$0xf]
        %v5881 = vld [vmem:[%s5795 + $0x154] sm:$0xf]
        %v5882 = vld [vmem:[%s5795 + $0x158] sm:$0xf]
        %v5883 = vld [vmem:[%s5795 + $0x15c] sm:$0xf]
        %v5884 = vld [vmem:[%s5795 + $0x160] sm:$0xf]
        %v5885 = vld [vmem:[%s5795 + $0x164] sm:$0xf]
        %v5886 = vld [vmem:[%s5795 + $0x168] sm:$0xf]
        %v5887 = vld [vmem:[%s5795 + $0x16c] sm:$0xf]
        %v5888 = vld [vmem:[%s5795 + $0x170] sm:$0xf]
        %v5889 = vld [vmem:[%s5795 + $0x174] sm:$0xf]
        %v5890 = vld [vmem:[%s5795 + $0x178] sm:$0xf]
        %v5891 = vld [vmem:[%s5795 + $0x17c] sm:$0xf]
        %v5892 = vld [vmem:[%s5795 + $0x180] sm:$0xf]
        %v5893 = vld [vmem:[%s5795 + $0x184] sm:$0xf]
        %v5894 = vld [vmem:[%s5795 + $0x188] sm:$0xf]
        %v5895 = vld [vmem:[%s5795 + $0x18c] sm:$0xf]
        %v5896 = vld [vmem:[%s5795 + $0x190] sm:$0xf]
        %v5897 = vld [vmem:[%s5795 + $0x194] sm:$0xf]
        %v5898 = vld [vmem:[%s5795 + $0x198] sm:$0xf]
        %v5899 = vld [vmem:[%s5795 + $0x19c] sm:$0xf]
        %v5900 = vld [vmem:[%s5795 + $0x1a0] sm:$0xf]
        %v5901 = vld [vmem:[%s5795 + $0x1a4] sm:$0xf]
        %v5902 = vld [vmem:[%s5795 + $0x1a8] sm:$0xf]
        %v5903 = vld [vmem:[%s5795 + $0x1ac] sm:$0xf]
        %v5904 = vld [vmem:[%s5795 + $0x1b0] sm:$0xf]
        %v5905 = vld [vmem:[%s5795 + $0x1b4] sm:$0xf]
        %v5906 = vld [vmem:[%s5795 + $0x1b8] sm:$0xf]
        %v5907 = vld [vmem:[%s5795 + $0x1bc] sm:$0xf]
        %v5908 = vld [vmem:[%s5795 + $0x1c0] sm:$0xf]
        %v5909 = vld [vmem:[%s5795 + $0x1c4] sm:$0xf]
        %v5910 = vld [vmem:[%s5795 + $0x1c8] sm:$0xf]
        %v5911 = vld [vmem:[%s5795 + $0x1cc] sm:$0xf]
        %v5912 = vld [vmem:[%s5795 + $0x1d0] sm:$0xf]
        %v5913 = vld [vmem:[%s5795 + $0x1d4] sm:$0xf]
        %v5914 = vld [vmem:[%s5795 + $0x1d8] sm:$0xf]
        %v5915 = vld [vmem:[%s5795 + $0x1dc] sm:$0xf]
        %v5916 = vld [vmem:[%s5795 + $0x1e0] sm:$0xf]
        %v5917 = vld [vmem:[%s5795 + $0x1e4] sm:$0xf]
        %v5918 = vld [vmem:[%s5795 + $0x1e8] sm:$0xf]
        %v5919 = vld [vmem:[%s5795 + $0x1ec] sm:$0xf]
        %v5920 = vld [vmem:[%s5795 + $0x1f0] sm:$0xf]
        %v5921 = vld [vmem:[%s5795 + $0x1f4] sm:$0xf]
        %v5922 = vld [vmem:[%s5795 + $0x1f8] sm:$0xf]
        %v5923 = vld [vmem:[%s5795 + $0x1fc] sm:$0xf]
        %v5924 = vld [vmem:[%s8] sm:$0x1]
        %v5926 = vperm.slane %v5924, 0
        %v6056 = vunpack.c.l.b16 %v5796
        %v6057 = vunpack.c.l.b16 %v5797
        %v6058 = vunpack.c.l.b16 %v5798
        %v6059 = vunpack.c.l.b16 %v5799
        %v6060 = vunpack.c.l.b16 %v5800
        %v6061 = vunpack.c.l.b16 %v5801
        %v6062 = vunpack.c.l.b16 %v5802
        %v6063 = vunpack.c.l.b16 %v5803
        %v6064 = vunpack.c.l.b16 %v5804
        %v6065 = vunpack.c.l.b16 %v5805
        %v6066 = vunpack.c.l.b16 %v5806
        %v6067 = vunpack.c.l.b16 %v5807
        %v6068 = vunpack.c.l.b16 %v5808
        %v6069 = vunpack.c.l.b16 %v5809
        %v6070 = vunpack.c.l.b16 %v5810
        %v6071 = vunpack.c.l.b16 %v5811
        %v6072 = vunpack.c.l.b16 %v5812
        %v6073 = vunpack.c.l.b16 %v5813
        %v6074 = vunpack.c.l.b16 %v5814
        %v6075 = vunpack.c.l.b16 %v5815
        %v6076 = vunpack.c.l.b16 %v5816
        %v6077 = vunpack.c.l.b16 %v5817
        %v6078 = vunpack.c.l.b16 %v5818
        %v6079 = vunpack.c.l.b16 %v5819
        %v6080 = vunpack.c.l.b16 %v5820
        %v6081 = vunpack.c.l.b16 %v5821
        %v6082 = vunpack.c.l.b16 %v5822
        %v6083 = vunpack.c.l.b16 %v5823
        %v6084 = vunpack.c.l.b16 %v5824
        %v6085 = vunpack.c.l.b16 %v5825
        %v6086 = vunpack.c.l.b16 %v5826
        %v6087 = vunpack.c.l.b16 %v5827
        %v6088 = vunpack.c.l.b16 %v5828
        %v6089 = vunpack.c.l.b16 %v5829
        %v6090 = vunpack.c.l.b16 %v5830
        %v6091 = vunpack.c.l.b16 %v5831
        %v6092 = vunpack.c.l.b16 %v5832
        %v6093 = vunpack.c.l.b16 %v5833
        %v6094 = vunpack.c.l.b16 %v5834
        %v6095 = vunpack.c.l.b16 %v5835
        %v6096 = vunpack.c.l.b16 %v5836
        %v6097 = vunpack.c.l.b16 %v5837
        %v6098 = vunpack.c.l.b16 %v5838
        %v6099 = vunpack.c.l.b16 %v5839
        %v6100 = vunpack.c.l.b16 %v5840
        %v6101 = vunpack.c.l.b16 %v5841
        %v6102 = vunpack.c.l.b16 %v5842
        %v6103 = vunpack.c.l.b16 %v5843
        %v6104 = vunpack.c.l.b16 %v5844
        %v6105 = vunpack.c.l.b16 %v5845
        %v6106 = vunpack.c.l.b16 %v5846
        %v6107 = vunpack.c.l.b16 %v5847
        %v6108 = vunpack.c.l.b16 %v5848
        %v6109 = vunpack.c.l.b16 %v5849
        %v6110 = vunpack.c.l.b16 %v5850
        %v6111 = vunpack.c.l.b16 %v5851
        %v6112 = vunpack.c.l.b16 %v5852
        %v6113 = vunpack.c.l.b16 %v5853
        %v6114 = vunpack.c.l.b16 %v5854
        %v6115 = vunpack.c.l.b16 %v5855
        %v6116 = vunpack.c.l.b16 %v5856
        %v6117 = vunpack.c.l.b16 %v5857
        %v6118 = vunpack.c.l.b16 %v5858
        %v6119 = vunpack.c.l.b16 %v5859
        %v6120 = vunpack.c.l.b16 %v5860
        %v6121 = vunpack.c.l.b16 %v5861
        %v6122 = vunpack.c.l.b16 %v5862
        %v6123 = vunpack.c.l.b16 %v5863
        %v6124 = vunpack.c.l.b16 %v5864
        %v6125 = vunpack.c.l.b16 %v5865
        %v6126 = vunpack.c.l.b16 %v5866
        %v6127 = vunpack.c.l.b16 %v5867
        %v6128 = vunpack.c.l.b16 %v5868
        %v6129 = vunpack.c.l.b16 %v5869
        %v6130 = vunpack.c.l.b16 %v5870
        %v6131 = vunpack.c.l.b16 %v5871
        %v6132 = vunpack.c.l.b16 %v5872
        %v6133 = vunpack.c.l.b16 %v5873
        %v6134 = vunpack.c.l.b16 %v5874
        %v6135 = vunpack.c.l.b16 %v5875
        %v6136 = vunpack.c.l.b16 %v5876
        %v6137 = vunpack.c.l.b16 %v5877
        %v6138 = vunpack.c.l.b16 %v5878
        %v6139 = vunpack.c.l.b16 %v5879
        %v6140 = vunpack.c.l.b16 %v5880
        %v6141 = vunpack.c.l.b16 %v5881
        %v6142 = vunpack.c.l.b16 %v5882
        %v6143 = vunpack.c.l.b16 %v5883
        %v6144 = vunpack.c.l.b16 %v5884
        %v6145 = vunpack.c.l.b16 %v5885
        %v6146 = vunpack.c.l.b16 %v5886
        %v6147 = vunpack.c.l.b16 %v5887
        %v6148 = vunpack.c.l.b16 %v5888
        %v6149 = vunpack.c.l.b16 %v5889
        %v6150 = vunpack.c.l.b16 %v5890
        %v6151 = vunpack.c.l.b16 %v5891
        %v6152 = vunpack.c.l.b16 %v5892
        %v6153 = vunpack.c.l.b16 %v5893
        %v6154 = vunpack.c.l.b16 %v5894
        %v6155 = vunpack.c.l.b16 %v5895
        %v6156 = vunpack.c.l.b16 %v5896
        %v6157 = vunpack.c.l.b16 %v5897
        %v6158 = vunpack.c.l.b16 %v5898
        %v6159 = vunpack.c.l.b16 %v5899
        %v6160 = vunpack.c.l.b16 %v5900
        %v6161 = vunpack.c.l.b16 %v5901
        %v6162 = vunpack.c.l.b16 %v5902
        %v6163 = vunpack.c.l.b16 %v5903
        %v6164 = vunpack.c.l.b16 %v5904
        %v6165 = vunpack.c.l.b16 %v5905
        %v6166 = vunpack.c.l.b16 %v5906
        %v6167 = vunpack.c.l.b16 %v5907
        %v6168 = vunpack.c.l.b16 %v5908
        %v6169 = vunpack.c.l.b16 %v5909
        %v6170 = vunpack.c.l.b16 %v5910
        %v6171 = vunpack.c.l.b16 %v5911
        %v6172 = vunpack.c.l.b16 %v5912
        %v6173 = vunpack.c.l.b16 %v5913
        %v6174 = vunpack.c.l.b16 %v5914
        %v6175 = vunpack.c.l.b16 %v5915
        %v6176 = vunpack.c.l.b16 %v5916
        %v6177 = vunpack.c.l.b16 %v5917
        %v6178 = vunpack.c.l.b16 %v5918
        %v6179 = vunpack.c.l.b16 %v5919
        %v6180 = vunpack.c.l.b16 %v5920
        %v6181 = vunpack.c.l.b16 %v5921
        %v6182 = vunpack.c.l.b16 %v5922
        %v6183 = vunpack.c.l.b16 %v5923
        %v6184 = vpack.c.b16 %v6057, %v6056
        %v6185 = vpack.c.b16 %v6059, %v6058
        %v6186 = vpack.c.b16 %v6061, %v6060
        %v6187 = vpack.c.b16 %v6063, %v6062
        %v6188 = vpack.c.b16 %v6065, %v6064
        %v6189 = vpack.c.b16 %v6067, %v6066
        %v6190 = vpack.c.b16 %v6069, %v6068
        %v6191 = vpack.c.b16 %v6071, %v6070
        %v6192 = vpack.c.b16 %v6073, %v6072
        %v6193 = vpack.c.b16 %v6075, %v6074
        %v6194 = vpack.c.b16 %v6077, %v6076
        %v6195 = vpack.c.b16 %v6079, %v6078
        %v6196 = vpack.c.b16 %v6081, %v6080
        %v6197 = vpack.c.b16 %v6083, %v6082
        %v6198 = vpack.c.b16 %v6085, %v6084
        %v6199 = vpack.c.b16 %v6087, %v6086
        %v6200 = vpack.c.b16 %v6089, %v6088
        %v6201 = vpack.c.b16 %v6091, %v6090
        %v6202 = vpack.c.b16 %v6093, %v6092
        %v6203 = vpack.c.b16 %v6095, %v6094
        %v6204 = vpack.c.b16 %v6097, %v6096
        %v6205 = vpack.c.b16 %v6099, %v6098
        %v6206 = vpack.c.b16 %v6101, %v6100
        %v6207 = vpack.c.b16 %v6103, %v6102
        %v6208 = vpack.c.b16 %v6105, %v6104
        %v6209 = vpack.c.b16 %v6107, %v6106
        %v6210 = vpack.c.b16 %v6109, %v6108
        %v6211 = vpack.c.b16 %v6111, %v6110
        %v6212 = vpack.c.b16 %v6113, %v6112
        %v6213 = vpack.c.b16 %v6115, %v6114
        %v6214 = vpack.c.b16 %v6117, %v6116
        %v6215 = vpack.c.b16 %v6119, %v6118
        %v6216 = vpack.c.b16 %v6121, %v6120
        %v6217 = vpack.c.b16 %v6123, %v6122
        %v6218 = vpack.c.b16 %v6125, %v6124
        %v6219 = vpack.c.b16 %v6127, %v6126
        %v6220 = vpack.c.b16 %v6129, %v6128
        %v6221 = vpack.c.b16 %v6131, %v6130
        %v6222 = vpack.c.b16 %v6133, %v6132
        %v6223 = vpack.c.b16 %v6135, %v6134
        %v6224 = vpack.c.b16 %v6137, %v6136
        %v6225 = vpack.c.b16 %v6139, %v6138
        %v6226 = vpack.c.b16 %v6141, %v6140
        %v6227 = vpack.c.b16 %v6143, %v6142
        %v6228 = vpack.c.b16 %v6145, %v6144
        %v6229 = vpack.c.b16 %v6147, %v6146
        %v6230 = vpack.c.b16 %v6149, %v6148
        %v6231 = vpack.c.b16 %v6151, %v6150
        %v6232 = vpack.c.b16 %v6153, %v6152
        %v6233 = vpack.c.b16 %v6155, %v6154
        %v6234 = vpack.c.b16 %v6157, %v6156
        %v6235 = vpack.c.b16 %v6159, %v6158
        %v6236 = vpack.c.b16 %v6161, %v6160
        %v6237 = vpack.c.b16 %v6163, %v6162
        %v6238 = vpack.c.b16 %v6165, %v6164
        %v6239 = vpack.c.b16 %v6167, %v6166
        %v6240 = vpack.c.b16 %v6169, %v6168
        %v6241 = vpack.c.b16 %v6171, %v6170
        %v6242 = vpack.c.b16 %v6173, %v6172
        %v6243 = vpack.c.b16 %v6175, %v6174
        %v6244 = vpack.c.b16 %v6177, %v6176
        %v6245 = vpack.c.b16 %v6179, %v6178
        %v6246 = vpack.c.b16 %v6181, %v6180
        %v6247 = vpack.c.b16 %v6183, %v6182
        %6312 = vmatpush.bf16.msra.mxu0 %v6191
        %6313 = vmatpush.bf16.msra.mxu0 %v6190
        %6314 = vmatpush.bf16.msra.mxu0 %v6189
        %6315 = vmatpush.bf16.msra.mxu0 %v6188
        %6316 = vmatpush.bf16.msra.mxu0 %v6187
        %6317 = vmatpush.bf16.msra.mxu0 %v6186
        %6318 = vmatpush.bf16.msra.mxu0 %v6185
        %6319 = vmatpush.bf16.msra.mxu0 %v6184
        %6320 = vmatmul.bf16.gmra.mxu0 %v4855
        %v6321 = vpop.f32.mrf.mxu0
        %v6322 = vadd.f32 %v5926, %v6321
        %v6323 = vpop.f32.mrf.mxu0
        %v6324 = vadd.f32 %v5926, %v6323
        %6325 = vmatmul.bf16.gmra.mxu0 %v4857
        %v6326 = vpop.f32.mrf.mxu0
        %v6327 = vadd.f32 %v5926, %v6326
        %v6328 = vpop.f32.mrf.mxu0
        %v6329 = vadd.f32 %v5926, %v6328
        %6330 = vmatmul.bf16.gmra.mxu0 %v4859
        %v6331 = vpop.f32.mrf.mxu0
        %v6332 = vadd.f32 %v5926, %v6331
        %v6333 = vpop.f32.mrf.mxu0
        %v6334 = vadd.f32 %v5926, %v6333
        %6335 = vmatmul.bf16.gmra.mxu0 %v4861
        %v6336 = vpop.f32.mrf.mxu0
        %v6337 = vadd.f32 %v5926, %v6336
        %v6338 = vpop.f32.mrf.mxu0
        %v6339 = vadd.f32 %v5926, %v6338
        %6340 = vdwg.mxu0
        %6341 = vmatpush.bf16.msra.mxu0 %v6199
        %6342 = vmatpush.bf16.msra.mxu0 %v6198
        %6343 = vmatpush.bf16.msra.mxu0 %v6197
        %6344 = vmatpush.bf16.msra.mxu0 %v6196
        %6345 = vmatpush.bf16.msra.mxu0 %v6195
        %6346 = vmatpush.bf16.msra.mxu0 %v6194
        %6347 = vmatpush.bf16.msra.mxu0 %v6193
        %6348 = vmatpush.bf16.msra.mxu0 %v6192
        %6349 = vmatmul.bf16.gmra.mxu0 %v4856
        %v6350 = vpop.f32.mrf.mxu0
        %v6351 = vadd.f32 %v6322, %v6350
        %v6352 = vpop.f32.mrf.mxu0
        %v6353 = vadd.f32 %v6324, %v6352
        %6354 = vmatmul.bf16.gmra.mxu0 %v4858
        %v6355 = vpop.f32.mrf.mxu0
        %v6356 = vadd.f32 %v6327, %v6355
        %v6357 = vpop.f32.mrf.mxu0
        %v6358 = vadd.f32 %v6329, %v6357
        %6359 = vmatmul.bf16.gmra.mxu0 %v4860
        %v6360 = vpop.f32.mrf.mxu0
        %v6361 = vadd.f32 %v6332, %v6360
        %v6362 = vpop.f32.mrf.mxu0
        %v6363 = vadd.f32 %v6334, %v6362
        %6364 = vmatmul.bf16.gmra.mxu0 %v4862
        %v6365 = vpop.f32.mrf.mxu0
        %v6366 = vadd.f32 %v6337, %v6365
        %v6367 = vpop.f32.mrf.mxu0
        %v6368 = vadd.f32 %v6339, %v6367
        %6369 = vdwg.mxu0
        %6370 = vmatpush.bf16.msra.mxu0 %v6207
        %6371 = vmatpush.bf16.msra.mxu0 %v6206
        %6372 = vmatpush.bf16.msra.mxu0 %v6205
        %6373 = vmatpush.bf16.msra.mxu0 %v6204
        %6374 = vmatpush.bf16.msra.mxu0 %v6203
        %6375 = vmatpush.bf16.msra.mxu0 %v6202
        %6376 = vmatpush.bf16.msra.mxu0 %v6201
        %6377 = vmatpush.bf16.msra.mxu0 %v6200
        %6378 = vmatmul.bf16.gmra.mxu0 %v5739
        %v6379 = vpop.f32.mrf.mxu0
        %v6380 = vadd.f32 %v6351, %v6379
        %v6381 = vpop.f32.mrf.mxu0
        %v6382 = vadd.f32 %v6353, %v6381
        %6383 = vmatmul.bf16.gmra.mxu0 %v5741
        %v6384 = vpop.f32.mrf.mxu0
        %v6385 = vadd.f32 %v6356, %v6384
        %v6386 = vpop.f32.mrf.mxu0
        %v6387 = vadd.f32 %v6358, %v6386
        %6388 = vmatmul.bf16.gmra.mxu0 %v5743
        %v6389 = vpop.f32.mrf.mxu0
        %v6390 = vadd.f32 %v6361, %v6389
        %v6391 = vpop.f32.mrf.mxu0
        %v6392 = vadd.f32 %v6363, %v6391
        %6393 = vmatmul.bf16.gmra.mxu0 %v5745
        %v6394 = vpop.f32.mrf.mxu0
        %v6395 = vadd.f32 %v6366, %v6394
        %v6396 = vpop.f32.mrf.mxu0
        %v6397 = vadd.f32 %v6368, %v6396
        %6398 = vdwg.mxu0
        %6399 = vmatpush.bf16.msra.mxu0 %v6215
        %6400 = vmatpush.bf16.msra.mxu0 %v6214
        %6401 = vmatpush.bf16.msra.mxu0 %v6213
        %6402 = vmatpush.bf16.msra.mxu0 %v6212
        %6403 = vmatpush.bf16.msra.mxu0 %v6211
        %6404 = vmatpush.bf16.msra.mxu0 %v6210
        %6405 = vmatpush.bf16.msra.mxu0 %v6209
        %6406 = vmatpush.bf16.msra.mxu0 %v6208
        %6407 = vmatmul.bf16.gmra.mxu0 %v5740
        %v6408 = vpop.f32.mrf.mxu0
        %v6409 = vadd.f32 %v6380, %v6408
        %v6410 = vpop.f32.mrf.mxu0
        %v6411 = vadd.f32 %v6382, %v6410
        %6412 = vmatmul.bf16.gmra.mxu0 %v5742
        %v6413 = vpop.f32.mrf.mxu0
        %v6414 = vadd.f32 %v6385, %v6413
        %v6415 = vpop.f32.mrf.mxu0
        %v6416 = vadd.f32 %v6387, %v6415
        %6417 = vmatmul.bf16.gmra.mxu0 %v5744
        %v6418 = vpop.f32.mrf.mxu0
        %v6419 = vadd.f32 %v6390, %v6418
        %v6420 = vpop.f32.mrf.mxu0
        %v6421 = vadd.f32 %v6392, %v6420
        %6422 = vmatmul.bf16.gmra.mxu0 %v5746
        %v6423 = vpop.f32.mrf.mxu0
        %v6424 = vadd.f32 %v6395, %v6423
        %v6425 = vpop.f32.mrf.mxu0
        %v6426 = vadd.f32 %v6397, %v6425
        %6427 = vdwg.mxu0
        %6428 = vmatpush.bf16.msra.mxu0 %v6223
        %6429 = vmatpush.bf16.msra.mxu0 %v6222
        %6430 = vmatpush.bf16.msra.mxu0 %v6221
        %6431 = vmatpush.bf16.msra.mxu0 %v6220
        %6432 = vmatpush.bf16.msra.mxu0 %v6219
        %6433 = vmatpush.bf16.msra.mxu0 %v6218
        %6434 = vmatpush.bf16.msra.mxu0 %v6217
        %6435 = vmatpush.bf16.msra.mxu0 %v6216
        %6436 = vmatmul.bf16.gmra.mxu0 %v4935
        %v6437 = vpop.f32.mrf.mxu0
        %v6438 = vadd.f32 %v6409, %v6437
        %v6439 = vpop.f32.mrf.mxu0
        %v6440 = vadd.f32 %v6411, %v6439
        %6441 = vmatmul.bf16.gmra.mxu0 %v4937
        %v6442 = vpop.f32.mrf.mxu0
        %v6443 = vadd.f32 %v6414, %v6442
        %v6444 = vpop.f32.mrf.mxu0
        %v6445 = vadd.f32 %v6416, %v6444
        %6446 = vmatmul.bf16.gmra.mxu0 %v4939
        %v6447 = vpop.f32.mrf.mxu0
        %v6448 = vadd.f32 %v6419, %v6447
        %v6449 = vpop.f32.mrf.mxu0
        %v6450 = vadd.f32 %v6421, %v6449
        %6451 = vmatmul.bf16.gmra.mxu0 %v4941
        %v6452 = vpop.f32.mrf.mxu0
        %v6453 = vadd.f32 %v6424, %v6452
        %v6454 = vpop.f32.mrf.mxu0
        %v6455 = vadd.f32 %v6426, %v6454
        %6456 = vdwg.mxu0
        %6457 = vmatpush.bf16.msra.mxu0 %v6231
        %6458 = vmatpush.bf16.msra.mxu0 %v6230
        %6459 = vmatpush.bf16.msra.mxu0 %v6229
        %6460 = vmatpush.bf16.msra.mxu0 %v6228
        %6461 = vmatpush.bf16.msra.mxu0 %v6227
        %6462 = vmatpush.bf16.msra.mxu0 %v6226
        %6463 = vmatpush.bf16.msra.mxu0 %v6225
        %6464 = vmatpush.bf16.msra.mxu0 %v6224
        %6465 = vmatmul.bf16.gmra.mxu0 %v4936
        %v6466 = vpop.f32.mrf.mxu0
        %v6467 = vadd.f32 %v6438, %v6466
        %v6468 = vpop.f32.mrf.mxu0
        %v6469 = vadd.f32 %v6440, %v6468
        %6470 = vmatmul.bf16.gmra.mxu0 %v4938
        %v6471 = vpop.f32.mrf.mxu0
        %v6472 = vadd.f32 %v6443, %v6471
        %v6473 = vpop.f32.mrf.mxu0
        %v6474 = vadd.f32 %v6445, %v6473
        %6475 = vmatmul.bf16.gmra.mxu0 %v4940
        %v6476 = vpop.f32.mrf.mxu0
        %v6477 = vadd.f32 %v6448, %v6476
        %v6478 = vpop.f32.mrf.mxu0
        %v6479 = vadd.f32 %v6450, %v6478
        %6480 = vmatmul.bf16.gmra.mxu0 %v4942
        %v6481 = vpop.f32.mrf.mxu0
        %v6482 = vadd.f32 %v6453, %v6481
        %v6483 = vpop.f32.mrf.mxu0
        %v6484 = vadd.f32 %v6455, %v6483
        %6485 = vdwg.mxu0
        %6486 = vmatpush.bf16.msra.mxu0 %v6239
        %6487 = vmatpush.bf16.msra.mxu0 %v6238
        %6488 = vmatpush.bf16.msra.mxu0 %v6237
        %6489 = vmatpush.bf16.msra.mxu0 %v6236
        %6490 = vmatpush.bf16.msra.mxu0 %v6235
        %6491 = vmatpush.bf16.msra.mxu0 %v6234
        %6492 = vmatpush.bf16.msra.mxu0 %v6233
        %6493 = vmatpush.bf16.msra.mxu0 %v6232
        %6494 = vmatmul.bf16.gmra.mxu0 %v5779
        %v6495 = vpop.f32.mrf.mxu0
        %v6496 = vadd.f32 %v6467, %v6495
        %v6497 = vpop.f32.mrf.mxu0
        %v6498 = vadd.f32 %v6469, %v6497
        %6499 = vmatmul.bf16.gmra.mxu0 %v5781
        %v6500 = vpop.f32.mrf.mxu0
        %v6501 = vadd.f32 %v6472, %v6500
        %v6502 = vpop.f32.mrf.mxu0
        %v6503 = vadd.f32 %v6474, %v6502
        %6504 = vmatmul.bf16.gmra.mxu0 %v5783
        %v6505 = vpop.f32.mrf.mxu0
        %v6506 = vadd.f32 %v6477, %v6505
        %v6507 = vpop.f32.mrf.mxu0
        %v6508 = vadd.f32 %v6479, %v6507
        %6509 = vmatmul.bf16.gmra.mxu0 %v5785
        %v6510 = vpop.f32.mrf.mxu0
        %v6511 = vadd.f32 %v6482, %v6510
        %v6512 = vpop.f32.mrf.mxu0
        %v6513 = vadd.f32 %v6484, %v6512
        %6514 = vdwg.mxu0
        %6515 = vmatpush.bf16.msra.mxu0 %v6247
        %6516 = vmatpush.bf16.msra.mxu0 %v6246
        %6517 = vmatpush.bf16.msra.mxu0 %v6245
        %6518 = vmatpush.bf16.msra.mxu0 %v6244
        %6519 = vmatpush.bf16.msra.mxu0 %v6243
        %6520 = vmatpush.bf16.msra.mxu0 %v6242
        %6521 = vmatpush.bf16.msra.mxu0 %v6241
        %6522 = vmatpush.bf16.msra.mxu0 %v6240
        %6523 = vmatmul.bf16.gmra.mxu0 %v5780
        %v6524 = vpop.f32.mrf.mxu0
        %v6525 = vadd.f32 %v6496, %v6524
        %v6526 = vpop.f32.mrf.mxu0
        %v6527 = vadd.f32 %v6498, %v6526
        %6528 = vmatmul.bf16.gmra.mxu0 %v5782
        %v6529 = vpop.f32.mrf.mxu0
        %v6530 = vadd.f32 %v6501, %v6529
        %v6531 = vpop.f32.mrf.mxu0
        %v6532 = vadd.f32 %v6503, %v6531
        %6533 = vmatmul.bf16.gmra.mxu0 %v5784
        %v6534 = vpop.f32.mrf.mxu0
        %v6535 = vadd.f32 %v6506, %v6534
        %v6536 = vpop.f32.mrf.mxu0
        %v6537 = vadd.f32 %v6508, %v6536
        %6538 = vmatmul.bf16.gmra.mxu0 %v5786
        %v6539 = vpop.f32.mrf.mxu0
        %v6540 = vadd.f32 %v6511, %v6539
        %v6541 = vpop.f32.mrf.mxu0
        %v6542 = vadd.f32 %v6513, %v6541
        %6543 = vdwg.mxu0
        %v6544 = vtanh.pop %v6525
        %v6545 = vtanh.pop %v6527
        %v6546 = vtanh.pop %v6530
        %v6547 = vtanh.pop %v6532
        %v6548 = vtanh.pop %v6535
        %v6549 = vtanh.pop %v6537
        %v6550 = vtanh.pop %v6540
        %v6551 = vtanh.pop %v6542
        %s6552 = scalar_lea.vmem %s424, 64
        %6553 = vst [vmem:[%s6552] sm:$0xff] %v6544
        %6554 = vst [vmem:[%s6552 + $0x8] sm:$0xff] %v6545
        %6555 = vst [vmem:[%s6552 + $0x10] sm:$0xff] %v6546
        %6556 = vst [vmem:[%s6552 + $0x18] sm:$0xff] %v6547
        %6557 = vst [vmem:[%s6552 + $0x20] sm:$0xff] %v6548
        %6558 = vst [vmem:[%s6552 + $0x28] sm:$0xff] %v6549
        %6559 = vst [vmem:[%s6552 + $0x30] sm:$0xff] %v6550
        %6560 = vst [vmem:[%s6552 + $0x38] sm:$0xff] %v6551
        %v6569 = vunpack.c.l.b16 %v4569
        %v6570 = vunpack.c.h.b16 %v4569
        %v6571 = vunpack.c.l.b16 %v4570
        %v6572 = vunpack.c.h.b16 %v4570
        %v6573 = vunpack.c.l.b16 %v4571
        %v6574 = vunpack.c.h.b16 %v4571
        %v6575 = vunpack.c.l.b16 %v4572
        %v6576 = vunpack.c.h.b16 %v4572
        %v6577 = vunpack.c.l.b16 %v4573
        %v6578 = vunpack.c.h.b16 %v4573
        %v6579 = vunpack.c.l.b16 %v4574
        %v6580 = vunpack.c.h.b16 %v4574
        %v6581 = vunpack.c.l.b16 %v4575
        %v6582 = vunpack.c.h.b16 %v4575
        %v6583 = vunpack.c.l.b16 %v4576
        %v6584 = vunpack.c.h.b16 %v4576
        %v6585 = vpack.c.b16 %v6571, %v6569
        %v6586 = vpack.c.b16 %v6572, %v6570
        %v6587 = vpack.c.b16 %v6575, %v6573
        %v6588 = vpack.c.b16 %v6576, %v6574
        %v6589 = vpack.c.b16 %v6579, %v6577
        %v6590 = vpack.c.b16 %v6580, %v6578
        %v6591 = vpack.c.b16 %v6583, %v6581
        %v6592 = vpack.c.b16 %v6584, %v6582
        %v6609 = vunpack.c.l.b16 %v4676
        %v6610 = vunpack.c.h.b16 %v4676
        %v6611 = vunpack.c.l.b16 %v4677
        %v6612 = vunpack.c.h.b16 %v4677
        %v6613 = vunpack.c.l.b16 %v4678
        %v6614 = vunpack.c.h.b16 %v4678
        %v6615 = vunpack.c.l.b16 %v4679
        %v6616 = vunpack.c.h.b16 %v4679
        %v6617 = vunpack.c.l.b16 %v4680
        %v6618 = vunpack.c.h.b16 %v4680
        %v6619 = vunpack.c.l.b16 %v4681
        %v6620 = vunpack.c.h.b16 %v4681
        %v6621 = vunpack.c.l.b16 %v4682
        %v6622 = vunpack.c.h.b16 %v4682
        %v6623 = vunpack.c.l.b16 %v4683
        %v6624 = vunpack.c.h.b16 %v4683
        %v6625 = vpack.c.b16 %v6611, %v6609
        %v6626 = vpack.c.b16 %v6612, %v6610
        %v6627 = vpack.c.b16 %v6615, %v6613
        %v6628 = vpack.c.b16 %v6616, %v6614
        %v6629 = vpack.c.b16 %v6619, %v6617
        %v6630 = vpack.c.b16 %v6620, %v6618
        %v6631 = vpack.c.b16 %v6623, %v6621
        %v6632 = vpack.c.b16 %v6624, %v6622
        %s6641 = scalar_lea.vmem [#allocation11], 1024
        %v6642 = vld [vmem:[%s6641] sm:$0xf]
        %v6643 = vld [vmem:[%s6641 + $0x4] sm:$0xf]
        %v6644 = vld [vmem:[%s6641 + $0x8] sm:$0xf]
        %v6645 = vld [vmem:[%s6641 + $0xc] sm:$0xf]
        %v6646 = vld [vmem:[%s6641 + $0x10] sm:$0xf]
        %v6647 = vld [vmem:[%s6641 + $0x14] sm:$0xf]
        %v6648 = vld [vmem:[%s6641 + $0x18] sm:$0xf]
        %v6649 = vld [vmem:[%s6641 + $0x1c] sm:$0xf]
        %v6650 = vld [vmem:[%s6641 + $0x20] sm:$0xf]
        %v6651 = vld [vmem:[%s6641 + $0x24] sm:$0xf]
        %v6652 = vld [vmem:[%s6641 + $0x28] sm:$0xf]
        %v6653 = vld [vmem:[%s6641 + $0x2c] sm:$0xf]
        %v6654 = vld [vmem:[%s6641 + $0x30] sm:$0xf]
        %v6655 = vld [vmem:[%s6641 + $0x34] sm:$0xf]
        %v6656 = vld [vmem:[%s6641 + $0x38] sm:$0xf]
        %v6657 = vld [vmem:[%s6641 + $0x3c] sm:$0xf]
        %v6658 = vld [vmem:[%s6641 + $0x40] sm:$0xf]
        %v6659 = vld [vmem:[%s6641 + $0x44] sm:$0xf]
        %v6660 = vld [vmem:[%s6641 + $0x48] sm:$0xf]
        %v6661 = vld [vmem:[%s6641 + $0x4c] sm:$0xf]
        %v6662 = vld [vmem:[%s6641 + $0x50] sm:$0xf]
        %v6663 = vld [vmem:[%s6641 + $0x54] sm:$0xf]
        %v6664 = vld [vmem:[%s6641 + $0x58] sm:$0xf]
        %v6665 = vld [vmem:[%s6641 + $0x5c] sm:$0xf]
        %v6666 = vld [vmem:[%s6641 + $0x60] sm:$0xf]
        %v6667 = vld [vmem:[%s6641 + $0x64] sm:$0xf]
        %v6668 = vld [vmem:[%s6641 + $0x68] sm:$0xf]
        %v6669 = vld [vmem:[%s6641 + $0x6c] sm:$0xf]
        %v6670 = vld [vmem:[%s6641 + $0x70] sm:$0xf]
        %v6671 = vld [vmem:[%s6641 + $0x74] sm:$0xf]
        %v6672 = vld [vmem:[%s6641 + $0x78] sm:$0xf]
        %v6673 = vld [vmem:[%s6641 + $0x7c] sm:$0xf]
        %v6674 = vld [vmem:[%s6641 + $0x80] sm:$0xf]
        %v6675 = vld [vmem:[%s6641 + $0x84] sm:$0xf]
        %v6676 = vld [vmem:[%s6641 + $0x88] sm:$0xf]
        %v6677 = vld [vmem:[%s6641 + $0x8c] sm:$0xf]
        %v6678 = vld [vmem:[%s6641 + $0x90] sm:$0xf]
        %v6679 = vld [vmem:[%s6641 + $0x94] sm:$0xf]
        %v6680 = vld [vmem:[%s6641 + $0x98] sm:$0xf]
        %v6681 = vld [vmem:[%s6641 + $0x9c] sm:$0xf]
        %v6682 = vld [vmem:[%s6641 + $0xa0] sm:$0xf]
        %v6683 = vld [vmem:[%s6641 + $0xa4] sm:$0xf]
        %v6684 = vld [vmem:[%s6641 + $0xa8] sm:$0xf]
        %v6685 = vld [vmem:[%s6641 + $0xac] sm:$0xf]
        %v6686 = vld [vmem:[%s6641 + $0xb0] sm:$0xf]
        %v6687 = vld [vmem:[%s6641 + $0xb4] sm:$0xf]
        %v6688 = vld [vmem:[%s6641 + $0xb8] sm:$0xf]
        %v6689 = vld [vmem:[%s6641 + $0xbc] sm:$0xf]
        %v6690 = vld [vmem:[%s6641 + $0xc0] sm:$0xf]
        %v6691 = vld [vmem:[%s6641 + $0xc4] sm:$0xf]
        %v6692 = vld [vmem:[%s6641 + $0xc8] sm:$0xf]
        %v6693 = vld [vmem:[%s6641 + $0xcc] sm:$0xf]
        %v6694 = vld [vmem:[%s6641 + $0xd0] sm:$0xf]
        %v6695 = vld [vmem:[%s6641 + $0xd4] sm:$0xf]
        %v6696 = vld [vmem:[%s6641 + $0xd8] sm:$0xf]
        %v6697 = vld [vmem:[%s6641 + $0xdc] sm:$0xf]
        %v6698 = vld [vmem:[%s6641 + $0xe0] sm:$0xf]
        %v6699 = vld [vmem:[%s6641 + $0xe4] sm:$0xf]
        %v6700 = vld [vmem:[%s6641 + $0xe8] sm:$0xf]
        %v6701 = vld [vmem:[%s6641 + $0xec] sm:$0xf]
        %v6702 = vld [vmem:[%s6641 + $0xf0] sm:$0xf]
        %v6703 = vld [vmem:[%s6641 + $0xf4] sm:$0xf]
        %v6704 = vld [vmem:[%s6641 + $0xf8] sm:$0xf]
        %v6705 = vld [vmem:[%s6641 + $0xfc] sm:$0xf]
        %v6706 = vld [vmem:[%s6641 + $0x100] sm:$0xf]
        %v6707 = vld [vmem:[%s6641 + $0x104] sm:$0xf]
        %v6708 = vld [vmem:[%s6641 + $0x108] sm:$0xf]
        %v6709 = vld [vmem:[%s6641 + $0x10c] sm:$0xf]
        %v6710 = vld [vmem:[%s6641 + $0x110] sm:$0xf]
        %v6711 = vld [vmem:[%s6641 + $0x114] sm:$0xf]
        %v6712 = vld [vmem:[%s6641 + $0x118] sm:$0xf]
        %v6713 = vld [vmem:[%s6641 + $0x11c] sm:$0xf]
        %v6714 = vld [vmem:[%s6641 + $0x120] sm:$0xf]
        %v6715 = vld [vmem:[%s6641 + $0x124] sm:$0xf]
        %v6716 = vld [vmem:[%s6641 + $0x128] sm:$0xf]
        %v6717 = vld [vmem:[%s6641 + $0x12c] sm:$0xf]
        %v6718 = vld [vmem:[%s6641 + $0x130] sm:$0xf]
        %v6719 = vld [vmem:[%s6641 + $0x134] sm:$0xf]
        %v6720 = vld [vmem:[%s6641 + $0x138] sm:$0xf]
        %v6721 = vld [vmem:[%s6641 + $0x13c] sm:$0xf]
        %v6722 = vld [vmem:[%s6641 + $0x140] sm:$0xf]
        %v6723 = vld [vmem:[%s6641 + $0x144] sm:$0xf]
        %v6724 = vld [vmem:[%s6641 + $0x148] sm:$0xf]
        %v6725 = vld [vmem:[%s6641 + $0x14c] sm:$0xf]
        %v6726 = vld [vmem:[%s6641 + $0x150] sm:$0xf]
        %v6727 = vld [vmem:[%s6641 + $0x154] sm:$0xf]
        %v6728 = vld [vmem:[%s6641 + $0x158] sm:$0xf]
        %v6729 = vld [vmem:[%s6641 + $0x15c] sm:$0xf]
        %v6730 = vld [vmem:[%s6641 + $0x160] sm:$0xf]
        %v6731 = vld [vmem:[%s6641 + $0x164] sm:$0xf]
        %v6732 = vld [vmem:[%s6641 + $0x168] sm:$0xf]
        %v6733 = vld [vmem:[%s6641 + $0x16c] sm:$0xf]
        %v6734 = vld [vmem:[%s6641 + $0x170] sm:$0xf]
        %v6735 = vld [vmem:[%s6641 + $0x174] sm:$0xf]
        %v6736 = vld [vmem:[%s6641 + $0x178] sm:$0xf]
        %v6737 = vld [vmem:[%s6641 + $0x17c] sm:$0xf]
        %v6738 = vld [vmem:[%s6641 + $0x180] sm:$0xf]
        %v6739 = vld [vmem:[%s6641 + $0x184] sm:$0xf]
        %v6740 = vld [vmem:[%s6641 + $0x188] sm:$0xf]
        %v6741 = vld [vmem:[%s6641 + $0x18c] sm:$0xf]
        %v6742 = vld [vmem:[%s6641 + $0x190] sm:$0xf]
        %v6743 = vld [vmem:[%s6641 + $0x194] sm:$0xf]
        %v6744 = vld [vmem:[%s6641 + $0x198] sm:$0xf]
        %v6745 = vld [vmem:[%s6641 + $0x19c] sm:$0xf]
        %v6746 = vld [vmem:[%s6641 + $0x1a0] sm:$0xf]
        %v6747 = vld [vmem:[%s6641 + $0x1a4] sm:$0xf]
        %v6748 = vld [vmem:[%s6641 + $0x1a8] sm:$0xf]
        %v6749 = vld [vmem:[%s6641 + $0x1ac] sm:$0xf]
        %v6750 = vld [vmem:[%s6641 + $0x1b0] sm:$0xf]
        %v6751 = vld [vmem:[%s6641 + $0x1b4] sm:$0xf]
        %v6752 = vld [vmem:[%s6641 + $0x1b8] sm:$0xf]
        %v6753 = vld [vmem:[%s6641 + $0x1bc] sm:$0xf]
        %v6754 = vld [vmem:[%s6641 + $0x1c0] sm:$0xf]
        %v6755 = vld [vmem:[%s6641 + $0x1c4] sm:$0xf]
        %v6756 = vld [vmem:[%s6641 + $0x1c8] sm:$0xf]
        %v6757 = vld [vmem:[%s6641 + $0x1cc] sm:$0xf]
        %v6758 = vld [vmem:[%s6641 + $0x1d0] sm:$0xf]
        %v6759 = vld [vmem:[%s6641 + $0x1d4] sm:$0xf]
        %v6760 = vld [vmem:[%s6641 + $0x1d8] sm:$0xf]
        %v6761 = vld [vmem:[%s6641 + $0x1dc] sm:$0xf]
        %v6762 = vld [vmem:[%s6641 + $0x1e0] sm:$0xf]
        %v6763 = vld [vmem:[%s6641 + $0x1e4] sm:$0xf]
        %v6764 = vld [vmem:[%s6641 + $0x1e8] sm:$0xf]
        %v6765 = vld [vmem:[%s6641 + $0x1ec] sm:$0xf]
        %v6766 = vld [vmem:[%s6641 + $0x1f0] sm:$0xf]
        %v6767 = vld [vmem:[%s6641 + $0x1f4] sm:$0xf]
        %v6768 = vld [vmem:[%s6641 + $0x1f8] sm:$0xf]
        %v6769 = vld [vmem:[%s6641 + $0x1fc] sm:$0xf]
        %v6770 = vld [vmem:[%s8] sm:$0x1]
        %v6772 = vperm.slane %v6770, 0
        %v6902 = vunpack.c.l.b16 %v6642
        %v6903 = vunpack.c.l.b16 %v6643
        %v6904 = vunpack.c.l.b16 %v6644
        %v6905 = vunpack.c.l.b16 %v6645
        %v6906 = vunpack.c.l.b16 %v6646
        %v6907 = vunpack.c.l.b16 %v6647
        %v6908 = vunpack.c.l.b16 %v6648
        %v6909 = vunpack.c.l.b16 %v6649
        %v6910 = vunpack.c.l.b16 %v6650
        %v6911 = vunpack.c.l.b16 %v6651
        %v6912 = vunpack.c.l.b16 %v6652
        %v6913 = vunpack.c.l.b16 %v6653
        %v6914 = vunpack.c.l.b16 %v6654
        %v6915 = vunpack.c.l.b16 %v6655
        %v6916 = vunpack.c.l.b16 %v6656
        %v6917 = vunpack.c.l.b16 %v6657
        %v6918 = vunpack.c.l.b16 %v6658
        %v6919 = vunpack.c.l.b16 %v6659
        %v6920 = vunpack.c.l.b16 %v6660
        %v6921 = vunpack.c.l.b16 %v6661
        %v6922 = vunpack.c.l.b16 %v6662
        %v6923 = vunpack.c.l.b16 %v6663
        %v6924 = vunpack.c.l.b16 %v6664
        %v6925 = vunpack.c.l.b16 %v6665
        %v6926 = vunpack.c.l.b16 %v6666
        %v6927 = vunpack.c.l.b16 %v6667
        %v6928 = vunpack.c.l.b16 %v6668
        %v6929 = vunpack.c.l.b16 %v6669
        %v6930 = vunpack.c.l.b16 %v6670
        %v6931 = vunpack.c.l.b16 %v6671
        %v6932 = vunpack.c.l.b16 %v6672
        %v6933 = vunpack.c.l.b16 %v6673
        %v6934 = vunpack.c.l.b16 %v6674
        %v6935 = vunpack.c.l.b16 %v6675
        %v6936 = vunpack.c.l.b16 %v6676
        %v6937 = vunpack.c.l.b16 %v6677
        %v6938 = vunpack.c.l.b16 %v6678
        %v6939 = vunpack.c.l.b16 %v6679
        %v6940 = vunpack.c.l.b16 %v6680
        %v6941 = vunpack.c.l.b16 %v6681
        %v6942 = vunpack.c.l.b16 %v6682
        %v6943 = vunpack.c.l.b16 %v6683
        %v6944 = vunpack.c.l.b16 %v6684
        %v6945 = vunpack.c.l.b16 %v6685
        %v6946 = vunpack.c.l.b16 %v6686
        %v6947 = vunpack.c.l.b16 %v6687
        %v6948 = vunpack.c.l.b16 %v6688
        %v6949 = vunpack.c.l.b16 %v6689
        %v6950 = vunpack.c.l.b16 %v6690
        %v6951 = vunpack.c.l.b16 %v6691
        %v6952 = vunpack.c.l.b16 %v6692
        %v6953 = vunpack.c.l.b16 %v6693
        %v6954 = vunpack.c.l.b16 %v6694
        %v6955 = vunpack.c.l.b16 %v6695
        %v6956 = vunpack.c.l.b16 %v6696
        %v6957 = vunpack.c.l.b16 %v6697
        %v6958 = vunpack.c.l.b16 %v6698
        %v6959 = vunpack.c.l.b16 %v6699
        %v6960 = vunpack.c.l.b16 %v6700
        %v6961 = vunpack.c.l.b16 %v6701
        %v6962 = vunpack.c.l.b16 %v6702
        %v6963 = vunpack.c.l.b16 %v6703
        %v6964 = vunpack.c.l.b16 %v6704
        %v6965 = vunpack.c.l.b16 %v6705
        %v6966 = vunpack.c.l.b16 %v6706
        %v6967 = vunpack.c.l.b16 %v6707
        %v6968 = vunpack.c.l.b16 %v6708
        %v6969 = vunpack.c.l.b16 %v6709
        %v6970 = vunpack.c.l.b16 %v6710
        %v6971 = vunpack.c.l.b16 %v6711
        %v6972 = vunpack.c.l.b16 %v6712
        %v6973 = vunpack.c.l.b16 %v6713
        %v6974 = vunpack.c.l.b16 %v6714
        %v6975 = vunpack.c.l.b16 %v6715
        %v6976 = vunpack.c.l.b16 %v6716
        %v6977 = vunpack.c.l.b16 %v6717
        %v6978 = vunpack.c.l.b16 %v6718
        %v6979 = vunpack.c.l.b16 %v6719
        %v6980 = vunpack.c.l.b16 %v6720
        %v6981 = vunpack.c.l.b16 %v6721
        %v6982 = vunpack.c.l.b16 %v6722
        %v6983 = vunpack.c.l.b16 %v6723
        %v6984 = vunpack.c.l.b16 %v6724
        %v6985 = vunpack.c.l.b16 %v6725
        %v6986 = vunpack.c.l.b16 %v6726
        %v6987 = vunpack.c.l.b16 %v6727
        %v6988 = vunpack.c.l.b16 %v6728
        %v6989 = vunpack.c.l.b16 %v6729
        %v6990 = vunpack.c.l.b16 %v6730
        %v6991 = vunpack.c.l.b16 %v6731
        %v6992 = vunpack.c.l.b16 %v6732
        %v6993 = vunpack.c.l.b16 %v6733
        %v6994 = vunpack.c.l.b16 %v6734
        %v6995 = vunpack.c.l.b16 %v6735
        %v6996 = vunpack.c.l.b16 %v6736
        %v6997 = vunpack.c.l.b16 %v6737
        %v6998 = vunpack.c.l.b16 %v6738
        %v6999 = vunpack.c.l.b16 %v6739
        %v7000 = vunpack.c.l.b16 %v6740
        %v7001 = vunpack.c.l.b16 %v6741
        %v7002 = vunpack.c.l.b16 %v6742
        %v7003 = vunpack.c.l.b16 %v6743
        %v7004 = vunpack.c.l.b16 %v6744
        %v7005 = vunpack.c.l.b16 %v6745
        %v7006 = vunpack.c.l.b16 %v6746
        %v7007 = vunpack.c.l.b16 %v6747
        %v7008 = vunpack.c.l.b16 %v6748
        %v7009 = vunpack.c.l.b16 %v6749
        %v7010 = vunpack.c.l.b16 %v6750
        %v7011 = vunpack.c.l.b16 %v6751
        %v7012 = vunpack.c.l.b16 %v6752
        %v7013 = vunpack.c.l.b16 %v6753
        %v7014 = vunpack.c.l.b16 %v6754
        %v7015 = vunpack.c.l.b16 %v6755
        %v7016 = vunpack.c.l.b16 %v6756
        %v7017 = vunpack.c.l.b16 %v6757
        %v7018 = vunpack.c.l.b16 %v6758
        %v7019 = vunpack.c.l.b16 %v6759
        %v7020 = vunpack.c.l.b16 %v6760
        %v7021 = vunpack.c.l.b16 %v6761
        %v7022 = vunpack.c.l.b16 %v6762
        %v7023 = vunpack.c.l.b16 %v6763
        %v7024 = vunpack.c.l.b16 %v6764
        %v7025 = vunpack.c.l.b16 %v6765
        %v7026 = vunpack.c.l.b16 %v6766
        %v7027 = vunpack.c.l.b16 %v6767
        %v7028 = vunpack.c.l.b16 %v6768
        %v7029 = vunpack.c.l.b16 %v6769
        %v7030 = vpack.c.b16 %v6903, %v6902
        %v7031 = vpack.c.b16 %v6905, %v6904
        %v7032 = vpack.c.b16 %v6907, %v6906
        %v7033 = vpack.c.b16 %v6909, %v6908
        %v7034 = vpack.c.b16 %v6911, %v6910
        %v7035 = vpack.c.b16 %v6913, %v6912
        %v7036 = vpack.c.b16 %v6915, %v6914
        %v7037 = vpack.c.b16 %v6917, %v6916
        %v7038 = vpack.c.b16 %v6919, %v6918
        %v7039 = vpack.c.b16 %v6921, %v6920
        %v7040 = vpack.c.b16 %v6923, %v6922
        %v7041 = vpack.c.b16 %v6925, %v6924
        %v7042 = vpack.c.b16 %v6927, %v6926
        %v7043 = vpack.c.b16 %v6929, %v6928
        %v7044 = vpack.c.b16 %v6931, %v6930
        %v7045 = vpack.c.b16 %v6933, %v6932
        %v7046 = vpack.c.b16 %v6935, %v6934
        %v7047 = vpack.c.b16 %v6937, %v6936
        %v7048 = vpack.c.b16 %v6939, %v6938
        %v7049 = vpack.c.b16 %v6941, %v6940
        %v7050 = vpack.c.b16 %v6943, %v6942
        %v7051 = vpack.c.b16 %v6945, %v6944
        %v7052 = vpack.c.b16 %v6947, %v6946
        %v7053 = vpack.c.b16 %v6949, %v6948
        %v7054 = vpack.c.b16 %v6951, %v6950
        %v7055 = vpack.c.b16 %v6953, %v6952
        %v7056 = vpack.c.b16 %v6955, %v6954
        %v7057 = vpack.c.b16 %v6957, %v6956
        %v7058 = vpack.c.b16 %v6959, %v6958
        %v7059 = vpack.c.b16 %v6961, %v6960
        %v7060 = vpack.c.b16 %v6963, %v6962
        %v7061 = vpack.c.b16 %v6965, %v6964
        %v7062 = vpack.c.b16 %v6967, %v6966
        %v7063 = vpack.c.b16 %v6969, %v6968
        %v7064 = vpack.c.b16 %v6971, %v6970
        %v7065 = vpack.c.b16 %v6973, %v6972
        %v7066 = vpack.c.b16 %v6975, %v6974
        %v7067 = vpack.c.b16 %v6977, %v6976
        %v7068 = vpack.c.b16 %v6979, %v6978
        %v7069 = vpack.c.b16 %v6981, %v6980
        %v7070 = vpack.c.b16 %v6983, %v6982
        %v7071 = vpack.c.b16 %v6985, %v6984
        %v7072 = vpack.c.b16 %v6987, %v6986
        %v7073 = vpack.c.b16 %v6989, %v6988
        %v7074 = vpack.c.b16 %v6991, %v6990
        %v7075 = vpack.c.b16 %v6993, %v6992
        %v7076 = vpack.c.b16 %v6995, %v6994
        %v7077 = vpack.c.b16 %v6997, %v6996
        %v7078 = vpack.c.b16 %v6999, %v6998
        %v7079 = vpack.c.b16 %v7001, %v7000
        %v7080 = vpack.c.b16 %v7003, %v7002
        %v7081 = vpack.c.b16 %v7005, %v7004
        %v7082 = vpack.c.b16 %v7007, %v7006
        %v7083 = vpack.c.b16 %v7009, %v7008
        %v7084 = vpack.c.b16 %v7011, %v7010
        %v7085 = vpack.c.b16 %v7013, %v7012
        %v7086 = vpack.c.b16 %v7015, %v7014
        %v7087 = vpack.c.b16 %v7017, %v7016
        %v7088 = vpack.c.b16 %v7019, %v7018
        %v7089 = vpack.c.b16 %v7021, %v7020
        %v7090 = vpack.c.b16 %v7023, %v7022
        %v7091 = vpack.c.b16 %v7025, %v7024
        %v7092 = vpack.c.b16 %v7027, %v7026
        %v7093 = vpack.c.b16 %v7029, %v7028
        %7158 = vmatpush.bf16.msra.mxu0 %v7037
        %7159 = vmatpush.bf16.msra.mxu0 %v7036
        %7160 = vmatpush.bf16.msra.mxu0 %v7035
        %7161 = vmatpush.bf16.msra.mxu0 %v7034
        %7162 = vmatpush.bf16.msra.mxu0 %v7033
        %7163 = vmatpush.bf16.msra.mxu0 %v7032
        %7164 = vmatpush.bf16.msra.mxu0 %v7031
        %7165 = vmatpush.bf16.msra.mxu0 %v7030
        %7166 = vmatmul.bf16.gmra.mxu0 %v4895
        %v7167 = vpop.f32.mrf.mxu0
        %v7168 = vadd.f32 %v6772, %v7167
        %v7169 = vpop.f32.mrf.mxu0
        %v7170 = vadd.f32 %v6772, %v7169
        %7171 = vmatmul.bf16.gmra.mxu0 %v4897
        %v7172 = vpop.f32.mrf.mxu0
        %v7173 = vadd.f32 %v6772, %v7172
        %v7174 = vpop.f32.mrf.mxu0
        %v7175 = vadd.f32 %v6772, %v7174
        %7176 = vmatmul.bf16.gmra.mxu0 %v4899
        %v7177 = vpop.f32.mrf.mxu0
        %v7178 = vadd.f32 %v6772, %v7177
        %v7179 = vpop.f32.mrf.mxu0
        %v7180 = vadd.f32 %v6772, %v7179
        %7181 = vmatmul.bf16.gmra.mxu0 %v4901
        %v7182 = vpop.f32.mrf.mxu0
        %v7183 = vadd.f32 %v6772, %v7182
        %v7184 = vpop.f32.mrf.mxu0
        %v7185 = vadd.f32 %v6772, %v7184
        %7186 = vdwg.mxu0
        %7187 = vmatpush.bf16.msra.mxu0 %v7045
        %7188 = vmatpush.bf16.msra.mxu0 %v7044
        %7189 = vmatpush.bf16.msra.mxu0 %v7043
        %7190 = vmatpush.bf16.msra.mxu0 %v7042
        %7191 = vmatpush.bf16.msra.mxu0 %v7041
        %7192 = vmatpush.bf16.msra.mxu0 %v7040
        %7193 = vmatpush.bf16.msra.mxu0 %v7039
        %7194 = vmatpush.bf16.msra.mxu0 %v7038
        %7195 = vmatmul.bf16.gmra.mxu0 %v4896
        %v7196 = vpop.f32.mrf.mxu0
        %v7197 = vadd.f32 %v7168, %v7196
        %v7198 = vpop.f32.mrf.mxu0
        %v7199 = vadd.f32 %v7170, %v7198
        %7200 = vmatmul.bf16.gmra.mxu0 %v4898
        %v7201 = vpop.f32.mrf.mxu0
        %v7202 = vadd.f32 %v7173, %v7201
        %v7203 = vpop.f32.mrf.mxu0
        %v7204 = vadd.f32 %v7175, %v7203
        %7205 = vmatmul.bf16.gmra.mxu0 %v4900
        %v7206 = vpop.f32.mrf.mxu0
        %v7207 = vadd.f32 %v7178, %v7206
        %v7208 = vpop.f32.mrf.mxu0
        %v7209 = vadd.f32 %v7180, %v7208
        %7210 = vmatmul.bf16.gmra.mxu0 %v4902
        %v7211 = vpop.f32.mrf.mxu0
        %v7212 = vadd.f32 %v7183, %v7211
        %v7213 = vpop.f32.mrf.mxu0
        %v7214 = vadd.f32 %v7185, %v7213
        %7215 = vdwg.mxu0
        %7216 = vmatpush.bf16.msra.mxu0 %v7053
        %7217 = vmatpush.bf16.msra.mxu0 %v7052
        %7218 = vmatpush.bf16.msra.mxu0 %v7051
        %7219 = vmatpush.bf16.msra.mxu0 %v7050
        %7220 = vmatpush.bf16.msra.mxu0 %v7049
        %7221 = vmatpush.bf16.msra.mxu0 %v7048
        %7222 = vmatpush.bf16.msra.mxu0 %v7047
        %7223 = vmatpush.bf16.msra.mxu0 %v7046
        %7224 = vmatmul.bf16.gmra.mxu0 %v4935
        %v7225 = vpop.f32.mrf.mxu0
        %v7226 = vadd.f32 %v7197, %v7225
        %v7227 = vpop.f32.mrf.mxu0
        %v7228 = vadd.f32 %v7199, %v7227
        %7229 = vmatmul.bf16.gmra.mxu0 %v4937
        %v7230 = vpop.f32.mrf.mxu0
        %v7231 = vadd.f32 %v7202, %v7230
        %v7232 = vpop.f32.mrf.mxu0
        %v7233 = vadd.f32 %v7204, %v7232
        %7234 = vmatmul.bf16.gmra.mxu0 %v4939
        %v7235 = vpop.f32.mrf.mxu0
        %v7236 = vadd.f32 %v7207, %v7235
        %v7237 = vpop.f32.mrf.mxu0
        %v7238 = vadd.f32 %v7209, %v7237
        %7239 = vmatmul.bf16.gmra.mxu0 %v4941
        %v7240 = vpop.f32.mrf.mxu0
        %v7241 = vadd.f32 %v7212, %v7240
        %v7242 = vpop.f32.mrf.mxu0
        %v7243 = vadd.f32 %v7214, %v7242
        %7244 = vdwg.mxu0
        %7245 = vmatpush.bf16.msra.mxu0 %v7061
        %7246 = vmatpush.bf16.msra.mxu0 %v7060
        %7247 = vmatpush.bf16.msra.mxu0 %v7059
        %7248 = vmatpush.bf16.msra.mxu0 %v7058
        %7249 = vmatpush.bf16.msra.mxu0 %v7057
        %7250 = vmatpush.bf16.msra.mxu0 %v7056
        %7251 = vmatpush.bf16.msra.mxu0 %v7055
        %7252 = vmatpush.bf16.msra.mxu0 %v7054
        %7253 = vmatmul.bf16.gmra.mxu0 %v4936
        %v7254 = vpop.f32.mrf.mxu0
        %v7255 = vadd.f32 %v7226, %v7254
        %v7256 = vpop.f32.mrf.mxu0
        %v7257 = vadd.f32 %v7228, %v7256
        %7258 = vmatmul.bf16.gmra.mxu0 %v4938
        %v7259 = vpop.f32.mrf.mxu0
        %v7260 = vadd.f32 %v7231, %v7259
        %v7261 = vpop.f32.mrf.mxu0
        %v7262 = vadd.f32 %v7233, %v7261
        %7263 = vmatmul.bf16.gmra.mxu0 %v4940
        %v7264 = vpop.f32.mrf.mxu0
        %v7265 = vadd.f32 %v7236, %v7264
        %v7266 = vpop.f32.mrf.mxu0
        %v7267 = vadd.f32 %v7238, %v7266
        %7268 = vmatmul.bf16.gmra.mxu0 %v4942
        %v7269 = vpop.f32.mrf.mxu0
        %v7270 = vadd.f32 %v7241, %v7269
        %v7271 = vpop.f32.mrf.mxu0
        %v7272 = vadd.f32 %v7243, %v7271
        %7273 = vdwg.mxu0
        %7274 = vmatpush.bf16.msra.mxu0 %v7069
        %7275 = vmatpush.bf16.msra.mxu0 %v7068
        %7276 = vmatpush.bf16.msra.mxu0 %v7067
        %7277 = vmatpush.bf16.msra.mxu0 %v7066
        %7278 = vmatpush.bf16.msra.mxu0 %v7065
        %7279 = vmatpush.bf16.msra.mxu0 %v7064
        %7280 = vmatpush.bf16.msra.mxu0 %v7063
        %7281 = vmatpush.bf16.msra.mxu0 %v7062
        %7282 = vmatmul.bf16.gmra.mxu0 %v6585
        %v7283 = vpop.f32.mrf.mxu0
        %v7284 = vadd.f32 %v7255, %v7283
        %v7285 = vpop.f32.mrf.mxu0
        %v7286 = vadd.f32 %v7257, %v7285
        %7287 = vmatmul.bf16.gmra.mxu0 %v6587
        %v7288 = vpop.f32.mrf.mxu0
        %v7289 = vadd.f32 %v7260, %v7288
        %v7290 = vpop.f32.mrf.mxu0
        %v7291 = vadd.f32 %v7262, %v7290
        %7292 = vmatmul.bf16.gmra.mxu0 %v6589
        %v7293 = vpop.f32.mrf.mxu0
        %v7294 = vadd.f32 %v7265, %v7293
        %v7295 = vpop.f32.mrf.mxu0
        %v7296 = vadd.f32 %v7267, %v7295
        %7297 = vmatmul.bf16.gmra.mxu0 %v6591
        %v7298 = vpop.f32.mrf.mxu0
        %v7299 = vadd.f32 %v7270, %v7298
        %v7300 = vpop.f32.mrf.mxu0
        %v7301 = vadd.f32 %v7272, %v7300
        %7302 = vdwg.mxu0
        %7303 = vmatpush.bf16.msra.mxu0 %v7077
        %7304 = vmatpush.bf16.msra.mxu0 %v7076
        %7305 = vmatpush.bf16.msra.mxu0 %v7075
        %7306 = vmatpush.bf16.msra.mxu0 %v7074
        %7307 = vmatpush.bf16.msra.mxu0 %v7073
        %7308 = vmatpush.bf16.msra.mxu0 %v7072
        %7309 = vmatpush.bf16.msra.mxu0 %v7071
        %7310 = vmatpush.bf16.msra.mxu0 %v7070
        %7311 = vmatmul.bf16.gmra.mxu0 %v6586
        %v7312 = vpop.f32.mrf.mxu0
        %v7313 = vadd.f32 %v7284, %v7312
        %v7314 = vpop.f32.mrf.mxu0
        %v7315 = vadd.f32 %v7286, %v7314
        %7316 = vmatmul.bf16.gmra.mxu0 %v6588
        %v7317 = vpop.f32.mrf.mxu0
        %v7318 = vadd.f32 %v7289, %v7317
        %v7319 = vpop.f32.mrf.mxu0
        %v7320 = vadd.f32 %v7291, %v7319
        %7321 = vmatmul.bf16.gmra.mxu0 %v6590
        %v7322 = vpop.f32.mrf.mxu0
        %v7323 = vadd.f32 %v7294, %v7322
        %v7324 = vpop.f32.mrf.mxu0
        %v7325 = vadd.f32 %v7296, %v7324
        %7326 = vmatmul.bf16.gmra.mxu0 %v6592
        %v7327 = vpop.f32.mrf.mxu0
        %v7328 = vadd.f32 %v7299, %v7327
        %v7329 = vpop.f32.mrf.mxu0
        %v7330 = vadd.f32 %v7301, %v7329
        %7331 = vdwg.mxu0
        %7332 = vmatpush.bf16.msra.mxu0 %v7085
        %7333 = vmatpush.bf16.msra.mxu0 %v7084
        %7334 = vmatpush.bf16.msra.mxu0 %v7083
        %7335 = vmatpush.bf16.msra.mxu0 %v7082
        %7336 = vmatpush.bf16.msra.mxu0 %v7081
        %7337 = vmatpush.bf16.msra.mxu0 %v7080
        %7338 = vmatpush.bf16.msra.mxu0 %v7079
        %7339 = vmatpush.bf16.msra.mxu0 %v7078
        %7340 = vmatmul.bf16.gmra.mxu0 %v6625
        %v7341 = vpop.f32.mrf.mxu0
        %v7342 = vadd.f32 %v7313, %v7341
        %v7343 = vpop.f32.mrf.mxu0
        %v7344 = vadd.f32 %v7315, %v7343
        %7345 = vmatmul.bf16.gmra.mxu0 %v6627
        %v7346 = vpop.f32.mrf.mxu0
        %v7347 = vadd.f32 %v7318, %v7346
        %v7348 = vpop.f32.mrf.mxu0
        %v7349 = vadd.f32 %v7320, %v7348
        %7350 = vmatmul.bf16.gmra.mxu0 %v6629
        %v7351 = vpop.f32.mrf.mxu0
        %v7352 = vadd.f32 %v7323, %v7351
        %v7353 = vpop.f32.mrf.mxu0
        %v7354 = vadd.f32 %v7325, %v7353
        %7355 = vmatmul.bf16.gmra.mxu0 %v6631
        %v7356 = vpop.f32.mrf.mxu0
        %v7357 = vadd.f32 %v7328, %v7356
        %v7358 = vpop.f32.mrf.mxu0
        %v7359 = vadd.f32 %v7330, %v7358
        %7360 = vdwg.mxu0
        %7361 = vmatpush.bf16.msra.mxu0 %v7093
        %7362 = vmatpush.bf16.msra.mxu0 %v7092
        %7363 = vmatpush.bf16.msra.mxu0 %v7091
        %7364 = vmatpush.bf16.msra.mxu0 %v7090
        %7365 = vmatpush.bf16.msra.mxu0 %v7089
        %7366 = vmatpush.bf16.msra.mxu0 %v7088
        %7367 = vmatpush.bf16.msra.mxu0 %v7087
        %7368 = vmatpush.bf16.msra.mxu0 %v7086
        %7369 = vmatmul.bf16.gmra.mxu0 %v6626
        %v7370 = vpop.f32.mrf.mxu0
        %v7371 = vadd.f32 %v7342, %v7370
        %v7372 = vpop.f32.mrf.mxu0
        %v7373 = vadd.f32 %v7344, %v7372
        %7374 = vmatmul.bf16.gmra.mxu0 %v6628
        %v7375 = vpop.f32.mrf.mxu0
        %v7376 = vadd.f32 %v7347, %v7375
        %v7377 = vpop.f32.mrf.mxu0
        %v7378 = vadd.f32 %v7349, %v7377
        %7379 = vmatmul.bf16.gmra.mxu0 %v6630
        %v7380 = vpop.f32.mrf.mxu0
        %v7381 = vadd.f32 %v7352, %v7380
        %v7382 = vpop.f32.mrf.mxu0
        %v7383 = vadd.f32 %v7354, %v7382
        %7384 = vmatmul.bf16.gmra.mxu0 %v6632
        %v7385 = vpop.f32.mrf.mxu0
        %v7386 = vadd.f32 %v7357, %v7385
        %v7387 = vpop.f32.mrf.mxu0
        %v7388 = vadd.f32 %v7359, %v7387
        %7389 = vdwg.mxu0
        %v7390 = vtanh.pop %v7371
        %v7391 = vtanh.pop %v7373
        %v7392 = vtanh.pop %v7376
        %v7393 = vtanh.pop %v7378
        %v7394 = vtanh.pop %v7381
        %v7395 = vtanh.pop %v7383
        %v7396 = vtanh.pop %v7386
        %v7397 = vtanh.pop %v7388
        %s7398 = scalar_lea.vmem %s424, 128
        %7399 = vst [vmem:[%s7398] sm:$0xff] %v7390
        %7400 = vst [vmem:[%s7398 + $0x8] sm:$0xff] %v7391
        %7401 = vst [vmem:[%s7398 + $0x10] sm:$0xff] %v7392
        %7402 = vst [vmem:[%s7398 + $0x18] sm:$0xff] %v7393
        %7403 = vst [vmem:[%s7398 + $0x20] sm:$0xff] %v7394
        %7404 = vst [vmem:[%s7398 + $0x28] sm:$0xff] %v7395
        %7405 = vst [vmem:[%s7398 + $0x30] sm:$0xff] %v7396
        %7406 = vst [vmem:[%s7398 + $0x38] sm:$0xff] %v7397
        %v7415 = vunpack.c.l.b16 %v4783
        %v7416 = vunpack.c.h.b16 %v4783
        %v7417 = vunpack.c.l.b16 %v4784
        %v7418 = vunpack.c.h.b16 %v4784
        %v7419 = vunpack.c.l.b16 %v4785
        %v7420 = vunpack.c.h.b16 %v4785
        %v7421 = vunpack.c.l.b16 %v4786
        %v7422 = vunpack.c.h.b16 %v4786
        %v7423 = vunpack.c.l.b16 %v4787
        %v7424 = vunpack.c.h.b16 %v4787
        %v7425 = vunpack.c.l.b16 %v4788
        %v7426 = vunpack.c.h.b16 %v4788
        %v7427 = vunpack.c.l.b16 %v4789
        %v7428 = vunpack.c.h.b16 %v4789
        %v7429 = vunpack.c.l.b16 %v4790
        %v7430 = vunpack.c.h.b16 %v4790
        %v7431 = vpack.c.b16 %v7417, %v7415
        %v7432 = vpack.c.b16 %v7418, %v7416
        %v7433 = vpack.c.b16 %v7421, %v7419
        %v7434 = vpack.c.b16 %v7422, %v7420
        %v7435 = vpack.c.b16 %v7425, %v7423
        %v7436 = vpack.c.b16 %v7426, %v7424
        %v7437 = vpack.c.b16 %v7429, %v7427
        %v7438 = vpack.c.b16 %v7430, %v7428
        %s7447 = scalar_lea.vmem [#allocation11], 1536
        %v7448 = vld [vmem:[%s7447] sm:$0xf]
        %v7449 = vld [vmem:[%s7447 + $0x4] sm:$0xf]
        %v7450 = vld [vmem:[%s7447 + $0x8] sm:$0xf]
        %v7451 = vld [vmem:[%s7447 + $0xc] sm:$0xf]
        %v7452 = vld [vmem:[%s7447 + $0x10] sm:$0xf]
        %v7453 = vld [vmem:[%s7447 + $0x14] sm:$0xf]
        %v7454 = vld [vmem:[%s7447 + $0x18] sm:$0xf]
        %v7455 = vld [vmem:[%s7447 + $0x1c] sm:$0xf]
        %v7456 = vld [vmem:[%s7447 + $0x20] sm:$0xf]
        %v7457 = vld [vmem:[%s7447 + $0x24] sm:$0xf]
        %v7458 = vld [vmem:[%s7447 + $0x28] sm:$0xf]
        %v7459 = vld [vmem:[%s7447 + $0x2c] sm:$0xf]
        %v7460 = vld [vmem:[%s7447 + $0x30] sm:$0xf]
        %v7461 = vld [vmem:[%s7447 + $0x34] sm:$0xf]
        %v7462 = vld [vmem:[%s7447 + $0x38] sm:$0xf]
        %v7463 = vld [vmem:[%s7447 + $0x3c] sm:$0xf]
        %v7464 = vld [vmem:[%s7447 + $0x40] sm:$0xf]
        %v7465 = vld [vmem:[%s7447 + $0x44] sm:$0xf]
        %v7466 = vld [vmem:[%s7447 + $0x48] sm:$0xf]
        %v7467 = vld [vmem:[%s7447 + $0x4c] sm:$0xf]
        %v7468 = vld [vmem:[%s7447 + $0x50] sm:$0xf]
        %v7469 = vld [vmem:[%s7447 + $0x54] sm:$0xf]
        %v7470 = vld [vmem:[%s7447 + $0x58] sm:$0xf]
        %v7471 = vld [vmem:[%s7447 + $0x5c] sm:$0xf]
        %v7472 = vld [vmem:[%s7447 + $0x60] sm:$0xf]
        %v7473 = vld [vmem:[%s7447 + $0x64] sm:$0xf]
        %v7474 = vld [vmem:[%s7447 + $0x68] sm:$0xf]
        %v7475 = vld [vmem:[%s7447 + $0x6c] sm:$0xf]
        %v7476 = vld [vmem:[%s7447 + $0x70] sm:$0xf]
        %v7477 = vld [vmem:[%s7447 + $0x74] sm:$0xf]
        %v7478 = vld [vmem:[%s7447 + $0x78] sm:$0xf]
        %v7479 = vld [vmem:[%s7447 + $0x7c] sm:$0xf]
        %v7480 = vld [vmem:[%s7447 + $0x80] sm:$0xf]
        %v7481 = vld [vmem:[%s7447 + $0x84] sm:$0xf]
        %v7482 = vld [vmem:[%s7447 + $0x88] sm:$0xf]
        %v7483 = vld [vmem:[%s7447 + $0x8c] sm:$0xf]
        %v7484 = vld [vmem:[%s7447 + $0x90] sm:$0xf]
        %v7485 = vld [vmem:[%s7447 + $0x94] sm:$0xf]
        %v7486 = vld [vmem:[%s7447 + $0x98] sm:$0xf]
        %v7487 = vld [vmem:[%s7447 + $0x9c] sm:$0xf]
        %v7488 = vld [vmem:[%s7447 + $0xa0] sm:$0xf]
        %v7489 = vld [vmem:[%s7447 + $0xa4] sm:$0xf]
        %v7490 = vld [vmem:[%s7447 + $0xa8] sm:$0xf]
        %v7491 = vld [vmem:[%s7447 + $0xac] sm:$0xf]
        %v7492 = vld [vmem:[%s7447 + $0xb0] sm:$0xf]
        %v7493 = vld [vmem:[%s7447 + $0xb4] sm:$0xf]
        %v7494 = vld [vmem:[%s7447 + $0xb8] sm:$0xf]
        %v7495 = vld [vmem:[%s7447 + $0xbc] sm:$0xf]
        %v7496 = vld [vmem:[%s7447 + $0xc0] sm:$0xf]
        %v7497 = vld [vmem:[%s7447 + $0xc4] sm:$0xf]
        %v7498 = vld [vmem:[%s7447 + $0xc8] sm:$0xf]
        %v7499 = vld [vmem:[%s7447 + $0xcc] sm:$0xf]
        %v7500 = vld [vmem:[%s7447 + $0xd0] sm:$0xf]
        %v7501 = vld [vmem:[%s7447 + $0xd4] sm:$0xf]
        %v7502 = vld [vmem:[%s7447 + $0xd8] sm:$0xf]
        %v7503 = vld [vmem:[%s7447 + $0xdc] sm:$0xf]
        %v7504 = vld [vmem:[%s7447 + $0xe0] sm:$0xf]
        %v7505 = vld [vmem:[%s7447 + $0xe4] sm:$0xf]
        %v7506 = vld [vmem:[%s7447 + $0xe8] sm:$0xf]
        %v7507 = vld [vmem:[%s7447 + $0xec] sm:$0xf]
        %v7508 = vld [vmem:[%s7447 + $0xf0] sm:$0xf]
        %v7509 = vld [vmem:[%s7447 + $0xf4] sm:$0xf]
        %v7510 = vld [vmem:[%s7447 + $0xf8] sm:$0xf]
        %v7511 = vld [vmem:[%s7447 + $0xfc] sm:$0xf]
        %v7512 = vld [vmem:[%s7447 + $0x100] sm:$0xf]
        %v7513 = vld [vmem:[%s7447 + $0x104] sm:$0xf]
        %v7514 = vld [vmem:[%s7447 + $0x108] sm:$0xf]
        %v7515 = vld [vmem:[%s7447 + $0x10c] sm:$0xf]
        %v7516 = vld [vmem:[%s7447 + $0x110] sm:$0xf]
        %v7517 = vld [vmem:[%s7447 + $0x114] sm:$0xf]
        %v7518 = vld [vmem:[%s7447 + $0x118] sm:$0xf]
        %v7519 = vld [vmem:[%s7447 + $0x11c] sm:$0xf]
        %v7520 = vld [vmem:[%s7447 + $0x120] sm:$0xf]
        %v7521 = vld [vmem:[%s7447 + $0x124] sm:$0xf]
        %v7522 = vld [vmem:[%s7447 + $0x128] sm:$0xf]
        %v7523 = vld [vmem:[%s7447 + $0x12c] sm:$0xf]
        %v7524 = vld [vmem:[%s7447 + $0x130] sm:$0xf]
        %v7525 = vld [vmem:[%s7447 + $0x134] sm:$0xf]
        %v7526 = vld [vmem:[%s7447 + $0x138] sm:$0xf]
        %v7527 = vld [vmem:[%s7447 + $0x13c] sm:$0xf]
        %v7528 = vld [vmem:[%s7447 + $0x140] sm:$0xf]
        %v7529 = vld [vmem:[%s7447 + $0x144] sm:$0xf]
        %v7530 = vld [vmem:[%s7447 + $0x148] sm:$0xf]
        %v7531 = vld [vmem:[%s7447 + $0x14c] sm:$0xf]
        %v7532 = vld [vmem:[%s7447 + $0x150] sm:$0xf]
        %v7533 = vld [vmem:[%s7447 + $0x154] sm:$0xf]
        %v7534 = vld [vmem:[%s7447 + $0x158] sm:$0xf]
        %v7535 = vld [vmem:[%s7447 + $0x15c] sm:$0xf]
        %v7536 = vld [vmem:[%s7447 + $0x160] sm:$0xf]
        %v7537 = vld [vmem:[%s7447 + $0x164] sm:$0xf]
        %v7538 = vld [vmem:[%s7447 + $0x168] sm:$0xf]
        %v7539 = vld [vmem:[%s7447 + $0x16c] sm:$0xf]
        %v7540 = vld [vmem:[%s7447 + $0x170] sm:$0xf]
        %v7541 = vld [vmem:[%s7447 + $0x174] sm:$0xf]
        %v7542 = vld [vmem:[%s7447 + $0x178] sm:$0xf]
        %v7543 = vld [vmem:[%s7447 + $0x17c] sm:$0xf]
        %v7544 = vld [vmem:[%s7447 + $0x180] sm:$0xf]
        %v7545 = vld [vmem:[%s7447 + $0x184] sm:$0xf]
        %v7546 = vld [vmem:[%s7447 + $0x188] sm:$0xf]
        %v7547 = vld [vmem:[%s7447 + $0x18c] sm:$0xf]
        %v7548 = vld [vmem:[%s7447 + $0x190] sm:$0xf]
        %v7549 = vld [vmem:[%s7447 + $0x194] sm:$0xf]
        %v7550 = vld [vmem:[%s7447 + $0x198] sm:$0xf]
        %v7551 = vld [vmem:[%s7447 + $0x19c] sm:$0xf]
        %v7552 = vld [vmem:[%s7447 + $0x1a0] sm:$0xf]
        %v7553 = vld [vmem:[%s7447 + $0x1a4] sm:$0xf]
        %v7554 = vld [vmem:[%s7447 + $0x1a8] sm:$0xf]
        %v7555 = vld [vmem:[%s7447 + $0x1ac] sm:$0xf]
        %v7556 = vld [vmem:[%s7447 + $0x1b0] sm:$0xf]
        %v7557 = vld [vmem:[%s7447 + $0x1b4] sm:$0xf]
        %v7558 = vld [vmem:[%s7447 + $0x1b8] sm:$0xf]
        %v7559 = vld [vmem:[%s7447 + $0x1bc] sm:$0xf]
        %v7560 = vld [vmem:[%s7447 + $0x1c0] sm:$0xf]
        %v7561 = vld [vmem:[%s7447 + $0x1c4] sm:$0xf]
        %v7562 = vld [vmem:[%s7447 + $0x1c8] sm:$0xf]
        %v7563 = vld [vmem:[%s7447 + $0x1cc] sm:$0xf]
        %v7564 = vld [vmem:[%s7447 + $0x1d0] sm:$0xf]
        %v7565 = vld [vmem:[%s7447 + $0x1d4] sm:$0xf]
        %v7566 = vld [vmem:[%s7447 + $0x1d8] sm:$0xf]
        %v7567 = vld [vmem:[%s7447 + $0x1dc] sm:$0xf]
        %v7568 = vld [vmem:[%s7447 + $0x1e0] sm:$0xf]
        %v7569 = vld [vmem:[%s7447 + $0x1e4] sm:$0xf]
        %v7570 = vld [vmem:[%s7447 + $0x1e8] sm:$0xf]
        %v7571 = vld [vmem:[%s7447 + $0x1ec] sm:$0xf]
        %v7572 = vld [vmem:[%s7447 + $0x1f0] sm:$0xf]
        %v7573 = vld [vmem:[%s7447 + $0x1f4] sm:$0xf]
        %v7574 = vld [vmem:[%s7447 + $0x1f8] sm:$0xf]
        %v7575 = vld [vmem:[%s7447 + $0x1fc] sm:$0xf]
        %v7576 = vld [vmem:[%s8] sm:$0x1]
        %v7578 = vperm.slane %v7576, 0
        %v7708 = vunpack.c.l.b16 %v7448
        %v7709 = vunpack.c.l.b16 %v7449
        %v7710 = vunpack.c.l.b16 %v7450
        %v7711 = vunpack.c.l.b16 %v7451
        %v7712 = vunpack.c.l.b16 %v7452
        %v7713 = vunpack.c.l.b16 %v7453
        %v7714 = vunpack.c.l.b16 %v7454
        %v7715 = vunpack.c.l.b16 %v7455
        %v7716 = vunpack.c.l.b16 %v7456
        %v7717 = vunpack.c.l.b16 %v7457
        %v7718 = vunpack.c.l.b16 %v7458
        %v7719 = vunpack.c.l.b16 %v7459
        %v7720 = vunpack.c.l.b16 %v7460
        %v7721 = vunpack.c.l.b16 %v7461
        %v7722 = vunpack.c.l.b16 %v7462
        %v7723 = vunpack.c.l.b16 %v7463
        %v7724 = vunpack.c.l.b16 %v7464
        %v7725 = vunpack.c.l.b16 %v7465
        %v7726 = vunpack.c.l.b16 %v7466
        %v7727 = vunpack.c.l.b16 %v7467
        %v7728 = vunpack.c.l.b16 %v7468
        %v7729 = vunpack.c.l.b16 %v7469
        %v7730 = vunpack.c.l.b16 %v7470
        %v7731 = vunpack.c.l.b16 %v7471
        %v7732 = vunpack.c.l.b16 %v7472
        %v7733 = vunpack.c.l.b16 %v7473
        %v7734 = vunpack.c.l.b16 %v7474
        %v7735 = vunpack.c.l.b16 %v7475
        %v7736 = vunpack.c.l.b16 %v7476
        %v7737 = vunpack.c.l.b16 %v7477
        %v7738 = vunpack.c.l.b16 %v7478
        %v7739 = vunpack.c.l.b16 %v7479
        %v7740 = vunpack.c.l.b16 %v7480
        %v7741 = vunpack.c.l.b16 %v7481
        %v7742 = vunpack.c.l.b16 %v7482
        %v7743 = vunpack.c.l.b16 %v7483
        %v7744 = vunpack.c.l.b16 %v7484
        %v7745 = vunpack.c.l.b16 %v7485
        %v7746 = vunpack.c.l.b16 %v7486
        %v7747 = vunpack.c.l.b16 %v7487
        %v7748 = vunpack.c.l.b16 %v7488
        %v7749 = vunpack.c.l.b16 %v7489
        %v7750 = vunpack.c.l.b16 %v7490
        %v7751 = vunpack.c.l.b16 %v7491
        %v7752 = vunpack.c.l.b16 %v7492
        %v7753 = vunpack.c.l.b16 %v7493
        %v7754 = vunpack.c.l.b16 %v7494
        %v7755 = vunpack.c.l.b16 %v7495
        %v7756 = vunpack.c.l.b16 %v7496
        %v7757 = vunpack.c.l.b16 %v7497
        %v7758 = vunpack.c.l.b16 %v7498
        %v7759 = vunpack.c.l.b16 %v7499
        %v7760 = vunpack.c.l.b16 %v7500
        %v7761 = vunpack.c.l.b16 %v7501
        %v7762 = vunpack.c.l.b16 %v7502
        %v7763 = vunpack.c.l.b16 %v7503
        %v7764 = vunpack.c.l.b16 %v7504
        %v7765 = vunpack.c.l.b16 %v7505
        %v7766 = vunpack.c.l.b16 %v7506
        %v7767 = vunpack.c.l.b16 %v7507
        %v7768 = vunpack.c.l.b16 %v7508
        %v7769 = vunpack.c.l.b16 %v7509
        %v7770 = vunpack.c.l.b16 %v7510
        %v7771 = vunpack.c.l.b16 %v7511
        %v7772 = vunpack.c.l.b16 %v7512
        %v7773 = vunpack.c.l.b16 %v7513
        %v7774 = vunpack.c.l.b16 %v7514
        %v7775 = vunpack.c.l.b16 %v7515
        %v7776 = vunpack.c.l.b16 %v7516
        %v7777 = vunpack.c.l.b16 %v7517
        %v7778 = vunpack.c.l.b16 %v7518
        %v7779 = vunpack.c.l.b16 %v7519
        %v7780 = vunpack.c.l.b16 %v7520
        %v7781 = vunpack.c.l.b16 %v7521
        %v7782 = vunpack.c.l.b16 %v7522
        %v7783 = vunpack.c.l.b16 %v7523
        %v7784 = vunpack.c.l.b16 %v7524
        %v7785 = vunpack.c.l.b16 %v7525
        %v7786 = vunpack.c.l.b16 %v7526
        %v7787 = vunpack.c.l.b16 %v7527
        %v7788 = vunpack.c.l.b16 %v7528
        %v7789 = vunpack.c.l.b16 %v7529
        %v7790 = vunpack.c.l.b16 %v7530
        %v7791 = vunpack.c.l.b16 %v7531
        %v7792 = vunpack.c.l.b16 %v7532
        %v7793 = vunpack.c.l.b16 %v7533
        %v7794 = vunpack.c.l.b16 %v7534
        %v7795 = vunpack.c.l.b16 %v7535
        %v7796 = vunpack.c.l.b16 %v7536
        %v7797 = vunpack.c.l.b16 %v7537
        %v7798 = vunpack.c.l.b16 %v7538
        %v7799 = vunpack.c.l.b16 %v7539
        %v7800 = vunpack.c.l.b16 %v7540
        %v7801 = vunpack.c.l.b16 %v7541
        %v7802 = vunpack.c.l.b16 %v7542
        %v7803 = vunpack.c.l.b16 %v7543
        %v7804 = vunpack.c.l.b16 %v7544
        %v7805 = vunpack.c.l.b16 %v7545
        %v7806 = vunpack.c.l.b16 %v7546
        %v7807 = vunpack.c.l.b16 %v7547
        %v7808 = vunpack.c.l.b16 %v7548
        %v7809 = vunpack.c.l.b16 %v7549
        %v7810 = vunpack.c.l.b16 %v7550
        %v7811 = vunpack.c.l.b16 %v7551
        %v7812 = vunpack.c.l.b16 %v7552
        %v7813 = vunpack.c.l.b16 %v7553
        %v7814 = vunpack.c.l.b16 %v7554
        %v7815 = vunpack.c.l.b16 %v7555
        %v7816 = vunpack.c.l.b16 %v7556
        %v7817 = vunpack.c.l.b16 %v7557
        %v7818 = vunpack.c.l.b16 %v7558
        %v7819 = vunpack.c.l.b16 %v7559
        %v7820 = vunpack.c.l.b16 %v7560
        %v7821 = vunpack.c.l.b16 %v7561
        %v7822 = vunpack.c.l.b16 %v7562
        %v7823 = vunpack.c.l.b16 %v7563
        %v7824 = vunpack.c.l.b16 %v7564
        %v7825 = vunpack.c.l.b16 %v7565
        %v7826 = vunpack.c.l.b16 %v7566
        %v7827 = vunpack.c.l.b16 %v7567
        %v7828 = vunpack.c.l.b16 %v7568
        %v7829 = vunpack.c.l.b16 %v7569
        %v7830 = vunpack.c.l.b16 %v7570
        %v7831 = vunpack.c.l.b16 %v7571
        %v7832 = vunpack.c.l.b16 %v7572
        %v7833 = vunpack.c.l.b16 %v7573
        %v7834 = vunpack.c.l.b16 %v7574
        %v7835 = vunpack.c.l.b16 %v7575
        %v7836 = vpack.c.b16 %v7709, %v7708
        %v7837 = vpack.c.b16 %v7711, %v7710
        %v7838 = vpack.c.b16 %v7713, %v7712
        %v7839 = vpack.c.b16 %v7715, %v7714
        %v7840 = vpack.c.b16 %v7717, %v7716
        %v7841 = vpack.c.b16 %v7719, %v7718
        %v7842 = vpack.c.b16 %v7721, %v7720
        %v7843 = vpack.c.b16 %v7723, %v7722
        %v7844 = vpack.c.b16 %v7725, %v7724
        %v7845 = vpack.c.b16 %v7727, %v7726
        %v7846 = vpack.c.b16 %v7729, %v7728
        %v7847 = vpack.c.b16 %v7731, %v7730
        %v7848 = vpack.c.b16 %v7733, %v7732
        %v7849 = vpack.c.b16 %v7735, %v7734
        %v7850 = vpack.c.b16 %v7737, %v7736
        %v7851 = vpack.c.b16 %v7739, %v7738
        %v7852 = vpack.c.b16 %v7741, %v7740
        %v7853 = vpack.c.b16 %v7743, %v7742
        %v7854 = vpack.c.b16 %v7745, %v7744
        %v7855 = vpack.c.b16 %v7747, %v7746
        %v7856 = vpack.c.b16 %v7749, %v7748
        %v7857 = vpack.c.b16 %v7751, %v7750
        %v7858 = vpack.c.b16 %v7753, %v7752
        %v7859 = vpack.c.b16 %v7755, %v7754
        %v7860 = vpack.c.b16 %v7757, %v7756
        %v7861 = vpack.c.b16 %v7759, %v7758
        %v7862 = vpack.c.b16 %v7761, %v7760
        %v7863 = vpack.c.b16 %v7763, %v7762
        %v7864 = vpack.c.b16 %v7765, %v7764
        %v7865 = vpack.c.b16 %v7767, %v7766
        %v7866 = vpack.c.b16 %v7769, %v7768
        %v7867 = vpack.c.b16 %v7771, %v7770
        %v7868 = vpack.c.b16 %v7773, %v7772
        %v7869 = vpack.c.b16 %v7775, %v7774
        %v7870 = vpack.c.b16 %v7777, %v7776
        %v7871 = vpack.c.b16 %v7779, %v7778
        %v7872 = vpack.c.b16 %v7781, %v7780
        %v7873 = vpack.c.b16 %v7783, %v7782
        %v7874 = vpack.c.b16 %v7785, %v7784
        %v7875 = vpack.c.b16 %v7787, %v7786
        %v7876 = vpack.c.b16 %v7789, %v7788
        %v7877 = vpack.c.b16 %v7791, %v7790
        %v7878 = vpack.c.b16 %v7793, %v7792
        %v7879 = vpack.c.b16 %v7795, %v7794
        %v7880 = vpack.c.b16 %v7797, %v7796
        %v7881 = vpack.c.b16 %v7799, %v7798
        %v7882 = vpack.c.b16 %v7801, %v7800
        %v7883 = vpack.c.b16 %v7803, %v7802
        %v7884 = vpack.c.b16 %v7805, %v7804
        %v7885 = vpack.c.b16 %v7807, %v7806
        %v7886 = vpack.c.b16 %v7809, %v7808
        %v7887 = vpack.c.b16 %v7811, %v7810
        %v7888 = vpack.c.b16 %v7813, %v7812
        %v7889 = vpack.c.b16 %v7815, %v7814
        %v7890 = vpack.c.b16 %v7817, %v7816
        %v7891 = vpack.c.b16 %v7819, %v7818
        %v7892 = vpack.c.b16 %v7821, %v7820
        %v7893 = vpack.c.b16 %v7823, %v7822
        %v7894 = vpack.c.b16 %v7825, %v7824
        %v7895 = vpack.c.b16 %v7827, %v7826
        %v7896 = vpack.c.b16 %v7829, %v7828
        %v7897 = vpack.c.b16 %v7831, %v7830
        %v7898 = vpack.c.b16 %v7833, %v7832
        %v7899 = vpack.c.b16 %v7835, %v7834
        %7964 = vmatpush.bf16.msra.mxu0 %v7843
        %7965 = vmatpush.bf16.msra.mxu0 %v7842
        %7966 = vmatpush.bf16.msra.mxu0 %v7841
        %7967 = vmatpush.bf16.msra.mxu0 %v7840
        %7968 = vmatpush.bf16.msra.mxu0 %v7839
        %7969 = vmatpush.bf16.msra.mxu0 %v7838
        %7970 = vmatpush.bf16.msra.mxu0 %v7837
        %7971 = vmatpush.bf16.msra.mxu0 %v7836
        %7972 = vmatmul.bf16.gmra.mxu0 %v4935
        %v7973 = vpop.f32.mrf.mxu0
        %v7974 = vadd.f32 %v7578, %v7973
        %v7975 = vpop.f32.mrf.mxu0
        %v7976 = vadd.f32 %v7578, %v7975
        %7977 = vmatmul.bf16.gmra.mxu0 %v4937
        %v7978 = vpop.f32.mrf.mxu0
        %v7979 = vadd.f32 %v7578, %v7978
        %v7980 = vpop.f32.mrf.mxu0
        %v7981 = vadd.f32 %v7578, %v7980
        %7982 = vmatmul.bf16.gmra.mxu0 %v4939
        %v7983 = vpop.f32.mrf.mxu0
        %v7984 = vadd.f32 %v7578, %v7983
        %v7985 = vpop.f32.mrf.mxu0
        %v7986 = vadd.f32 %v7578, %v7985
        %7987 = vmatmul.bf16.gmra.mxu0 %v4941
        %v7988 = vpop.f32.mrf.mxu0
        %v7989 = vadd.f32 %v7578, %v7988
        %v7990 = vpop.f32.mrf.mxu0
        %v7991 = vadd.f32 %v7578, %v7990
        %7992 = vdwg.mxu0
        %7993 = vmatpush.bf16.msra.mxu0 %v7851
        %7994 = vmatpush.bf16.msra.mxu0 %v7850
        %7995 = vmatpush.bf16.msra.mxu0 %v7849
        %7996 = vmatpush.bf16.msra.mxu0 %v7848
        %7997 = vmatpush.bf16.msra.mxu0 %v7847
        %7998 = vmatpush.bf16.msra.mxu0 %v7846
        %7999 = vmatpush.bf16.msra.mxu0 %v7845
        %8000 = vmatpush.bf16.msra.mxu0 %v7844
        %8001 = vmatmul.bf16.gmra.mxu0 %v4936
        %v8002 = vpop.f32.mrf.mxu0
        %v8003 = vadd.f32 %v7974, %v8002
        %v8004 = vpop.f32.mrf.mxu0
        %v8005 = vadd.f32 %v7976, %v8004
        %8006 = vmatmul.bf16.gmra.mxu0 %v4938
        %v8007 = vpop.f32.mrf.mxu0
        %v8008 = vadd.f32 %v7979, %v8007
        %v8009 = vpop.f32.mrf.mxu0
        %v8010 = vadd.f32 %v7981, %v8009
        %8011 = vmatmul.bf16.gmra.mxu0 %v4940
        %v8012 = vpop.f32.mrf.mxu0
        %v8013 = vadd.f32 %v7984, %v8012
        %v8014 = vpop.f32.mrf.mxu0
        %v8015 = vadd.f32 %v7986, %v8014
        %8016 = vmatmul.bf16.gmra.mxu0 %v4942
        %v8017 = vpop.f32.mrf.mxu0
        %v8018 = vadd.f32 %v7989, %v8017
        %v8019 = vpop.f32.mrf.mxu0
        %v8020 = vadd.f32 %v7991, %v8019
        %8021 = vdwg.mxu0
        %8022 = vmatpush.bf16.msra.mxu0 %v7859
        %8023 = vmatpush.bf16.msra.mxu0 %v7858
        %8024 = vmatpush.bf16.msra.mxu0 %v7857
        %8025 = vmatpush.bf16.msra.mxu0 %v7856
        %8026 = vmatpush.bf16.msra.mxu0 %v7855
        %8027 = vmatpush.bf16.msra.mxu0 %v7854
        %8028 = vmatpush.bf16.msra.mxu0 %v7853
        %8029 = vmatpush.bf16.msra.mxu0 %v7852
        %8030 = vmatmul.bf16.gmra.mxu0 %v5779
        %v8031 = vpop.f32.mrf.mxu0
        %v8032 = vadd.f32 %v8003, %v8031
        %v8033 = vpop.f32.mrf.mxu0
        %v8034 = vadd.f32 %v8005, %v8033
        %8035 = vmatmul.bf16.gmra.mxu0 %v5781
        %v8036 = vpop.f32.mrf.mxu0
        %v8037 = vadd.f32 %v8008, %v8036
        %v8038 = vpop.f32.mrf.mxu0
        %v8039 = vadd.f32 %v8010, %v8038
        %8040 = vmatmul.bf16.gmra.mxu0 %v5783
        %v8041 = vpop.f32.mrf.mxu0
        %v8042 = vadd.f32 %v8013, %v8041
        %v8043 = vpop.f32.mrf.mxu0
        %v8044 = vadd.f32 %v8015, %v8043
        %8045 = vmatmul.bf16.gmra.mxu0 %v5785
        %v8046 = vpop.f32.mrf.mxu0
        %v8047 = vadd.f32 %v8018, %v8046
        %v8048 = vpop.f32.mrf.mxu0
        %v8049 = vadd.f32 %v8020, %v8048
        %8050 = vdwg.mxu0
        %8051 = vmatpush.bf16.msra.mxu0 %v7867
        %8052 = vmatpush.bf16.msra.mxu0 %v7866
        %8053 = vmatpush.bf16.msra.mxu0 %v7865
        %8054 = vmatpush.bf16.msra.mxu0 %v7864
        %8055 = vmatpush.bf16.msra.mxu0 %v7863
        %8056 = vmatpush.bf16.msra.mxu0 %v7862
        %8057 = vmatpush.bf16.msra.mxu0 %v7861
        %8058 = vmatpush.bf16.msra.mxu0 %v7860
        %8059 = vmatmul.bf16.gmra.mxu0 %v5780
        %v8060 = vpop.f32.mrf.mxu0
        %v8061 = vadd.f32 %v8032, %v8060
        %v8062 = vpop.f32.mrf.mxu0
        %v8063 = vadd.f32 %v8034, %v8062
        %8064 = vmatmul.bf16.gmra.mxu0 %v5782
        %v8065 = vpop.f32.mrf.mxu0
        %v8066 = vadd.f32 %v8037, %v8065
        %v8067 = vpop.f32.mrf.mxu0
        %v8068 = vadd.f32 %v8039, %v8067
        %8069 = vmatmul.bf16.gmra.mxu0 %v5784
        %v8070 = vpop.f32.mrf.mxu0
        %v8071 = vadd.f32 %v8042, %v8070
        %v8072 = vpop.f32.mrf.mxu0
        %v8073 = vadd.f32 %v8044, %v8072
        %8074 = vmatmul.bf16.gmra.mxu0 %v5786
        %v8075 = vpop.f32.mrf.mxu0
        %v8076 = vadd.f32 %v8047, %v8075
        %v8077 = vpop.f32.mrf.mxu0
        %v8078 = vadd.f32 %v8049, %v8077
        %8079 = vdwg.mxu0
        %8080 = vmatpush.bf16.msra.mxu0 %v7875
        %8081 = vmatpush.bf16.msra.mxu0 %v7874
        %8082 = vmatpush.bf16.msra.mxu0 %v7873
        %8083 = vmatpush.bf16.msra.mxu0 %v7872
        %8084 = vmatpush.bf16.msra.mxu0 %v7871
        %8085 = vmatpush.bf16.msra.mxu0 %v7870
        %8086 = vmatpush.bf16.msra.mxu0 %v7869
        %8087 = vmatpush.bf16.msra.mxu0 %v7868
        %8088 = vmatmul.bf16.gmra.mxu0 %v6625
        %v8089 = vpop.f32.mrf.mxu0
        %v8090 = vadd.f32 %v8061, %v8089
        %v8091 = vpop.f32.mrf.mxu0
        %v8092 = vadd.f32 %v8063, %v8091
        %8093 = vmatmul.bf16.gmra.mxu0 %v6627
        %v8094 = vpop.f32.mrf.mxu0
        %v8095 = vadd.f32 %v8066, %v8094
        %v8096 = vpop.f32.mrf.mxu0
        %v8097 = vadd.f32 %v8068, %v8096
        %8098 = vmatmul.bf16.gmra.mxu0 %v6629
        %v8099 = vpop.f32.mrf.mxu0
        %v8100 = vadd.f32 %v8071, %v8099
        %v8101 = vpop.f32.mrf.mxu0
        %v8102 = vadd.f32 %v8073, %v8101
        %8103 = vmatmul.bf16.gmra.mxu0 %v6631
        %v8104 = vpop.f32.mrf.mxu0
        %v8105 = vadd.f32 %v8076, %v8104
        %v8106 = vpop.f32.mrf.mxu0
        %v8107 = vadd.f32 %v8078, %v8106
        %8108 = vdwg.mxu0
        %8109 = vmatpush.bf16.msra.mxu0 %v7883
        %8110 = vmatpush.bf16.msra.mxu0 %v7882
        %8111 = vmatpush.bf16.msra.mxu0 %v7881
        %8112 = vmatpush.bf16.msra.mxu0 %v7880
        %8113 = vmatpush.bf16.msra.mxu0 %v7879
        %8114 = vmatpush.bf16.msra.mxu0 %v7878
        %8115 = vmatpush.bf16.msra.mxu0 %v7877
        %8116 = vmatpush.bf16.msra.mxu0 %v7876
        %8117 = vmatmul.bf16.gmra.mxu0 %v6626
        %v8118 = vpop.f32.mrf.mxu0
        %v8119 = vadd.f32 %v8090, %v8118
        %v8120 = vpop.f32.mrf.mxu0
        %v8121 = vadd.f32 %v8092, %v8120
        %8122 = vmatmul.bf16.gmra.mxu0 %v6628
        %v8123 = vpop.f32.mrf.mxu0
        %v8124 = vadd.f32 %v8095, %v8123
        %v8125 = vpop.f32.mrf.mxu0
        %v8126 = vadd.f32 %v8097, %v8125
        %8127 = vmatmul.bf16.gmra.mxu0 %v6630
        %v8128 = vpop.f32.mrf.mxu0
        %v8129 = vadd.f32 %v8100, %v8128
        %v8130 = vpop.f32.mrf.mxu0
        %v8131 = vadd.f32 %v8102, %v8130
        %8132 = vmatmul.bf16.gmra.mxu0 %v6632
        %v8133 = vpop.f32.mrf.mxu0
        %v8134 = vadd.f32 %v8105, %v8133
        %v8135 = vpop.f32.mrf.mxu0
        %v8136 = vadd.f32 %v8107, %v8135
        %8137 = vdwg.mxu0
        %8138 = vmatpush.bf16.msra.mxu0 %v7891
        %8139 = vmatpush.bf16.msra.mxu0 %v7890
        %8140 = vmatpush.bf16.msra.mxu0 %v7889
        %8141 = vmatpush.bf16.msra.mxu0 %v7888
        %8142 = vmatpush.bf16.msra.mxu0 %v7887
        %8143 = vmatpush.bf16.msra.mxu0 %v7886
        %8144 = vmatpush.bf16.msra.mxu0 %v7885
        %8145 = vmatpush.bf16.msra.mxu0 %v7884
        %8146 = vmatmul.bf16.gmra.mxu0 %v7431
        %v8147 = vpop.f32.mrf.mxu0
        %v8148 = vadd.f32 %v8119, %v8147
        %v8149 = vpop.f32.mrf.mxu0
        %v8150 = vadd.f32 %v8121, %v8149
        %8151 = vmatmul.bf16.gmra.mxu0 %v7433
        %v8152 = vpop.f32.mrf.mxu0
        %v8153 = vadd.f32 %v8124, %v8152
        %v8154 = vpop.f32.mrf.mxu0
        %v8155 = vadd.f32 %v8126, %v8154
        %8156 = vmatmul.bf16.gmra.mxu0 %v7435
        %v8157 = vpop.f32.mrf.mxu0
        %v8158 = vadd.f32 %v8129, %v8157
        %v8159 = vpop.f32.mrf.mxu0
        %v8160 = vadd.f32 %v8131, %v8159
        %8161 = vmatmul.bf16.gmra.mxu0 %v7437
        %v8162 = vpop.f32.mrf.mxu0
        %v8163 = vadd.f32 %v8134, %v8162
        %v8164 = vpop.f32.mrf.mxu0
        %v8165 = vadd.f32 %v8136, %v8164
        %8166 = vdwg.mxu0
        %8167 = vmatpush.bf16.msra.mxu0 %v7899
        %8168 = vmatpush.bf16.msra.mxu0 %v7898
        %8169 = vmatpush.bf16.msra.mxu0 %v7897
        %8170 = vmatpush.bf16.msra.mxu0 %v7896
        %8171 = vmatpush.bf16.msra.mxu0 %v7895
        %8172 = vmatpush.bf16.msra.mxu0 %v7894
        %8173 = vmatpush.bf16.msra.mxu0 %v7893
        %8174 = vmatpush.bf16.msra.mxu0 %v7892
        %8175 = vmatmul.bf16.gmra.mxu0 %v7432
        %v8176 = vpop.f32.mrf.mxu0
        %v8177 = vadd.f32 %v8148, %v8176
        %v8178 = vpop.f32.mrf.mxu0
        %v8179 = vadd.f32 %v8150, %v8178
        %8180 = vmatmul.bf16.gmra.mxu0 %v7434
        %v8181 = vpop.f32.mrf.mxu0
        %v8182 = vadd.f32 %v8153, %v8181
        %v8183 = vpop.f32.mrf.mxu0
        %v8184 = vadd.f32 %v8155, %v8183
        %8185 = vmatmul.bf16.gmra.mxu0 %v7436
        %v8186 = vpop.f32.mrf.mxu0
        %v8187 = vadd.f32 %v8158, %v8186
        %v8188 = vpop.f32.mrf.mxu0
        %v8189 = vadd.f32 %v8160, %v8188
        %8190 = vmatmul.bf16.gmra.mxu0 %v7438
        %v8191 = vpop.f32.mrf.mxu0
        %v8192 = vadd.f32 %v8163, %v8191
        %v8193 = vpop.f32.mrf.mxu0
        %v8194 = vadd.f32 %v8165, %v8193
        %8195 = vdwg.mxu0
        %v8196 = vtanh.pop %v8177
        %v8197 = vtanh.pop %v8179
        %v8198 = vtanh.pop %v8182
        %v8199 = vtanh.pop %v8184
        %v8200 = vtanh.pop %v8187
        %v8201 = vtanh.pop %v8189
        %v8202 = vtanh.pop %v8192
        %v8203 = vtanh.pop %v8194
        %s8204 = scalar_lea.vmem %s424, 192
        %8205 = vst [vmem:[%s8204] sm:$0xff] %v8196
        %8206 = vst [vmem:[%s8204 + $0x8] sm:$0xff] %v8197
        %8207 = vst [vmem:[%s8204 + $0x10] sm:$0xff] %v8198
        %8208 = vst [vmem:[%s8204 + $0x18] sm:$0xff] %v8199
        %8209 = vst [vmem:[%s8204 + $0x20] sm:$0xff] %v8200
        %8210 = vst [vmem:[%s8204 + $0x28] sm:$0xff] %v8201
        %8211 = vst [vmem:[%s8204 + $0x30] sm:$0xff] %v8202
        %8212 = vst [vmem:[%s8204 + $0x38] sm:$0xff] %v8203
        %p8213 = scmp.lt.s32.totalorder %s24, 1
        %s8214 = scalar_select %p8213, %s24, 1
        %s8215 = smul.addr %s8214, 32
        %s8216 = smul.addr %s8215, 8
        %s8217 = scalar_lea.vmem %s9, %s8216
        // Predicated region
        $region81: #{improved_gan_forward.1} parent=55 // pred_check
          %p8218 = pneg %p236
        $region82: #{improved_gan_forward.1} parent=55 // pred_check_branch
          %8220 = sbr.rel (%p8218) target = $region84
        $region83: #{improved_gan_forward.1} parent=55 // pred_region
          _
        $region84: #{improved_gan_forward.1} parent=55 // pred_fallthru
          _
      $region56: #{improved_gan_forward.1} parent=5 // pred_fallthru
        _
      %p8221 = scmp.le.s32.totalorder 2, %s19
      // Predicated region
      $region85: #{improved_gan_forward.1} parent=5 // pred_check
        %p8222 = pneg %p8221
      $region86: #{improved_gan_forward.1} parent=5 // pred_check_branch
        %8224 = sbr.rel (%p8222) target = $region88
      $region87: #{improved_gan_forward.1} parent=5 // pred_region
        %s8225 = ssub.s32 %s19, 2
        // Predicated region
        $region89: #{improved_gan_forward.1} parent=87 // pred_check
          %p8226 = pneg %p242
        $region90: #{improved_gan_forward.1} parent=87 // pred_check_branch
          %8228 = sbr.rel (%p8226) target = $region92
        $region91: #{improved_gan_forward.1} parent=87 // pred_region
          %p8229 = scmp.lt.s32.totalorder %s25, 1
          %s8230 = scalar_select %p8229, %s25, 1
          %s8231 = smul.addr %s8230, 32
          %s8232 = smul.addr %s8231, 8
          %s8233 = scalar_lea.vmem %s9, %s8232
        $region92: #{improved_gan_forward.1} parent=87 // pred_fallthru
          _
      $region88: #{improved_gan_forward.1} parent=5 // pred_fallthru
        _
    $region6: #{improved_gan_forward.1} parent=1 // loop_footer
      %s23 = sadd.s32 1, %s19
    $region7: #{improved_gan_forward.1} parent=1 // loop_footer_branch
      %18 = sbr.rel target = $region3
    $region8: #{improved_gan_forward.1} parent=1 // loop_exit
      _
    %8234 = vsyncpa [#allocation4], 1
    %s8235 = scalar_lea.sflag [#allocation4], 1
    %8236 = vsyncpa %s8235, 1
    %8237 = vsyncpa [#allocation6], 1
    %8238 = vsyncpa [#allocation9], 1
    %8239 = vsyncpa [#allocation12], 1

</llo_original>
